<compile_context>
chip_gen: v7x
topology: tpu7x:2x2x1
jax: 0.10.0
libtpu: 0.0.40
codegen_flags: <defaults>
</compile_context>

<pallas_src>
import functools

import jax
import jax.numpy as jnp
from jax.experimental import pallas as pl
from jax.experimental.pallas import tpu as pltpu

# ----------------------------------------------------------------------------
# Problem configuration (small shapes consistent with the module).
# ----------------------------------------------------------------------------
LATENT_LEN = 32
N_CHANNELS = 3
BATCH = 2
SPATIAL = 16  # encoder spatial trace: 16 -> 8 -> 4 -> 2 -> 1 -> 1 -> 1 -> 1 -> 1

CHANNELS_E = [N_CHANNELS, 32, 64, 128, 128, 128, 128, 512, 2 * LATENT_LEN]
CHANNELS_D = [LATENT_LEN, 256, 256, 128, 128, 128, 64, 32, N_CHANNELS]
# Decoder upsample schedule mirrors the encoder downsampling for SPATIAL=16:
# spatial trace 1 -> 1 -> 1 -> 1 -> 1 -> 2 -> 4 -> 8 -> 16.
DEC_SCALES = (1, 1, 1, 1, 2, 2, 2, 2)

LANE = 128                       # pad matmul K/N to multiples of this
ROW_PAD = 8                      # pad matmul M to sublane multiple only (not 128)
VMEM_LIMIT = 32 * 1024 * 1024    # explicit scoped-VMEM budget, safe on v5e/v6e/v7x


def _round_up(x, m):
    return ((x + m - 1) // m) * m


# ----------------------------------------------------------------------------
# Pallas kernels
# ----------------------------------------------------------------------------
def _apply_act(x, act):
    if act == "leaky":
        return jnp.where(x > 0, x, 0.2 * x)
    if act == "relu":
        return jnp.maximum(x, 0.0)
    if act == "tanh":
        return jnp.tanh(x)
    return x  # "none"


def _conv_matmul_kernel(a_ref, w_ref, b_ref, o_ref, *, act):
    """Fused (im2col-patches @ weight) + bias + activation, single block."""
    acc = jnp.dot(a_ref[...], w_ref[...], preferred_element_type=jnp.float32)
    acc = _apply_act(acc + b_ref[...], act)
    o_ref[...] = acc.astype(o_ref.dtype)


def _fused_dense_kernel(h_ref, eps_ref,
                        we3, we4, we5, we6, we7, wd0, wd1, wd2, wd3, wd4,
                        be3, be4, be5, be6, be7, bd0, bd1, bd2, bd3, bd4,
                        stats_ref, hdec_ref):
    """Encoder layers 3..7 + reparameterize + decoder layers 0..4, all in VMEM.

    Every 1x1-spatial conv is an exact dense matmul against a pre-packed weight
    (only the kernel taps that see real data are kept).  Padded rows (>= BATCH)
    and zero-padded lanes carry garbage that is either multiplied by zero weight
    rows or sliced off outside the kernel.
    """

    def dense(h, w_ref, b_ref, act):
        acc = jnp.dot(h.astype(jnp.bfloat16), w_ref[...],
                      preferred_element_type=jnp.float32)
        return _apply_act(acc + b_ref[...], act)

    # ---- encoder tail ------------------------------------------------------
    h = h_ref[...]                                   # (8, 512): enc-L2 output, flat
    h = dense(h, we3, be3, "leaky")                  # enc L3 (2x2 -> 1x1)
    h = dense(h, we4, be4, "leaky")                  # enc L4 (1x1)
    h = dense(h, we5, be5, "leaky")                  # enc L5 (1x1)
    h = dense(h, we6, be6, "leaky")                  # enc L6 (1x1)
    z = dense(h, we7, be7, "none")                   # enc L7: [mu | logvar | 0]
    stats_ref[...] = z

    # ---- reparameterize (fused; no lane realignment needed) ----------------
    # eps is pre-placed in lanes [32, 64); the decoder-0 weight has its true rows
    # duplicated into K-rows [32, 64), so (mu + eps*std) @ W needs no lane shuffle.
    lane_idx = jax.lax.broadcasted_iota(jnp.int32, z.shape, dimension=1)
    mu_only = jnp.where(lane_idx < LATENT_LEN, z, 0.0)
    noise = eps_ref[...] * jnp.exp(0.5 * z)          # nonzero only in lanes [32, 64)
    latent = mu_only + noise

    # ---- decoder head ------------------------------------------------------
    h = dense(latent, wd0, bd0, "relu")              # dec L0 (1x1)
    h = dense(h, wd1, bd1, "relu")                   # dec L1 (1x1)
    h = dense(h, wd2, bd2, "relu")                   # dec L2 (1x1)
    h = dense(h, wd3, bd3, "relu")                   # dec L3 (1x1)
    h = dense(h, wd4, bd4, "relu")                   # dec L4 (1x1 -> 2x2), (8, 512)
    hdec_ref[...] = h.astype(hdec_ref.dtype)


# ----------------------------------------------------------------------------
# Wrappers around pallas_call
# ----------------------------------------------------------------------------
def _extract_patches(x, k, stride, pad):
    """x: (B,H,W,C) -> (B,OH,OW,k*k*C) im2col patches (tap-major, channel fastest)."""
    B, H, W, C = x.shape
    xp = jnp.pad(x, ((0, 0), (pad, pad), (pad, pad), (0, 0)))
    OH = (H + 2 * pad - k) // stride + 1
    OW = (W + 2 * pad - k) // stride + 1
    cols = []
    for i in range(k):
        for j in range(k):
            cols.append(
                xp[:, i: i + stride * (OH - 1) + 1: stride,
                      j: j + stride * (OW - 1) + 1: stride, :]
            )
    return jnp.concatenate(cols, axis=-1), OH, OW


def conv2d_spatial(x, wp, bp, cout, stride, act, out_dtype):
    """3x3 conv (pad=1) via XLA im2col + a single-block Pallas matmul kernel.

    x: (B,H,W,Cin); wp: (Kp,Np) pre-padded bf16 weight; bp: (1,Np) f32 bias.
    """
    B, H, W, C = x.shape
    patches, OH, OW = _extract_patches(x, 3, stride, 1)
    M, K = B * OH * OW, 9 * C
    a = patches.reshape(M, K).astype(jnp.bfloat16)
    Kp, Np = wp.shape
    Mp = _round_up(M, ROW_PAD)
    if (Mp, Kp) != (M, K):
        a = jnp.pad(a, ((0, Mp - M), (0, Kp - K)))
    out = pl.pallas_call(
        functools.partial(_conv_matmul_kernel, act=act),
        out_shape=jax.ShapeDtypeStruct((Mp, Np), out_dtype),
        grid=(1,),
        in_specs=[pl.BlockSpec((Mp, Kp), lambda i: (0, 0)),
                  pl.BlockSpec((Kp, Np), lambda i: (0, 0)),
                  pl.BlockSpec((1, Np), lambda i: (0, 0))],
        out_specs=pl.BlockSpec((Mp, Np), lambda i: (0, 0)),
        compiler_params=pltpu.CompilerParams(vmem_limit_bytes=VMEM_LIMIT),
    )(a, wp, bp)
    return out[:M, :cout].reshape(B, OH, OW, cout)


def fused_dense_chain(h2, eps, dense_ws, dense_bs):
    """ONE pallas_call for encoder L3..L7 + reparameterize + decoder L0..L4.

    h2: (B,2,2,128) encoder-L2 output; eps: (B, LATENT_LEN) noise.
    Returns mu (B,32), logvar (B,32), decoder-L4 feature map (B,2,2,128).
    """
    B = h2.shape[0]
    h_flat = h2.reshape(B, 4 * LANE).astype(jnp.bfloat16)       # (B, 2*2*128)
    h_pad = jnp.zeros((ROW_PAD, 4 * LANE), jnp.bfloat16).at[:B].set(h_flat)
    eps_pad = jnp.zeros((ROW_PAD, LANE), jnp.float32)
    eps_pad = eps_pad.at[:B, LATENT_LEN:2 * LATENT_LEN].set(eps)

    operands = (h_pad, eps_pad) + tuple(dense_ws) + tuple(dense_bs)
    stats, hdec = pl.pallas_call(
        _fused_dense_kernel,
        out_shape=(jax.ShapeDtypeStruct((ROW_PAD, LANE), jnp.float32),
                   jax.ShapeDtypeStruct((ROW_PAD, 4 * LANE), jnp.bfloat16)),
        grid=(1,),
        in_specs=[pl.BlockSpec(op.shape, lambda i: (0, 0)) for op in operands],
        out_specs=(pl.BlockSpec((ROW_PAD, LANE), lambda i: (0, 0)),
                   pl.BlockSpec((ROW_PAD, 4 * LANE), lambda i: (0, 0))),
        compiler_params=pltpu.CompilerParams(vmem_limit_bytes=VMEM_LIMIT),
    )(*operands)

    mu = stats[:B, :LATENT_LEN]
    logvar = stats[:B, LATENT_LEN:2 * LATENT_LEN]
    hd4 = hdec[:B].reshape(B, 2, 2, LANE)
    return mu, logvar, hd4


# ----------------------------------------------------------------------------
# VAE forward (NCHW external interface)
# ----------------------------------------------------------------------------
def vae_forward(params, x_nchw, eps):
    spat_e, dense_ws, dense_bs, spat_d = params
    h = jnp.transpose(x_nchw, (0, 2, 3, 1)).astype(jnp.float32)     # NCHW -> NHWC

    # encoder layers 0..2: stride-2 3x3 conv + LeakyReLU(0.2)
    for (wp, bp), cout in zip(spat_e, CHANNELS_E[1:4]):
        h = conv2d_spatial(h, wp, bp, cout, stride=2, act="leaky",
                           out_dtype=jnp.bfloat16)

    # encoder L3..L7 + reparameterize + decoder L0..L4, fused in one kernel
    mu, logvar, h = fused_dense_chain(h, eps, dense_ws, dense_bs)

    # decoder layers 5..7: nearest x2 upsample + 3x3 conv (+ReLU / final Tanh)
    n = len(spat_d)
    for idx, ((wp, bp), cout) in enumerate(zip(spat_d, CHANNELS_D[6:9])):
        h = jnp.repeat(jnp.repeat(h, 2, axis=1), 2, axis=2)          # nearest x2
        last = idx == n - 1
        h = conv2d_spatial(h, wp, bp, cout, stride=1,
                           act="tanh" if last else "relu",
                           out_dtype=jnp.float32 if last else jnp.bfloat16)

    x_hat = jnp.transpose(h, (0, 3, 1, 2))                           # NHWC -> NCHW
    return x_hat, mu, logvar


# ----------------------------------------------------------------------------
# Deterministic parameter init (raw 3x3 conv weights, PyTorch-like layout HWIO)
# ----------------------------------------------------------------------------
def init_conv(key, k, cin, cout):
    wkey, bkey = jax.random.split(key)
    scale = 1.0 / jnp.sqrt(float(k * k * cin))
    w = jax.random.normal(wkey, (k, k, cin, cout), jnp.float32) * scale
    b = jax.random.normal(bkey, (cout,), jnp.float32) * 0.01
    return w, b


def init_stack(key, channels):
    params = []
    for i in range(len(channels) - 1):
        key, sub = jax.random.split(key)
        params.append(init_conv(sub, 3, channels[i], channels[i + 1]))
    return params


def init_raw_params(key):
    k_enc, k_dec = jax.random.split(key)
    return init_stack(k_enc, CHANNELS_E), init_stack(k_dec, CHANNELS_D)


# ----------------------------------------------------------------------------
# One-time weight packing: padded bf16 matmul layout (hoisted out of the forward)
# ----------------------------------------------------------------------------
def _pack_spatial(w, b):
    kh, kw, cin, cout = w.shape
    K = kh * kw * cin
    Kp, Np = _round_up(K, LANE), _round_up(cout, LANE)
    wp = jnp.zeros((Kp, Np), jnp.bfloat16)
    wp = wp.at[:K, :cout].set(w.reshape(K, cout).astype(jnp.bfloat16))
    bp = jnp.zeros((1, Np), jnp.float32).at[0, :cout].set(b)
    return wp, bp


def _pack_dense(mat, b, dup_rows=None):
    cin, cout = mat.shape
    Kp, Np = _round_up(cin, LANE), _round_up(cout, LANE)
    wp = jnp.zeros((Kp, Np), jnp.bfloat16)
    wp = wp.at[:cin, :cout].set(mat.astype(jnp.bfloat16))
    if dup_rows is not None:
        wp = wp.at[dup_rows:dup_rows + cin, :cout].set(mat.astype(jnp.bfloat16))
    bp = jnp.zeros((1, Np), jnp.float32).at[0, :cout].set(b)
    return wp, bp


def pack_params(enc_raw, dec_raw):
    # spatial encoder layers 0..2 (stride-2 im2col matmul)
    spat_e = tuple(_pack_spatial(w, b) for (w, b) in enc_raw[:3])

    dense_ws, dense_bs = [], []

    # encoder L3: 2x2 -> 1x1 stride-2 pad-1 conv; only taps (1..2, 1..2) see data.
    w3, b3 = enc_raw[3]
    we3 = jnp.concatenate(
        [w3[1 + dh, 1 + dw] for dh in range(2) for dw in range(2)], axis=0)
    wp, bp = _pack_dense(we3, b3)
    dense_ws.append(wp); dense_bs.append(bp)

    # encoder L4..L7: spatial 1x1 -> only the center tap contributes (K = Cin).
    for (w, b) in enc_raw[4:8]:
        wp, bp = _pack_dense(w[1, 1], b)
        dense_ws.append(wp); dense_bs.append(bp)

    # decoder L0: center tap; duplicate true rows into K-rows [32, 64) so the
    # in-kernel reparam (eps pre-placed in lanes [32, 64)) needs no lane shuffle.
    w, b = dec_raw[0]
    wp, bp = _pack_dense(w[1, 1], b, dup_rows=LATENT_LEN)
    dense_ws.append(wp); dense_bs.append(bp)

    # decoder L1..L3: center tap only.
    for (w, b) in dec_raw[1:4]:
        wp, bp = _pack_dense(w[1, 1], b)
        dense_ws.append(wp); dense_bs.append(bp)

    # decoder L4: nearest x2 of a 1x1 map + 3x3 pad-1 conv == dense matmul against
    # per-output-position tap sums; output columns ordered (oh, ow, cout).
    w, b = dec_raw[4]
    taps = {0: (1, 2), 1: (0, 1)}
    blocks = [sum(w[di, dj] for di in taps[oh] for dj in taps[ow])
              for oh in range(2) for ow in range(2)]
    wd4 = jnp.concatenate(blocks, axis=1)
    bd4 = jnp.tile(b, 4)
    wp, bp = _pack_dense(wd4, bd4)
    dense_ws.append(wp); dense_bs.append(bp)

    # spatial decoder layers 5..7 (nearest x2 + stride-1 im2col matmul)
    spat_d = tuple(_pack_spatial(w, b) for (w, b) in dec_raw[5:8])

    return spat_e, tuple(dense_ws), tuple(dense_bs), spat_d


# ----------------------------------------------------------------------------
# Plain-JAX f32 reference of the same (assumed) architecture, for validation
# ----------------------------------------------------------------------------
def ref_forward(enc_raw, dec_raw, x_nchw, eps):
    hp = jax.lax.Precision.HIGHEST
    h = jnp.transpose(x_nchw, (0, 2, 3, 1))
    for idx, (w, b) in enumerate(enc_raw):
        h = jax.lax.conv_general_dilated(
            h, w, window_strides=(2, 2), padding=((1, 1), (1, 1)),
            dimension_numbers=("NHWC", "HWIO", "NHWC"), precision=hp) + b
        if idx < len(enc_raw) - 1:
            h = jnp.where(h > 0, h, 0.2 * h)
    z = h.reshape(h.shape[0], -1)
    mu, logvar = z[:, :LATENT_LEN], z[:, LATENT_LEN:]
    zl = eps * jnp.exp(0.5 * logvar) + mu
    h = zl.reshape(-1, 1, 1, LATENT_LEN)
    for idx, (w, b) in enumerate(dec_raw):
        s = DEC_SCALES[idx]
        if s > 1:
            h = jnp.repeat(jnp.repeat(h, s, axis=1), s, axis=2)
        h = jax.lax.conv_general_dilated(
            h, w, window_strides=(1, 1), padding=((1, 1), (1, 1)),
            dimension_numbers=("NHWC", "HWIO", "NHWC"), precision=hp) + b
        h = jnp.tanh(h) if idx == len(dec_raw) - 1 else jnp.maximum(h, 0.0)
    return jnp.transpose(h, (0, 3, 1, 2)), mu, logvar


def _rel_err(a, b):
    a = a.astype(jnp.float32)
    b = b.astype(jnp.float32)
    return float(jnp.linalg.norm(a - b) / (jnp.linalg.norm(b) + 1e-6))


# ----------------------------------------------------------------------------
if __name__ == "__main__":
    root = jax.random.PRNGKey(0)
    k_params, k_x, k_eps = jax.random.split(root, 3)

    enc_raw, dec_raw = init_raw_params(k_params)
    params = pack_params(enc_raw, dec_raw)

    x = jax.random.normal(k_x, (BATCH, N_CHANNELS, SPATIAL, SPATIAL), jnp.float32)
    # TODO(synk): torch.randn_like(std) RNG stream replaced by a fixed jax.random key.
    eps = jax.random.normal(k_eps, (BATCH, LATENT_LEN), jnp.float32)

    fwd = jax.jit(vae_forward)
    x_hat, mu, logvar = fwd(params, x, eps)
    jax.block_until_ready((x_hat, mu, logvar))

    assert x_hat.shape == (BATCH, N_CHANNELS, SPATIAL, SPATIAL), x_hat.shape
    assert mu.shape == (BATCH, LATENT_LEN), mu.shape
    assert logvar.shape == (BATCH, LATENT_LEN), logvar.shape
    assert bool(jnp.all(jnp.isfinite(x_hat)))
    assert bool(jnp.all(jnp.isfinite(mu))) and bool(jnp.all(jnp.isfinite(logvar)))

    # Validate the fused / tap-packed Pallas path against a plain-JAX f32 reference
    # of the same network (loose tolerance: matmuls run in bf16).
    x_ref, mu_ref, lv_ref = jax.jit(ref_forward)(enc_raw, dec_raw, x, eps)
    jax.block_until_ready((x_ref, mu_ref, lv_ref))
    assert _rel_err(mu, mu_ref) < 0.15, ("mu mismatch", _rel_err(mu, mu_ref))
    assert _rel_err(logvar, lv_ref) < 0.15, ("logvar mismatch", _rel_err(logvar, lv_ref))
    assert _rel_err(x_hat, x_ref) < 0.15, ("x_hat mismatch", _rel_err(x_hat, x_ref))

    print("KERNEL_OK")
</pallas_src>

<mosaic_0001>
module attributes {stable_mosaic.version = 11 : i64} {
  func.func @_conv_matmul_kernel(%arg0: i32, %arg1: memref<128x128xbf16, #tpu.memory_space<vmem>>, %arg2: memref<128x128xbf16, #tpu.memory_space<vmem>>, %arg3: memref<1x128xf32, #tpu.memory_space<vmem>>, %arg4: memref<128x128xbf16, #tpu.memory_space<vmem>>) attributes {dimension_semantics = [#tpu.dimension_semantics<arbitrary>], iteration_bounds = array<i64: 1>, scalar_prefetch = 0 : i64, scratch_operands = 0 : i64, tpu.core_type = #tpu.core_type<tc>, window_params = [{pipeline_mode = #tpu.pipeline_mode<synchronous>, transform_indices = @transform_0, window_bounds = array<i64: 128, 128>}, {pipeline_mode = #tpu.pipeline_mode<synchronous>, transform_indices = @transform_1, window_bounds = array<i64: 128, 128>}, {pipeline_mode = #tpu.pipeline_mode<synchronous>, transform_indices = @transform_2, window_bounds = array<i64: 1, 128>}, {pipeline_mode = #tpu.pipeline_mode<synchronous>, transform_indices = @transform_3, window_bounds = array<i64: 128, 128>}]} {
    %c0 = arith.constant 0 : index
    %c0_0 = arith.constant 0 : index
    %0 = vector.load %arg1[%c0, %c0_0] : memref<128x128xbf16, #tpu.memory_space<vmem>>, vector<128x128xbf16>
    %c0_1 = arith.constant 0 : index
    %c0_2 = arith.constant 0 : index
    %1 = vector.load %arg2[%c0_1, %c0_2] : memref<128x128xbf16, #tpu.memory_space<vmem>>, vector<128x128xbf16>
    %cst = arith.constant dense<0.000000e+00> : vector<128x128xf32>
    %2 = tpu.matmul %0, %1, %cst {dimension_numbers = #tpu.dot_dimension_numbers<[1], [0], [0], [1], [0, 0, 1, 1], [], []>} : vector<128x128xbf16>, vector<128x128xbf16>, vector<128x128xf32> -> vector<128x128xf32>
    %c0_3 = arith.constant 0 : index
    %c0_4 = arith.constant 0 : index
    %3 = vector.load %arg3[%c0_3, %c0_4] : memref<1x128xf32, #tpu.memory_space<vmem>>, vector<1x128xf32>
    %4 = vector.broadcast %3 : vector<1x128xf32> to vector<128x128xf32>
    %5 = arith.addf %2, %4 : vector<128x128xf32>
    %cst_5 = arith.constant 0.000000e+00 : f32
    %6 = vector.broadcast %cst_5 : f32 to vector<128x128xf32>
    %7 = arith.cmpf ogt, %5, %6 : vector<128x128xf32>
    %cst_6 = arith.constant 2.000000e-01 : f32
    %8 = vector.broadcast %cst_6 : f32 to vector<128x128xf32>
    %9 = arith.mulf %8, %5 : vector<128x128xf32>
    %10 = arith.select %7, %5, %9 : vector<128x128xi1>, vector<128x128xf32>
    %11 = arith.truncf %10 : vector<128x128xf32> to vector<128x128xbf16>
    %c0_7 = arith.constant 0 : index
    %c0_8 = arith.constant 0 : index
    %12 = vector.load %arg4[%c0_7, %c0_8] : memref<128x128xbf16, #tpu.memory_space<vmem>>, vector<128x128xbf16>
    tpu.vector_store %arg4[%c0_7, %c0_8], %11 {strides = array<i32>} : memref<128x128xbf16, #tpu.memory_space<vmem>>, vector<128x128xbf16>,
    return
  }
  func.func @transform_0(%arg0: i32) -> (i32, i32) {
    %c0_i32 = arith.constant 0 : i32
    %c0_i32_0 = arith.constant 0 : i32
    %c0_i32_1 = arith.constant 0 : i32
    return %c0_i32, %c0_i32_0 : i32, i32
  }
  func.func @transform_1(%arg0: i32) -> (i32, i32) {
    %c0_i32 = arith.constant 0 : i32
    %c0_i32_0 = arith.constant 0 : i32
    %c0_i32_1 = arith.constant 0 : i32
    return %c0_i32, %c0_i32_0 : i32, i32
  }
  func.func @transform_2(%arg0: i32) -> (i32, i32) {
    %c0_i32 = arith.constant 0 : i32
    %c0_i32_0 = arith.constant 0 : i32
    %c0_i32_1 = arith.constant 0 : i32
    return %c0_i32, %c0_i32_0 : i32, i32
  }
  func.func @transform_3(%arg0: i32) -> (i32, i32) {
    %c0_i32 = arith.constant 0 : i32
    %c0_i32_0 = arith.constant 0 : i32
    %c0_i32_1 = arith.constant 0 : i32
    return %c0_i32, %c0_i32_0 : i32, i32
  }
}

module attributes {stable_mosaic.version = 11 : i64} {
  func.func @_conv_matmul_kernel(%arg0: i32, %arg1: memref<32x384xbf16, #tpu.memory_space<vmem>>, %arg2: memref<384x128xbf16, #tpu.memory_space<vmem>>, %arg3: memref<1x128xf32, #tpu.memory_space<vmem>>, %arg4: memref<32x128xbf16, #tpu.memory_space<vmem>>) attributes {dimension_semantics = [#tpu.dimension_semantics<arbitrary>], iteration_bounds = array<i64: 1>, scalar_prefetch = 0 : i64, scratch_operands = 0 : i64, tpu.core_type = #tpu.core_type<tc>, window_params = [{pipeline_mode = #tpu.pipeline_mode<synchronous>, transform_indices = @transform_0, window_bounds = array<i64: 32, 384>}, {pipeline_mode = #tpu.pipeline_mode<synchronous>, transform_indices = @transform_1, window_bounds = array<i64: 384, 128>}, {pipeline_mode = #tpu.pipeline_mode<synchronous>, transform_indices = @transform_2, window_bounds = array<i64: 1, 128>}, {pipeline_mode = #tpu.pipeline_mode<synchronous>, transform_indices = @transform_3, window_bounds = array<i64: 32, 128>}]} {
    %c0 = arith.constant 0 : index
    %c0_0 = arith.constant 0 : index
    %0 = vector.load %arg1[%c0, %c0_0] : memref<32x384xbf16, #tpu.memory_space<vmem>>, vector<32x384xbf16>
    %c0_1 = arith.constant 0 : index
    %c0_2 = arith.constant 0 : index
    %1 = vector.load %arg2[%c0_1, %c0_2] : memref<384x128xbf16, #tpu.memory_space<vmem>>, vector<384x128xbf16>
    %cst = arith.constant dense<0.000000e+00> : vector<32x128xf32>
    %2 = tpu.matmul %0, %1, %cst {dimension_numbers = #tpu.dot_dimension_numbers<[1], [0], [0], [1], [0, 0, 1, 1], [], []>} : vector<32x384xbf16>, vector<384x128xbf16>, vector<32x128xf32> -> vector<32x128xf32>
    %c0_3 = arith.constant 0 : index
    %c0_4 = arith.constant 0 : index
    %3 = vector.load %arg3[%c0_3, %c0_4] : memref<1x128xf32, #tpu.memory_space<vmem>>, vector<1x128xf32>
    %4 = vector.broadcast %3 : vector<1x128xf32> to vector<32x128xf32>
    %5 = arith.addf %2, %4 : vector<32x128xf32>
    %cst_5 = arith.constant 0.000000e+00 : f32
    %6 = vector.broadcast %cst_5 : f32 to vector<32x128xf32>
    %7 = arith.cmpf ogt, %5, %6 : vector<32x128xf32>
    %cst_6 = arith.constant 2.000000e-01 : f32
    %8 = vector.broadcast %cst_6 : f32 to vector<32x128xf32>
    %9 = arith.mulf %8, %5 : vector<32x128xf32>
    %10 = arith.select %7, %5, %9 : vector<32x128xi1>, vector<32x128xf32>
    %11 = arith.truncf %10 : vector<32x128xf32> to vector<32x128xbf16>
    %c0_7 = arith.constant 0 : index
    %c0_8 = arith.constant 0 : index
    %12 = vector.load %arg4[%c0_7, %c0_8] : memref<32x128xbf16, #tpu.memory_space<vmem>>, vector<32x128xbf16>
    tpu.vector_store %arg4[%c0_7, %c0_8], %11 {strides = array<i32>} : memref<32x128xbf16, #tpu.memory_space<vmem>>, vector<32x128xbf16>,
    return
  }
  func.func @transform_0(%arg0: i32) -> (i32, i32) {
    %c0_i32 = arith.constant 0 : i32
    %c0_i32_0 = arith.constant 0 : i32
    %c0_i32_1 = arith.constant 0 : i32
    return %c0_i32, %c0_i32_0 : i32, i32
  }
  func.func @transform_1(%arg0: i32) -> (i32, i32) {
    %c0_i32 = arith.constant 0 : i32
    %c0_i32_0 = arith.constant 0 : i32
    %c0_i32_1 = arith.constant 0 : i32
    return %c0_i32, %c0_i32_0 : i32, i32
  }
  func.func @transform_2(%arg0: i32) -> (i32, i32) {
    %c0_i32 = arith.constant 0 : i32
    %c0_i32_0 = arith.constant 0 : i32
    %c0_i32_1 = arith.constant 0 : i32
    return %c0_i32, %c0_i32_0 : i32, i32
  }
  func.func @transform_3(%arg0: i32) -> (i32, i32) {
    %c0_i32 = arith.constant 0 : i32
    %c0_i32_0 = arith.constant 0 : i32
    %c0_i32_1 = arith.constant 0 : i32
    return %c0_i32, %c0_i32_0 : i32, i32
  }
}

module attributes {stable_mosaic.version = 11 : i64} {
  func.func @_conv_matmul_kernel(%arg0: i32, %arg1: memref<8x640xbf16, #tpu.memory_space<vmem>>, %arg2: memref<640x128xbf16, #tpu.memory_space<vmem>>, %arg3: memref<1x128xf32, #tpu.memory_space<vmem>>, %arg4: memref<8x128xbf16, #tpu.memory_space<vmem>>) attributes {dimension_semantics = [#tpu.dimension_semantics<arbitrary>], iteration_bounds = array<i64: 1>, scalar_prefetch = 0 : i64, scratch_operands = 0 : i64, tpu.core_type = #tpu.core_type<tc>, window_params = [{pipeline_mode = #tpu.pipeline_mode<synchronous>, transform_indices = @transform_0, window_bounds = array<i64: 8, 640>}, {pipeline_mode = #tpu.pipeline_mode<synchronous>, transform_indices = @transform_1, window_bounds = array<i64: 640, 128>}, {pipeline_mode = #tpu.pipeline_mode<synchronous>, transform_indices = @transform_2, window_bounds = array<i64: 1, 128>}, {pipeline_mode = #tpu.pipeline_mode<synchronous>, transform_indices = @transform_3, window_bounds = array<i64: 8, 128>}]} {
    %c0 = arith.constant 0 : index
    %c0_0 = arith.constant 0 : index
    %0 = vector.load %arg1[%c0, %c0_0] : memref<8x640xbf16, #tpu.memory_space<vmem>>, vector<8x640xbf16>
    %c0_1 = arith.constant 0 : index
    %c0_2 = arith.constant 0 : index
    %1 = vector.load %arg2[%c0_1, %c0_2] : memref<640x128xbf16, #tpu.memory_space<vmem>>, vector<640x128xbf16>
    %cst = arith.constant dense<0.000000e+00> : vector<8x128xf32>
    %2 = tpu.matmul %0, %1, %cst {dimension_numbers = #tpu.dot_dimension_numbers<[1], [0], [0], [1], [0, 0, 1, 1], [], []>} : vector<8x640xbf16>, vector<640x128xbf16>, vector<8x128xf32> -> vector<8x128xf32>
    %c0_3 = arith.constant 0 : index
    %c0_4 = arith.constant 0 : index
    %3 = vector.load %arg3[%c0_3, %c0_4] : memref<1x128xf32, #tpu.memory_space<vmem>>, vector<1x128xf32>
    %4 = vector.broadcast %3 : vector<1x128xf32> to vector<8x128xf32>
    %5 = arith.addf %2, %4 : vector<8x128xf32>
    %cst_5 = arith.constant 0.000000e+00 : f32
    %6 = vector.broadcast %cst_5 : f32 to vector<8x128xf32>
    %7 = arith.cmpf ogt, %5, %6 : vector<8x128xf32>
    %cst_6 = arith.constant 2.000000e-01 : f32
    %8 = vector.broadcast %cst_6 : f32 to vector<8x128xf32>
    %9 = arith.mulf %8, %5 : vector<8x128xf32>
    %10 = arith.select %7, %5, %9 : vector<8x128xi1>, vector<8x128xf32>
    %11 = arith.truncf %10 : vector<8x128xf32> to vector<8x128xbf16>
    %c0_7 = arith.constant 0 : index
    %c0_8 = arith.constant 0 : index
    %12 = vector.load %arg4[%c0_7, %c0_8] : memref<8x128xbf16, #tpu.memory_space<vmem>>, vector<8x128xbf16>
    tpu.vector_store %arg4[%c0_7, %c0_8], %11 {strides = array<i32>} : memref<8x128xbf16, #tpu.memory_space<vmem>>, vector<8x128xbf16>,
    return
  }
  func.func @transform_0(%arg0: i32) -> (i32, i32) {
    %c0_i32 = arith.constant 0 : i32
    %c0_i32_0 = arith.constant 0 : i32
    %c0_i32_1 = arith.constant 0 : i32
    return %c0_i32, %c0_i32_0 : i32, i32
  }
  func.func @transform_1(%arg0: i32) -> (i32, i32) {
    %c0_i32 = arith.constant 0 : i32
    %c0_i32_0 = arith.constant 0 : i32
    %c0_i32_1 = arith.constant 0 : i32
    return %c0_i32, %c0_i32_0 : i32, i32
  }
  func.func @transform_2(%arg0: i32) -> (i32, i32) {
    %c0_i32 = arith.constant 0 : i32
    %c0_i32_0 = arith.constant 0 : i32
    %c0_i32_1 = arith.constant 0 : i32
    return %c0_i32, %c0_i32_0 : i32, i32
  }
  func.func @transform_3(%arg0: i32) -> (i32, i32) {
    %c0_i32 = arith.constant 0 : i32
    %c0_i32_0 = arith.constant 0 : i32
    %c0_i32_1 = arith.constant 0 : i32
    return %c0_i32, %c0_i32_0 : i32, i32
  }
}

module attributes {stable_mosaic.version = 11 : i64} {
  func.func @_fused_dense_kernel(%arg0: i32, %arg1: memref<8x512xbf16, #tpu.memory_space<vmem>>, %arg2: memref<8x128xf32, #tpu.memory_space<vmem>>, %arg3: memref<512x128xbf16, #tpu.memory_space<vmem>>, %arg4: memref<128x128xbf16, #tpu.memory_space<vmem>>, %arg5: memref<128x128xbf16, #tpu.memory_space<vmem>>, %arg6: memref<128x512xbf16, #tpu.memory_space<vmem>>, %arg7: memref<512x128xbf16, #tpu.memory_space<vmem>>, %arg8: memref<128x256xbf16, #tpu.memory_space<vmem>>, %arg9: memref<256x256xbf16, #tpu.memory_space<vmem>>, %arg10: memref<256x128xbf16, #tpu.memory_space<vmem>>, %arg11: memref<128x128xbf16, #tpu.memory_space<vmem>>, %arg12: memref<128x512xbf16, #tpu.memory_space<vmem>>, %arg13: memref<1x128xf32, #tpu.memory_space<vmem>>, %arg14: memref<1x128xf32, #tpu.memory_space<vmem>>, %arg15: memref<1x128xf32, #tpu.memory_space<vmem>>, %arg16: memref<1x512xf32, #tpu.memory_space<vmem>>, %arg17: memref<1x128xf32, #tpu.memory_space<vmem>>, %arg18: memref<1x256xf32, #tpu.memory_space<vmem>>, %arg19: memref<1x256xf32, #tpu.memory_space<vmem>>, %arg20: memref<1x128xf32, #tpu.memory_space<vmem>>, %arg21: memref<1x128xf32, #tpu.memory_space<vmem>>, %arg22: memref<1x512xf32, #tpu.memory_space<vmem>>, %arg23: memref<8x128xf32, #tpu.memory_space<vmem>>, %arg24: memref<8x512xbf16, #tpu.memory_space<vmem>>) attributes {dimension_semantics = [#tpu.dimension_semantics<arbitrary>], iteration_bounds = array<i64: 1>, scalar_prefetch = 0 : i64, scratch_operands = 0 : i64, tpu.core_type = #tpu.core_type<tc>, window_params = [{pipeline_mode = #tpu.pipeline_mode<synchronous>, transform_indices = @transform_0, window_bounds = array<i64: 8, 512>}, {pipeline_mode = #tpu.pipeline_mode<synchronous>, transform_indices = @transform_1, window_bounds = array<i64: 8, 128>}, {pipeline_mode = #tpu.pipeline_mode<synchronous>, transform_indices = @transform_2, window_bounds = array<i64: 512, 128>}, {pipeline_mode = #tpu.pipeline_mode<synchronous>, transform_indices = @transform_3, window_bounds = array<i64: 128, 128>}, {pipeline_mode = #tpu.pipeline_mode<synchronous>, transform_indices = @transform_4, window_bounds = array<i64: 128, 128>}, {pipeline_mode = #tpu.pipeline_mode<synchronous>, transform_indices = @transform_5, window_bounds = array<i64: 128, 512>}, {pipeline_mode = #tpu.pipeline_mode<synchronous>, transform_indices = @transform_6, window_bounds = array<i64: 512, 128>}, {pipeline_mode = #tpu.pipeline_mode<synchronous>, transform_indices = @transform_7, window_bounds = array<i64: 128, 256>}, {pipeline_mode = #tpu.pipeline_mode<synchronous>, transform_indices = @transform_8, window_bounds = array<i64: 256, 256>}, {pipeline_mode = #tpu.pipeline_mode<synchronous>, transform_indices = @transform_9, window_bounds = array<i64: 256, 128>}, {pipeline_mode = #tpu.pipeline_mode<synchronous>, transform_indices = @transform_10, window_bounds = array<i64: 128, 128>}, {pipeline_mode = #tpu.pipeline_mode<synchronous>, transform_indices = @transform_11, window_bounds = array<i64: 128, 512>}, {pipeline_mode = #tpu.pipeline_mode<synchronous>, transform_indices = @transform_12, window_bounds = array<i64: 1, 128>}, {pipeline_mode = #tpu.pipeline_mode<synchronous>, transform_indices = @transform_13, window_bounds = array<i64: 1, 128>}, {pipeline_mode = #tpu.pipeline_mode<synchronous>, transform_indices = @transform_14, window_bounds = array<i64: 1, 128>}, {pipeline_mode = #tpu.pipeline_mode<synchronous>, transform_indices = @transform_15, window_bounds = array<i64: 1, 512>}, {pipeline_mode = #tpu.pipeline_mode<synchronous>, transform_indices = @transform_16, window_bounds = array<i64: 1, 128>}, {pipeline_mode = #tpu.pipeline_mode<synchronous>, transform_indices = @transform_17, window_bounds = array<i64: 1, 256>}, {pipeline_mode = #tpu.pipeline_mode<synchronous>, transform_indices = @transform_18, window_bounds = array<i64: 1, 256>}, {pipeline_mode = #tpu.pipeline_mode<synchronous>, transform_indices = @transform_19, window_bounds = array<i64: 1, 128>}, {pipeline_mode = #tpu.pipeline_mode<synchronous>, transform_indices = @transform_20, window_bounds = array<i64: 1, 128>}, {pipeline_mode = #tpu.pipeline_mode<synchronous>, transform_indices = @transform_21, window_bounds = array<i64: 1, 512>}, {pipeline_mode = #tpu.pipeline_mode<synchronous>, transform_indices = @transform_22, window_bounds = array<i64: 8, 128>}, {pipeline_mode = #tpu.pipeline_mode<synchronous>, transform_indices = @transform_23, window_bounds = array<i64: 8, 512>}]} {
    %c0 = arith.constant 0 : index
    %c0_0 = arith.constant 0 : index
    %0 = vector.load %arg1[%c0, %c0_0] : memref<8x512xbf16, #tpu.memory_space<vmem>>, vector<8x512xbf16>
    %c0_1 = arith.constant 0 : index
    %c0_2 = arith.constant 0 : index
    %1 = vector.load %arg3[%c0_1, %c0_2] : memref<512x128xbf16, #tpu.memory_space<vmem>>, vector<512x128xbf16>
    %cst = arith.constant dense<0.000000e+00> : vector<8x128xf32>
    %2 = tpu.matmul %0, %1, %cst {dimension_numbers = #tpu.dot_dimension_numbers<[1], [0], [0], [1], [0, 0, 1, 1], [], []>} : vector<8x512xbf16>, vector<512x128xbf16>, vector<8x128xf32> -> vector<8x128xf32>
    %c0_3 = arith.constant 0 : index
    %c0_4 = arith.constant 0 : index
    %3 = vector.load %arg13[%c0_3, %c0_4] : memref<1x128xf32, #tpu.memory_space<vmem>>, vector<1x128xf32>
    %4 = vector.broadcast %3 : vector<1x128xf32> to vector<8x128xf32>
    %5 = arith.addf %2, %4 : vector<8x128xf32>
    %cst_5 = arith.constant 0.000000e+00 : f32
    %6 = vector.broadcast %cst_5 : f32 to vector<8x128xf32>
    %7 = arith.cmpf ogt, %5, %6 : vector<8x128xf32>
    %cst_6 = arith.constant 2.000000e-01 : f32
    %8 = vector.broadcast %cst_6 : f32 to vector<8x128xf32>
    %9 = arith.mulf %8, %5 : vector<8x128xf32>
    %10 = arith.select %7, %5, %9 : vector<8x128xi1>, vector<8x128xf32>
    %11 = arith.truncf %10 : vector<8x128xf32> to vector<8x128xbf16>
    %c0_7 = arith.constant 0 : index
    %c0_8 = arith.constant 0 : index
    %12 = vector.load %arg4[%c0_7, %c0_8] : memref<128x128xbf16, #tpu.memory_space<vmem>>, vector<128x128xbf16>
    %cst_9 = arith.constant dense<0.000000e+00> : vector<8x128xf32>
    %13 = tpu.matmul %11, %12, %cst_9 {dimension_numbers = #tpu.dot_dimension_numbers<[1], [0], [0], [1], [0, 0, 1, 1], [], []>} : vector<8x128xbf16>, vector<128x128xbf16>, vector<8x128xf32> -> vector<8x128xf32>
    %c0_10 = arith.constant 0 : index
    %c0_11 = arith.constant 0 : index
    %14 = vector.load %arg14[%c0_10, %c0_11] : memref<1x128xf32, #tpu.memory_space<vmem>>, vector<1x128xf32>
    %15 = vector.broadcast %14 : vector<1x128xf32> to vector<8x128xf32>
    %16 = arith.addf %13, %15 : vector<8x128xf32>
    %cst_12 = arith.constant 0.000000e+00 : f32
    %17 = vector.broadcast %cst_12 : f32 to vector<8x128xf32>
    %18 = arith.cmpf ogt, %16, %17 : vector<8x128xf32>
    %cst_13 = arith.constant 2.000000e-01 : f32
    %19 = vector.broadcast %cst_13 : f32 to vector<8x128xf32>
    %20 = arith.mulf %19, %16 : vector<8x128xf32>
    %21 = arith.select %18, %16, %20 : vector<8x128xi1>, vector<8x128xf32>
    %22 = arith.truncf %21 : vector<8x128xf32> to vector<8x128xbf16>
    %c0_14 = arith.constant 0 : index
    %c0_15 = arith.constant 0 : index
    %23 = vector.load %arg5[%c0_14, %c0_15] : memref<128x128xbf16, #tpu.memory_space<vmem>>, vector<128x128xbf16>
    %cst_16 = arith.constant dense<0.000000e+00> : vector<8x128xf32>
    %24 = tpu.matmul %22, %23, %cst_16 {dimension_numbers = #tpu.dot_dimension_numbers<[1], [0], [0], [1], [0, 0, 1, 1], [], []>} : vector<8x128xbf16>, vector<128x128xbf16>, vector<8x128xf32> -> vector<8x128xf32>
    %c0_17 = arith.constant 0 : index
    %c0_18 = arith.constant 0 : index
    %25 = vector.load %arg15[%c0_17, %c0_18] : memref<1x128xf32, #tpu.memory_space<vmem>>, vector<1x128xf32>
    %26 = vector.broadcast %25 : vector<1x128xf32> to vector<8x128xf32>
    %27 = arith.addf %24, %26 : vector<8x128xf32>
    %cst_19 = arith.constant 0.000000e+00 : f32
    %28 = vector.broadcast %cst_19 : f32 to vector<8x128xf32>
    %29 = arith.cmpf ogt, %27, %28 : vector<8x128xf32>
    %cst_20 = arith.constant 2.000000e-01 : f32
    %30 = vector.broadcast %cst_20 : f32 to vector<8x128xf32>
    %31 = arith.mulf %30, %27 : vector<8x128xf32>
    %32 = arith.select %29, %27, %31 : vector<8x128xi1>, vector<8x128xf32>
    %33 = arith.truncf %32 : vector<8x128xf32> to vector<8x128xbf16>
    %c0_21 = arith.constant 0 : index
    %c0_22 = arith.constant 0 : index
    %34 = vector.load %arg6[%c0_21, %c0_22] : memref<128x512xbf16, #tpu.memory_space<vmem>>, vector<128x512xbf16>
    %cst_23 = arith.constant dense<0.000000e+00> : vector<8x512xf32>
    %35 = tpu.matmul %33, %34, %cst_23 {dimension_numbers = #tpu.dot_dimension_numbers<[1], [0], [0], [1], [0, 0, 1, 1], [], []>} : vector<8x128xbf16>, vector<128x512xbf16>, vector<8x512xf32> -> vector<8x512xf32>
    %c0_24 = arith.constant 0 : index
    %c0_25 = arith.constant 0 : index
    %36 = vector.load %arg16[%c0_24, %c0_25] : memref<1x512xf32, #tpu.memory_space<vmem>>, vector<1x512xf32>
    %37 = vector.broadcast %36 : vector<1x512xf32> to vector<8x512xf32>
    %38 = arith.addf %35, %37 : vector<8x512xf32>
    %cst_26 = arith.constant 0.000000e+00 : f32
    %39 = vector.broadcast %cst_26 : f32 to vector<8x512xf32>
    %40 = arith.cmpf ogt, %38, %39 : vector<8x512xf32>
    %cst_27 = arith.constant 2.000000e-01 : f32
    %41 = vector.broadcast %cst_27 : f32 to vector<8x512xf32>
    %42 = arith.mulf %41, %38 : vector<8x512xf32>
    %43 = arith.select %40, %38, %42 : vector<8x512xi1>, vector<8x512xf32>
    %44 = arith.truncf %43 : vector<8x512xf32> to vector<8x512xbf16>
    %c0_28 = arith.constant 0 : index
    %c0_29 = arith.constant 0 : index
    %45 = vector.load %arg7[%c0_28, %c0_29] : memref<512x128xbf16, #tpu.memory_space<vmem>>, vector<512x128xbf16>
    %cst_30 = arith.constant dense<0.000000e+00> : vector<8x128xf32>
    %46 = tpu.matmul %44, %45, %cst_30 {dimension_numbers = #tpu.dot_dimension_numbers<[1], [0], [0], [1], [0, 0, 1, 1], [], []>} : vector<8x512xbf16>, vector<512x128xbf16>, vector<8x128xf32> -> vector<8x128xf32>
    %c0_31 = arith.constant 0 : index
    %c0_32 = arith.constant 0 : index
    %47 = vector.load %arg17[%c0_31, %c0_32] : memref<1x128xf32, #tpu.memory_space<vmem>>, vector<1x128xf32>
    %48 = vector.broadcast %47 : vector<1x128xf32> to vector<8x128xf32>
    %49 = arith.addf %46, %48 : vector<8x128xf32>
    %c0_33 = arith.constant 0 : index
    %c0_34 = arith.constant 0 : index
    %50 = vector.load %arg23[%c0_33, %c0_34] : memref<8x128xf32, #tpu.memory_space<vmem>>, vector<8x128xf32>
    tpu.vector_store %arg23[%c0_33, %c0_34], %49 {strides = array<i32>} : memref<8x128xf32, #tpu.memory_space<vmem>>, vector<8x128xf32>,
    %51 = tpu.iota {dimensions = array<i32: 1>} : vector<8x128xi32>
    %c32_i32 = arith.constant 32 : i32
    %52 = vector.broadcast %c32_i32 : i32 to vector<8x128xi32>
    %53 = arith.cmpi slt, %51, %52 : vector<8x128xi32>
    %cst_35 = arith.constant 0.000000e+00 : f32
    %54 = vector.broadcast %cst_35 : f32 to vector<8x128xf32>
    %55 = arith.select %53, %49, %54 : vector<8x128xi1>, vector<8x128xf32>
    %c0_36 = arith.constant 0 : index
    %c0_37 = arith.constant 0 : index
    %56 = vector.load %arg2[%c0_36, %c0_37] : memref<8x128xf32, #tpu.memory_space<vmem>>, vector<8x128xf32>
    %cst_38 = arith.constant 5.000000e-01 : f32
    %57 = vector.broadcast %cst_38 : f32 to vector<8x128xf32>
    %58 = arith.mulf %57, %49 : vector<8x128xf32>
    %59 = math.exp %58 : vector<8x128xf32>
    %60 = arith.mulf %56, %59 : vector<8x128xf32>
    %61 = arith.addf %55, %60 : vector<8x128xf32>
    %62 = arith.truncf %61 : vector<8x128xf32> to vector<8x128xbf16>
    %c0_39 = arith.constant 0 : index
    %c0_40 = arith.constant 0 : index
    %63 = vector.load %arg8[%c0_39, %c0_40] : memref<128x256xbf16, #tpu.memory_space<vmem>>, vector<128x256xbf16>
    %cst_41 = arith.constant dense<0.000000e+00> : vector<8x256xf32>
    %64 = tpu.matmul %62, %63, %cst_41 {dimension_numbers = #tpu.dot_dimension_numbers<[1], [0], [0], [1], [0, 0, 1, 1], [], []>} : vector<8x128xbf16>, vector<128x256xbf16>, vector<8x256xf32> -> vector<8x256xf32>
    %c0_42 = arith.constant 0 : index
    %c0_43 = arith.constant 0 : index
    %65 = vector.load %arg18[%c0_42, %c0_43] : memref<1x256xf32, #tpu.memory_space<vmem>>, vector<1x256xf32>
    %66 = vector.broadcast %65 : vector<1x256xf32> to vector<8x256xf32>
    %67 = arith.addf %64, %66 : vector<8x256xf32>
    %cst_44 = arith.constant 0.000000e+00 : f32
    %68 = vector.broadcast %cst_44 : f32 to vector<8x256xf32>
    %69 = arith.maximumf %67, %68 : vector<8x256xf32>
    %70 = arith.truncf %69 : vector<8x256xf32> to vector<8x256xbf16>
    %c0_45 = arith.constant 0 : index
    %c0_46 = arith.constant 0 : index
    %71 = vector.load %arg9[%c0_45, %c0_46] : memref<256x256xbf16, #tpu.memory_space<vmem>>, vector<256x256xbf16>
    %cst_47 = arith.constant dense<0.000000e+00> : vector<8x256xf32>
    %72 = tpu.matmul %70, %71, %cst_47 {dimension_numbers = #tpu.dot_dimension_numbers<[1], [0], [0], [1], [0, 0, 1, 1], [], []>} : vector<8x256xbf16>, vector<256x256xbf16>, vector<8x256xf32> -> vector<8x256xf32>
    %c0_48 = arith.constant 0 : index
    %c0_49 = arith.constant 0 : index
    %73 = vector.load %arg19[%c0_48, %c0_49] : memref<1x256xf32, #tpu.memory_space<vmem>>, vector<1x256xf32>
    %74 = vector.broadcast %73 : vector<1x256xf32> to vector<8x256xf32>
    %75 = arith.addf %72, %74 : vector<8x256xf32>
    %cst_50 = arith.constant 0.000000e+00 : f32
    %76 = vector.broadcast %cst_50 : f32 to vector<8x256xf32>
    %77 = arith.maximumf %75, %76 : vector<8x256xf32>
    %78 = arith.truncf %77 : vector<8x256xf32> to vector<8x256xbf16>
    %c0_51 = arith.constant 0 : index
    %c0_52 = arith.constant 0 : index
    %79 = vector.load %arg10[%c0_51, %c0_52] : memref<256x128xbf16, #tpu.memory_space<vmem>>, vector<256x128xbf16>
    %cst_53 = arith.constant dense<0.000000e+00> : vector<8x128xf32>
    %80 = tpu.matmul %78, %79, %cst_53 {dimension_numbers = #tpu.dot_dimension_numbers<[1], [0], [0], [1], [0, 0, 1, 1], [], []>} : vector<8x256xbf16>, vector<256x128xbf16>, vector<8x128xf32> -> vector<8x128xf32>
    %c0_54 = arith.constant 0 : index
    %c0_55 = arith.constant 0 : index
    %81 = vector.load %arg20[%c0_54, %c0_55] : memref<1x128xf32, #tpu.memory_space<vmem>>, vector<1x128xf32>
    %82 = vector.broadcast %81 : vector<1x128xf32> to vector<8x128xf32>
    %83 = arith.addf %80, %82 : vector<8x128xf32>
    %cst_56 = arith.constant 0.000000e+00 : f32
    %84 = vector.broadcast %cst_56 : f32 to vector<8x128xf32>
    %85 = arith.maximumf %83, %84 : vector<8x128xf32>
    %86 = arith.truncf %85 : vector<8x128xf32> to vector<8x128xbf16>
    %c0_57 = arith.constant 0 : index
    %c0_58 = arith.constant 0 : index
    %87 = vector.load %arg11[%c0_57, %c0_58] : memref<128x128xbf16, #tpu.memory_space<vmem>>, vector<128x128xbf16>
    %cst_59 = arith.constant dense<0.000000e+00> : vector<8x128xf32>
    %88 = tpu.matmul %86, %87, %cst_59 {dimension_numbers = #tpu.dot_dimension_numbers<[1], [0], [0], [1], [0, 0, 1, 1], [], []>} : vector<8x128xbf16>, vector<128x128xbf16>, vector<8x128xf32> -> vector<8x128xf32>
    %c0_60 = arith.constant 0 : index
    %c0_61 = arith.constant 0 : index
    %89 = vector.load %arg21[%c0_60, %c0_61] : memref<1x128xf32, #tpu.memory_space<vmem>>, vector<1x128xf32>
    %90 = vector.broadcast %89 : vector<1x128xf32> to vector<8x128xf32>
    %91 = arith.addf %88, %90 : vector<8x128xf32>
    %cst_62 = arith.constant 0.000000e+00 : f32
    %92 = vector.broadcast %cst_62 : f32 to vector<8x128xf32>
    %93 = arith.maximumf %91, %92 : vector<8x128xf32>
    %94 = arith.truncf %93 : vector<8x128xf32> to vector<8x128xbf16>
    %c0_63 = arith.constant 0 : index
    %c0_64 = arith.constant 0 : index
    %95 = vector.load %arg12[%c0_63, %c0_64] : memref<128x512xbf16, #tpu.memory_space<vmem>>, vector<128x512xbf16>
    %cst_65 = arith.constant dense<0.000000e+00> : vector<8x512xf32>
    %96 = tpu.matmul %94, %95, %cst_65 {dimension_numbers = #tpu.dot_dimension_numbers<[1], [0], [0], [1], [0, 0, 1, 1], [], []>} : vector<8x128xbf16>, vector<128x512xbf16>, vector<8x512xf32> -> vector<8x512xf32>
    %c0_66 = arith.constant 0 : index
    %c0_67 = arith.constant 0 : index
    %97 = vector.load %arg22[%c0_66, %c0_67] : memref<1x512xf32, #tpu.memory_space<vmem>>, vector<1x512xf32>
    %98 = vector.broadcast %97 : vector<1x512xf32> to vector<8x512xf32>
    %99 = arith.addf %96, %98 : vector<8x512xf32>
    %cst_68 = arith.constant 0.000000e+00 : f32
    %100 = vector.broadcast %cst_68 : f32 to vector<8x512xf32>
    %101 = arith.maximumf %99, %100 : vector<8x512xf32>
    %102 = arith.truncf %101 : vector<8x512xf32> to vector<8x512xbf16>
    %c0_69 = arith.constant 0 : index
    %c0_70 = arith.constant 0 : index
    %103 = vector.load %arg24[%c0_69, %c0_70] : memref<8x512xbf16, #tpu.memory_space<vmem>>, vector<8x512xbf16>
    tpu.vector_store %arg24[%c0_69, %c0_70], %102 {strides = array<i32>} : memref<8x512xbf16, #tpu.memory_space<vmem>>, vector<8x512xbf16>,
    return
  }
  func.func @transform_0(%arg0: i32) -> (i32, i32) {
    %c0_i32 = arith.constant 0 : i32
    %c0_i32_0 = arith.constant 0 : i32
    %c0_i32_1 = arith.constant 0 : i32
    return %c0_i32, %c0_i32_0 : i32, i32
  }
  func.func @transform_1(%arg0: i32) -> (i32, i32) {
    %c0_i32 = arith.constant 0 : i32
    %c0_i32_0 = arith.constant 0 : i32
    %c0_i32_1 = arith.constant 0 : i32
    return %c0_i32, %c0_i32_0 : i32, i32
  }
  func.func @transform_2(%arg0: i32) -> (i32, i32) {
    %c0_i32 = arith.constant 0 : i32
    %c0_i32_0 = arith.constant 0 : i32
    %c0_i32_1 = arith.constant 0 : i32
    return %c0_i32, %c0_i32_0 : i32, i32
  }
  func.func @transform_3(%arg0: i32) -> (i32, i32) {
    %c0_i32 = arith.constant 0 : i32
    %c0_i32_0 = arith.constant 0 : i32
    %c0_i32_1 = arith.constant 0 : i32
    return %c0_i32, %c0_i32_0 : i32, i32
  }
  func.func @transform_4(%arg0: i32) -> (i32, i32) {
    %c0_i32 = arith.constant 0 : i32
    %c0_i32_0 = arith.constant 0 : i32
    %c0_i32_1 = arith.constant 0 : i32
    return %c0_i32, %c0_i32_0 : i32, i32
  }
  func.func @transform_5(%arg0: i32) -> (i32, i32) {
    %c0_i32 = arith.constant 0 : i32
    %c0_i32_0 = arith.constant 0 : i32
    %c0_i32_1 = arith.constant 0 : i32
    return %c0_i32, %c0_i32_0 : i32, i32
  }
  func.func @transform_6(%arg0: i32) -> (i32, i32) {
    %c0_i32 = arith.constant 0 : i32
    %c0_i32_0 = arith.constant 0 : i32
    %c0_i32_1 = arith.constant 0 : i32
    return %c0_i32, %c0_i32_0 : i32, i32
  }
  func.func @transform_7(%arg0: i32) -> (i32, i32) {
    %c0_i32 = arith.constant 0 : i32
    %c0_i32_0 = arith.constant 0 : i32
    %c0_i32_1 = arith.constant 0 : i32
    return %c0_i32, %c0_i32_0 : i32, i32
  }
  func.func @transform_8(%arg0: i32) -> (i32, i32) {
    %c0_i32 = arith.constant 0 : i32
    %c0_i32_0 = arith.constant 0 : i32
    %c0_i32_1 = arith.constant 0 : i32
    return %c0_i32, %c0_i32_0 : i32, i32
  }
  func.func @transform_9(%arg0: i32) -> (i32, i32) {
    %c0_i32 = arith.constant 0 : i32
    %c0_i32_0 = arith.constant 0 : i32
    %c0_i32_1 = arith.constant 0 : i32
    return %c0_i32, %c0_i32_0 : i32, i32
  }
  func.func @transform_10(%arg0: i32) -> (i32, i32) {
    %c0_i32 = arith.constant 0 : i32
    %c0_i32_0 = arith.constant 0 : i32
    %c0_i32_1 = arith.constant 0 : i32
    return %c0_i32, %c0_i32_0 : i32, i32
  }
  func.func @transform_11(%arg0: i32) -> (i32, i32) {
    %c0_i32 = arith.constant 0 : i32
    %c0_i32_0 = arith.constant 0 : i32
    %c0_i32_1 = arith.constant 0 : i32
    return %c0_i32, %c0_i32_0 : i32, i32
  }
  func.func @transform_12(%arg0: i32) -> (i32, i32) {
    %c0_i32 = arith.constant 0 : i32
    %c0_i32_0 = arith.constant 0 : i32
    %c0_i32_1 = arith.constant 0 : i32
    return %c0_i32, %c0_i32_0 : i32, i32
  }
  func.func @transform_13(%arg0: i32) -> (i32, i32) {
    %c0_i32 = arith.constant 0 : i32
    %c0_i32_0 = arith.constant 0 : i32
    %c0_i32_1 = arith.constant 0 : i32
    return %c0_i32, %c0_i32_0 : i32, i32
  }
  func.func @transform_14(%arg0: i32) -> (i32, i32) {
    %c0_i32 = arith.constant 0 : i32
    %c0_i32_0 = arith.constant 0 : i32
    %c0_i32_1 = arith.constant 0 : i32
    return %c0_i32, %c0_i32_0 : i32, i32
  }
  func.func @transform_15(%arg0: i32) -> (i32, i32) {
    %c0_i32 = arith.constant 0 : i32
    %c0_i32_0 = arith.constant 0 : i32
    %c0_i32_1 = arith.constant 0 : i32
    return %c0_i32, %c0_i32_0 : i32, i32
  }
  func.func @transform_16(%arg0: i32) -> (i32, i32) {
    %c0_i32 = arith.constant 0 : i32
    %c0_i32_0 = arith.constant 0 : i32
    %c0_i32_1 = arith.constant 0 : i32
    return %c0_i32, %c0_i32_0 : i32, i32
  }
  func.func @transform_17(%arg0: i32) -> (i32, i32) {
    %c0_i32 = arith.constant 0 : i32
    %c0_i32_0 = arith.constant 0 : i32
    %c0_i32_1 = arith.constant 0 : i32
    return %c0_i32, %c0_i32_0 : i32, i32
  }
  func.func @transform_18(%arg0: i32) -> (i32, i32) {
    %c0_i32 = arith.constant 0 : i32
    %c0_i32_0 = arith.constant 0 : i32
    %c0_i32_1 = arith.constant 0 : i32
    return %c0_i32, %c0_i32_0 : i32, i32
  }
  func.func @transform_19(%arg0: i32) -> (i32, i32) {
    %c0_i32 = arith.constant 0 : i32
    %c0_i32_0 = arith.constant 0 : i32
    %c0_i32_1 = arith.constant 0 : i32
    return %c0_i32, %c0_i32_0 : i32, i32
  }
  func.func @transform_20(%arg0: i32) -> (i32, i32) {
    %c0_i32 = arith.constant 0 : i32
    %c0_i32_0 = arith.constant 0 : i32
    %c0_i32_1 = arith.constant 0 : i32
    return %c0_i32, %c0_i32_0 : i32, i32
  }
  func.func @transform_21(%arg0: i32) -> (i32, i32) {
    %c0_i32 = arith.constant 0 : i32
    %c0_i32_0 = arith.constant 0 : i32
    %c0_i32_1 = arith.constant 0 : i32
    return %c0_i32, %c0_i32_0 : i32, i32
  }
  func.func @transform_22(%arg0: i32) -> (i32, i32) {
    %c0_i32 = arith.constant 0 : i32
    %c0_i32_0 = arith.constant 0 : i32
    %c0_i32_1 = arith.constant 0 : i32
    return %c0_i32, %c0_i32_0 : i32, i32
  }
  func.func @transform_23(%arg0: i32) -> (i32, i32) {
    %c0_i32 = arith.constant 0 : i32
    %c0_i32_0 = arith.constant 0 : i32
    %c0_i32_1 = arith.constant 0 : i32
    return %c0_i32, %c0_i32_0 : i32, i32
  }
}

module attributes {stable_mosaic.version = 11 : i64} {
  func.func @_conv_matmul_kernel(%arg0: i32, %arg1: memref<32x1152xbf16, #tpu.memory_space<vmem>>, %arg2: memref<1152x128xbf16, #tpu.memory_space<vmem>>, %arg3: memref<1x128xf32, #tpu.memory_space<vmem>>, %arg4: memref<32x128xbf16, #tpu.memory_space<vmem>>) attributes {dimension_semantics = [#tpu.dimension_semantics<arbitrary>], iteration_bounds = array<i64: 1>, scalar_prefetch = 0 : i64, scratch_operands = 0 : i64, tpu.core_type = #tpu.core_type<tc>, window_params = [{pipeline_mode = #tpu.pipeline_mode<synchronous>, transform_indices = @transform_0, window_bounds = array<i64: 32, 1152>}, {pipeline_mode = #tpu.pipeline_mode<synchronous>, transform_indices = @transform_1, window_bounds = array<i64: 1152, 128>}, {pipeline_mode = #tpu.pipeline_mode<synchronous>, transform_indices = @transform_2, window_bounds = array<i64: 1, 128>}, {pipeline_mode = #tpu.pipeline_mode<synchronous>, transform_indices = @transform_3, window_bounds = array<i64: 32, 128>}]} {
    %c0 = arith.constant 0 : index
    %c0_0 = arith.constant 0 : index
    %0 = vector.load %arg1[%c0, %c0_0] : memref<32x1152xbf16, #tpu.memory_space<vmem>>, vector<32x1152xbf16>
    %c0_1 = arith.constant 0 : index
    %c0_2 = arith.constant 0 : index
    %1 = vector.load %arg2[%c0_1, %c0_2] : memref<1152x128xbf16, #tpu.memory_space<vmem>>, vector<1152x128xbf16>
    %cst = arith.constant dense<0.000000e+00> : vector<32x128xf32>
    %2 = tpu.matmul %0, %1, %cst {dimension_numbers = #tpu.dot_dimension_numbers<[1], [0], [0], [1], [0, 0, 1, 1], [], []>} : vector<32x1152xbf16>, vector<1152x128xbf16>, vector<32x128xf32> -> vector<32x128xf32>
    %c0_3 = arith.constant 0 : index
    %c0_4 = arith.constant 0 : index
    %3 = vector.load %arg3[%c0_3, %c0_4] : memref<1x128xf32, #tpu.memory_space<vmem>>, vector<1x128xf32>
    %4 = vector.broadcast %3 : vector<1x128xf32> to vector<32x128xf32>
    %5 = arith.addf %2, %4 : vector<32x128xf32>
    %cst_5 = arith.constant 0.000000e+00 : f32
    %6 = vector.broadcast %cst_5 : f32 to vector<32x128xf32>
    %7 = arith.maximumf %5, %6 : vector<32x128xf32>
    %8 = arith.truncf %7 : vector<32x128xf32> to vector<32x128xbf16>
    %c0_6 = arith.constant 0 : index
    %c0_7 = arith.constant 0 : index
    %9 = vector.load %arg4[%c0_6, %c0_7] : memref<32x128xbf16, #tpu.memory_space<vmem>>, vector<32x128xbf16>
    tpu.vector_store %arg4[%c0_6, %c0_7], %8 {strides = array<i32>} : memref<32x128xbf16, #tpu.memory_space<vmem>>, vector<32x128xbf16>,
    return
  }
  func.func @transform_0(%arg0: i32) -> (i32, i32) {
    %c0_i32 = arith.constant 0 : i32
    %c0_i32_0 = arith.constant 0 : i32
    %c0_i32_1 = arith.constant 0 : i32
    return %c0_i32, %c0_i32_0 : i32, i32
  }
  func.func @transform_1(%arg0: i32) -> (i32, i32) {
    %c0_i32 = arith.constant 0 : i32
    %c0_i32_0 = arith.constant 0 : i32
    %c0_i32_1 = arith.constant 0 : i32
    return %c0_i32, %c0_i32_0 : i32, i32
  }
  func.func @transform_2(%arg0: i32) -> (i32, i32) {
    %c0_i32 = arith.constant 0 : i32
    %c0_i32_0 = arith.constant 0 : i32
    %c0_i32_1 = arith.constant 0 : i32
    return %c0_i32, %c0_i32_0 : i32, i32
  }
  func.func @transform_3(%arg0: i32) -> (i32, i32) {
    %c0_i32 = arith.constant 0 : i32
    %c0_i32_0 = arith.constant 0 : i32
    %c0_i32_1 = arith.constant 0 : i32
    return %c0_i32, %c0_i32_0 : i32, i32
  }
}

module attributes {stable_mosaic.version = 11 : i64} {
  func.func @_conv_matmul_kernel(%arg0: i32, %arg1: memref<128x640xbf16, #tpu.memory_space<vmem>>, %arg2: memref<640x128xbf16, #tpu.memory_space<vmem>>, %arg3: memref<1x128xf32, #tpu.memory_space<vmem>>, %arg4: memref<128x128xbf16, #tpu.memory_space<vmem>>) attributes {dimension_semantics = [#tpu.dimension_semantics<arbitrary>], iteration_bounds = array<i64: 1>, scalar_prefetch = 0 : i64, scratch_operands = 0 : i64, tpu.core_type = #tpu.core_type<tc>, window_params = [{pipeline_mode = #tpu.pipeline_mode<synchronous>, transform_indices = @transform_0, window_bounds = array<i64: 128, 640>}, {pipeline_mode = #tpu.pipeline_mode<synchronous>, transform_indices = @transform_1, window_bounds = array<i64: 640, 128>}, {pipeline_mode = #tpu.pipeline_mode<synchronous>, transform_indices = @transform_2, window_bounds = array<i64: 1, 128>}, {pipeline_mode = #tpu.pipeline_mode<synchronous>, transform_indices = @transform_3, window_bounds = array<i64: 128, 128>}]} {
    %c0 = arith.constant 0 : index
    %c0_0 = arith.constant 0 : index
    %0 = vector.load %arg1[%c0, %c0_0] : memref<128x640xbf16, #tpu.memory_space<vmem>>, vector<128x640xbf16>
    %c0_1 = arith.constant 0 : index
    %c0_2 = arith.constant 0 : index
    %1 = vector.load %arg2[%c0_1, %c0_2] : memref<640x128xbf16, #tpu.memory_space<vmem>>, vector<640x128xbf16>
    %cst = arith.constant dense<0.000000e+00> : vector<128x128xf32>
    %2 = tpu.matmul %0, %1, %cst {dimension_numbers = #tpu.dot_dimension_numbers<[1], [0], [0], [1], [0, 0, 1, 1], [], []>} : vector<128x640xbf16>, vector<640x128xbf16>, vector<128x128xf32> -> vector<128x128xf32>
    %c0_3 = arith.constant 0 : index
    %c0_4 = arith.constant 0 : index
    %3 = vector.load %arg3[%c0_3, %c0_4] : memref<1x128xf32, #tpu.memory_space<vmem>>, vector<1x128xf32>
    %4 = vector.broadcast %3 : vector<1x128xf32> to vector<128x128xf32>
    %5 = arith.addf %2, %4 : vector<128x128xf32>
    %cst_5 = arith.constant 0.000000e+00 : f32
    %6 = vector.broadcast %cst_5 : f32 to vector<128x128xf32>
    %7 = arith.maximumf %5, %6 : vector<128x128xf32>
    %8 = arith.truncf %7 : vector<128x128xf32> to vector<128x128xbf16>
    %c0_6 = arith.constant 0 : index
    %c0_7 = arith.constant 0 : index
    %9 = vector.load %arg4[%c0_6, %c0_7] : memref<128x128xbf16, #tpu.memory_space<vmem>>, vector<128x128xbf16>
    tpu.vector_store %arg4[%c0_6, %c0_7], %8 {strides = array<i32>} : memref<128x128xbf16, #tpu.memory_space<vmem>>, vector<128x128xbf16>,
    return
  }
  func.func @transform_0(%arg0: i32) -> (i32, i32) {
    %c0_i32 = arith.constant 0 : i32
    %c0_i32_0 = arith.constant 0 : i32
    %c0_i32_1 = arith.constant 0 : i32
    return %c0_i32, %c0_i32_0 : i32, i32
  }
  func.func @transform_1(%arg0: i32) -> (i32, i32) {
    %c0_i32 = arith.constant 0 : i32
    %c0_i32_0 = arith.constant 0 : i32
    %c0_i32_1 = arith.constant 0 : i32
    return %c0_i32, %c0_i32_0 : i32, i32
  }
  func.func @transform_2(%arg0: i32) -> (i32, i32) {
    %c0_i32 = arith.constant 0 : i32
    %c0_i32_0 = arith.constant 0 : i32
    %c0_i32_1 = arith.constant 0 : i32
    return %c0_i32, %c0_i32_0 : i32, i32
  }
  func.func @transform_3(%arg0: i32) -> (i32, i32) {
    %c0_i32 = arith.constant 0 : i32
    %c0_i32_0 = arith.constant 0 : i32
    %c0_i32_1 = arith.constant 0 : i32
    return %c0_i32, %c0_i32_0 : i32, i32
  }
}

module attributes {stable_mosaic.version = 11 : i64} {
  func.func @_conv_matmul_kernel(%arg0: i32, %arg1: memref<512x384xbf16, #tpu.memory_space<vmem>>, %arg2: memref<384x128xbf16, #tpu.memory_space<vmem>>, %arg3: memref<1x128xf32, #tpu.memory_space<vmem>>, %arg4: memref<512x128xf32, #tpu.memory_space<vmem>>) attributes {dimension_semantics = [#tpu.dimension_semantics<arbitrary>], iteration_bounds = array<i64: 1>, scalar_prefetch = 0 : i64, scratch_operands = 0 : i64, tpu.core_type = #tpu.core_type<tc>, window_params = [{pipeline_mode = #tpu.pipeline_mode<synchronous>, transform_indices = @transform_0, window_bounds = array<i64: 512, 384>}, {pipeline_mode = #tpu.pipeline_mode<synchronous>, transform_indices = @transform_1, window_bounds = array<i64: 384, 128>}, {pipeline_mode = #tpu.pipeline_mode<synchronous>, transform_indices = @transform_2, window_bounds = array<i64: 1, 128>}, {pipeline_mode = #tpu.pipeline_mode<synchronous>, transform_indices = @transform_3, window_bounds = array<i64: 512, 128>}]} {
    %c0 = arith.constant 0 : index
    %c0_0 = arith.constant 0 : index
    %0 = vector.load %arg1[%c0, %c0_0] : memref<512x384xbf16, #tpu.memory_space<vmem>>, vector<512x384xbf16>
    %c0_1 = arith.constant 0 : index
    %c0_2 = arith.constant 0 : index
    %1 = vector.load %arg2[%c0_1, %c0_2] : memref<384x128xbf16, #tpu.memory_space<vmem>>, vector<384x128xbf16>
    %cst = arith.constant dense<0.000000e+00> : vector<512x128xf32>
    %2 = tpu.matmul %0, %1, %cst {dimension_numbers = #tpu.dot_dimension_numbers<[1], [0], [0], [1], [0, 0, 1, 1], [], []>} : vector<512x384xbf16>, vector<384x128xbf16>, vector<512x128xf32> -> vector<512x128xf32>
    %c0_3 = arith.constant 0 : index
    %c0_4 = arith.constant 0 : index
    %3 = vector.load %arg3[%c0_3, %c0_4] : memref<1x128xf32, #tpu.memory_space<vmem>>, vector<1x128xf32>
    %4 = vector.broadcast %3 : vector<1x128xf32> to vector<512x128xf32>
    %5 = arith.addf %2, %4 : vector<512x128xf32>
    %6 = math.tanh %5 : vector<512x128xf32>
    %c0_5 = arith.constant 0 : index
    %c0_6 = arith.constant 0 : index
    %7 = vector.load %arg4[%c0_5, %c0_6] : memref<512x128xf32, #tpu.memory_space<vmem>>, vector<512x128xf32>
    tpu.vector_store %arg4[%c0_5, %c0_6], %6 {strides = array<i32>} : memref<512x128xf32, #tpu.memory_space<vmem>>, vector<512x128xf32>,
    return
  }
  func.func @transform_0(%arg0: i32) -> (i32, i32) {
    %c0_i32 = arith.constant 0 : i32
    %c0_i32_0 = arith.constant 0 : i32
    %c0_i32_1 = arith.constant 0 : i32
    return %c0_i32, %c0_i32_0 : i32, i32
  }
  func.func @transform_1(%arg0: i32) -> (i32, i32) {
    %c0_i32 = arith.constant 0 : i32
    %c0_i32_0 = arith.constant 0 : i32
    %c0_i32_1 = arith.constant 0 : i32
    return %c0_i32, %c0_i32_0 : i32, i32
  }
  func.func @transform_2(%arg0: i32) -> (i32, i32) {
    %c0_i32 = arith.constant 0 : i32
    %c0_i32_0 = arith.constant 0 : i32
    %c0_i32_1 = arith.constant 0 : i32
    return %c0_i32, %c0_i32_0 : i32, i32
  }
  func.func @transform_3(%arg0: i32) -> (i32, i32) {
    %c0_i32 = arith.constant 0 : i32
    %c0_i32_0 = arith.constant 0 : i32
    %c0_i32_1 = arith.constant 0 : i32
    return %c0_i32, %c0_i32_0 : i32, i32
  }
}

</mosaic_0001>

<llo_original>
// kernel: vae_forward.7
$region0: #{vae_forward.7}
  #allocation0 [shape = 'u32[]', space=smem, size = 0x4, offset = 0x4, fixed_abs, tag = 'smem constant byte address 0x4 - core index']
  #allocation1 [shape = 'u32[144,128]{1,0:T(1,128)}', space=vmem, size = 0x12000, scoped, tag = 'internal scratch']
  %s0 = inlined_call_operand.vmem [shape: bf16[128,128], index: 0, kind: input, shape index: {}]
  %s1 = inlined_call_operand.vmem [shape: bf16[128,128], index: 1, kind: input, shape index: {}]
  %s2 = inlined_call_operand.vmem [shape: f32[1,128], index: 2, kind: input, shape index: {}]
  %s3 = inlined_call_operand.vmem [shape: bf16[128,128], index: 3, kind: output, shape index: {}]
  %s4 = sld [smem:[#allocation0]]
  $region22: #{vae_forward.7} parent=0
    _
  %s6 = ssub.s32 1, %s4
  %s7 = scalar_select 0, %s6, %s4
  // Predicated region
  $region2: #{vae_forward.7} parent=0 // pred_check
    _
  $region3: #{vae_forward.7} parent=0 // pred_check_branch
    %9 = sbr.rel (0) target = $region5
  $region4: #{vae_forward.7} parent=0 // pred_region
    _
  $region5: #{vae_forward.7} parent=0 // pred_fallthru
    _
  // Predicated region
  $region6: #{vae_forward.7} parent=0 // pred_check
    _
  $region7: #{vae_forward.7} parent=0 // pred_check_branch
    %11 = sbr.rel (0) target = $region9
  $region8: #{vae_forward.7} parent=0 // pred_region
    _
  $region9: #{vae_forward.7} parent=0 // pred_fallthru
    _
  // Predicated region
  $region10: #{vae_forward.7} parent=0 // pred_check
    _
  $region11: #{vae_forward.7} parent=0 // pred_check_branch
    %13 = sbr.rel (0) target = $region13
  $region12: #{vae_forward.7} parent=0 // pred_region
    _
  $region13: #{vae_forward.7} parent=0 // pred_fallthru
    _
  %v15 = vld [vmem:[%s0] sm:$0xf]
  %v16 = vld [vmem:[%s0 + $0x4] sm:$0xf]
  %v17 = vld [vmem:[%s0 + $0x8] sm:$0xf]
  %v18 = vld [vmem:[%s0 + $0xc] sm:$0xf]
  %v19 = vld [vmem:[%s0 + $0x10] sm:$0xf]
  %v20 = vld [vmem:[%s0 + $0x14] sm:$0xf]
  %v21 = vld [vmem:[%s0 + $0x18] sm:$0xf]
  %v22 = vld [vmem:[%s0 + $0x1c] sm:$0xf]
  %v23 = vld [vmem:[%s0 + $0x20] sm:$0xf]
  %v24 = vld [vmem:[%s0 + $0x24] sm:$0xf]
  %v25 = vld [vmem:[%s0 + $0x28] sm:$0xf]
  %v26 = vld [vmem:[%s0 + $0x2c] sm:$0xf]
  %v27 = vld [vmem:[%s0 + $0x30] sm:$0xf]
  %v28 = vld [vmem:[%s0 + $0x34] sm:$0xf]
  %v29 = vld [vmem:[%s0 + $0x38] sm:$0xf]
  %v30 = vld [vmem:[%s0 + $0x3c] sm:$0xf]
  %v31 = vld [vmem:[%s1] sm:$0xf]
  %v32 = vld [vmem:[%s1 + $0x4] sm:$0xf]
  %v33 = vld [vmem:[%s1 + $0x8] sm:$0xf]
  %v34 = vld [vmem:[%s1 + $0xc] sm:$0xf]
  %v35 = vld [vmem:[%s1 + $0x10] sm:$0xf]
  %v36 = vld [vmem:[%s1 + $0x14] sm:$0xf]
  %v37 = vld [vmem:[%s1 + $0x18] sm:$0xf]
  %v38 = vld [vmem:[%s1 + $0x1c] sm:$0xf]
  %v39 = vld [vmem:[%s1 + $0x20] sm:$0xf]
  %v40 = vld [vmem:[%s1 + $0x24] sm:$0xf]
  %v41 = vld [vmem:[%s1 + $0x28] sm:$0xf]
  %v42 = vld [vmem:[%s1 + $0x2c] sm:$0xf]
  %v43 = vld [vmem:[%s1 + $0x30] sm:$0xf]
  %v44 = vld [vmem:[%s1 + $0x34] sm:$0xf]
  %v45 = vld [vmem:[%s1 + $0x38] sm:$0xf]
  %v46 = vld [vmem:[%s1 + $0x3c] sm:$0xf]
  %v47 = vld [vmem:[%s2] sm:$0x1]
  %v49 = vlaneseq
  %v50 = vshrl.u32 %v49, 7
  %v51 = vsub.s32 0, %v50
  %v52 = vrot.slane %v47, %v51
  %v70 = vunpack.c.l.b16 %v15
  %v71 = vunpack.c.l.b16 %v16
  %v72 = vunpack.c.l.b16 %v17
  %v73 = vunpack.c.l.b16 %v18
  %v74 = vunpack.c.l.b16 %v19
  %v75 = vunpack.c.l.b16 %v20
  %v76 = vunpack.c.l.b16 %v21
  %v77 = vunpack.c.l.b16 %v22
  %v78 = vunpack.c.l.b16 %v23
  %v79 = vunpack.c.l.b16 %v24
  %v80 = vunpack.c.l.b16 %v25
  %v81 = vunpack.c.l.b16 %v26
  %v82 = vunpack.c.l.b16 %v27
  %v83 = vunpack.c.l.b16 %v28
  %v84 = vunpack.c.l.b16 %v29
  %v85 = vunpack.c.l.b16 %v30
  %v86 = vpack.c.b16 %v71, %v70
  %v87 = vpack.c.b16 %v73, %v72
  %v88 = vpack.c.b16 %v75, %v74
  %v89 = vpack.c.b16 %v77, %v76
  %v90 = vpack.c.b16 %v79, %v78
  %v91 = vpack.c.b16 %v81, %v80
  %v92 = vpack.c.b16 %v83, %v82
  %v93 = vpack.c.b16 %v85, %v84
  %v118 = vunpack.c.l.b16 %v31
  %v119 = vunpack.c.l.b16 %v32
  %v120 = vunpack.c.l.b16 %v33
  %v121 = vunpack.c.l.b16 %v34
  %v122 = vunpack.c.l.b16 %v35
  %v123 = vunpack.c.l.b16 %v36
  %v124 = vunpack.c.l.b16 %v37
  %v125 = vunpack.c.l.b16 %v38
  %v126 = vunpack.c.l.b16 %v39
  %v127 = vunpack.c.l.b16 %v40
  %v128 = vunpack.c.l.b16 %v41
  %v129 = vunpack.c.l.b16 %v42
  %v130 = vunpack.c.l.b16 %v43
  %v131 = vunpack.c.l.b16 %v44
  %v132 = vunpack.c.l.b16 %v45
  %v133 = vunpack.c.l.b16 %v46
  %v134 = vpack.c.b16 %v119, %v118
  %v135 = vpack.c.b16 %v121, %v120
  %v136 = vpack.c.b16 %v123, %v122
  %v137 = vpack.c.b16 %v125, %v124
  %v138 = vpack.c.b16 %v127, %v126
  %v139 = vpack.c.b16 %v129, %v128
  %v140 = vpack.c.b16 %v131, %v130
  %v141 = vpack.c.b16 %v133, %v132
  %150 = vmatprep.subr.bf16.mxu0 0
  %151 = vmatpush1.bf16.msra.mxu0 %v134
  %152 = vmatprep.subr.bf16.mxu0 0
  %153 = vmatpush1.bf16.msra.mxu0 %v135
  %154 = vmatprep.subr.bf16.mxu0 0
  %155 = vmatpush1.bf16.msra.mxu0 %v136
  %156 = vmatprep.subr.bf16.mxu0 0
  %157 = vmatpush1.bf16.msra.mxu0 %v137
  %158 = vmatprep.subr.bf16.mxu0 0
  %159 = vmatpush1.bf16.msra.mxu0 %v138
  %160 = vmatprep.subr.bf16.mxu0 0
  %161 = vmatpush1.bf16.msra.mxu0 %v139
  %162 = vmatprep.subr.bf16.mxu0 0
  %163 = vmatpush1.bf16.msra.mxu0 %v140
  %164 = vmatprep.subr.bf16.mxu0 0
  %165 = vmatpush1.bf16.msra.mxu0 %v141
  %166 = vmatprep.subr.bf16.mxu0 0
  %167 = vmatpush1.bf16.msra.mxu0 0
  %168 = vmatprep.subr.bf16.mxu0 0
  %169 = vmatpush1.bf16.msra.mxu0 0
  %170 = vmatprep.subr.bf16.mxu0 0
  %171 = vmatpush1.bf16.msra.mxu0 0
  %172 = vmatprep.subr.bf16.mxu0 0
  %173 = vmatpush1.bf16.msra.mxu0 0
  %174 = vmatprep.subr.bf16.mxu0 0
  %175 = vmatpush1.bf16.msra.mxu0 0
  %176 = vmatprep.subr.bf16.mxu0 0
  %177 = vmatpush1.bf16.msra.mxu0 0
  %178 = vmatprep.subr.bf16.mxu0 0
  %179 = vmatpush1.bf16.msra.mxu0 0
  %180 = vmatprep.subr.bf16.mxu0 0
  %181 = vmatpush1.bf16.msra.mxu0 0
  %182 = vmatprep.mubr.bf16.mxu0 0
  %183 = vmatmul.mubr.bf16.gmra.mrb[0].mxu0 %v86
  %v184 = vpop.f32.mrb[0].mxu0
  %v185 = vadd.f32 %v52, %v184
  %v186 = vpop.f32.mrb[0].mxu0
  %v187 = vpop.f32.mrb[0].mxu0
  %v188 = vadd.f32 %v52, %v187
  %v189 = vpop.f32.mrb[0].mxu0
  %190 = vmatprep.mubr.bf16.mxu0 0
  %191 = vmatmul.mubr.bf16.gmra.mrb[0].mxu0 %v87
  %v192 = vpop.f32.mrb[0].mxu0
  %v193 = vadd.f32 %v52, %v192
  %v194 = vpop.f32.mrb[0].mxu0
  %v195 = vpop.f32.mrb[0].mxu0
  %v196 = vadd.f32 %v52, %v195
  %v197 = vpop.f32.mrb[0].mxu0
  %198 = vmatprep.mubr.bf16.mxu0 0
  %199 = vmatmul.mubr.bf16.gmra.mrb[0].mxu0 %v88
  %v200 = vpop.f32.mrb[0].mxu0
  %v201 = vadd.f32 %v52, %v200
  %v202 = vpop.f32.mrb[0].mxu0
  %v203 = vpop.f32.mrb[0].mxu0
  %v204 = vadd.f32 %v52, %v203
  %v205 = vpop.f32.mrb[0].mxu0
  %206 = vmatprep.mubr.bf16.mxu0 0
  %207 = vmatmul.mubr.bf16.gmra.mrb[0].mxu0 %v89
  %v208 = vpop.f32.mrb[0].mxu0
  %v209 = vadd.f32 %v52, %v208
  %v210 = vpop.f32.mrb[0].mxu0
  %v211 = vpop.f32.mrb[0].mxu0
  %v212 = vadd.f32 %v52, %v211
  %v213 = vpop.f32.mrb[0].mxu0
  %214 = vmatprep.mubr.bf16.mxu0 0
  %215 = vmatmul.mubr.bf16.gmra.mrb[0].mxu0 %v90
  %v216 = vpop.f32.mrb[0].mxu0
  %v217 = vadd.f32 %v52, %v216
  %v218 = vpop.f32.mrb[0].mxu0
  %v219 = vpop.f32.mrb[0].mxu0
  %v220 = vadd.f32 %v52, %v219
  %v221 = vpop.f32.mrb[0].mxu0
  %222 = vmatprep.mubr.bf16.mxu0 0
  %223 = vmatmul.mubr.bf16.gmra.mrb[0].mxu0 %v91
  %v224 = vpop.f32.mrb[0].mxu0
  %v225 = vadd.f32 %v52, %v224
  %v226 = vpop.f32.mrb[0].mxu0
  %v227 = vpop.f32.mrb[0].mxu0
  %v228 = vadd.f32 %v52, %v227
  %v229 = vpop.f32.mrb[0].mxu0
  %230 = vmatprep.mubr.bf16.mxu0 0
  %231 = vmatmul.mubr.bf16.gmra.mrb[0].mxu0 %v92
  %v232 = vpop.f32.mrb[0].mxu0
  %v233 = vadd.f32 %v52, %v232
  %v234 = vpop.f32.mrb[0].mxu0
  %v235 = vpop.f32.mrb[0].mxu0
  %v236 = vadd.f32 %v52, %v235
  %v237 = vpop.f32.mrb[0].mxu0
  %238 = vmatprep.mubr.bf16.mxu0 0
  %239 = vmatmul.mubr.bf16.gmra.mrb[0].mxu0 %v93
  %v240 = vpop.f32.mrb[0].mxu0
  %v241 = vadd.f32 %v52, %v240
  %v242 = vpop.f32.mrb[0].mxu0
  %v243 = vpop.f32.mrb[0].mxu0
  %v244 = vadd.f32 %v52, %v243
  %v245 = vpop.f32.mrb[0].mxu0
  %246 = vdwg.mxu0
  %vm247 = vcmp.gt.f32.partialorder %v185, 0.0
  %vm248 = vcmp.gt.f32.partialorder %v188, 0.0
  %vm249 = vcmp.gt.f32.partialorder %v193, 0.0
  %vm250 = vcmp.gt.f32.partialorder %v196, 0.0
  %vm251 = vcmp.gt.f32.partialorder %v201, 0.0
  %vm252 = vcmp.gt.f32.partialorder %v204, 0.0
  %vm253 = vcmp.gt.f32.partialorder %v209, 0.0
  %vm254 = vcmp.gt.f32.partialorder %v212, 0.0
  %vm255 = vcmp.gt.f32.partialorder %v217, 0.0
  %vm256 = vcmp.gt.f32.partialorder %v220, 0.0
  %vm257 = vcmp.gt.f32.partialorder %v225, 0.0
  %vm258 = vcmp.gt.f32.partialorder %v228, 0.0
  %vm259 = vcmp.gt.f32.partialorder %v233, 0.0
  %vm260 = vcmp.gt.f32.partialorder %v236, 0.0
  %vm261 = vcmp.gt.f32.partialorder %v241, 0.0
  %vm262 = vcmp.gt.f32.partialorder %v244, 0.0
  %v263 = vmul.f32 %v185, 0.2
  %v264 = vmul.f32 %v188, 0.2
  %v265 = vmul.f32 %v193, 0.2
  %v266 = vmul.f32 %v196, 0.2
  %v267 = vmul.f32 %v201, 0.2
  %v268 = vmul.f32 %v204, 0.2
  %v269 = vmul.f32 %v209, 0.2
  %v270 = vmul.f32 %v212, 0.2
  %v271 = vmul.f32 %v217, 0.2
  %v272 = vmul.f32 %v220, 0.2
  %v273 = vmul.f32 %v225, 0.2
  %v274 = vmul.f32 %v228, 0.2
  %v275 = vmul.f32 %v233, 0.2
  %v276 = vmul.f32 %v236, 0.2
  %v277 = vmul.f32 %v241, 0.2
  %v278 = vmul.f32 %v244, 0.2
  %v279 = vsel %vm247, %v185, %v263
  %v280 = vsel %vm248, %v188, %v264
  %v281 = vsel %vm249, %v193, %v265
  %v282 = vsel %vm250, %v196, %v266
  %v283 = vsel %vm251, %v201, %v267
  %v284 = vsel %vm252, %v204, %v268
  %v285 = vsel %vm253, %v209, %v269
  %v286 = vsel %vm254, %v212, %v270
  %v287 = vsel %vm255, %v217, %v271
  %v288 = vsel %vm256, %v220, %v272
  %v289 = vsel %vm257, %v225, %v273
  %v290 = vsel %vm258, %v228, %v274
  %v291 = vsel %vm259, %v233, %v275
  %v292 = vsel %vm260, %v236, %v276
  %v293 = vsel %vm261, %v241, %v277
  %v294 = vsel %vm262, %v244, %v278
  %v295 = vpack.c.bf16 %v280, %v279
  %v296 = vpack.c.bf16 %v282, %v281
  %v297 = vpack.c.bf16 %v284, %v283
  %v298 = vpack.c.bf16 %v286, %v285
  %v299 = vpack.c.bf16 %v288, %v287
  %v300 = vpack.c.bf16 %v290, %v289
  %v301 = vpack.c.bf16 %v292, %v291
  %v302 = vpack.c.bf16 %v294, %v293
  %v311 = vunpack.c.l.b16 %v295
  %v312 = vunpack.c.h.b16 %v295
  %v313 = vunpack.c.l.b16 %v296
  %v314 = vunpack.c.h.b16 %v296
  %v315 = vunpack.c.l.b16 %v297
  %v316 = vunpack.c.h.b16 %v297
  %v317 = vunpack.c.l.b16 %v298
  %v318 = vunpack.c.h.b16 %v298
  %v319 = vunpack.c.l.b16 %v299
  %v320 = vunpack.c.h.b16 %v299
  %v321 = vunpack.c.l.b16 %v300
  %v322 = vunpack.c.h.b16 %v300
  %v323 = vunpack.c.l.b16 %v301
  %v324 = vunpack.c.h.b16 %v301
  %v325 = vunpack.c.l.b16 %v302
  %v326 = vunpack.c.h.b16 %v302
  %v327 = vpack.c.b16 %v311, %v311
  %v328 = vpack.c.b16 %v312, %v312
  %v329 = vpack.c.b16 %v313, %v313
  %v330 = vpack.c.b16 %v314, %v314
  %v331 = vpack.c.b16 %v315, %v315
  %v332 = vpack.c.b16 %v316, %v316
  %v333 = vpack.c.b16 %v317, %v317
  %v334 = vpack.c.b16 %v318, %v318
  %v335 = vpack.c.b16 %v319, %v319
  %v336 = vpack.c.b16 %v320, %v320
  %v337 = vpack.c.b16 %v321, %v321
  %v338 = vpack.c.b16 %v322, %v322
  %v339 = vpack.c.b16 %v323, %v323
  %v340 = vpack.c.b16 %v324, %v324
  %v341 = vpack.c.b16 %v325, %v325
  %v342 = vpack.c.b16 %v326, %v326
  %359 = vst [vmem:[%s3] sm:$0xf] %v327
  %360 = vst [vmem:[%s3 + $0x4] sm:$0xf] %v328
  %361 = vst [vmem:[%s3 + $0x8] sm:$0xf] %v329
  %362 = vst [vmem:[%s3 + $0xc] sm:$0xf] %v330
  %363 = vst [vmem:[%s3 + $0x10] sm:$0xf] %v331
  %364 = vst [vmem:[%s3 + $0x14] sm:$0xf] %v332
  %365 = vst [vmem:[%s3 + $0x18] sm:$0xf] %v333
  %366 = vst [vmem:[%s3 + $0x1c] sm:$0xf] %v334
  %367 = vst [vmem:[%s3 + $0x20] sm:$0xf] %v335
  %368 = vst [vmem:[%s3 + $0x24] sm:$0xf] %v336
  %369 = vst [vmem:[%s3 + $0x28] sm:$0xf] %v337
  %370 = vst [vmem:[%s3 + $0x2c] sm:$0xf] %v338
  %371 = vst [vmem:[%s3 + $0x30] sm:$0xf] %v339
  %372 = vst [vmem:[%s3 + $0x34] sm:$0xf] %v340
  %373 = vst [vmem:[%s3 + $0x38] sm:$0xf] %v341
  %374 = vst [vmem:[%s3 + $0x3c] sm:$0xf] %v342
  // Predicated region
  $region14: #{vae_forward.7} parent=0 // pred_check
    _
  $region15: #{vae_forward.7} parent=0 // pred_check_branch
    %376 = sbr.rel (0) target = $region17
  $region16: #{vae_forward.7} parent=0 // pred_region
    _
  $region17: #{vae_forward.7} parent=0 // pred_fallthru
    _
  // Predicated region
  $region18: #{vae_forward.7} parent=0 // pred_check
    _
  $region19: #{vae_forward.7} parent=0 // pred_check_branch
    %378 = sbr.rel (0) target = $region21
  $region20: #{vae_forward.7} parent=0 // pred_region
    _
  $region21: #{vae_forward.7} parent=0 // pred_fallthru
    _

// kernel: vae_forward.8
$region0: #{vae_forward.8}
  #allocation0 [shape = 'u32[]', space=smem, size = 0x4, offset = 0x4, fixed_abs, tag = 'smem constant byte address 0x4 - core index']
  #allocation1 [shape = 'u32[144,128]{1,0:T(1,128)}', space=vmem, size = 0x12000, scoped, tag = 'internal scratch']
  %s0 = inlined_call_operand.vmem [shape: bf16[32,384], index: 0, kind: input, shape index: {}]
  %s1 = inlined_call_operand.vmem [shape: bf16[384,128], index: 1, kind: input, shape index: {}]
  %s2 = inlined_call_operand.vmem [shape: f32[1,128], index: 2, kind: input, shape index: {}]
  %s3 = inlined_call_operand.vmem [shape: bf16[32,128], index: 3, kind: output, shape index: {}]
  %s4 = sld [smem:[#allocation0]]
  $region22: #{vae_forward.8} parent=0
    _
  %s6 = ssub.s32 1, %s4
  %s7 = scalar_select 0, %s6, %s4
  // Predicated region
  $region2: #{vae_forward.8} parent=0 // pred_check
    _
  $region3: #{vae_forward.8} parent=0 // pred_check_branch
    %9 = sbr.rel (0) target = $region5
  $region4: #{vae_forward.8} parent=0 // pred_region
    _
  $region5: #{vae_forward.8} parent=0 // pred_fallthru
    _
  // Predicated region
  $region6: #{vae_forward.8} parent=0 // pred_check
    _
  $region7: #{vae_forward.8} parent=0 // pred_check_branch
    %11 = sbr.rel (0) target = $region9
  $region8: #{vae_forward.8} parent=0 // pred_region
    _
  $region9: #{vae_forward.8} parent=0 // pred_fallthru
    _
  // Predicated region
  $region10: #{vae_forward.8} parent=0 // pred_check
    _
  $region11: #{vae_forward.8} parent=0 // pred_check_branch
    %13 = sbr.rel (0) target = $region13
  $region12: #{vae_forward.8} parent=0 // pred_region
    _
  $region13: #{vae_forward.8} parent=0 // pred_fallthru
    _
  %v15 = vld [vmem:[%s0] sm:$0xff]
  %v16 = vld [vmem:[%s0 + $0x8] sm:$0xf]
  %v17 = vld [vmem:[%s0 + $0xc] sm:$0xff]
  %v18 = vld [vmem:[%s0 + $0x14] sm:$0xf]
  %v19 = vld [vmem:[%s0 + $0x18] sm:$0xff]
  %v20 = vld [vmem:[%s0 + $0x20] sm:$0xf]
  %v21 = vld [vmem:[%s0 + $0x24] sm:$0xff]
  %v22 = vld [vmem:[%s0 + $0x2c] sm:$0xf]
  %v23 = vld [vmem:[%s1] sm:$0xf]
  %v24 = vld [vmem:[%s1 + $0x4] sm:$0xf]
  %v25 = vld [vmem:[%s1 + $0x8] sm:$0xf]
  %v26 = vld [vmem:[%s1 + $0xc] sm:$0xf]
  %v27 = vld [vmem:[%s1 + $0x10] sm:$0xf]
  %v28 = vld [vmem:[%s1 + $0x14] sm:$0xf]
  %v29 = vld [vmem:[%s1 + $0x18] sm:$0xf]
  %v30 = vld [vmem:[%s1 + $0x1c] sm:$0xf]
  %v31 = vld [vmem:[%s1 + $0x20] sm:$0xf]
  %v32 = vld [vmem:[%s1 + $0x24] sm:$0xf]
  %v33 = vld [vmem:[%s1 + $0x28] sm:$0xf]
  %v34 = vld [vmem:[%s1 + $0x2c] sm:$0xf]
  %v35 = vld [vmem:[%s1 + $0x30] sm:$0xf]
  %v36 = vld [vmem:[%s1 + $0x34] sm:$0xf]
  %v37 = vld [vmem:[%s1 + $0x38] sm:$0xf]
  %v38 = vld [vmem:[%s1 + $0x3c] sm:$0xf]
  %v39 = vld [vmem:[%s1 + $0x40] sm:$0xf]
  %v40 = vld [vmem:[%s1 + $0x44] sm:$0xf]
  %v41 = vld [vmem:[%s1 + $0x48] sm:$0xf]
  %v42 = vld [vmem:[%s1 + $0x4c] sm:$0xf]
  %v43 = vld [vmem:[%s1 + $0x50] sm:$0xf]
  %v44 = vld [vmem:[%s1 + $0x54] sm:$0xf]
  %v45 = vld [vmem:[%s1 + $0x58] sm:$0xf]
  %v46 = vld [vmem:[%s1 + $0x5c] sm:$0xf]
  %v47 = vld [vmem:[%s1 + $0x60] sm:$0xf]
  %v48 = vld [vmem:[%s1 + $0x64] sm:$0xf]
  %v49 = vld [vmem:[%s1 + $0x68] sm:$0xf]
  %v50 = vld [vmem:[%s1 + $0x6c] sm:$0xf]
  %v51 = vld [vmem:[%s1 + $0x70] sm:$0xf]
  %v52 = vld [vmem:[%s1 + $0x74] sm:$0xf]
  %v53 = vld [vmem:[%s1 + $0x78] sm:$0xf]
  %v54 = vld [vmem:[%s1 + $0x7c] sm:$0xf]
  %v55 = vld [vmem:[%s1 + $0x80] sm:$0xf]
  %v56 = vld [vmem:[%s1 + $0x84] sm:$0xf]
  %v57 = vld [vmem:[%s1 + $0x88] sm:$0xf]
  %v58 = vld [vmem:[%s1 + $0x8c] sm:$0xf]
  %v59 = vld [vmem:[%s1 + $0x90] sm:$0xf]
  %v60 = vld [vmem:[%s1 + $0x94] sm:$0xf]
  %v61 = vld [vmem:[%s1 + $0x98] sm:$0xf]
  %v62 = vld [vmem:[%s1 + $0x9c] sm:$0xf]
  %v63 = vld [vmem:[%s1 + $0xa0] sm:$0xf]
  %v64 = vld [vmem:[%s1 + $0xa4] sm:$0xf]
  %v65 = vld [vmem:[%s1 + $0xa8] sm:$0xf]
  %v66 = vld [vmem:[%s1 + $0xac] sm:$0xf]
  %v67 = vld [vmem:[%s1 + $0xb0] sm:$0xf]
  %v68 = vld [vmem:[%s1 + $0xb4] sm:$0xf]
  %v69 = vld [vmem:[%s1 + $0xb8] sm:$0xf]
  %v70 = vld [vmem:[%s1 + $0xbc] sm:$0xf]
  %v71 = vld [vmem:[%s2] sm:$0x1]
  %v73 = vlaneseq
  %v74 = vshrl.u32 %v73, 7
  %v75 = vsub.s32 0, %v74
  %v76 = vrot.slane %v71, %v75
  %v86 = vunpack.c.l.b16 %v15
  %v87 = vunpack.c.h.b16 %v15
  %v88 = vunpack.c.l.b16 %v16
  %v89 = vunpack.c.l.b16 %v17
  %v90 = vunpack.c.h.b16 %v17
  %v91 = vunpack.c.l.b16 %v18
  %v92 = vunpack.c.l.b16 %v19
  %v93 = vunpack.c.h.b16 %v19
  %v94 = vunpack.c.l.b16 %v20
  %v95 = vunpack.c.l.b16 %v21
  %v96 = vunpack.c.h.b16 %v21
  %v97 = vunpack.c.l.b16 %v22
  %v98 = vpack.c.b16 %v89, %v86
  %v99 = vpack.c.b16 %v90, %v87
  %v100 = vpack.c.b16 %v91, %v88
  %v101 = vpack.c.b16 %v95, %v92
  %v102 = vpack.c.b16 %v96, %v93
  %v103 = vpack.c.b16 %v97, %v94
  %v158 = vunpack.c.l.b16 %v23
  %v159 = vunpack.c.l.b16 %v24
  %v160 = vunpack.c.l.b16 %v25
  %v161 = vunpack.c.l.b16 %v26
  %v162 = vunpack.c.l.b16 %v27
  %v163 = vunpack.c.l.b16 %v28
  %v164 = vunpack.c.l.b16 %v29
  %v165 = vunpack.c.l.b16 %v30
  %v166 = vunpack.c.l.b16 %v31
  %v167 = vunpack.c.l.b16 %v32
  %v168 = vunpack.c.l.b16 %v33
  %v169 = vunpack.c.l.b16 %v34
  %v170 = vunpack.c.l.b16 %v35
  %v171 = vunpack.c.l.b16 %v36
  %v172 = vunpack.c.l.b16 %v37
  %v173 = vunpack.c.l.b16 %v38
  %v174 = vunpack.c.l.b16 %v39
  %v175 = vunpack.c.l.b16 %v40
  %v176 = vunpack.c.l.b16 %v41
  %v177 = vunpack.c.l.b16 %v42
  %v178 = vunpack.c.l.b16 %v43
  %v179 = vunpack.c.l.b16 %v44
  %v180 = vunpack.c.l.b16 %v45
  %v181 = vunpack.c.l.b16 %v46
  %v182 = vunpack.c.l.b16 %v47
  %v183 = vunpack.c.l.b16 %v48
  %v184 = vunpack.c.l.b16 %v49
  %v185 = vunpack.c.l.b16 %v50
  %v186 = vunpack.c.l.b16 %v51
  %v187 = vunpack.c.l.b16 %v52
  %v188 = vunpack.c.l.b16 %v53
  %v189 = vunpack.c.l.b16 %v54
  %v190 = vunpack.c.l.b16 %v55
  %v191 = vunpack.c.l.b16 %v56
  %v192 = vunpack.c.l.b16 %v57
  %v193 = vunpack.c.l.b16 %v58
  %v194 = vunpack.c.l.b16 %v59
  %v195 = vunpack.c.l.b16 %v60
  %v196 = vunpack.c.l.b16 %v61
  %v197 = vunpack.c.l.b16 %v62
  %v198 = vunpack.c.l.b16 %v63
  %v199 = vunpack.c.l.b16 %v64
  %v200 = vunpack.c.l.b16 %v65
  %v201 = vunpack.c.l.b16 %v66
  %v202 = vunpack.c.l.b16 %v67
  %v203 = vunpack.c.l.b16 %v68
  %v204 = vunpack.c.l.b16 %v69
  %v205 = vunpack.c.l.b16 %v70
  %v206 = vpack.c.b16 %v159, %v158
  %v207 = vpack.c.b16 %v161, %v160
  %v208 = vpack.c.b16 %v163, %v162
  %v209 = vpack.c.b16 %v165, %v164
  %v210 = vpack.c.b16 %v167, %v166
  %v211 = vpack.c.b16 %v169, %v168
  %v212 = vpack.c.b16 %v171, %v170
  %v213 = vpack.c.b16 %v173, %v172
  %v214 = vpack.c.b16 %v175, %v174
  %v215 = vpack.c.b16 %v177, %v176
  %v216 = vpack.c.b16 %v179, %v178
  %v217 = vpack.c.b16 %v181, %v180
  %v218 = vpack.c.b16 %v183, %v182
  %v219 = vpack.c.b16 %v185, %v184
  %v220 = vpack.c.b16 %v187, %v186
  %v221 = vpack.c.b16 %v189, %v188
  %v222 = vpack.c.b16 %v191, %v190
  %v223 = vpack.c.b16 %v193, %v192
  %v224 = vpack.c.b16 %v195, %v194
  %v225 = vpack.c.b16 %v197, %v196
  %v226 = vpack.c.b16 %v199, %v198
  %v227 = vpack.c.b16 %v201, %v200
  %v228 = vpack.c.b16 %v203, %v202
  %v229 = vpack.c.b16 %v205, %v204
  %254 = vmatprep.subr.bf16.mxu0 0
  %255 = vmatpush1.bf16.msra.mxu0 %v206
  %256 = vmatprep.subr.bf16.mxu0 0
  %257 = vmatpush1.bf16.msra.mxu0 %v207
  %258 = vmatprep.subr.bf16.mxu0 0
  %259 = vmatpush1.bf16.msra.mxu0 %v208
  %260 = vmatprep.subr.bf16.mxu0 0
  %261 = vmatpush1.bf16.msra.mxu0 %v209
  %262 = vmatprep.subr.bf16.mxu0 0
  %263 = vmatpush1.bf16.msra.mxu0 %v210
  %264 = vmatprep.subr.bf16.mxu0 0
  %265 = vmatpush1.bf16.msra.mxu0 %v211
  %266 = vmatprep.subr.bf16.mxu0 0
  %267 = vmatpush1.bf16.msra.mxu0 %v212
  %268 = vmatprep.subr.bf16.mxu0 0
  %269 = vmatpush1.bf16.msra.mxu0 %v213
  %270 = vmatprep.subr.bf16.mxu0 0
  %271 = vmatpush1.bf16.msra.mxu0 %v214
  %272 = vmatprep.subr.bf16.mxu0 0
  %273 = vmatpush1.bf16.msra.mxu0 %v215
  %274 = vmatprep.subr.bf16.mxu0 0
  %275 = vmatpush1.bf16.msra.mxu0 %v216
  %276 = vmatprep.subr.bf16.mxu0 0
  %277 = vmatpush1.bf16.msra.mxu0 %v217
  %278 = vmatprep.subr.bf16.mxu0 0
  %279 = vmatpush1.bf16.msra.mxu0 %v218
  %280 = vmatprep.subr.bf16.mxu0 0
  %281 = vmatpush1.bf16.msra.mxu0 %v219
  %282 = vmatprep.subr.bf16.mxu0 0
  %283 = vmatpush1.bf16.msra.mxu0 %v220
  %284 = vmatprep.subr.bf16.mxu0 0
  %285 = vmatpush1.bf16.msra.mxu0 %v221
  %286 = vmatprep.mubr.bf16.mxu0 %v99
  %287 = vmatmul.mubr.bf16.gmra.mrb[0].mxu0 %v98
  %v288 = vpop.f32.mrb[0].mxu0
  %v289 = vadd.f32 %v76, %v288
  %v290 = vpop.f32.mrb[0].mxu0
  %v291 = vpop.f32.mrb[0].mxu0
  %v292 = vadd.f32 %v76, %v291
  %v293 = vpop.f32.mrb[0].mxu0
  %294 = vmatprep.mubr.bf16.mxu0 %v102
  %295 = vmatmul.mubr.bf16.gmra.mrb[0].mxu0 %v101
  %v296 = vpop.f32.mrb[0].mxu0
  %v297 = vadd.f32 %v76, %v296
  %v298 = vpop.f32.mrb[0].mxu0
  %v299 = vpop.f32.mrb[0].mxu0
  %v300 = vadd.f32 %v76, %v299
  %v301 = vpop.f32.mrb[0].mxu0
  %302 = vdwg.mxu0
  %303 = vmatprep.subr.bf16.mxu0 0
  %304 = vmatpush1.bf16.msra.mxu0 %v222
  %305 = vmatprep.subr.bf16.mxu0 0
  %306 = vmatpush1.bf16.msra.mxu0 %v223
  %307 = vmatprep.subr.bf16.mxu0 0
  %308 = vmatpush1.bf16.msra.mxu0 %v224
  %309 = vmatprep.subr.bf16.mxu0 0
  %310 = vmatpush1.bf16.msra.mxu0 %v225
  %311 = vmatprep.subr.bf16.mxu0 0
  %312 = vmatpush1.bf16.msra.mxu0 %v226
  %313 = vmatprep.subr.bf16.mxu0 0
  %314 = vmatpush1.bf16.msra.mxu0 %v227
  %315 = vmatprep.subr.bf16.mxu0 0
  %316 = vmatpush1.bf16.msra.mxu0 %v228
  %317 = vmatprep.subr.bf16.mxu0 0
  %318 = vmatpush1.bf16.msra.mxu0 %v229
  %319 = vmatprep.subr.bf16.mxu0 0
  %320 = vmatpush1.bf16.msra.mxu0 0
  %321 = vmatprep.subr.bf16.mxu0 0
  %322 = vmatpush1.bf16.msra.mxu0 0
  %323 = vmatprep.subr.bf16.mxu0 0
  %324 = vmatpush1.bf16.msra.mxu0 0
  %325 = vmatprep.subr.bf16.mxu0 0
  %326 = vmatpush1.bf16.msra.mxu0 0
  %327 = vmatprep.subr.bf16.mxu0 0
  %328 = vmatpush1.bf16.msra.mxu0 0
  %329 = vmatprep.subr.bf16.mxu0 0
  %330 = vmatpush1.bf16.msra.mxu0 0
  %331 = vmatprep.subr.bf16.mxu0 0
  %332 = vmatpush1.bf16.msra.mxu0 0
  %333 = vmatprep.subr.bf16.mxu0 0
  %334 = vmatpush1.bf16.msra.mxu0 0
  %335 = vmatprep.mubr.bf16.mxu0 0
  %336 = vmatmul.mubr.bf16.gmra.mrb[0].mxu0 %v100
  %v337 = vpop.f32.mrb[0].mxu0
  %v338 = vadd.f32 %v289, %v337
  %v339 = vpop.f32.mrb[0].mxu0
  %v340 = vpop.f32.mrb[0].mxu0
  %v341 = vadd.f32 %v292, %v340
  %v342 = vpop.f32.mrb[0].mxu0
  %343 = vmatprep.mubr.bf16.mxu0 0
  %344 = vmatmul.mubr.bf16.gmra.mrb[0].mxu0 %v103
  %v345 = vpop.f32.mrb[0].mxu0
  %v346 = vadd.f32 %v297, %v345
  %v347 = vpop.f32.mrb[0].mxu0
  %v348 = vpop.f32.mrb[0].mxu0
  %v349 = vadd.f32 %v300, %v348
  %v350 = vpop.f32.mrb[0].mxu0
  %351 = vdwg.mxu0
  %vm352 = vcmp.gt.f32.partialorder %v338, 0.0
  %vm353 = vcmp.gt.f32.partialorder %v341, 0.0
  %vm354 = vcmp.gt.f32.partialorder %v346, 0.0
  %vm355 = vcmp.gt.f32.partialorder %v349, 0.0
  %v356 = vmul.f32 %v338, 0.2
  %v357 = vmul.f32 %v341, 0.2
  %v358 = vmul.f32 %v346, 0.2
  %v359 = vmul.f32 %v349, 0.2
  %v360 = vsel %vm352, %v338, %v356
  %v361 = vsel %vm353, %v341, %v357
  %v362 = vsel %vm354, %v346, %v358
  %v363 = vsel %vm355, %v349, %v359
  %v364 = vpack.c.bf16 %v361, %v360
  %v365 = vpack.c.bf16 %v363, %v362
  %v368 = vunpack.c.l.b16 %v364
  %v369 = vunpack.c.h.b16 %v364
  %v370 = vunpack.c.l.b16 %v365
  %v371 = vunpack.c.h.b16 %v365
  %v372 = vpack.c.b16 %v368, %v368
  %v373 = vpack.c.b16 %v369, %v369
  %v374 = vpack.c.b16 %v370, %v370
  %v375 = vpack.c.b16 %v371, %v371
  %380 = vst [vmem:[%s3] sm:$0xf] %v372
  %381 = vst [vmem:[%s3 + $0x4] sm:$0xf] %v373
  %382 = vst [vmem:[%s3 + $0x8] sm:$0xf] %v374
  %383 = vst [vmem:[%s3 + $0xc] sm:$0xf] %v375
  // Predicated region
  $region14: #{vae_forward.8} parent=0 // pred_check
    _
  $region15: #{vae_forward.8} parent=0 // pred_check_branch
    %385 = sbr.rel (0) target = $region17
  $region16: #{vae_forward.8} parent=0 // pred_region
    _
  $region17: #{vae_forward.8} parent=0 // pred_fallthru
    _
  // Predicated region
  $region18: #{vae_forward.8} parent=0 // pred_check
    _
  $region19: #{vae_forward.8} parent=0 // pred_check_branch
    %387 = sbr.rel (0) target = $region21
  $region20: #{vae_forward.8} parent=0 // pred_region
    _
  $region21: #{vae_forward.8} parent=0 // pred_fallthru
    _

// kernel: vae_forward.9
$region0: #{vae_forward.9}
  #allocation0 [shape = 'u32[]', space=smem, size = 0x4, offset = 0x4, fixed_abs, tag = 'smem constant byte address 0x4 - core index']
  #allocation1 [shape = 'u32[144,128]{1,0:T(1,128)}', space=vmem, size = 0x12000, scoped, tag = 'internal scratch']
  %s0 = inlined_call_operand.vmem [shape: bf16[8,640], index: 0, kind: input, shape index: {}]
  %s1 = inlined_call_operand.vmem [shape: bf16[640,128], index: 1, kind: input, shape index: {}]
  %s2 = inlined_call_operand.vmem [shape: f32[1,128], index: 2, kind: input, shape index: {}]
  %s3 = inlined_call_operand.vmem [shape: bf16[8,128], index: 3, kind: output, shape index: {}]
  %s4 = sld [smem:[#allocation0]]
  $region22: #{vae_forward.9} parent=0
    _
  %s6 = ssub.s32 1, %s4
  %s7 = scalar_select 0, %s6, %s4
  // Predicated region
  $region2: #{vae_forward.9} parent=0 // pred_check
    _
  $region3: #{vae_forward.9} parent=0 // pred_check_branch
    %9 = sbr.rel (0) target = $region5
  $region4: #{vae_forward.9} parent=0 // pred_region
    _
  $region5: #{vae_forward.9} parent=0 // pred_fallthru
    _
  // Predicated region
  $region6: #{vae_forward.9} parent=0 // pred_check
    _
  $region7: #{vae_forward.9} parent=0 // pred_check_branch
    %11 = sbr.rel (0) target = $region9
  $region8: #{vae_forward.9} parent=0 // pred_region
    _
  $region9: #{vae_forward.9} parent=0 // pred_fallthru
    _
  // Predicated region
  $region10: #{vae_forward.9} parent=0 // pred_check
    _
  $region11: #{vae_forward.9} parent=0 // pred_check_branch
    %13 = sbr.rel (0) target = $region13
  $region12: #{vae_forward.9} parent=0 // pred_region
    _
  $region13: #{vae_forward.9} parent=0 // pred_fallthru
    _
  %v15 = vld [vmem:[%s0] sm:$0xff]
  %v16 = vld [vmem:[%s0 + $0x8] sm:$0xff]
  %v17 = vld [vmem:[%s0 + $0x10] sm:$0xf]
  %v18 = vld [vmem:[%s1] sm:$0xf]
  %v19 = vld [vmem:[%s1 + $0x4] sm:$0xf]
  %v20 = vld [vmem:[%s1 + $0x8] sm:$0xf]
  %v21 = vld [vmem:[%s1 + $0xc] sm:$0xf]
  %v22 = vld [vmem:[%s1 + $0x10] sm:$0xf]
  %v23 = vld [vmem:[%s1 + $0x14] sm:$0xf]
  %v24 = vld [vmem:[%s1 + $0x18] sm:$0xf]
  %v25 = vld [vmem:[%s1 + $0x1c] sm:$0xf]
  %v26 = vld [vmem:[%s1 + $0x20] sm:$0xf]
  %v27 = vld [vmem:[%s1 + $0x24] sm:$0xf]
  %v28 = vld [vmem:[%s1 + $0x28] sm:$0xf]
  %v29 = vld [vmem:[%s1 + $0x2c] sm:$0xf]
  %v30 = vld [vmem:[%s1 + $0x30] sm:$0xf]
  %v31 = vld [vmem:[%s1 + $0x34] sm:$0xf]
  %v32 = vld [vmem:[%s1 + $0x38] sm:$0xf]
  %v33 = vld [vmem:[%s1 + $0x3c] sm:$0xf]
  %v34 = vld [vmem:[%s1 + $0x40] sm:$0xf]
  %v35 = vld [vmem:[%s1 + $0x44] sm:$0xf]
  %v36 = vld [vmem:[%s1 + $0x48] sm:$0xf]
  %v37 = vld [vmem:[%s1 + $0x4c] sm:$0xf]
  %v38 = vld [vmem:[%s1 + $0x50] sm:$0xf]
  %v39 = vld [vmem:[%s1 + $0x54] sm:$0xf]
  %v40 = vld [vmem:[%s1 + $0x58] sm:$0xf]
  %v41 = vld [vmem:[%s1 + $0x5c] sm:$0xf]
  %v42 = vld [vmem:[%s1 + $0x60] sm:$0xf]
  %v43 = vld [vmem:[%s1 + $0x64] sm:$0xf]
  %v44 = vld [vmem:[%s1 + $0x68] sm:$0xf]
  %v45 = vld [vmem:[%s1 + $0x6c] sm:$0xf]
  %v46 = vld [vmem:[%s1 + $0x70] sm:$0xf]
  %v47 = vld [vmem:[%s1 + $0x74] sm:$0xf]
  %v48 = vld [vmem:[%s1 + $0x78] sm:$0xf]
  %v49 = vld [vmem:[%s1 + $0x7c] sm:$0xf]
  %v50 = vld [vmem:[%s1 + $0x80] sm:$0xf]
  %v51 = vld [vmem:[%s1 + $0x84] sm:$0xf]
  %v52 = vld [vmem:[%s1 + $0x88] sm:$0xf]
  %v53 = vld [vmem:[%s1 + $0x8c] sm:$0xf]
  %v54 = vld [vmem:[%s1 + $0x90] sm:$0xf]
  %v55 = vld [vmem:[%s1 + $0x94] sm:$0xf]
  %v56 = vld [vmem:[%s1 + $0x98] sm:$0xf]
  %v57 = vld [vmem:[%s1 + $0x9c] sm:$0xf]
  %v58 = vld [vmem:[%s1 + $0xa0] sm:$0xf]
  %v59 = vld [vmem:[%s1 + $0xa4] sm:$0xf]
  %v60 = vld [vmem:[%s1 + $0xa8] sm:$0xf]
  %v61 = vld [vmem:[%s1 + $0xac] sm:$0xf]
  %v62 = vld [vmem:[%s1 + $0xb0] sm:$0xf]
  %v63 = vld [vmem:[%s1 + $0xb4] sm:$0xf]
  %v64 = vld [vmem:[%s1 + $0xb8] sm:$0xf]
  %v65 = vld [vmem:[%s1 + $0xbc] sm:$0xf]
  %v66 = vld [vmem:[%s1 + $0xc0] sm:$0xf]
  %v67 = vld [vmem:[%s1 + $0xc4] sm:$0xf]
  %v68 = vld [vmem:[%s1 + $0xc8] sm:$0xf]
  %v69 = vld [vmem:[%s1 + $0xcc] sm:$0xf]
  %v70 = vld [vmem:[%s1 + $0xd0] sm:$0xf]
  %v71 = vld [vmem:[%s1 + $0xd4] sm:$0xf]
  %v72 = vld [vmem:[%s1 + $0xd8] sm:$0xf]
  %v73 = vld [vmem:[%s1 + $0xdc] sm:$0xf]
  %v74 = vld [vmem:[%s1 + $0xe0] sm:$0xf]
  %v75 = vld [vmem:[%s1 + $0xe4] sm:$0xf]
  %v76 = vld [vmem:[%s1 + $0xe8] sm:$0xf]
  %v77 = vld [vmem:[%s1 + $0xec] sm:$0xf]
  %v78 = vld [vmem:[%s1 + $0xf0] sm:$0xf]
  %v79 = vld [vmem:[%s1 + $0xf4] sm:$0xf]
  %v80 = vld [vmem:[%s1 + $0xf8] sm:$0xf]
  %v81 = vld [vmem:[%s1 + $0xfc] sm:$0xf]
  %v82 = vld [vmem:[%s1 + $0x100] sm:$0xf]
  %v83 = vld [vmem:[%s1 + $0x104] sm:$0xf]
  %v84 = vld [vmem:[%s1 + $0x108] sm:$0xf]
  %v85 = vld [vmem:[%s1 + $0x10c] sm:$0xf]
  %v86 = vld [vmem:[%s1 + $0x110] sm:$0xf]
  %v87 = vld [vmem:[%s1 + $0x114] sm:$0xf]
  %v88 = vld [vmem:[%s1 + $0x118] sm:$0xf]
  %v89 = vld [vmem:[%s1 + $0x11c] sm:$0xf]
  %v90 = vld [vmem:[%s1 + $0x120] sm:$0xf]
  %v91 = vld [vmem:[%s1 + $0x124] sm:$0xf]
  %v92 = vld [vmem:[%s1 + $0x128] sm:$0xf]
  %v93 = vld [vmem:[%s1 + $0x12c] sm:$0xf]
  %v94 = vld [vmem:[%s1 + $0x130] sm:$0xf]
  %v95 = vld [vmem:[%s1 + $0x134] sm:$0xf]
  %v96 = vld [vmem:[%s1 + $0x138] sm:$0xf]
  %v97 = vld [vmem:[%s1 + $0x13c] sm:$0xf]
  %v98 = vld [vmem:[%s2] sm:$0x1]
  %v100 = vlaneseq
  %v101 = vshrl.u32 %v100, 7
  %v102 = vsub.s32 0, %v101
  %v103 = vrot.slane %v98, %v102
  %v108 = vunpack.c.l.b16 %v15
  %v109 = vunpack.c.h.b16 %v15
  %v110 = vunpack.c.l.b16 %v16
  %v111 = vunpack.c.h.b16 %v16
  %v112 = vunpack.c.l.b16 %v17
  %v113 = vpack.c.b16 %v108, %v108
  %v114 = vpack.c.b16 %v109, %v109
  %v115 = vpack.c.b16 %v110, %v110
  %v116 = vpack.c.b16 %v111, %v111
  %v117 = vpack.c.b16 %v112, %v112
  %v203 = vunpack.c.l.b16 %v18
  %v204 = vunpack.c.l.b16 %v19
  %v205 = vunpack.c.l.b16 %v20
  %v206 = vunpack.c.l.b16 %v21
  %v207 = vunpack.c.l.b16 %v22
  %v208 = vunpack.c.l.b16 %v23
  %v209 = vunpack.c.l.b16 %v24
  %v210 = vunpack.c.l.b16 %v25
  %v211 = vunpack.c.l.b16 %v26
  %v212 = vunpack.c.l.b16 %v27
  %v213 = vunpack.c.l.b16 %v28
  %v214 = vunpack.c.l.b16 %v29
  %v215 = vunpack.c.l.b16 %v30
  %v216 = vunpack.c.l.b16 %v31
  %v217 = vunpack.c.l.b16 %v32
  %v218 = vunpack.c.l.b16 %v33
  %v219 = vunpack.c.l.b16 %v34
  %v220 = vunpack.c.l.b16 %v35
  %v221 = vunpack.c.l.b16 %v36
  %v222 = vunpack.c.l.b16 %v37
  %v223 = vunpack.c.l.b16 %v38
  %v224 = vunpack.c.l.b16 %v39
  %v225 = vunpack.c.l.b16 %v40
  %v226 = vunpack.c.l.b16 %v41
  %v227 = vunpack.c.l.b16 %v42
  %v228 = vunpack.c.l.b16 %v43
  %v229 = vunpack.c.l.b16 %v44
  %v230 = vunpack.c.l.b16 %v45
  %v231 = vunpack.c.l.b16 %v46
  %v232 = vunpack.c.l.b16 %v47
  %v233 = vunpack.c.l.b16 %v48
  %v234 = vunpack.c.l.b16 %v49
  %v235 = vunpack.c.l.b16 %v50
  %v236 = vunpack.c.l.b16 %v51
  %v237 = vunpack.c.l.b16 %v52
  %v238 = vunpack.c.l.b16 %v53
  %v239 = vunpack.c.l.b16 %v54
  %v240 = vunpack.c.l.b16 %v55
  %v241 = vunpack.c.l.b16 %v56
  %v242 = vunpack.c.l.b16 %v57
  %v243 = vunpack.c.l.b16 %v58
  %v244 = vunpack.c.l.b16 %v59
  %v245 = vunpack.c.l.b16 %v60
  %v246 = vunpack.c.l.b16 %v61
  %v247 = vunpack.c.l.b16 %v62
  %v248 = vunpack.c.l.b16 %v63
  %v249 = vunpack.c.l.b16 %v64
  %v250 = vunpack.c.l.b16 %v65
  %v251 = vunpack.c.l.b16 %v66
  %v252 = vunpack.c.l.b16 %v67
  %v253 = vunpack.c.l.b16 %v68
  %v254 = vunpack.c.l.b16 %v69
  %v255 = vunpack.c.l.b16 %v70
  %v256 = vunpack.c.l.b16 %v71
  %v257 = vunpack.c.l.b16 %v72
  %v258 = vunpack.c.l.b16 %v73
  %v259 = vunpack.c.l.b16 %v74
  %v260 = vunpack.c.l.b16 %v75
  %v261 = vunpack.c.l.b16 %v76
  %v262 = vunpack.c.l.b16 %v77
  %v263 = vunpack.c.l.b16 %v78
  %v264 = vunpack.c.l.b16 %v79
  %v265 = vunpack.c.l.b16 %v80
  %v266 = vunpack.c.l.b16 %v81
  %v267 = vunpack.c.l.b16 %v82
  %v268 = vunpack.c.l.b16 %v83
  %v269 = vunpack.c.l.b16 %v84
  %v270 = vunpack.c.l.b16 %v85
  %v271 = vunpack.c.l.b16 %v86
  %v272 = vunpack.c.l.b16 %v87
  %v273 = vunpack.c.l.b16 %v88
  %v274 = vunpack.c.l.b16 %v89
  %v275 = vunpack.c.l.b16 %v90
  %v276 = vunpack.c.l.b16 %v91
  %v277 = vunpack.c.l.b16 %v92
  %v278 = vunpack.c.l.b16 %v93
  %v279 = vunpack.c.l.b16 %v94
  %v280 = vunpack.c.l.b16 %v95
  %v281 = vunpack.c.l.b16 %v96
  %v282 = vunpack.c.l.b16 %v97
  %v283 = vpack.c.b16 %v204, %v203
  %v284 = vpack.c.b16 %v206, %v205
  %v285 = vpack.c.b16 %v208, %v207
  %v286 = vpack.c.b16 %v210, %v209
  %v287 = vpack.c.b16 %v212, %v211
  %v288 = vpack.c.b16 %v214, %v213
  %v289 = vpack.c.b16 %v216, %v215
  %v290 = vpack.c.b16 %v218, %v217
  %v291 = vpack.c.b16 %v220, %v219
  %v292 = vpack.c.b16 %v222, %v221
  %v293 = vpack.c.b16 %v224, %v223
  %v294 = vpack.c.b16 %v226, %v225
  %v295 = vpack.c.b16 %v228, %v227
  %v296 = vpack.c.b16 %v230, %v229
  %v297 = vpack.c.b16 %v232, %v231
  %v298 = vpack.c.b16 %v234, %v233
  %v299 = vpack.c.b16 %v236, %v235
  %v300 = vpack.c.b16 %v238, %v237
  %v301 = vpack.c.b16 %v240, %v239
  %v302 = vpack.c.b16 %v242, %v241
  %v303 = vpack.c.b16 %v244, %v243
  %v304 = vpack.c.b16 %v246, %v245
  %v305 = vpack.c.b16 %v248, %v247
  %v306 = vpack.c.b16 %v250, %v249
  %v307 = vpack.c.b16 %v252, %v251
  %v308 = vpack.c.b16 %v254, %v253
  %v309 = vpack.c.b16 %v256, %v255
  %v310 = vpack.c.b16 %v258, %v257
  %v311 = vpack.c.b16 %v260, %v259
  %v312 = vpack.c.b16 %v262, %v261
  %v313 = vpack.c.b16 %v264, %v263
  %v314 = vpack.c.b16 %v266, %v265
  %v315 = vpack.c.b16 %v268, %v267
  %v316 = vpack.c.b16 %v270, %v269
  %v317 = vpack.c.b16 %v272, %v271
  %v318 = vpack.c.b16 %v274, %v273
  %v319 = vpack.c.b16 %v276, %v275
  %v320 = vpack.c.b16 %v278, %v277
  %v321 = vpack.c.b16 %v280, %v279
  %v322 = vpack.c.b16 %v282, %v281
  %363 = vmatprep.subr.bf16.mxu0 0
  %364 = vmatpush1.bf16.msra.mxu0 %v283
  %365 = vmatprep.subr.bf16.mxu0 0
  %366 = vmatpush1.bf16.msra.mxu0 %v284
  %367 = vmatprep.subr.bf16.mxu0 0
  %368 = vmatpush1.bf16.msra.mxu0 %v285
  %369 = vmatprep.subr.bf16.mxu0 0
  %370 = vmatpush1.bf16.msra.mxu0 %v286
  %371 = vmatprep.subr.bf16.mxu0 0
  %372 = vmatpush1.bf16.msra.mxu0 %v287
  %373 = vmatprep.subr.bf16.mxu0 0
  %374 = vmatpush1.bf16.msra.mxu0 %v288
  %375 = vmatprep.subr.bf16.mxu0 0
  %376 = vmatpush1.bf16.msra.mxu0 %v289
  %377 = vmatprep.subr.bf16.mxu0 0
  %378 = vmatpush1.bf16.msra.mxu0 %v290
  %379 = vmatprep.subr.bf16.mxu0 0
  %380 = vmatpush1.bf16.msra.mxu0 %v291
  %381 = vmatprep.subr.bf16.mxu0 0
  %382 = vmatpush1.bf16.msra.mxu0 %v292
  %383 = vmatprep.subr.bf16.mxu0 0
  %384 = vmatpush1.bf16.msra.mxu0 %v293
  %385 = vmatprep.subr.bf16.mxu0 0
  %386 = vmatpush1.bf16.msra.mxu0 %v294
  %387 = vmatprep.subr.bf16.mxu0 0
  %388 = vmatpush1.bf16.msra.mxu0 %v295
  %389 = vmatprep.subr.bf16.mxu0 0
  %390 = vmatpush1.bf16.msra.mxu0 %v296
  %391 = vmatprep.subr.bf16.mxu0 0
  %392 = vmatpush1.bf16.msra.mxu0 %v297
  %393 = vmatprep.subr.bf16.mxu0 0
  %394 = vmatpush1.bf16.msra.mxu0 %v298
  %395 = vmatprep.mubr.bf16.mxu0 %v114
  %396 = vmatmul.mubr.bf16.gmra.mrb[0].mxu0 %v113
  %v397 = vpop.f32.mrb[0].mxu0
  %v398 = vadd.f32 %v103, %v397
  %v399 = vpop.f32.mrb[0].mxu0
  %v400 = vpop.f32.mrb[0].mxu0
  %v401 = vpop.f32.mrb[0].mxu0
  %402 = vdwg.mxu0
  %403 = vmatprep.subr.bf16.mxu0 0
  %404 = vmatpush1.bf16.msra.mxu0 %v299
  %405 = vmatprep.subr.bf16.mxu0 0
  %406 = vmatpush1.bf16.msra.mxu0 %v300
  %407 = vmatprep.subr.bf16.mxu0 0
  %408 = vmatpush1.bf16.msra.mxu0 %v301
  %409 = vmatprep.subr.bf16.mxu0 0
  %410 = vmatpush1.bf16.msra.mxu0 %v302
  %411 = vmatprep.subr.bf16.mxu0 0
  %412 = vmatpush1.bf16.msra.mxu0 %v303
  %413 = vmatprep.subr.bf16.mxu0 0
  %414 = vmatpush1.bf16.msra.mxu0 %v304
  %415 = vmatprep.subr.bf16.mxu0 0
  %416 = vmatpush1.bf16.msra.mxu0 %v305
  %417 = vmatprep.subr.bf16.mxu0 0
  %418 = vmatpush1.bf16.msra.mxu0 %v306
  %419 = vmatprep.subr.bf16.mxu0 0
  %420 = vmatpush1.bf16.msra.mxu0 %v307
  %421 = vmatprep.subr.bf16.mxu0 0
  %422 = vmatpush1.bf16.msra.mxu0 %v308
  %423 = vmatprep.subr.bf16.mxu0 0
  %424 = vmatpush1.bf16.msra.mxu0 %v309
  %425 = vmatprep.subr.bf16.mxu0 0
  %426 = vmatpush1.bf16.msra.mxu0 %v310
  %427 = vmatprep.subr.bf16.mxu0 0
  %428 = vmatpush1.bf16.msra.mxu0 %v311
  %429 = vmatprep.subr.bf16.mxu0 0
  %430 = vmatpush1.bf16.msra.mxu0 %v312
  %431 = vmatprep.subr.bf16.mxu0 0
  %432 = vmatpush1.bf16.msra.mxu0 %v313
  %433 = vmatprep.subr.bf16.mxu0 0
  %434 = vmatpush1.bf16.msra.mxu0 %v314
  %435 = vmatprep.mubr.bf16.mxu0 %v116
  %436 = vmatmul.mubr.bf16.gmra.mrb[0].mxu0 %v115
  %v437 = vpop.f32.mrb[0].mxu0
  %v438 = vadd.f32 %v398, %v437
  %v439 = vpop.f32.mrb[0].mxu0
  %v440 = vpop.f32.mrb[0].mxu0
  %v441 = vpop.f32.mrb[0].mxu0
  %442 = vdwg.mxu0
  %443 = vmatprep.subr.bf16.mxu0 0
  %444 = vmatpush1.bf16.msra.mxu0 %v315
  %445 = vmatprep.subr.bf16.mxu0 0
  %446 = vmatpush1.bf16.msra.mxu0 %v316
  %447 = vmatprep.subr.bf16.mxu0 0
  %448 = vmatpush1.bf16.msra.mxu0 %v317
  %449 = vmatprep.subr.bf16.mxu0 0
  %450 = vmatpush1.bf16.msra.mxu0 %v318
  %451 = vmatprep.subr.bf16.mxu0 0
  %452 = vmatpush1.bf16.msra.mxu0 %v319
  %453 = vmatprep.subr.bf16.mxu0 0
  %454 = vmatpush1.bf16.msra.mxu0 %v320
  %455 = vmatprep.subr.bf16.mxu0 0
  %456 = vmatpush1.bf16.msra.mxu0 %v321
  %457 = vmatprep.subr.bf16.mxu0 0
  %458 = vmatpush1.bf16.msra.mxu0 %v322
  %459 = vmatprep.subr.bf16.mxu0 0
  %460 = vmatpush1.bf16.msra.mxu0 0
  %461 = vmatprep.subr.bf16.mxu0 0
  %462 = vmatpush1.bf16.msra.mxu0 0
  %463 = vmatprep.subr.bf16.mxu0 0
  %464 = vmatpush1.bf16.msra.mxu0 0
  %465 = vmatprep.subr.bf16.mxu0 0
  %466 = vmatpush1.bf16.msra.mxu0 0
  %467 = vmatprep.subr.bf16.mxu0 0
  %468 = vmatpush1.bf16.msra.mxu0 0
  %469 = vmatprep.subr.bf16.mxu0 0
  %470 = vmatpush1.bf16.msra.mxu0 0
  %471 = vmatprep.subr.bf16.mxu0 0
  %472 = vmatpush1.bf16.msra.mxu0 0
  %473 = vmatprep.subr.bf16.mxu0 0
  %474 = vmatpush1.bf16.msra.mxu0 0
  %475 = vmatprep.mubr.bf16.mxu0 0
  %476 = vmatmul.mubr.bf16.gmra.mrb[0].mxu0 %v117
  %v477 = vpop.f32.mrb[0].mxu0
  %v478 = vadd.f32 %v438, %v477
  %v479 = vpop.f32.mrb[0].mxu0
  %v480 = vpop.f32.mrb[0].mxu0
  %v481 = vpop.f32.mrb[0].mxu0
  %482 = vdwg.mxu0
  %vm483 = vcmp.gt.f32.partialorder %v478, 0.0
  %v484 = vmul.f32 %v478, 0.2
  %v485 = vsel %vm483, %v478, %v484
  %v486 = vpack.c.bf16 %v485, %v485
  %487 = vst [vmem:[%s3] sm:$0xf] %v486
  // Predicated region
  $region14: #{vae_forward.9} parent=0 // pred_check
    _
  $region15: #{vae_forward.9} parent=0 // pred_check_branch
    %489 = sbr.rel (0) target = $region17
  $region16: #{vae_forward.9} parent=0 // pred_region
    _
  $region17: #{vae_forward.9} parent=0 // pred_fallthru
    _
  // Predicated region
  $region18: #{vae_forward.9} parent=0 // pred_check
    _
  $region19: #{vae_forward.9} parent=0 // pred_check_branch
    %491 = sbr.rel (0) target = $region21
  $region20: #{vae_forward.9} parent=0 // pred_region
    _
  $region21: #{vae_forward.9} parent=0 // pred_fallthru
    _

// kernel: vae_forward.11
$region0: #{vae_forward.11}
  #allocation0 [shape = 'u32[]', space=smem, size = 0x4, offset = 0x4, fixed_abs, tag = 'smem constant byte address 0x4 - core index']
  #allocation1 [shape = 'u32[144,128]{1,0:T(1,128)}', space=vmem, size = 0x12000, scoped, tag = 'internal scratch']
  %s0 = inlined_call_operand.vmem [shape: bf16[32,1152], index: 0, kind: input, shape index: {}]
  %s1 = inlined_call_operand.vmem [shape: bf16[1152,128], index: 1, kind: input, shape index: {}]
  %s2 = inlined_call_operand.vmem [shape: f32[1,128], index: 2, kind: input, shape index: {}]
  %s3 = inlined_call_operand.vmem [shape: bf16[32,128], index: 3, kind: output, shape index: {}]
  %s4 = sld [smem:[#allocation0]]
  $region22: #{vae_forward.11} parent=0
    _
  %s6 = ssub.s32 1, %s4
  %s7 = scalar_select 0, %s6, %s4
  // Predicated region
  $region2: #{vae_forward.11} parent=0 // pred_check
    _
  $region3: #{vae_forward.11} parent=0 // pred_check_branch
    %9 = sbr.rel (0) target = $region5
  $region4: #{vae_forward.11} parent=0 // pred_region
    _
  $region5: #{vae_forward.11} parent=0 // pred_fallthru
    _
  // Predicated region
  $region6: #{vae_forward.11} parent=0 // pred_check
    _
  $region7: #{vae_forward.11} parent=0 // pred_check_branch
    %11 = sbr.rel (0) target = $region9
  $region8: #{vae_forward.11} parent=0 // pred_region
    _
  $region9: #{vae_forward.11} parent=0 // pred_fallthru
    _
  // Predicated region
  $region10: #{vae_forward.11} parent=0 // pred_check
    _
  $region11: #{vae_forward.11} parent=0 // pred_check_branch
    %13 = sbr.rel (0) target = $region13
  $region12: #{vae_forward.11} parent=0 // pred_region
    _
  $region13: #{vae_forward.11} parent=0 // pred_fallthru
    _
  %v15 = vld [vmem:[%s0] sm:$0xff]
  %v16 = vld [vmem:[%s0 + $0x8] sm:$0xff]
  %v17 = vld [vmem:[%s0 + $0x10] sm:$0xff]
  %v18 = vld [vmem:[%s0 + $0x18] sm:$0xff]
  %v19 = vld [vmem:[%s0 + $0x20] sm:$0xf]
  %v20 = vld [vmem:[%s0 + $0x24] sm:$0xff]
  %v21 = vld [vmem:[%s0 + $0x2c] sm:$0xff]
  %v22 = vld [vmem:[%s0 + $0x34] sm:$0xff]
  %v23 = vld [vmem:[%s0 + $0x3c] sm:$0xff]
  %v24 = vld [vmem:[%s0 + $0x44] sm:$0xf]
  %v25 = vld [vmem:[%s0 + $0x48] sm:$0xff]
  %v26 = vld [vmem:[%s0 + $0x50] sm:$0xff]
  %v27 = vld [vmem:[%s0 + $0x58] sm:$0xff]
  %v28 = vld [vmem:[%s0 + $0x60] sm:$0xff]
  %v29 = vld [vmem:[%s0 + $0x68] sm:$0xf]
  %v30 = vld [vmem:[%s0 + $0x6c] sm:$0xff]
  %v31 = vld [vmem:[%s0 + $0x74] sm:$0xff]
  %v32 = vld [vmem:[%s0 + $0x7c] sm:$0xff]
  %v33 = vld [vmem:[%s0 + $0x84] sm:$0xff]
  %v34 = vld [vmem:[%s0 + $0x8c] sm:$0xf]
  %v35 = vld [vmem:[%s1] sm:$0xf]
  %v36 = vld [vmem:[%s1 + $0x4] sm:$0xf]
  %v37 = vld [vmem:[%s1 + $0x8] sm:$0xf]
  %v38 = vld [vmem:[%s1 + $0xc] sm:$0xf]
  %v39 = vld [vmem:[%s1 + $0x10] sm:$0xf]
  %v40 = vld [vmem:[%s1 + $0x14] sm:$0xf]
  %v41 = vld [vmem:[%s1 + $0x18] sm:$0xf]
  %v42 = vld [vmem:[%s1 + $0x1c] sm:$0xf]
  %v43 = vld [vmem:[%s1 + $0x20] sm:$0xf]
  %v44 = vld [vmem:[%s1 + $0x24] sm:$0xf]
  %v45 = vld [vmem:[%s1 + $0x28] sm:$0xf]
  %v46 = vld [vmem:[%s1 + $0x2c] sm:$0xf]
  %v47 = vld [vmem:[%s1 + $0x30] sm:$0xf]
  %v48 = vld [vmem:[%s1 + $0x34] sm:$0xf]
  %v49 = vld [vmem:[%s1 + $0x38] sm:$0xf]
  %v50 = vld [vmem:[%s1 + $0x3c] sm:$0xf]
  %v51 = vld [vmem:[%s1 + $0x40] sm:$0xf]
  %v52 = vld [vmem:[%s1 + $0x44] sm:$0xf]
  %v53 = vld [vmem:[%s1 + $0x48] sm:$0xf]
  %v54 = vld [vmem:[%s1 + $0x4c] sm:$0xf]
  %v55 = vld [vmem:[%s1 + $0x50] sm:$0xf]
  %v56 = vld [vmem:[%s1 + $0x54] sm:$0xf]
  %v57 = vld [vmem:[%s1 + $0x58] sm:$0xf]
  %v58 = vld [vmem:[%s1 + $0x5c] sm:$0xf]
  %v59 = vld [vmem:[%s1 + $0x60] sm:$0xf]
  %v60 = vld [vmem:[%s1 + $0x64] sm:$0xf]
  %v61 = vld [vmem:[%s1 + $0x68] sm:$0xf]
  %v62 = vld [vmem:[%s1 + $0x6c] sm:$0xf]
  %v63 = vld [vmem:[%s1 + $0x70] sm:$0xf]
  %v64 = vld [vmem:[%s1 + $0x74] sm:$0xf]
  %v65 = vld [vmem:[%s1 + $0x78] sm:$0xf]
  %v66 = vld [vmem:[%s1 + $0x7c] sm:$0xf]
  %v67 = vld [vmem:[%s1 + $0x80] sm:$0xf]
  %v68 = vld [vmem:[%s1 + $0x84] sm:$0xf]
  %v69 = vld [vmem:[%s1 + $0x88] sm:$0xf]
  %v70 = vld [vmem:[%s1 + $0x8c] sm:$0xf]
  %v71 = vld [vmem:[%s1 + $0x90] sm:$0xf]
  %v72 = vld [vmem:[%s1 + $0x94] sm:$0xf]
  %v73 = vld [vmem:[%s1 + $0x98] sm:$0xf]
  %v74 = vld [vmem:[%s1 + $0x9c] sm:$0xf]
  %v75 = vld [vmem:[%s1 + $0xa0] sm:$0xf]
  %v76 = vld [vmem:[%s1 + $0xa4] sm:$0xf]
  %v77 = vld [vmem:[%s1 + $0xa8] sm:$0xf]
  %v78 = vld [vmem:[%s1 + $0xac] sm:$0xf]
  %v79 = vld [vmem:[%s1 + $0xb0] sm:$0xf]
  %v80 = vld [vmem:[%s1 + $0xb4] sm:$0xf]
  %v81 = vld [vmem:[%s1 + $0xb8] sm:$0xf]
  %v82 = vld [vmem:[%s1 + $0xbc] sm:$0xf]
  %v83 = vld [vmem:[%s1 + $0xc0] sm:$0xf]
  %v84 = vld [vmem:[%s1 + $0xc4] sm:$0xf]
  %v85 = vld [vmem:[%s1 + $0xc8] sm:$0xf]
  %v86 = vld [vmem:[%s1 + $0xcc] sm:$0xf]
  %v87 = vld [vmem:[%s1 + $0xd0] sm:$0xf]
  %v88 = vld [vmem:[%s1 + $0xd4] sm:$0xf]
  %v89 = vld [vmem:[%s1 + $0xd8] sm:$0xf]
  %v90 = vld [vmem:[%s1 + $0xdc] sm:$0xf]
  %v91 = vld [vmem:[%s1 + $0xe0] sm:$0xf]
  %v92 = vld [vmem:[%s1 + $0xe4] sm:$0xf]
  %v93 = vld [vmem:[%s1 + $0xe8] sm:$0xf]
  %v94 = vld [vmem:[%s1 + $0xec] sm:$0xf]
  %v95 = vld [vmem:[%s1 + $0xf0] sm:$0xf]
  %v96 = vld [vmem:[%s1 + $0xf4] sm:$0xf]
  %v97 = vld [vmem:[%s1 + $0xf8] sm:$0xf]
  %v98 = vld [vmem:[%s1 + $0xfc] sm:$0xf]
  %v99 = vld [vmem:[%s1 + $0x100] sm:$0xf]
  %v100 = vld [vmem:[%s1 + $0x104] sm:$0xf]
  %v101 = vld [vmem:[%s1 + $0x108] sm:$0xf]
  %v102 = vld [vmem:[%s1 + $0x10c] sm:$0xf]
  %v103 = vld [vmem:[%s1 + $0x110] sm:$0xf]
  %v104 = vld [vmem:[%s1 + $0x114] sm:$0xf]
  %v105 = vld [vmem:[%s1 + $0x118] sm:$0xf]
  %v106 = vld [vmem:[%s1 + $0x11c] sm:$0xf]
  %v107 = vld [vmem:[%s1 + $0x120] sm:$0xf]
  %v108 = vld [vmem:[%s1 + $0x124] sm:$0xf]
  %v109 = vld [vmem:[%s1 + $0x128] sm:$0xf]
  %v110 = vld [vmem:[%s1 + $0x12c] sm:$0xf]
  %v111 = vld [vmem:[%s1 + $0x130] sm:$0xf]
  %v112 = vld [vmem:[%s1 + $0x134] sm:$0xf]
  %v113 = vld [vmem:[%s1 + $0x138] sm:$0xf]
  %v114 = vld [vmem:[%s1 + $0x13c] sm:$0xf]
  %v115 = vld [vmem:[%s1 + $0x140] sm:$0xf]
  %v116 = vld [vmem:[%s1 + $0x144] sm:$0xf]
  %v117 = vld [vmem:[%s1 + $0x148] sm:$0xf]
  %v118 = vld [vmem:[%s1 + $0x14c] sm:$0xf]
  %v119 = vld [vmem:[%s1 + $0x150] sm:$0xf]
  %v120 = vld [vmem:[%s1 + $0x154] sm:$0xf]
  %v121 = vld [vmem:[%s1 + $0x158] sm:$0xf]
  %v122 = vld [vmem:[%s1 + $0x15c] sm:$0xf]
  %v123 = vld [vmem:[%s1 + $0x160] sm:$0xf]
  %v124 = vld [vmem:[%s1 + $0x164] sm:$0xf]
  %v125 = vld [vmem:[%s1 + $0x168] sm:$0xf]
  %v126 = vld [vmem:[%s1 + $0x16c] sm:$0xf]
  %v127 = vld [vmem:[%s1 + $0x170] sm:$0xf]
  %v128 = vld [vmem:[%s1 + $0x174] sm:$0xf]
  %v129 = vld [vmem:[%s1 + $0x178] sm:$0xf]
  %v130 = vld [vmem:[%s1 + $0x17c] sm:$0xf]
  %v131 = vld [vmem:[%s1 + $0x180] sm:$0xf]
  %v132 = vld [vmem:[%s1 + $0x184] sm:$0xf]
  %v133 = vld [vmem:[%s1 + $0x188] sm:$0xf]
  %v134 = vld [vmem:[%s1 + $0x18c] sm:$0xf]
  %v135 = vld [vmem:[%s1 + $0x190] sm:$0xf]
  %v136 = vld [vmem:[%s1 + $0x194] sm:$0xf]
  %v137 = vld [vmem:[%s1 + $0x198] sm:$0xf]
  %v138 = vld [vmem:[%s1 + $0x19c] sm:$0xf]
  %v139 = vld [vmem:[%s1 + $0x1a0] sm:$0xf]
  %v140 = vld [vmem:[%s1 + $0x1a4] sm:$0xf]
  %v141 = vld [vmem:[%s1 + $0x1a8] sm:$0xf]
  %v142 = vld [vmem:[%s1 + $0x1ac] sm:$0xf]
  %v143 = vld [vmem:[%s1 + $0x1b0] sm:$0xf]
  %v144 = vld [vmem:[%s1 + $0x1b4] sm:$0xf]
  %v145 = vld [vmem:[%s1 + $0x1b8] sm:$0xf]
  %v146 = vld [vmem:[%s1 + $0x1bc] sm:$0xf]
  %v147 = vld [vmem:[%s1 + $0x1c0] sm:$0xf]
  %v148 = vld [vmem:[%s1 + $0x1c4] sm:$0xf]
  %v149 = vld [vmem:[%s1 + $0x1c8] sm:$0xf]
  %v150 = vld [vmem:[%s1 + $0x1cc] sm:$0xf]
  %v151 = vld [vmem:[%s1 + $0x1d0] sm:$0xf]
  %v152 = vld [vmem:[%s1 + $0x1d4] sm:$0xf]
  %v153 = vld [vmem:[%s1 + $0x1d8] sm:$0xf]
  %v154 = vld [vmem:[%s1 + $0x1dc] sm:$0xf]
  %v155 = vld [vmem:[%s1 + $0x1e0] sm:$0xf]
  %v156 = vld [vmem:[%s1 + $0x1e4] sm:$0xf]
  %v157 = vld [vmem:[%s1 + $0x1e8] sm:$0xf]
  %v158 = vld [vmem:[%s1 + $0x1ec] sm:$0xf]
  %v159 = vld [vmem:[%s1 + $0x1f0] sm:$0xf]
  %v160 = vld [vmem:[%s1 + $0x1f4] sm:$0xf]
  %v161 = vld [vmem:[%s1 + $0x1f8] sm:$0xf]
  %v162 = vld [vmem:[%s1 + $0x1fc] sm:$0xf]
  %v163 = vld [vmem:[%s1 + $0x200] sm:$0xf]
  %v164 = vld [vmem:[%s1 + $0x204] sm:$0xf]
  %v165 = vld [vmem:[%s1 + $0x208] sm:$0xf]
  %v166 = vld [vmem:[%s1 + $0x20c] sm:$0xf]
  %v167 = vld [vmem:[%s1 + $0x210] sm:$0xf]
  %v168 = vld [vmem:[%s1 + $0x214] sm:$0xf]
  %v169 = vld [vmem:[%s1 + $0x218] sm:$0xf]
  %v170 = vld [vmem:[%s1 + $0x21c] sm:$0xf]
  %v171 = vld [vmem:[%s1 + $0x220] sm:$0xf]
  %v172 = vld [vmem:[%s1 + $0x224] sm:$0xf]
  %v173 = vld [vmem:[%s1 + $0x228] sm:$0xf]
  %v174 = vld [vmem:[%s1 + $0x22c] sm:$0xf]
  %v175 = vld [vmem:[%s1 + $0x230] sm:$0xf]
  %v176 = vld [vmem:[%s1 + $0x234] sm:$0xf]
  %v177 = vld [vmem:[%s1 + $0x238] sm:$0xf]
  %v178 = vld [vmem:[%s1 + $0x23c] sm:$0xf]
  %v179 = vld [vmem:[%s2] sm:$0x1]
  %v181 = vlaneseq
  %v182 = vshrl.u32 %v181, 7
  %v183 = vsub.s32 0, %v182
  %v184 = vrot.slane %v179, %v183
  %v206 = vunpack.c.l.b16 %v15
  %v207 = vunpack.c.h.b16 %v15
  %v208 = vunpack.c.l.b16 %v16
  %v209 = vunpack.c.h.b16 %v16
  %v210 = vunpack.c.l.b16 %v17
  %v211 = vunpack.c.h.b16 %v17
  %v212 = vunpack.c.l.b16 %v18
  %v213 = vunpack.c.h.b16 %v18
  %v214 = vunpack.c.l.b16 %v19
  %v215 = vunpack.c.l.b16 %v20
  %v216 = vunpack.c.h.b16 %v20
  %v217 = vunpack.c.l.b16 %v21
  %v218 = vunpack.c.h.b16 %v21
  %v219 = vunpack.c.l.b16 %v22
  %v220 = vunpack.c.h.b16 %v22
  %v221 = vunpack.c.l.b16 %v23
  %v222 = vunpack.c.h.b16 %v23
  %v223 = vunpack.c.l.b16 %v24
  %v224 = vunpack.c.l.b16 %v25
  %v225 = vunpack.c.h.b16 %v25
  %v226 = vunpack.c.l.b16 %v26
  %v227 = vunpack.c.h.b16 %v26
  %v228 = vunpack.c.l.b16 %v27
  %v229 = vunpack.c.h.b16 %v27
  %v230 = vunpack.c.l.b16 %v28
  %v231 = vunpack.c.h.b16 %v28
  %v232 = vunpack.c.l.b16 %v29
  %v233 = vunpack.c.l.b16 %v30
  %v234 = vunpack.c.h.b16 %v30
  %v235 = vunpack.c.l.b16 %v31
  %v236 = vunpack.c.h.b16 %v31
  %v237 = vunpack.c.l.b16 %v32
  %v238 = vunpack.c.h.b16 %v32
  %v239 = vunpack.c.l.b16 %v33
  %v240 = vunpack.c.h.b16 %v33
  %v241 = vunpack.c.l.b16 %v34
  %v242 = vpack.c.b16 %v215, %v206
  %v243 = vpack.c.b16 %v216, %v207
  %v244 = vpack.c.b16 %v217, %v208
  %v245 = vpack.c.b16 %v218, %v209
  %v246 = vpack.c.b16 %v219, %v210
  %v247 = vpack.c.b16 %v220, %v211
  %v248 = vpack.c.b16 %v221, %v212
  %v249 = vpack.c.b16 %v222, %v213
  %v250 = vpack.c.b16 %v223, %v214
  %v251 = vpack.c.b16 %v233, %v224
  %v252 = vpack.c.b16 %v234, %v225
  %v253 = vpack.c.b16 %v235, %v226
  %v254 = vpack.c.b16 %v236, %v227
  %v255 = vpack.c.b16 %v237, %v228
  %v256 = vpack.c.b16 %v238, %v229
  %v257 = vpack.c.b16 %v239, %v230
  %v258 = vpack.c.b16 %v240, %v231
  %v259 = vpack.c.b16 %v241, %v232
  %v422 = vunpack.c.l.b16 %v35
  %v423 = vunpack.c.l.b16 %v36
  %v424 = vunpack.c.l.b16 %v37
  %v425 = vunpack.c.l.b16 %v38
  %v426 = vunpack.c.l.b16 %v39
  %v427 = vunpack.c.l.b16 %v40
  %v428 = vunpack.c.l.b16 %v41
  %v429 = vunpack.c.l.b16 %v42
  %v430 = vunpack.c.l.b16 %v43
  %v431 = vunpack.c.l.b16 %v44
  %v432 = vunpack.c.l.b16 %v45
  %v433 = vunpack.c.l.b16 %v46
  %v434 = vunpack.c.l.b16 %v47
  %v435 = vunpack.c.l.b16 %v48
  %v436 = vunpack.c.l.b16 %v49
  %v437 = vunpack.c.l.b16 %v50
  %v438 = vunpack.c.l.b16 %v51
  %v439 = vunpack.c.l.b16 %v52
  %v440 = vunpack.c.l.b16 %v53
  %v441 = vunpack.c.l.b16 %v54
  %v442 = vunpack.c.l.b16 %v55
  %v443 = vunpack.c.l.b16 %v56
  %v444 = vunpack.c.l.b16 %v57
  %v445 = vunpack.c.l.b16 %v58
  %v446 = vunpack.c.l.b16 %v59
  %v447 = vunpack.c.l.b16 %v60
  %v448 = vunpack.c.l.b16 %v61
  %v449 = vunpack.c.l.b16 %v62
  %v450 = vunpack.c.l.b16 %v63
  %v451 = vunpack.c.l.b16 %v64
  %v452 = vunpack.c.l.b16 %v65
  %v453 = vunpack.c.l.b16 %v66
  %v454 = vunpack.c.l.b16 %v67
  %v455 = vunpack.c.l.b16 %v68
  %v456 = vunpack.c.l.b16 %v69
  %v457 = vunpack.c.l.b16 %v70
  %v458 = vunpack.c.l.b16 %v71
  %v459 = vunpack.c.l.b16 %v72
  %v460 = vunpack.c.l.b16 %v73
  %v461 = vunpack.c.l.b16 %v74
  %v462 = vunpack.c.l.b16 %v75
  %v463 = vunpack.c.l.b16 %v76
  %v464 = vunpack.c.l.b16 %v77
  %v465 = vunpack.c.l.b16 %v78
  %v466 = vunpack.c.l.b16 %v79
  %v467 = vunpack.c.l.b16 %v80
  %v468 = vunpack.c.l.b16 %v81
  %v469 = vunpack.c.l.b16 %v82
  %v470 = vunpack.c.l.b16 %v83
  %v471 = vunpack.c.l.b16 %v84
  %v472 = vunpack.c.l.b16 %v85
  %v473 = vunpack.c.l.b16 %v86
  %v474 = vunpack.c.l.b16 %v87
  %v475 = vunpack.c.l.b16 %v88
  %v476 = vunpack.c.l.b16 %v89
  %v477 = vunpack.c.l.b16 %v90
  %v478 = vunpack.c.l.b16 %v91
  %v479 = vunpack.c.l.b16 %v92
  %v480 = vunpack.c.l.b16 %v93
  %v481 = vunpack.c.l.b16 %v94
  %v482 = vunpack.c.l.b16 %v95
  %v483 = vunpack.c.l.b16 %v96
  %v484 = vunpack.c.l.b16 %v97
  %v485 = vunpack.c.l.b16 %v98
  %v486 = vunpack.c.l.b16 %v99
  %v487 = vunpack.c.l.b16 %v100
  %v488 = vunpack.c.l.b16 %v101
  %v489 = vunpack.c.l.b16 %v102
  %v490 = vunpack.c.l.b16 %v103
  %v491 = vunpack.c.l.b16 %v104
  %v492 = vunpack.c.l.b16 %v105
  %v493 = vunpack.c.l.b16 %v106
  %v494 = vunpack.c.l.b16 %v107
  %v495 = vunpack.c.l.b16 %v108
  %v496 = vunpack.c.l.b16 %v109
  %v497 = vunpack.c.l.b16 %v110
  %v498 = vunpack.c.l.b16 %v111
  %v499 = vunpack.c.l.b16 %v112
  %v500 = vunpack.c.l.b16 %v113
  %v501 = vunpack.c.l.b16 %v114
  %v502 = vunpack.c.l.b16 %v115
  %v503 = vunpack.c.l.b16 %v116
  %v504 = vunpack.c.l.b16 %v117
  %v505 = vunpack.c.l.b16 %v118
  %v506 = vunpack.c.l.b16 %v119
  %v507 = vunpack.c.l.b16 %v120
  %v508 = vunpack.c.l.b16 %v121
  %v509 = vunpack.c.l.b16 %v122
  %v510 = vunpack.c.l.b16 %v123
  %v511 = vunpack.c.l.b16 %v124
  %v512 = vunpack.c.l.b16 %v125
  %v513 = vunpack.c.l.b16 %v126
  %v514 = vunpack.c.l.b16 %v127
  %v515 = vunpack.c.l.b16 %v128
  %v516 = vunpack.c.l.b16 %v129
  %v517 = vunpack.c.l.b16 %v130
  %v518 = vunpack.c.l.b16 %v131
  %v519 = vunpack.c.l.b16 %v132
  %v520 = vunpack.c.l.b16 %v133
  %v521 = vunpack.c.l.b16 %v134
  %v522 = vunpack.c.l.b16 %v135
  %v523 = vunpack.c.l.b16 %v136
  %v524 = vunpack.c.l.b16 %v137
  %v525 = vunpack.c.l.b16 %v138
  %v526 = vunpack.c.l.b16 %v139
  %v527 = vunpack.c.l.b16 %v140
  %v528 = vunpack.c.l.b16 %v141
  %v529 = vunpack.c.l.b16 %v142
  %v530 = vunpack.c.l.b16 %v143
  %v531 = vunpack.c.l.b16 %v144
  %v532 = vunpack.c.l.b16 %v145
  %v533 = vunpack.c.l.b16 %v146
  %v534 = vunpack.c.l.b16 %v147
  %v535 = vunpack.c.l.b16 %v148
  %v536 = vunpack.c.l.b16 %v149
  %v537 = vunpack.c.l.b16 %v150
  %v538 = vunpack.c.l.b16 %v151
  %v539 = vunpack.c.l.b16 %v152
  %v540 = vunpack.c.l.b16 %v153
  %v541 = vunpack.c.l.b16 %v154
  %v542 = vunpack.c.l.b16 %v155
  %v543 = vunpack.c.l.b16 %v156
  %v544 = vunpack.c.l.b16 %v157
  %v545 = vunpack.c.l.b16 %v158
  %v546 = vunpack.c.l.b16 %v159
  %v547 = vunpack.c.l.b16 %v160
  %v548 = vunpack.c.l.b16 %v161
  %v549 = vunpack.c.l.b16 %v162
  %v550 = vunpack.c.l.b16 %v163
  %v551 = vunpack.c.l.b16 %v164
  %v552 = vunpack.c.l.b16 %v165
  %v553 = vunpack.c.l.b16 %v166
  %v554 = vunpack.c.l.b16 %v167
  %v555 = vunpack.c.l.b16 %v168
  %v556 = vunpack.c.l.b16 %v169
  %v557 = vunpack.c.l.b16 %v170
  %v558 = vunpack.c.l.b16 %v171
  %v559 = vunpack.c.l.b16 %v172
  %v560 = vunpack.c.l.b16 %v173
  %v561 = vunpack.c.l.b16 %v174
  %v562 = vunpack.c.l.b16 %v175
  %v563 = vunpack.c.l.b16 %v176
  %v564 = vunpack.c.l.b16 %v177
  %v565 = vunpack.c.l.b16 %v178
  %v566 = vpack.c.b16 %v423, %v422
  %v567 = vpack.c.b16 %v425, %v424
  %v568 = vpack.c.b16 %v427, %v426
  %v569 = vpack.c.b16 %v429, %v428
  %v570 = vpack.c.b16 %v431, %v430
  %v571 = vpack.c.b16 %v433, %v432
  %v572 = vpack.c.b16 %v435, %v434
  %v573 = vpack.c.b16 %v437, %v436
  %v574 = vpack.c.b16 %v439, %v438
  %v575 = vpack.c.b16 %v441, %v440
  %v576 = vpack.c.b16 %v443, %v442
  %v577 = vpack.c.b16 %v445, %v444
  %v578 = vpack.c.b16 %v447, %v446
  %v579 = vpack.c.b16 %v449, %v448
  %v580 = vpack.c.b16 %v451, %v450
  %v581 = vpack.c.b16 %v453, %v452
  %v582 = vpack.c.b16 %v455, %v454
  %v583 = vpack.c.b16 %v457, %v456
  %v584 = vpack.c.b16 %v459, %v458
  %v585 = vpack.c.b16 %v461, %v460
  %v586 = vpack.c.b16 %v463, %v462
  %v587 = vpack.c.b16 %v465, %v464
  %v588 = vpack.c.b16 %v467, %v466
  %v589 = vpack.c.b16 %v469, %v468
  %v590 = vpack.c.b16 %v471, %v470
  %v591 = vpack.c.b16 %v473, %v472
  %v592 = vpack.c.b16 %v475, %v474
  %v593 = vpack.c.b16 %v477, %v476
  %v594 = vpack.c.b16 %v479, %v478
  %v595 = vpack.c.b16 %v481, %v480
  %v596 = vpack.c.b16 %v483, %v482
  %v597 = vpack.c.b16 %v485, %v484
  %v598 = vpack.c.b16 %v487, %v486
  %v599 = vpack.c.b16 %v489, %v488
  %v600 = vpack.c.b16 %v491, %v490
  %v601 = vpack.c.b16 %v493, %v492
  %v602 = vpack.c.b16 %v495, %v494
  %v603 = vpack.c.b16 %v497, %v496
  %v604 = vpack.c.b16 %v499, %v498
  %v605 = vpack.c.b16 %v501, %v500
  %v606 = vpack.c.b16 %v503, %v502
  %v607 = vpack.c.b16 %v505, %v504
  %v608 = vpack.c.b16 %v507, %v506
  %v609 = vpack.c.b16 %v509, %v508
  %v610 = vpack.c.b16 %v511, %v510
  %v611 = vpack.c.b16 %v513, %v512
  %v612 = vpack.c.b16 %v515, %v514
  %v613 = vpack.c.b16 %v517, %v516
  %v614 = vpack.c.b16 %v519, %v518
  %v615 = vpack.c.b16 %v521, %v520
  %v616 = vpack.c.b16 %v523, %v522
  %v617 = vpack.c.b16 %v525, %v524
  %v618 = vpack.c.b16 %v527, %v526
  %v619 = vpack.c.b16 %v529, %v528
  %v620 = vpack.c.b16 %v531, %v530
  %v621 = vpack.c.b16 %v533, %v532
  %v622 = vpack.c.b16 %v535, %v534
  %v623 = vpack.c.b16 %v537, %v536
  %v624 = vpack.c.b16 %v539, %v538
  %v625 = vpack.c.b16 %v541, %v540
  %v626 = vpack.c.b16 %v543, %v542
  %v627 = vpack.c.b16 %v545, %v544
  %v628 = vpack.c.b16 %v547, %v546
  %v629 = vpack.c.b16 %v549, %v548
  %v630 = vpack.c.b16 %v551, %v550
  %v631 = vpack.c.b16 %v553, %v552
  %v632 = vpack.c.b16 %v555, %v554
  %v633 = vpack.c.b16 %v557, %v556
  %v634 = vpack.c.b16 %v559, %v558
  %v635 = vpack.c.b16 %v561, %v560
  %v636 = vpack.c.b16 %v563, %v562
  %v637 = vpack.c.b16 %v565, %v564
  %710 = vmatprep.subr.bf16.mxu0 0
  %711 = vmatpush1.bf16.msra.mxu0 %v566
  %712 = vmatprep.subr.bf16.mxu0 0
  %713 = vmatpush1.bf16.msra.mxu0 %v567
  %714 = vmatprep.subr.bf16.mxu0 0
  %715 = vmatpush1.bf16.msra.mxu0 %v568
  %716 = vmatprep.subr.bf16.mxu0 0
  %717 = vmatpush1.bf16.msra.mxu0 %v569
  %718 = vmatprep.subr.bf16.mxu0 0
  %719 = vmatpush1.bf16.msra.mxu0 %v570
  %720 = vmatprep.subr.bf16.mxu0 0
  %721 = vmatpush1.bf16.msra.mxu0 %v571
  %722 = vmatprep.subr.bf16.mxu0 0
  %723 = vmatpush1.bf16.msra.mxu0 %v572
  %724 = vmatprep.subr.bf16.mxu0 0
  %725 = vmatpush1.bf16.msra.mxu0 %v573
  %726 = vmatprep.subr.bf16.mxu0 0
  %727 = vmatpush1.bf16.msra.mxu0 %v574
  %728 = vmatprep.subr.bf16.mxu0 0
  %729 = vmatpush1.bf16.msra.mxu0 %v575
  %730 = vmatprep.subr.bf16.mxu0 0
  %731 = vmatpush1.bf16.msra.mxu0 %v576
  %732 = vmatprep.subr.bf16.mxu0 0
  %733 = vmatpush1.bf16.msra.mxu0 %v577
  %734 = vmatprep.subr.bf16.mxu0 0
  %735 = vmatpush1.bf16.msra.mxu0 %v578
  %736 = vmatprep.subr.bf16.mxu0 0
  %737 = vmatpush1.bf16.msra.mxu0 %v579
  %738 = vmatprep.subr.bf16.mxu0 0
  %739 = vmatpush1.bf16.msra.mxu0 %v580
  %740 = vmatprep.subr.bf16.mxu0 0
  %741 = vmatpush1.bf16.msra.mxu0 %v581
  %742 = vmatprep.mubr.bf16.mxu0 %v243
  %743 = vmatmul.mubr.bf16.gmra.mrb[0].mxu0 %v242
  %v744 = vpop.f32.mrb[0].mxu0
  %v745 = vadd.f32 %v184, %v744
  %v746 = vpop.f32.mrb[0].mxu0
  %v747 = vpop.f32.mrb[0].mxu0
  %v748 = vadd.f32 %v184, %v747
  %v749 = vpop.f32.mrb[0].mxu0
  %750 = vmatprep.mubr.bf16.mxu0 %v252
  %751 = vmatmul.mubr.bf16.gmra.mrb[0].mxu0 %v251
  %v752 = vpop.f32.mrb[0].mxu0
  %v753 = vadd.f32 %v184, %v752
  %v754 = vpop.f32.mrb[0].mxu0
  %v755 = vpop.f32.mrb[0].mxu0
  %v756 = vadd.f32 %v184, %v755
  %v757 = vpop.f32.mrb[0].mxu0
  %758 = vdwg.mxu0
  %759 = vmatprep.subr.bf16.mxu0 0
  %760 = vmatpush1.bf16.msra.mxu0 %v582
  %761 = vmatprep.subr.bf16.mxu0 0
  %762 = vmatpush1.bf16.msra.mxu0 %v583
  %763 = vmatprep.subr.bf16.mxu0 0
  %764 = vmatpush1.bf16.msra.mxu0 %v584
  %765 = vmatprep.subr.bf16.mxu0 0
  %766 = vmatpush1.bf16.msra.mxu0 %v585
  %767 = vmatprep.subr.bf16.mxu0 0
  %768 = vmatpush1.bf16.msra.mxu0 %v586
  %769 = vmatprep.subr.bf16.mxu0 0
  %770 = vmatpush1.bf16.msra.mxu0 %v587
  %771 = vmatprep.subr.bf16.mxu0 0
  %772 = vmatpush1.bf16.msra.mxu0 %v588
  %773 = vmatprep.subr.bf16.mxu0 0
  %774 = vmatpush1.bf16.msra.mxu0 %v589
  %775 = vmatprep.subr.bf16.mxu0 0
  %776 = vmatpush1.bf16.msra.mxu0 %v590
  %777 = vmatprep.subr.bf16.mxu0 0
  %778 = vmatpush1.bf16.msra.mxu0 %v591
  %779 = vmatprep.subr.bf16.mxu0 0
  %780 = vmatpush1.bf16.msra.mxu0 %v592
  %781 = vmatprep.subr.bf16.mxu0 0
  %782 = vmatpush1.bf16.msra.mxu0 %v593
  %783 = vmatprep.subr.bf16.mxu0 0
  %784 = vmatpush1.bf16.msra.mxu0 %v594
  %785 = vmatprep.subr.bf16.mxu0 0
  %786 = vmatpush1.bf16.msra.mxu0 %v595
  %787 = vmatprep.subr.bf16.mxu0 0
  %788 = vmatpush1.bf16.msra.mxu0 %v596
  %789 = vmatprep.subr.bf16.mxu0 0
  %790 = vmatpush1.bf16.msra.mxu0 %v597
  %791 = vmatprep.mubr.bf16.mxu0 %v245
  %792 = vmatmul.mubr.bf16.gmra.mrb[0].mxu0 %v244
  %v793 = vpop.f32.mrb[0].mxu0
  %v794 = vadd.f32 %v745, %v793
  %v795 = vpop.f32.mrb[0].mxu0
  %v796 = vpop.f32.mrb[0].mxu0
  %v797 = vadd.f32 %v748, %v796
  %v798 = vpop.f32.mrb[0].mxu0
  %799 = vmatprep.mubr.bf16.mxu0 %v254
  %800 = vmatmul.mubr.bf16.gmra.mrb[0].mxu0 %v253
  %v801 = vpop.f32.mrb[0].mxu0
  %v802 = vadd.f32 %v753, %v801
  %v803 = vpop.f32.mrb[0].mxu0
  %v804 = vpop.f32.mrb[0].mxu0
  %v805 = vadd.f32 %v756, %v804
  %v806 = vpop.f32.mrb[0].mxu0
  %807 = vdwg.mxu0
  %808 = vmatprep.subr.bf16.mxu0 0
  %809 = vmatpush1.bf16.msra.mxu0 %v598
  %810 = vmatprep.subr.bf16.mxu0 0
  %811 = vmatpush1.bf16.msra.mxu0 %v599
  %812 = vmatprep.subr.bf16.mxu0 0
  %813 = vmatpush1.bf16.msra.mxu0 %v600
  %814 = vmatprep.subr.bf16.mxu0 0
  %815 = vmatpush1.bf16.msra.mxu0 %v601
  %816 = vmatprep.subr.bf16.mxu0 0
  %817 = vmatpush1.bf16.msra.mxu0 %v602
  %818 = vmatprep.subr.bf16.mxu0 0
  %819 = vmatpush1.bf16.msra.mxu0 %v603
  %820 = vmatprep.subr.bf16.mxu0 0
  %821 = vmatpush1.bf16.msra.mxu0 %v604
  %822 = vmatprep.subr.bf16.mxu0 0
  %823 = vmatpush1.bf16.msra.mxu0 %v605
  %824 = vmatprep.subr.bf16.mxu0 0
  %825 = vmatpush1.bf16.msra.mxu0 %v606
  %826 = vmatprep.subr.bf16.mxu0 0
  %827 = vmatpush1.bf16.msra.mxu0 %v607
  %828 = vmatprep.subr.bf16.mxu0 0
  %829 = vmatpush1.bf16.msra.mxu0 %v608
  %830 = vmatprep.subr.bf16.mxu0 0
  %831 = vmatpush1.bf16.msra.mxu0 %v609
  %832 = vmatprep.subr.bf16.mxu0 0
  %833 = vmatpush1.bf16.msra.mxu0 %v610
  %834 = vmatprep.subr.bf16.mxu0 0
  %835 = vmatpush1.bf16.msra.mxu0 %v611
  %836 = vmatprep.subr.bf16.mxu0 0
  %837 = vmatpush1.bf16.msra.mxu0 %v612
  %838 = vmatprep.subr.bf16.mxu0 0
  %839 = vmatpush1.bf16.msra.mxu0 %v613
  %840 = vmatprep.mubr.bf16.mxu0 %v247
  %841 = vmatmul.mubr.bf16.gmra.mrb[0].mxu0 %v246
  %v842 = vpop.f32.mrb[0].mxu0
  %v843 = vadd.f32 %v794, %v842
  %v844 = vpop.f32.mrb[0].mxu0
  %v845 = vpop.f32.mrb[0].mxu0
  %v846 = vadd.f32 %v797, %v845
  %v847 = vpop.f32.mrb[0].mxu0
  %848 = vmatprep.mubr.bf16.mxu0 %v256
  %849 = vmatmul.mubr.bf16.gmra.mrb[0].mxu0 %v255
  %v850 = vpop.f32.mrb[0].mxu0
  %v851 = vadd.f32 %v802, %v850
  %v852 = vpop.f32.mrb[0].mxu0
  %v853 = vpop.f32.mrb[0].mxu0
  %v854 = vadd.f32 %v805, %v853
  %v855 = vpop.f32.mrb[0].mxu0
  %856 = vdwg.mxu0
  %857 = vmatprep.subr.bf16.mxu0 0
  %858 = vmatpush1.bf16.msra.mxu0 %v614
  %859 = vmatprep.subr.bf16.mxu0 0
  %860 = vmatpush1.bf16.msra.mxu0 %v615
  %861 = vmatprep.subr.bf16.mxu0 0
  %862 = vmatpush1.bf16.msra.mxu0 %v616
  %863 = vmatprep.subr.bf16.mxu0 0
  %864 = vmatpush1.bf16.msra.mxu0 %v617
  %865 = vmatprep.subr.bf16.mxu0 0
  %866 = vmatpush1.bf16.msra.mxu0 %v618
  %867 = vmatprep.subr.bf16.mxu0 0
  %868 = vmatpush1.bf16.msra.mxu0 %v619
  %869 = vmatprep.subr.bf16.mxu0 0
  %870 = vmatpush1.bf16.msra.mxu0 %v620
  %871 = vmatprep.subr.bf16.mxu0 0
  %872 = vmatpush1.bf16.msra.mxu0 %v621
  %873 = vmatprep.subr.bf16.mxu0 0
  %874 = vmatpush1.bf16.msra.mxu0 %v622
  %875 = vmatprep.subr.bf16.mxu0 0
  %876 = vmatpush1.bf16.msra.mxu0 %v623
  %877 = vmatprep.subr.bf16.mxu0 0
  %878 = vmatpush1.bf16.msra.mxu0 %v624
  %879 = vmatprep.subr.bf16.mxu0 0
  %880 = vmatpush1.bf16.msra.mxu0 %v625
  %881 = vmatprep.subr.bf16.mxu0 0
  %882 = vmatpush1.bf16.msra.mxu0 %v626
  %883 = vmatprep.subr.bf16.mxu0 0
  %884 = vmatpush1.bf16.msra.mxu0 %v627
  %885 = vmatprep.subr.bf16.mxu0 0
  %886 = vmatpush1.bf16.msra.mxu0 %v628
  %887 = vmatprep.subr.bf16.mxu0 0
  %888 = vmatpush1.bf16.msra.mxu0 %v629
  %889 = vmatprep.mubr.bf16.mxu0 %v249
  %890 = vmatmul.mubr.bf16.gmra.mrb[0].mxu0 %v248
  %v891 = vpop.f32.mrb[0].mxu0
  %v892 = vadd.f32 %v843, %v891
  %v893 = vpop.f32.mrb[0].mxu0
  %v894 = vpop.f32.mrb[0].mxu0
  %v895 = vadd.f32 %v846, %v894
  %v896 = vpop.f32.mrb[0].mxu0
  %897 = vmatprep.mubr.bf16.mxu0 %v258
  %898 = vmatmul.mubr.bf16.gmra.mrb[0].mxu0 %v257
  %v899 = vpop.f32.mrb[0].mxu0
  %v900 = vadd.f32 %v851, %v899
  %v901 = vpop.f32.mrb[0].mxu0
  %v902 = vpop.f32.mrb[0].mxu0
  %v903 = vadd.f32 %v854, %v902
  %v904 = vpop.f32.mrb[0].mxu0
  %905 = vdwg.mxu0
  %906 = vmatprep.subr.bf16.mxu0 0
  %907 = vmatpush1.bf16.msra.mxu0 %v630
  %908 = vmatprep.subr.bf16.mxu0 0
  %909 = vmatpush1.bf16.msra.mxu0 %v631
  %910 = vmatprep.subr.bf16.mxu0 0
  %911 = vmatpush1.bf16.msra.mxu0 %v632
  %912 = vmatprep.subr.bf16.mxu0 0
  %913 = vmatpush1.bf16.msra.mxu0 %v633
  %914 = vmatprep.subr.bf16.mxu0 0
  %915 = vmatpush1.bf16.msra.mxu0 %v634
  %916 = vmatprep.subr.bf16.mxu0 0
  %917 = vmatpush1.bf16.msra.mxu0 %v635
  %918 = vmatprep.subr.bf16.mxu0 0
  %919 = vmatpush1.bf16.msra.mxu0 %v636
  %920 = vmatprep.subr.bf16.mxu0 0
  %921 = vmatpush1.bf16.msra.mxu0 %v637
  %922 = vmatprep.subr.bf16.mxu0 0
  %923 = vmatpush1.bf16.msra.mxu0 0
  %924 = vmatprep.subr.bf16.mxu0 0
  %925 = vmatpush1.bf16.msra.mxu0 0
  %926 = vmatprep.subr.bf16.mxu0 0
  %927 = vmatpush1.bf16.msra.mxu0 0
  %928 = vmatprep.subr.bf16.mxu0 0
  %929 = vmatpush1.bf16.msra.mxu0 0
  %930 = vmatprep.subr.bf16.mxu0 0
  %931 = vmatpush1.bf16.msra.mxu0 0
  %932 = vmatprep.subr.bf16.mxu0 0
  %933 = vmatpush1.bf16.msra.mxu0 0
  %934 = vmatprep.subr.bf16.mxu0 0
  %935 = vmatpush1.bf16.msra.mxu0 0
  %936 = vmatprep.subr.bf16.mxu0 0
  %937 = vmatpush1.bf16.msra.mxu0 0
  %938 = vmatprep.mubr.bf16.mxu0 0
  %939 = vmatmul.mubr.bf16.gmra.mrb[0].mxu0 %v250
  %v940 = vpop.f32.mrb[0].mxu0
  %v941 = vadd.f32 %v892, %v940
  %v942 = vpop.f32.mrb[0].mxu0
  %v943 = vpop.f32.mrb[0].mxu0
  %v944 = vadd.f32 %v895, %v943
  %v945 = vpop.f32.mrb[0].mxu0
  %946 = vmatprep.mubr.bf16.mxu0 0
  %947 = vmatmul.mubr.bf16.gmra.mrb[0].mxu0 %v259
  %v948 = vpop.f32.mrb[0].mxu0
  %v949 = vadd.f32 %v900, %v948
  %v950 = vpop.f32.mrb[0].mxu0
  %v951 = vpop.f32.mrb[0].mxu0
  %v952 = vadd.f32 %v903, %v951
  %v953 = vpop.f32.mrb[0].mxu0
  %954 = vdwg.mxu0
  %v955 = vmax.f32 %v941, 0.0
  %v956 = vmax.f32 %v944, 0.0
  %v957 = vmax.f32 %v949, 0.0
  %v958 = vmax.f32 %v952, 0.0
  %v959 = vpack.c.bf16 %v956, %v955
  %v960 = vpack.c.bf16 %v958, %v957
  %v963 = vunpack.c.l.b16 %v959
  %v964 = vunpack.c.h.b16 %v959
  %v965 = vunpack.c.l.b16 %v960
  %v966 = vunpack.c.h.b16 %v960
  %v967 = vpack.c.b16 %v963, %v963
  %v968 = vpack.c.b16 %v964, %v964
  %v969 = vpack.c.b16 %v965, %v965
  %v970 = vpack.c.b16 %v966, %v966
  %975 = vst [vmem:[%s3] sm:$0xf] %v967
  %976 = vst [vmem:[%s3 + $0x4] sm:$0xf] %v968
  %977 = vst [vmem:[%s3 + $0x8] sm:$0xf] %v969
  %978 = vst [vmem:[%s3 + $0xc] sm:$0xf] %v970
  // Predicated region
  $region14: #{vae_forward.11} parent=0 // pred_check
    _
  $region15: #{vae_forward.11} parent=0 // pred_check_branch
    %980 = sbr.rel (0) target = $region17
  $region16: #{vae_forward.11} parent=0 // pred_region
    _
  $region17: #{vae_forward.11} parent=0 // pred_fallthru
    _
  // Predicated region
  $region18: #{vae_forward.11} parent=0 // pred_check
    _
  $region19: #{vae_forward.11} parent=0 // pred_check_branch
    %982 = sbr.rel (0) target = $region21
  $region20: #{vae_forward.11} parent=0 // pred_region
    _
  $region21: #{vae_forward.11} parent=0 // pred_fallthru
    _

// kernel: vae_forward.10
$region0: #{vae_forward.10}
  #allocation0 [shape = 'u32[]', space=smem, size = 0x4, offset = 0x4, fixed_abs, tag = 'smem constant byte address 0x4 - core index']
  #allocation1 [shape = 'u32[144,128]{1,0:T(1,128)}', space=vmem, size = 0x12000, scoped, tag = 'internal scratch']
  %s0 = inlined_call_operand.vmem [shape: bf16[8,512], index: 0, kind: input, shape index: {}]
  %s1 = inlined_call_operand.vmem [shape: f32[8,128], index: 1, kind: input, shape index: {}]
  %s2 = inlined_call_operand.vmem [shape: bf16[512,128], index: 2, kind: input, shape index: {}]
  %s3 = inlined_call_operand.vmem [shape: bf16[128,128], index: 3, kind: input, shape index: {}]
  %s4 = inlined_call_operand.vmem [shape: bf16[128,128], index: 4, kind: input, shape index: {}]
  %s5 = inlined_call_operand.vmem [shape: bf16[128,512], index: 5, kind: input, shape index: {}]
  %s6 = inlined_call_operand.vmem [shape: bf16[512,128], index: 6, kind: input, shape index: {}]
  %s7 = inlined_call_operand.vmem [shape: bf16[128,256], index: 7, kind: input, shape index: {}]
  %s8 = inlined_call_operand.vmem [shape: bf16[256,256], index: 8, kind: input, shape index: {}]
  %s9 = inlined_call_operand.vmem [shape: bf16[256,128], index: 9, kind: input, shape index: {}]
  %s10 = inlined_call_operand.vmem [shape: bf16[128,128], index: 10, kind: input, shape index: {}]
  %s11 = inlined_call_operand.vmem [shape: bf16[128,512], index: 11, kind: input, shape index: {}]
  %s12 = inlined_call_operand.vmem [shape: f32[1,128], index: 12, kind: input, shape index: {}]
  %s13 = inlined_call_operand.vmem [shape: f32[1,128], index: 13, kind: input, shape index: {}]
  %s14 = inlined_call_operand.vmem [shape: f32[1,128], index: 14, kind: input, shape index: {}]
  %s15 = inlined_call_operand.vmem [shape: f32[1,512], index: 15, kind: input, shape index: {}]
  %s16 = inlined_call_operand.vmem [shape: f32[1,128], index: 16, kind: input, shape index: {}]
  %s17 = inlined_call_operand.vmem [shape: f32[1,256], index: 17, kind: input, shape index: {}]
  %s18 = inlined_call_operand.vmem [shape: f32[1,256], index: 18, kind: input, shape index: {}]
  %s19 = inlined_call_operand.vmem [shape: f32[1,128], index: 19, kind: input, shape index: {}]
  %s20 = inlined_call_operand.vmem [shape: f32[1,128], index: 20, kind: input, shape index: {}]
  %s21 = inlined_call_operand.vmem [shape: f32[1,512], index: 21, kind: input, shape index: {}]
  %s22 = inlined_call_operand.vmem [shape: f32[8,128], index: 22, kind: output, shape index: {0}]
  %s23 = inlined_call_operand.vmem [shape: bf16[8,512], index: 23, kind: output, shape index: {1}]
  %24 = xla_tuple %s22, %s23
  %s25 = sld [smem:[#allocation0]]
  $region106: #{vae_forward.10} parent=0
    _
  %s27 = ssub.s32 1, %s25
  %s28 = scalar_select 0, %s27, %s25
  // Predicated region
  $region2: #{vae_forward.10} parent=0 // pred_check
    _
  $region3: #{vae_forward.10} parent=0 // pred_check_branch
    %30 = sbr.rel (0) target = $region5
  $region4: #{vae_forward.10} parent=0 // pred_region
    _
  $region5: #{vae_forward.10} parent=0 // pred_fallthru
    _
  // Predicated region
  $region6: #{vae_forward.10} parent=0 // pred_check
    _
  $region7: #{vae_forward.10} parent=0 // pred_check_branch
    %32 = sbr.rel (0) target = $region9
  $region8: #{vae_forward.10} parent=0 // pred_region
    _
  $region9: #{vae_forward.10} parent=0 // pred_fallthru
    _
  // Predicated region
  $region10: #{vae_forward.10} parent=0 // pred_check
    _
  $region11: #{vae_forward.10} parent=0 // pred_check_branch
    %34 = sbr.rel (0) target = $region13
  $region12: #{vae_forward.10} parent=0 // pred_region
    _
  $region13: #{vae_forward.10} parent=0 // pred_fallthru
    _
  // Predicated region
  $region14: #{vae_forward.10} parent=0 // pred_check
    _
  $region15: #{vae_forward.10} parent=0 // pred_check_branch
    %36 = sbr.rel (0) target = $region17
  $region16: #{vae_forward.10} parent=0 // pred_region
    _
  $region17: #{vae_forward.10} parent=0 // pred_fallthru
    _
  // Predicated region
  $region18: #{vae_forward.10} parent=0 // pred_check
    _
  $region19: #{vae_forward.10} parent=0 // pred_check_branch
    %38 = sbr.rel (0) target = $region21
  $region20: #{vae_forward.10} parent=0 // pred_region
    _
  $region21: #{vae_forward.10} parent=0 // pred_fallthru
    _
  // Predicated region
  $region22: #{vae_forward.10} parent=0 // pred_check
    _
  $region23: #{vae_forward.10} parent=0 // pred_check_branch
    %40 = sbr.rel (0) target = $region25
  $region24: #{vae_forward.10} parent=0 // pred_region
    _
  $region25: #{vae_forward.10} parent=0 // pred_fallthru
    _
  // Predicated region
  $region26: #{vae_forward.10} parent=0 // pred_check
    _
  $region27: #{vae_forward.10} parent=0 // pred_check_branch
    %42 = sbr.rel (0) target = $region29
  $region28: #{vae_forward.10} parent=0 // pred_region
    _
  $region29: #{vae_forward.10} parent=0 // pred_fallthru
    _
  // Predicated region
  $region30: #{vae_forward.10} parent=0 // pred_check
    _
  $region31: #{vae_forward.10} parent=0 // pred_check_branch
    %44 = sbr.rel (0) target = $region33
  $region32: #{vae_forward.10} parent=0 // pred_region
    _
  $region33: #{vae_forward.10} parent=0 // pred_fallthru
    _
  // Predicated region
  $region34: #{vae_forward.10} parent=0 // pred_check
    _
  $region35: #{vae_forward.10} parent=0 // pred_check_branch
    %46 = sbr.rel (0) target = $region37
  $region36: #{vae_forward.10} parent=0 // pred_region
    _
  $region37: #{vae_forward.10} parent=0 // pred_fallthru
    _
  // Predicated region
  $region38: #{vae_forward.10} parent=0 // pred_check
    _
  $region39: #{vae_forward.10} parent=0 // pred_check_branch
    %48 = sbr.rel (0) target = $region41
  $region40: #{vae_forward.10} parent=0 // pred_region
    _
  $region41: #{vae_forward.10} parent=0 // pred_fallthru
    _
  // Predicated region
  $region42: #{vae_forward.10} parent=0 // pred_check
    _
  $region43: #{vae_forward.10} parent=0 // pred_check_branch
    %50 = sbr.rel (0) target = $region45
  $region44: #{vae_forward.10} parent=0 // pred_region
    _
  $region45: #{vae_forward.10} parent=0 // pred_fallthru
    _
  // Predicated region
  $region46: #{vae_forward.10} parent=0 // pred_check
    _
  $region47: #{vae_forward.10} parent=0 // pred_check_branch
    %52 = sbr.rel (0) target = $region49
  $region48: #{vae_forward.10} parent=0 // pred_region
    _
  $region49: #{vae_forward.10} parent=0 // pred_fallthru
    _
  // Predicated region
  $region50: #{vae_forward.10} parent=0 // pred_check
    _
  $region51: #{vae_forward.10} parent=0 // pred_check_branch
    %54 = sbr.rel (0) target = $region53
  $region52: #{vae_forward.10} parent=0 // pred_region
    _
  $region53: #{vae_forward.10} parent=0 // pred_fallthru
    _
  // Predicated region
  $region54: #{vae_forward.10} parent=0 // pred_check
    _
  $region55: #{vae_forward.10} parent=0 // pred_check_branch
    %56 = sbr.rel (0) target = $region57
  $region56: #{vae_forward.10} parent=0 // pred_region
    _
  $region57: #{vae_forward.10} parent=0 // pred_fallthru
    _
  // Predicated region
  $region58: #{vae_forward.10} parent=0 // pred_check
    _
  $region59: #{vae_forward.10} parent=0 // pred_check_branch
    %58 = sbr.rel (0) target = $region61
  $region60: #{vae_forward.10} parent=0 // pred_region
    _
  $region61: #{vae_forward.10} parent=0 // pred_fallthru
    _
  // Predicated region
  $region62: #{vae_forward.10} parent=0 // pred_check
    _
  $region63: #{vae_forward.10} parent=0 // pred_check_branch
    %60 = sbr.rel (0) target = $region65
  $region64: #{vae_forward.10} parent=0 // pred_region
    _
  $region65: #{vae_forward.10} parent=0 // pred_fallthru
    _
  // Predicated region
  $region66: #{vae_forward.10} parent=0 // pred_check
    _
  $region67: #{vae_forward.10} parent=0 // pred_check_branch
    %62 = sbr.rel (0) target = $region69
  $region68: #{vae_forward.10} parent=0 // pred_region
    _
  $region69: #{vae_forward.10} parent=0 // pred_fallthru
    _
  // Predicated region
  $region70: #{vae_forward.10} parent=0 // pred_check
    _
  $region71: #{vae_forward.10} parent=0 // pred_check_branch
    %64 = sbr.rel (0) target = $region73
  $region72: #{vae_forward.10} parent=0 // pred_region
    _
  $region73: #{vae_forward.10} parent=0 // pred_fallthru
    _
  // Predicated region
  $region74: #{vae_forward.10} parent=0 // pred_check
    _
  $region75: #{vae_forward.10} parent=0 // pred_check_branch
    %66 = sbr.rel (0) target = $region77
  $region76: #{vae_forward.10} parent=0 // pred_region
    _
  $region77: #{vae_forward.10} parent=0 // pred_fallthru
    _
  // Predicated region
  $region78: #{vae_forward.10} parent=0 // pred_check
    _
  $region79: #{vae_forward.10} parent=0 // pred_check_branch
    %68 = sbr.rel (0) target = $region81
  $region80: #{vae_forward.10} parent=0 // pred_region
    _
  $region81: #{vae_forward.10} parent=0 // pred_fallthru
    _
  // Predicated region
  $region82: #{vae_forward.10} parent=0 // pred_check
    _
  $region83: #{vae_forward.10} parent=0 // pred_check_branch
    %70 = sbr.rel (0) target = $region85
  $region84: #{vae_forward.10} parent=0 // pred_region
    _
  $region85: #{vae_forward.10} parent=0 // pred_fallthru
    _
  // Predicated region
  $region86: #{vae_forward.10} parent=0 // pred_check
    _
  $region87: #{vae_forward.10} parent=0 // pred_check_branch
    %72 = sbr.rel (0) target = $region89
  $region88: #{vae_forward.10} parent=0 // pred_region
    _
  $region89: #{vae_forward.10} parent=0 // pred_fallthru
    _
  %v74 = vld [vmem:[%s0] sm:$0xff]
  %v75 = vld [vmem:[%s0 + $0x8] sm:$0xff]
  %v76 = vld [vmem:[%s2] sm:$0xf]
  %v77 = vld [vmem:[%s2 + $0x4] sm:$0xf]
  %v78 = vld [vmem:[%s2 + $0x8] sm:$0xf]
  %v79 = vld [vmem:[%s2 + $0xc] sm:$0xf]
  %v80 = vld [vmem:[%s2 + $0x10] sm:$0xf]
  %v81 = vld [vmem:[%s2 + $0x14] sm:$0xf]
  %v82 = vld [vmem:[%s2 + $0x18] sm:$0xf]
  %v83 = vld [vmem:[%s2 + $0x1c] sm:$0xf]
  %v84 = vld [vmem:[%s2 + $0x20] sm:$0xf]
  %v85 = vld [vmem:[%s2 + $0x24] sm:$0xf]
  %v86 = vld [vmem:[%s2 + $0x28] sm:$0xf]
  %v87 = vld [vmem:[%s2 + $0x2c] sm:$0xf]
  %v88 = vld [vmem:[%s2 + $0x30] sm:$0xf]
  %v89 = vld [vmem:[%s2 + $0x34] sm:$0xf]
  %v90 = vld [vmem:[%s2 + $0x38] sm:$0xf]
  %v91 = vld [vmem:[%s2 + $0x3c] sm:$0xf]
  %v92 = vld [vmem:[%s2 + $0x40] sm:$0xf]
  %v93 = vld [vmem:[%s2 + $0x44] sm:$0xf]
  %v94 = vld [vmem:[%s2 + $0x48] sm:$0xf]
  %v95 = vld [vmem:[%s2 + $0x4c] sm:$0xf]
  %v96 = vld [vmem:[%s2 + $0x50] sm:$0xf]
  %v97 = vld [vmem:[%s2 + $0x54] sm:$0xf]
  %v98 = vld [vmem:[%s2 + $0x58] sm:$0xf]
  %v99 = vld [vmem:[%s2 + $0x5c] sm:$0xf]
  %v100 = vld [vmem:[%s2 + $0x60] sm:$0xf]
  %v101 = vld [vmem:[%s2 + $0x64] sm:$0xf]
  %v102 = vld [vmem:[%s2 + $0x68] sm:$0xf]
  %v103 = vld [vmem:[%s2 + $0x6c] sm:$0xf]
  %v104 = vld [vmem:[%s2 + $0x70] sm:$0xf]
  %v105 = vld [vmem:[%s2 + $0x74] sm:$0xf]
  %v106 = vld [vmem:[%s2 + $0x78] sm:$0xf]
  %v107 = vld [vmem:[%s2 + $0x7c] sm:$0xf]
  %v108 = vld [vmem:[%s2 + $0x80] sm:$0xf]
  %v109 = vld [vmem:[%s2 + $0x84] sm:$0xf]
  %v110 = vld [vmem:[%s2 + $0x88] sm:$0xf]
  %v111 = vld [vmem:[%s2 + $0x8c] sm:$0xf]
  %v112 = vld [vmem:[%s2 + $0x90] sm:$0xf]
  %v113 = vld [vmem:[%s2 + $0x94] sm:$0xf]
  %v114 = vld [vmem:[%s2 + $0x98] sm:$0xf]
  %v115 = vld [vmem:[%s2 + $0x9c] sm:$0xf]
  %v116 = vld [vmem:[%s2 + $0xa0] sm:$0xf]
  %v117 = vld [vmem:[%s2 + $0xa4] sm:$0xf]
  %v118 = vld [vmem:[%s2 + $0xa8] sm:$0xf]
  %v119 = vld [vmem:[%s2 + $0xac] sm:$0xf]
  %v120 = vld [vmem:[%s2 + $0xb0] sm:$0xf]
  %v121 = vld [vmem:[%s2 + $0xb4] sm:$0xf]
  %v122 = vld [vmem:[%s2 + $0xb8] sm:$0xf]
  %v123 = vld [vmem:[%s2 + $0xbc] sm:$0xf]
  %v124 = vld [vmem:[%s2 + $0xc0] sm:$0xf]
  %v125 = vld [vmem:[%s2 + $0xc4] sm:$0xf]
  %v126 = vld [vmem:[%s2 + $0xc8] sm:$0xf]
  %v127 = vld [vmem:[%s2 + $0xcc] sm:$0xf]
  %v128 = vld [vmem:[%s2 + $0xd0] sm:$0xf]
  %v129 = vld [vmem:[%s2 + $0xd4] sm:$0xf]
  %v130 = vld [vmem:[%s2 + $0xd8] sm:$0xf]
  %v131 = vld [vmem:[%s2 + $0xdc] sm:$0xf]
  %v132 = vld [vmem:[%s2 + $0xe0] sm:$0xf]
  %v133 = vld [vmem:[%s2 + $0xe4] sm:$0xf]
  %v134 = vld [vmem:[%s2 + $0xe8] sm:$0xf]
  %v135 = vld [vmem:[%s2 + $0xec] sm:$0xf]
  %v136 = vld [vmem:[%s2 + $0xf0] sm:$0xf]
  %v137 = vld [vmem:[%s2 + $0xf4] sm:$0xf]
  %v138 = vld [vmem:[%s2 + $0xf8] sm:$0xf]
  %v139 = vld [vmem:[%s2 + $0xfc] sm:$0xf]
  %v140 = vld [vmem:[%s12] sm:$0x1]
  %v142 = vlaneseq
  %v143 = vshrl.u32 %v142, 7
  %v144 = vsub.s32 0, %v143
  %v145 = vrot.slane %v140, %v144
  %v149 = vunpack.c.l.b16 %v74
  %v150 = vunpack.c.h.b16 %v74
  %v151 = vunpack.c.l.b16 %v75
  %v152 = vunpack.c.h.b16 %v75
  %v153 = vpack.c.b16 %v149, %v149
  %v154 = vpack.c.b16 %v150, %v150
  %v155 = vpack.c.b16 %v151, %v151
  %v156 = vpack.c.b16 %v152, %v152
  %v225 = vunpack.c.l.b16 %v76
  %v226 = vunpack.c.l.b16 %v77
  %v227 = vunpack.c.l.b16 %v78
  %v228 = vunpack.c.l.b16 %v79
  %v229 = vunpack.c.l.b16 %v80
  %v230 = vunpack.c.l.b16 %v81
  %v231 = vunpack.c.l.b16 %v82
  %v232 = vunpack.c.l.b16 %v83
  %v233 = vunpack.c.l.b16 %v84
  %v234 = vunpack.c.l.b16 %v85
  %v235 = vunpack.c.l.b16 %v86
  %v236 = vunpack.c.l.b16 %v87
  %v237 = vunpack.c.l.b16 %v88
  %v238 = vunpack.c.l.b16 %v89
  %v239 = vunpack.c.l.b16 %v90
  %v240 = vunpack.c.l.b16 %v91
  %v241 = vunpack.c.l.b16 %v92
  %v242 = vunpack.c.l.b16 %v93
  %v243 = vunpack.c.l.b16 %v94
  %v244 = vunpack.c.l.b16 %v95
  %v245 = vunpack.c.l.b16 %v96
  %v246 = vunpack.c.l.b16 %v97
  %v247 = vunpack.c.l.b16 %v98
  %v248 = vunpack.c.l.b16 %v99
  %v249 = vunpack.c.l.b16 %v100
  %v250 = vunpack.c.l.b16 %v101
  %v251 = vunpack.c.l.b16 %v102
  %v252 = vunpack.c.l.b16 %v103
  %v253 = vunpack.c.l.b16 %v104
  %v254 = vunpack.c.l.b16 %v105
  %v255 = vunpack.c.l.b16 %v106
  %v256 = vunpack.c.l.b16 %v107
  %v257 = vunpack.c.l.b16 %v108
  %v258 = vunpack.c.l.b16 %v109
  %v259 = vunpack.c.l.b16 %v110
  %v260 = vunpack.c.l.b16 %v111
  %v261 = vunpack.c.l.b16 %v112
  %v262 = vunpack.c.l.b16 %v113
  %v263 = vunpack.c.l.b16 %v114
  %v264 = vunpack.c.l.b16 %v115
  %v265 = vunpack.c.l.b16 %v116
  %v266 = vunpack.c.l.b16 %v117
  %v267 = vunpack.c.l.b16 %v118
  %v268 = vunpack.c.l.b16 %v119
  %v269 = vunpack.c.l.b16 %v120
  %v270 = vunpack.c.l.b16 %v121
  %v271 = vunpack.c.l.b16 %v122
  %v272 = vunpack.c.l.b16 %v123
  %v273 = vunpack.c.l.b16 %v124
  %v274 = vunpack.c.l.b16 %v125
  %v275 = vunpack.c.l.b16 %v126
  %v276 = vunpack.c.l.b16 %v127
  %v277 = vunpack.c.l.b16 %v128
  %v278 = vunpack.c.l.b16 %v129
  %v279 = vunpack.c.l.b16 %v130
  %v280 = vunpack.c.l.b16 %v131
  %v281 = vunpack.c.l.b16 %v132
  %v282 = vunpack.c.l.b16 %v133
  %v283 = vunpack.c.l.b16 %v134
  %v284 = vunpack.c.l.b16 %v135
  %v285 = vunpack.c.l.b16 %v136
  %v286 = vunpack.c.l.b16 %v137
  %v287 = vunpack.c.l.b16 %v138
  %v288 = vunpack.c.l.b16 %v139
  %v289 = vpack.c.b16 %v226, %v225
  %v290 = vpack.c.b16 %v228, %v227
  %v291 = vpack.c.b16 %v230, %v229
  %v292 = vpack.c.b16 %v232, %v231
  %v293 = vpack.c.b16 %v234, %v233
  %v294 = vpack.c.b16 %v236, %v235
  %v295 = vpack.c.b16 %v238, %v237
  %v296 = vpack.c.b16 %v240, %v239
  %v297 = vpack.c.b16 %v242, %v241
  %v298 = vpack.c.b16 %v244, %v243
  %v299 = vpack.c.b16 %v246, %v245
  %v300 = vpack.c.b16 %v248, %v247
  %v301 = vpack.c.b16 %v250, %v249
  %v302 = vpack.c.b16 %v252, %v251
  %v303 = vpack.c.b16 %v254, %v253
  %v304 = vpack.c.b16 %v256, %v255
  %v305 = vpack.c.b16 %v258, %v257
  %v306 = vpack.c.b16 %v260, %v259
  %v307 = vpack.c.b16 %v262, %v261
  %v308 = vpack.c.b16 %v264, %v263
  %v309 = vpack.c.b16 %v266, %v265
  %v310 = vpack.c.b16 %v268, %v267
  %v311 = vpack.c.b16 %v270, %v269
  %v312 = vpack.c.b16 %v272, %v271
  %v313 = vpack.c.b16 %v274, %v273
  %v314 = vpack.c.b16 %v276, %v275
  %v315 = vpack.c.b16 %v278, %v277
  %v316 = vpack.c.b16 %v280, %v279
  %v317 = vpack.c.b16 %v282, %v281
  %v318 = vpack.c.b16 %v284, %v283
  %v319 = vpack.c.b16 %v286, %v285
  %v320 = vpack.c.b16 %v288, %v287
  %353 = vmatprep.subr.bf16.mxu0 0
  %354 = vmatpush1.bf16.msra.mxu0 %v289
  %355 = vmatprep.subr.bf16.mxu0 0
  %356 = vmatpush1.bf16.msra.mxu0 %v290
  %357 = vmatprep.subr.bf16.mxu0 0
  %358 = vmatpush1.bf16.msra.mxu0 %v291
  %359 = vmatprep.subr.bf16.mxu0 0
  %360 = vmatpush1.bf16.msra.mxu0 %v292
  %361 = vmatprep.subr.bf16.mxu0 0
  %362 = vmatpush1.bf16.msra.mxu0 %v293
  %363 = vmatprep.subr.bf16.mxu0 0
  %364 = vmatpush1.bf16.msra.mxu0 %v294
  %365 = vmatprep.subr.bf16.mxu0 0
  %366 = vmatpush1.bf16.msra.mxu0 %v295
  %367 = vmatprep.subr.bf16.mxu0 0
  %368 = vmatpush1.bf16.msra.mxu0 %v296
  %369 = vmatprep.subr.bf16.mxu0 0
  %370 = vmatpush1.bf16.msra.mxu0 %v297
  %371 = vmatprep.subr.bf16.mxu0 0
  %372 = vmatpush1.bf16.msra.mxu0 %v298
  %373 = vmatprep.subr.bf16.mxu0 0
  %374 = vmatpush1.bf16.msra.mxu0 %v299
  %375 = vmatprep.subr.bf16.mxu0 0
  %376 = vmatpush1.bf16.msra.mxu0 %v300
  %377 = vmatprep.subr.bf16.mxu0 0
  %378 = vmatpush1.bf16.msra.mxu0 %v301
  %379 = vmatprep.subr.bf16.mxu0 0
  %380 = vmatpush1.bf16.msra.mxu0 %v302
  %381 = vmatprep.subr.bf16.mxu0 0
  %382 = vmatpush1.bf16.msra.mxu0 %v303
  %383 = vmatprep.subr.bf16.mxu0 0
  %384 = vmatpush1.bf16.msra.mxu0 %v304
  %385 = vmatprep.mubr.bf16.mxu0 %v154
  %386 = vmatmul.mubr.bf16.gmra.mrb[0].mxu0 %v153
  %v387 = vpop.f32.mrb[0].mxu0
  %v388 = vadd.f32 %v145, %v387
  %v389 = vpop.f32.mrb[0].mxu0
  %v390 = vpop.f32.mrb[0].mxu0
  %v391 = vpop.f32.mrb[0].mxu0
  %392 = vdwg.mxu0
  %393 = vmatprep.subr.bf16.mxu0 0
  %394 = vmatpush1.bf16.msra.mxu0 %v305
  %395 = vmatprep.subr.bf16.mxu0 0
  %396 = vmatpush1.bf16.msra.mxu0 %v306
  %397 = vmatprep.subr.bf16.mxu0 0
  %398 = vmatpush1.bf16.msra.mxu0 %v307
  %399 = vmatprep.subr.bf16.mxu0 0
  %400 = vmatpush1.bf16.msra.mxu0 %v308
  %401 = vmatprep.subr.bf16.mxu0 0
  %402 = vmatpush1.bf16.msra.mxu0 %v309
  %403 = vmatprep.subr.bf16.mxu0 0
  %404 = vmatpush1.bf16.msra.mxu0 %v310
  %405 = vmatprep.subr.bf16.mxu0 0
  %406 = vmatpush1.bf16.msra.mxu0 %v311
  %407 = vmatprep.subr.bf16.mxu0 0
  %408 = vmatpush1.bf16.msra.mxu0 %v312
  %409 = vmatprep.subr.bf16.mxu0 0
  %410 = vmatpush1.bf16.msra.mxu0 %v313
  %411 = vmatprep.subr.bf16.mxu0 0
  %412 = vmatpush1.bf16.msra.mxu0 %v314
  %413 = vmatprep.subr.bf16.mxu0 0
  %414 = vmatpush1.bf16.msra.mxu0 %v315
  %415 = vmatprep.subr.bf16.mxu0 0
  %416 = vmatpush1.bf16.msra.mxu0 %v316
  %417 = vmatprep.subr.bf16.mxu0 0
  %418 = vmatpush1.bf16.msra.mxu0 %v317
  %419 = vmatprep.subr.bf16.mxu0 0
  %420 = vmatpush1.bf16.msra.mxu0 %v318
  %421 = vmatprep.subr.bf16.mxu0 0
  %422 = vmatpush1.bf16.msra.mxu0 %v319
  %423 = vmatprep.subr.bf16.mxu0 0
  %424 = vmatpush1.bf16.msra.mxu0 %v320
  %425 = vmatprep.mubr.bf16.mxu0 %v156
  %426 = vmatmul.mubr.bf16.gmra.mrb[0].mxu0 %v155
  %v427 = vpop.f32.mrb[0].mxu0
  %v428 = vadd.f32 %v388, %v427
  %v429 = vpop.f32.mrb[0].mxu0
  %v430 = vpop.f32.mrb[0].mxu0
  %v431 = vpop.f32.mrb[0].mxu0
  %432 = vdwg.mxu0
  %vm433 = vcmp.gt.f32.partialorder %v428, 0.0
  %v434 = vmul.f32 %v428, 0.2
  %v435 = vsel %vm433, %v428, %v434
  %v436 = vpack.c.bf16 %v435, %v435
  %v437 = vld [vmem:[%s3] sm:$0xf]
  %v438 = vld [vmem:[%s3 + $0x4] sm:$0xf]
  %v439 = vld [vmem:[%s3 + $0x8] sm:$0xf]
  %v440 = vld [vmem:[%s3 + $0xc] sm:$0xf]
  %v441 = vld [vmem:[%s3 + $0x10] sm:$0xf]
  %v442 = vld [vmem:[%s3 + $0x14] sm:$0xf]
  %v443 = vld [vmem:[%s3 + $0x18] sm:$0xf]
  %v444 = vld [vmem:[%s3 + $0x1c] sm:$0xf]
  %v445 = vld [vmem:[%s3 + $0x20] sm:$0xf]
  %v446 = vld [vmem:[%s3 + $0x24] sm:$0xf]
  %v447 = vld [vmem:[%s3 + $0x28] sm:$0xf]
  %v448 = vld [vmem:[%s3 + $0x2c] sm:$0xf]
  %v449 = vld [vmem:[%s3 + $0x30] sm:$0xf]
  %v450 = vld [vmem:[%s3 + $0x34] sm:$0xf]
  %v451 = vld [vmem:[%s3 + $0x38] sm:$0xf]
  %v452 = vld [vmem:[%s3 + $0x3c] sm:$0xf]
  %v453 = vld [vmem:[%s13] sm:$0x1]
  %v455 = vlaneseq
  %v456 = vshrl.u32 %v455, 7
  %v457 = vsub.s32 0, %v456
  %v458 = vrot.slane %v453, %v457
  %v476 = vunpack.c.l.b16 %v437
  %v477 = vunpack.c.l.b16 %v438
  %v478 = vunpack.c.l.b16 %v439
  %v479 = vunpack.c.l.b16 %v440
  %v480 = vunpack.c.l.b16 %v441
  %v481 = vunpack.c.l.b16 %v442
  %v482 = vunpack.c.l.b16 %v443
  %v483 = vunpack.c.l.b16 %v444
  %v484 = vunpack.c.l.b16 %v445
  %v485 = vunpack.c.l.b16 %v446
  %v486 = vunpack.c.l.b16 %v447
  %v487 = vunpack.c.l.b16 %v448
  %v488 = vunpack.c.l.b16 %v449
  %v489 = vunpack.c.l.b16 %v450
  %v490 = vunpack.c.l.b16 %v451
  %v491 = vunpack.c.l.b16 %v452
  %v492 = vpack.c.b16 %v477, %v476
  %v493 = vpack.c.b16 %v479, %v478
  %v494 = vpack.c.b16 %v481, %v480
  %v495 = vpack.c.b16 %v483, %v482
  %v496 = vpack.c.b16 %v485, %v484
  %v497 = vpack.c.b16 %v487, %v486
  %v498 = vpack.c.b16 %v489, %v488
  %v499 = vpack.c.b16 %v491, %v490
  %508 = vmatprep.subr.bf16.mxu0 0
  %509 = vmatpush1.bf16.msra.mxu0 %v492
  %510 = vmatprep.subr.bf16.mxu0 0
  %511 = vmatpush1.bf16.msra.mxu0 %v493
  %512 = vmatprep.subr.bf16.mxu0 0
  %513 = vmatpush1.bf16.msra.mxu0 %v494
  %514 = vmatprep.subr.bf16.mxu0 0
  %515 = vmatpush1.bf16.msra.mxu0 %v495
  %516 = vmatprep.subr.bf16.mxu0 0
  %517 = vmatpush1.bf16.msra.mxu0 %v496
  %518 = vmatprep.subr.bf16.mxu0 0
  %519 = vmatpush1.bf16.msra.mxu0 %v497
  %520 = vmatprep.subr.bf16.mxu0 0
  %521 = vmatpush1.bf16.msra.mxu0 %v498
  %522 = vmatprep.subr.bf16.mxu0 0
  %523 = vmatpush1.bf16.msra.mxu0 %v499
  %524 = vmatprep.subr.bf16.mxu0 0
  %525 = vmatpush1.bf16.msra.mxu0 0
  %526 = vmatprep.subr.bf16.mxu0 0
  %527 = vmatpush1.bf16.msra.mxu0 0
  %528 = vmatprep.subr.bf16.mxu0 0
  %529 = vmatpush1.bf16.msra.mxu0 0
  %530 = vmatprep.subr.bf16.mxu0 0
  %531 = vmatpush1.bf16.msra.mxu0 0
  %532 = vmatprep.subr.bf16.mxu0 0
  %533 = vmatpush1.bf16.msra.mxu0 0
  %534 = vmatprep.subr.bf16.mxu0 0
  %535 = vmatpush1.bf16.msra.mxu0 0
  %536 = vmatprep.subr.bf16.mxu0 0
  %537 = vmatpush1.bf16.msra.mxu0 0
  %538 = vmatprep.subr.bf16.mxu0 0
  %539 = vmatpush1.bf16.msra.mxu0 0
  %540 = vmatprep.mubr.bf16.mxu0 0
  %541 = vmatmul.mubr.bf16.gmra.mrb[0].mxu0 %v436
  %v542 = vpop.f32.mrb[0].mxu0
  %v543 = vadd.f32 %v458, %v542
  %v544 = vpop.f32.mrb[0].mxu0
  %v545 = vpop.f32.mrb[0].mxu0
  %v546 = vpop.f32.mrb[0].mxu0
  %547 = vdwg.mxu0
  %vm548 = vcmp.gt.f32.partialorder %v543, 0.0
  %v549 = vmul.f32 %v543, 0.2
  %v550 = vsel %vm548, %v543, %v549
  %v551 = vpack.c.bf16 %v550, %v550
  %v552 = vld [vmem:[%s4] sm:$0xf]
  %v553 = vld [vmem:[%s4 + $0x4] sm:$0xf]
  %v554 = vld [vmem:[%s4 + $0x8] sm:$0xf]
  %v555 = vld [vmem:[%s4 + $0xc] sm:$0xf]
  %v556 = vld [vmem:[%s4 + $0x10] sm:$0xf]
  %v557 = vld [vmem:[%s4 + $0x14] sm:$0xf]
  %v558 = vld [vmem:[%s4 + $0x18] sm:$0xf]
  %v559 = vld [vmem:[%s4 + $0x1c] sm:$0xf]
  %v560 = vld [vmem:[%s4 + $0x20] sm:$0xf]
  %v561 = vld [vmem:[%s4 + $0x24] sm:$0xf]
  %v562 = vld [vmem:[%s4 + $0x28] sm:$0xf]
  %v563 = vld [vmem:[%s4 + $0x2c] sm:$0xf]
  %v564 = vld [vmem:[%s4 + $0x30] sm:$0xf]
  %v565 = vld [vmem:[%s4 + $0x34] sm:$0xf]
  %v566 = vld [vmem:[%s4 + $0x38] sm:$0xf]
  %v567 = vld [vmem:[%s4 + $0x3c] sm:$0xf]
  %v568 = vld [vmem:[%s14] sm:$0x1]
  %v570 = vlaneseq
  %v571 = vshrl.u32 %v570, 7
  %v572 = vsub.s32 0, %v571
  %v573 = vrot.slane %v568, %v572
  %v591 = vunpack.c.l.b16 %v552
  %v592 = vunpack.c.l.b16 %v553
  %v593 = vunpack.c.l.b16 %v554
  %v594 = vunpack.c.l.b16 %v555
  %v595 = vunpack.c.l.b16 %v556
  %v596 = vunpack.c.l.b16 %v557
  %v597 = vunpack.c.l.b16 %v558
  %v598 = vunpack.c.l.b16 %v559
  %v599 = vunpack.c.l.b16 %v560
  %v600 = vunpack.c.l.b16 %v561
  %v601 = vunpack.c.l.b16 %v562
  %v602 = vunpack.c.l.b16 %v563
  %v603 = vunpack.c.l.b16 %v564
  %v604 = vunpack.c.l.b16 %v565
  %v605 = vunpack.c.l.b16 %v566
  %v606 = vunpack.c.l.b16 %v567
  %v607 = vpack.c.b16 %v592, %v591
  %v608 = vpack.c.b16 %v594, %v593
  %v609 = vpack.c.b16 %v596, %v595
  %v610 = vpack.c.b16 %v598, %v597
  %v611 = vpack.c.b16 %v600, %v599
  %v612 = vpack.c.b16 %v602, %v601
  %v613 = vpack.c.b16 %v604, %v603
  %v614 = vpack.c.b16 %v606, %v605
  %623 = vmatprep.subr.bf16.mxu0 0
  %624 = vmatpush1.bf16.msra.mxu0 %v607
  %625 = vmatprep.subr.bf16.mxu0 0
  %626 = vmatpush1.bf16.msra.mxu0 %v608
  %627 = vmatprep.subr.bf16.mxu0 0
  %628 = vmatpush1.bf16.msra.mxu0 %v609
  %629 = vmatprep.subr.bf16.mxu0 0
  %630 = vmatpush1.bf16.msra.mxu0 %v610
  %631 = vmatprep.subr.bf16.mxu0 0
  %632 = vmatpush1.bf16.msra.mxu0 %v611
  %633 = vmatprep.subr.bf16.mxu0 0
  %634 = vmatpush1.bf16.msra.mxu0 %v612
  %635 = vmatprep.subr.bf16.mxu0 0
  %636 = vmatpush1.bf16.msra.mxu0 %v613
  %637 = vmatprep.subr.bf16.mxu0 0
  %638 = vmatpush1.bf16.msra.mxu0 %v614
  %639 = vmatprep.subr.bf16.mxu0 0
  %640 = vmatpush1.bf16.msra.mxu0 0
  %641 = vmatprep.subr.bf16.mxu0 0
  %642 = vmatpush1.bf16.msra.mxu0 0
  %643 = vmatprep.subr.bf16.mxu0 0
  %644 = vmatpush1.bf16.msra.mxu0 0
  %645 = vmatprep.subr.bf16.mxu0 0
  %646 = vmatpush1.bf16.msra.mxu0 0
  %647 = vmatprep.subr.bf16.mxu0 0
  %648 = vmatpush1.bf16.msra.mxu0 0
  %649 = vmatprep.subr.bf16.mxu0 0
  %650 = vmatpush1.bf16.msra.mxu0 0
  %651 = vmatprep.subr.bf16.mxu0 0
  %652 = vmatpush1.bf16.msra.mxu0 0
  %653 = vmatprep.subr.bf16.mxu0 0
  %654 = vmatpush1.bf16.msra.mxu0 0
  %655 = vmatprep.mubr.bf16.mxu0 0
  %656 = vmatmul.mubr.bf16.gmra.mrb[0].mxu0 %v551
  %v657 = vpop.f32.mrb[0].mxu0
  %v658 = vadd.f32 %v573, %v657
  %v659 = vpop.f32.mrb[0].mxu0
  %v660 = vpop.f32.mrb[0].mxu0
  %v661 = vpop.f32.mrb[0].mxu0
  %662 = vdwg.mxu0
  %vm663 = vcmp.gt.f32.partialorder %v658, 0.0
  %v664 = vmul.f32 %v658, 0.2
  %v665 = vsel %vm663, %v658, %v664
  %v666 = vpack.c.bf16 %v665, %v665
  %v667 = vld [vmem:[%s5] sm:$0xff]
  %v668 = vld [vmem:[%s5 + $0x8] sm:$0xff]
  %v669 = vld [vmem:[%s5 + $0x10] sm:$0xff]
  %v670 = vld [vmem:[%s5 + $0x18] sm:$0xff]
  %v671 = vld [vmem:[%s5 + $0x20] sm:$0xff]
  %v672 = vld [vmem:[%s5 + $0x28] sm:$0xff]
  %v673 = vld [vmem:[%s5 + $0x30] sm:$0xff]
  %v674 = vld [vmem:[%s5 + $0x38] sm:$0xff]
  %v675 = vld [vmem:[%s5 + $0x40] sm:$0xff]
  %v676 = vld [vmem:[%s5 + $0x48] sm:$0xff]
  %v677 = vld [vmem:[%s5 + $0x50] sm:$0xff]
  %v678 = vld [vmem:[%s5 + $0x58] sm:$0xff]
  %v679 = vld [vmem:[%s5 + $0x60] sm:$0xff]
  %v680 = vld [vmem:[%s5 + $0x68] sm:$0xff]
  %v681 = vld [vmem:[%s5 + $0x70] sm:$0xff]
  %v682 = vld [vmem:[%s5 + $0x78] sm:$0xff]
  %v683 = vld [vmem:[%s5 + $0x80] sm:$0xff]
  %v684 = vld [vmem:[%s5 + $0x88] sm:$0xff]
  %v685 = vld [vmem:[%s5 + $0x90] sm:$0xff]
  %v686 = vld [vmem:[%s5 + $0x98] sm:$0xff]
  %v687 = vld [vmem:[%s5 + $0xa0] sm:$0xff]
  %v688 = vld [vmem:[%s5 + $0xa8] sm:$0xff]
  %v689 = vld [vmem:[%s5 + $0xb0] sm:$0xff]
  %v690 = vld [vmem:[%s5 + $0xb8] sm:$0xff]
  %v691 = vld [vmem:[%s5 + $0xc0] sm:$0xff]
  %v692 = vld [vmem:[%s5 + $0xc8] sm:$0xff]
  %v693 = vld [vmem:[%s5 + $0xd0] sm:$0xff]
  %v694 = vld [vmem:[%s5 + $0xd8] sm:$0xff]
  %v695 = vld [vmem:[%s5 + $0xe0] sm:$0xff]
  %v696 = vld [vmem:[%s5 + $0xe8] sm:$0xff]
  %v697 = vld [vmem:[%s5 + $0xf0] sm:$0xff]
  %v698 = vld [vmem:[%s5 + $0xf8] sm:$0xff]
  %v699 = vld [vmem:[%s15] sm:$0xf]
  %v701 = vlaneseq
  %v702 = vshrl.u32 %v701, 7
  %v703 = vsub.s32 0, %v702
  %v704 = vrot.slane %v699, %v703
  %v705 = vlaneseq
  %v706 = vshrl.u32 %v705, 7
  %v707 = vsub.s32 1, %v706
  %v708 = vrot.slane %v699, %v707
  %v709 = vlaneseq
  %v710 = vshrl.u32 %v709, 7
  %v711 = vsub.s32 2, %v710
  %v712 = vrot.slane %v699, %v711
  %v713 = vlaneseq
  %v714 = vshrl.u32 %v713, 7
  %v715 = vsub.s32 3, %v714
  %v716 = vrot.slane %v699, %v715
  %v753 = vunpack.c.l.b16 %v667
  %v754 = vunpack.c.h.b16 %v667
  %v755 = vunpack.c.l.b16 %v668
  %v756 = vunpack.c.h.b16 %v668
  %v757 = vunpack.c.l.b16 %v669
  %v758 = vunpack.c.h.b16 %v669
  %v759 = vunpack.c.l.b16 %v670
  %v760 = vunpack.c.h.b16 %v670
  %v761 = vunpack.c.l.b16 %v671
  %v762 = vunpack.c.h.b16 %v671
  %v763 = vunpack.c.l.b16 %v672
  %v764 = vunpack.c.h.b16 %v672
  %v765 = vunpack.c.l.b16 %v673
  %v766 = vunpack.c.h.b16 %v673
  %v767 = vunpack.c.l.b16 %v674
  %v768 = vunpack.c.h.b16 %v674
  %v769 = vunpack.c.l.b16 %v675
  %v770 = vunpack.c.h.b16 %v675
  %v771 = vunpack.c.l.b16 %v676
  %v772 = vunpack.c.h.b16 %v676
  %v773 = vunpack.c.l.b16 %v677
  %v774 = vunpack.c.h.b16 %v677
  %v775 = vunpack.c.l.b16 %v678
  %v776 = vunpack.c.h.b16 %v678
  %v777 = vunpack.c.l.b16 %v679
  %v778 = vunpack.c.h.b16 %v679
  %v779 = vunpack.c.l.b16 %v680
  %v780 = vunpack.c.h.b16 %v680
  %v781 = vunpack.c.l.b16 %v681
  %v782 = vunpack.c.h.b16 %v681
  %v783 = vunpack.c.l.b16 %v682
  %v784 = vunpack.c.h.b16 %v682
  %v785 = vunpack.c.l.b16 %v683
  %v786 = vunpack.c.h.b16 %v683
  %v787 = vunpack.c.l.b16 %v684
  %v788 = vunpack.c.h.b16 %v684
  %v789 = vunpack.c.l.b16 %v685
  %v790 = vunpack.c.h.b16 %v685
  %v791 = vunpack.c.l.b16 %v686
  %v792 = vunpack.c.h.b16 %v686
  %v793 = vunpack.c.l.b16 %v687
  %v794 = vunpack.c.h.b16 %v687
  %v795 = vunpack.c.l.b16 %v688
  %v796 = vunpack.c.h.b16 %v688
  %v797 = vunpack.c.l.b16 %v689
  %v798 = vunpack.c.h.b16 %v689
  %v799 = vunpack.c.l.b16 %v690
  %v800 = vunpack.c.h.b16 %v690
  %v801 = vunpack.c.l.b16 %v691
  %v802 = vunpack.c.h.b16 %v691
  %v803 = vunpack.c.l.b16 %v692
  %v804 = vunpack.c.h.b16 %v692
  %v805 = vunpack.c.l.b16 %v693
  %v806 = vunpack.c.h.b16 %v693
  %v807 = vunpack.c.l.b16 %v694
  %v808 = vunpack.c.h.b16 %v694
  %v809 = vunpack.c.l.b16 %v695
  %v810 = vunpack.c.h.b16 %v695
  %v811 = vunpack.c.l.b16 %v696
  %v812 = vunpack.c.h.b16 %v696
  %v813 = vunpack.c.l.b16 %v697
  %v814 = vunpack.c.h.b16 %v697
  %v815 = vunpack.c.l.b16 %v698
  %v816 = vunpack.c.h.b16 %v698
  %v817 = vpack.c.b16 %v757, %v753
  %v818 = vpack.c.b16 %v758, %v754
  %v819 = vpack.c.b16 %v759, %v755
  %v820 = vpack.c.b16 %v760, %v756
  %v821 = vpack.c.b16 %v765, %v761
  %v822 = vpack.c.b16 %v766, %v762
  %v823 = vpack.c.b16 %v767, %v763
  %v824 = vpack.c.b16 %v768, %v764
  %v825 = vpack.c.b16 %v773, %v769
  %v826 = vpack.c.b16 %v774, %v770
  %v827 = vpack.c.b16 %v775, %v771
  %v828 = vpack.c.b16 %v776, %v772
  %v829 = vpack.c.b16 %v781, %v777
  %v830 = vpack.c.b16 %v782, %v778
  %v831 = vpack.c.b16 %v783, %v779
  %v832 = vpack.c.b16 %v784, %v780
  %v833 = vpack.c.b16 %v789, %v785
  %v834 = vpack.c.b16 %v790, %v786
  %v835 = vpack.c.b16 %v791, %v787
  %v836 = vpack.c.b16 %v792, %v788
  %v837 = vpack.c.b16 %v797, %v793
  %v838 = vpack.c.b16 %v798, %v794
  %v839 = vpack.c.b16 %v799, %v795
  %v840 = vpack.c.b16 %v800, %v796
  %v841 = vpack.c.b16 %v805, %v801
  %v842 = vpack.c.b16 %v806, %v802
  %v843 = vpack.c.b16 %v807, %v803
  %v844 = vpack.c.b16 %v808, %v804
  %v845 = vpack.c.b16 %v813, %v809
  %v846 = vpack.c.b16 %v814, %v810
  %v847 = vpack.c.b16 %v815, %v811
  %v848 = vpack.c.b16 %v816, %v812
  %881 = vmatprep.subr.bf16.mxu0 %v818
  %882 = vmatpush1.bf16.msra.mxu0 %v817
  %883 = vmatprep.subr.bf16.mxu0 %v822
  %884 = vmatpush1.bf16.msra.mxu0 %v821
  %885 = vmatprep.subr.bf16.mxu0 %v826
  %886 = vmatpush1.bf16.msra.mxu0 %v825
  %887 = vmatprep.subr.bf16.mxu0 %v830
  %888 = vmatpush1.bf16.msra.mxu0 %v829
  %889 = vmatprep.subr.bf16.mxu0 %v834
  %890 = vmatpush1.bf16.msra.mxu0 %v833
  %891 = vmatprep.subr.bf16.mxu0 %v838
  %892 = vmatpush1.bf16.msra.mxu0 %v837
  %893 = vmatprep.subr.bf16.mxu0 %v842
  %894 = vmatpush1.bf16.msra.mxu0 %v841
  %895 = vmatprep.subr.bf16.mxu0 %v846
  %896 = vmatpush1.bf16.msra.mxu0 %v845
  %897 = vmatprep.subr.bf16.mxu0 0
  %898 = vmatpush1.bf16.msra.mxu0 0
  %899 = vmatprep.subr.bf16.mxu0 0
  %900 = vmatpush1.bf16.msra.mxu0 0
  %901 = vmatprep.subr.bf16.mxu0 0
  %902 = vmatpush1.bf16.msra.mxu0 0
  %903 = vmatprep.subr.bf16.mxu0 0
  %904 = vmatpush1.bf16.msra.mxu0 0
  %905 = vmatprep.subr.bf16.mxu0 0
  %906 = vmatpush1.bf16.msra.mxu0 0
  %907 = vmatprep.subr.bf16.mxu0 0
  %908 = vmatpush1.bf16.msra.mxu0 0
  %909 = vmatprep.subr.bf16.mxu0 0
  %910 = vmatpush1.bf16.msra.mxu0 0
  %911 = vmatprep.subr.bf16.mxu0 0
  %912 = vmatpush1.bf16.msra.mxu0 0
  %913 = vmatprep.mubr.bf16.mxu0 0
  %914 = vmatmul.mubr.bf16.gmra.mrb[0].mxu0 %v666
  %v915 = vpop.f32.mrb[0].mxu0
  %v916 = vadd.f32 %v704, %v915
  %v917 = vpop.f32.mrb[0].mxu0
  %v918 = vadd.f32 %v708, %v917
  %v919 = vpop.f32.mrb[0].mxu0
  %v920 = vpop.f32.mrb[0].mxu0
  %921 = vdwg.mxu0
  %922 = vmatprep.subr.bf16.mxu0 %v820
  %923 = vmatpush1.bf16.msra.mxu0 %v819
  %924 = vmatprep.subr.bf16.mxu0 %v824
  %925 = vmatpush1.bf16.msra.mxu0 %v823
  %926 = vmatprep.subr.bf16.mxu0 %v828
  %927 = vmatpush1.bf16.msra.mxu0 %v827
  %928 = vmatprep.subr.bf16.mxu0 %v832
  %929 = vmatpush1.bf16.msra.mxu0 %v831
  %930 = vmatprep.subr.bf16.mxu0 %v836
  %931 = vmatpush1.bf16.msra.mxu0 %v835
  %932 = vmatprep.subr.bf16.mxu0 %v840
  %933 = vmatpush1.bf16.msra.mxu0 %v839
  %934 = vmatprep.subr.bf16.mxu0 %v844
  %935 = vmatpush1.bf16.msra.mxu0 %v843
  %936 = vmatprep.subr.bf16.mxu0 %v848
  %937 = vmatpush1.bf16.msra.mxu0 %v847
  %938 = vmatprep.subr.bf16.mxu0 0
  %939 = vmatpush1.bf16.msra.mxu0 0
  %940 = vmatprep.subr.bf16.mxu0 0
  %941 = vmatpush1.bf16.msra.mxu0 0
  %942 = vmatprep.subr.bf16.mxu0 0
  %943 = vmatpush1.bf16.msra.mxu0 0
  %944 = vmatprep.subr.bf16.mxu0 0
  %945 = vmatpush1.bf16.msra.mxu0 0
  %946 = vmatprep.subr.bf16.mxu0 0
  %947 = vmatpush1.bf16.msra.mxu0 0
  %948 = vmatprep.subr.bf16.mxu0 0
  %949 = vmatpush1.bf16.msra.mxu0 0
  %950 = vmatprep.subr.bf16.mxu0 0
  %951 = vmatpush1.bf16.msra.mxu0 0
  %952 = vmatprep.subr.bf16.mxu0 0
  %953 = vmatpush1.bf16.msra.mxu0 0
  %954 = vmatprep.mubr.bf16.mxu0 0
  %955 = vmatmul.mubr.bf16.gmra.mrb[0].mxu0 %v666
  %v956 = vpop.f32.mrb[0].mxu0
  %v957 = vadd.f32 %v712, %v956
  %v958 = vpop.f32.mrb[0].mxu0
  %v959 = vadd.f32 %v716, %v958
  %v960 = vpop.f32.mrb[0].mxu0
  %v961 = vpop.f32.mrb[0].mxu0
  %962 = vdwg.mxu0
  %vm963 = vcmp.gt.f32.partialorder %v916, 0.0
  %vm964 = vcmp.gt.f32.partialorder %v918, 0.0
  %vm965 = vcmp.gt.f32.partialorder %v957, 0.0
  %vm966 = vcmp.gt.f32.partialorder %v959, 0.0
  %v967 = vmul.f32 %v916, 0.2
  %v968 = vmul.f32 %v918, 0.2
  %v969 = vmul.f32 %v957, 0.2
  %v970 = vmul.f32 %v959, 0.2
  %v971 = vsel %vm963, %v916, %v967
  %v972 = vsel %vm964, %v918, %v968
  %v973 = vsel %vm965, %v957, %v969
  %v974 = vsel %vm966, %v959, %v970
  %v975 = vpack.c.bf16 %v971, %v971
  %v976 = vpack.c.bf16 %v972, %v972
  %v977 = vpack.c.bf16 %v973, %v973
  %v978 = vpack.c.bf16 %v974, %v974
  %v979 = vld [vmem:[%s6] sm:$0xf]
  %v980 = vld [vmem:[%s6 + $0x4] sm:$0xf]
  %v981 = vld [vmem:[%s6 + $0x8] sm:$0xf]
  %v982 = vld [vmem:[%s6 + $0xc] sm:$0xf]
  %v983 = vld [vmem:[%s6 + $0x10] sm:$0xf]
  %v984 = vld [vmem:[%s6 + $0x14] sm:$0xf]
  %v985 = vld [vmem:[%s6 + $0x18] sm:$0xf]
  %v986 = vld [vmem:[%s6 + $0x1c] sm:$0xf]
  %v987 = vld [vmem:[%s6 + $0x20] sm:$0xf]
  %v988 = vld [vmem:[%s6 + $0x24] sm:$0xf]
  %v989 = vld [vmem:[%s6 + $0x28] sm:$0xf]
  %v990 = vld [vmem:[%s6 + $0x2c] sm:$0xf]
  %v991 = vld [vmem:[%s6 + $0x30] sm:$0xf]
  %v992 = vld [vmem:[%s6 + $0x34] sm:$0xf]
  %v993 = vld [vmem:[%s6 + $0x38] sm:$0xf]
  %v994 = vld [vmem:[%s6 + $0x3c] sm:$0xf]
  %v995 = vld [vmem:[%s6 + $0x40] sm:$0xf]
  %v996 = vld [vmem:[%s6 + $0x44] sm:$0xf]
  %v997 = vld [vmem:[%s6 + $0x48] sm:$0xf]
  %v998 = vld [vmem:[%s6 + $0x4c] sm:$0xf]
  %v999 = vld [vmem:[%s6 + $0x50] sm:$0xf]
  %v1000 = vld [vmem:[%s6 + $0x54] sm:$0xf]
  %v1001 = vld [vmem:[%s6 + $0x58] sm:$0xf]
  %v1002 = vld [vmem:[%s6 + $0x5c] sm:$0xf]
  %v1003 = vld [vmem:[%s6 + $0x60] sm:$0xf]
  %v1004 = vld [vmem:[%s6 + $0x64] sm:$0xf]
  %v1005 = vld [vmem:[%s6 + $0x68] sm:$0xf]
  %v1006 = vld [vmem:[%s6 + $0x6c] sm:$0xf]
  %v1007 = vld [vmem:[%s6 + $0x70] sm:$0xf]
  %v1008 = vld [vmem:[%s6 + $0x74] sm:$0xf]
  %v1009 = vld [vmem:[%s6 + $0x78] sm:$0xf]
  %v1010 = vld [vmem:[%s6 + $0x7c] sm:$0xf]
  %v1011 = vld [vmem:[%s6 + $0x80] sm:$0xf]
  %v1012 = vld [vmem:[%s6 + $0x84] sm:$0xf]
  %v1013 = vld [vmem:[%s6 + $0x88] sm:$0xf]
  %v1014 = vld [vmem:[%s6 + $0x8c] sm:$0xf]
  %v1015 = vld [vmem:[%s6 + $0x90] sm:$0xf]
  %v1016 = vld [vmem:[%s6 + $0x94] sm:$0xf]
  %v1017 = vld [vmem:[%s6 + $0x98] sm:$0xf]
  %v1018 = vld [vmem:[%s6 + $0x9c] sm:$0xf]
  %v1019 = vld [vmem:[%s6 + $0xa0] sm:$0xf]
  %v1020 = vld [vmem:[%s6 + $0xa4] sm:$0xf]
  %v1021 = vld [vmem:[%s6 + $0xa8] sm:$0xf]
  %v1022 = vld [vmem:[%s6 + $0xac] sm:$0xf]
  %v1023 = vld [vmem:[%s6 + $0xb0] sm:$0xf]
  %v1024 = vld [vmem:[%s6 + $0xb4] sm:$0xf]
  %v1025 = vld [vmem:[%s6 + $0xb8] sm:$0xf]
  %v1026 = vld [vmem:[%s6 + $0xbc] sm:$0xf]
  %v1027 = vld [vmem:[%s6 + $0xc0] sm:$0xf]
  %v1028 = vld [vmem:[%s6 + $0xc4] sm:$0xf]
  %v1029 = vld [vmem:[%s6 + $0xc8] sm:$0xf]
  %v1030 = vld [vmem:[%s6 + $0xcc] sm:$0xf]
  %v1031 = vld [vmem:[%s6 + $0xd0] sm:$0xf]
  %v1032 = vld [vmem:[%s6 + $0xd4] sm:$0xf]
  %v1033 = vld [vmem:[%s6 + $0xd8] sm:$0xf]
  %v1034 = vld [vmem:[%s6 + $0xdc] sm:$0xf]
  %v1035 = vld [vmem:[%s6 + $0xe0] sm:$0xf]
  %v1036 = vld [vmem:[%s6 + $0xe4] sm:$0xf]
  %v1037 = vld [vmem:[%s6 + $0xe8] sm:$0xf]
  %v1038 = vld [vmem:[%s6 + $0xec] sm:$0xf]
  %v1039 = vld [vmem:[%s6 + $0xf0] sm:$0xf]
  %v1040 = vld [vmem:[%s6 + $0xf4] sm:$0xf]
  %v1041 = vld [vmem:[%s6 + $0xf8] sm:$0xf]
  %v1042 = vld [vmem:[%s6 + $0xfc] sm:$0xf]
  %v1043 = vld [vmem:[%s16] sm:$0x1]
  %v1045 = vlaneseq
  %v1046 = vshrl.u32 %v1045, 7
  %v1047 = vsub.s32 0, %v1046
  %v1048 = vrot.slane %v1043, %v1047
  %v1114 = vunpack.c.l.b16 %v979
  %v1115 = vunpack.c.l.b16 %v980
  %v1116 = vunpack.c.l.b16 %v981
  %v1117 = vunpack.c.l.b16 %v982
  %v1118 = vunpack.c.l.b16 %v983
  %v1119 = vunpack.c.l.b16 %v984
  %v1120 = vunpack.c.l.b16 %v985
  %v1121 = vunpack.c.l.b16 %v986
  %v1122 = vunpack.c.l.b16 %v987
  %v1123 = vunpack.c.l.b16 %v988
  %v1124 = vunpack.c.l.b16 %v989
  %v1125 = vunpack.c.l.b16 %v990
  %v1126 = vunpack.c.l.b16 %v991
  %v1127 = vunpack.c.l.b16 %v992
  %v1128 = vunpack.c.l.b16 %v993
  %v1129 = vunpack.c.l.b16 %v994
  %v1130 = vunpack.c.l.b16 %v995
  %v1131 = vunpack.c.l.b16 %v996
  %v1132 = vunpack.c.l.b16 %v997
  %v1133 = vunpack.c.l.b16 %v998
  %v1134 = vunpack.c.l.b16 %v999
  %v1135 = vunpack.c.l.b16 %v1000
  %v1136 = vunpack.c.l.b16 %v1001
  %v1137 = vunpack.c.l.b16 %v1002
  %v1138 = vunpack.c.l.b16 %v1003
  %v1139 = vunpack.c.l.b16 %v1004
  %v1140 = vunpack.c.l.b16 %v1005
  %v1141 = vunpack.c.l.b16 %v1006
  %v1142 = vunpack.c.l.b16 %v1007
  %v1143 = vunpack.c.l.b16 %v1008
  %v1144 = vunpack.c.l.b16 %v1009
  %v1145 = vunpack.c.l.b16 %v1010
  %v1146 = vunpack.c.l.b16 %v1011
  %v1147 = vunpack.c.l.b16 %v1012
  %v1148 = vunpack.c.l.b16 %v1013
  %v1149 = vunpack.c.l.b16 %v1014
  %v1150 = vunpack.c.l.b16 %v1015
  %v1151 = vunpack.c.l.b16 %v1016
  %v1152 = vunpack.c.l.b16 %v1017
  %v1153 = vunpack.c.l.b16 %v1018
  %v1154 = vunpack.c.l.b16 %v1019
  %v1155 = vunpack.c.l.b16 %v1020
  %v1156 = vunpack.c.l.b16 %v1021
  %v1157 = vunpack.c.l.b16 %v1022
  %v1158 = vunpack.c.l.b16 %v1023
  %v1159 = vunpack.c.l.b16 %v1024
  %v1160 = vunpack.c.l.b16 %v1025
  %v1161 = vunpack.c.l.b16 %v1026
  %v1162 = vunpack.c.l.b16 %v1027
  %v1163 = vunpack.c.l.b16 %v1028
  %v1164 = vunpack.c.l.b16 %v1029
  %v1165 = vunpack.c.l.b16 %v1030
  %v1166 = vunpack.c.l.b16 %v1031
  %v1167 = vunpack.c.l.b16 %v1032
  %v1168 = vunpack.c.l.b16 %v1033
  %v1169 = vunpack.c.l.b16 %v1034
  %v1170 = vunpack.c.l.b16 %v1035
  %v1171 = vunpack.c.l.b16 %v1036
  %v1172 = vunpack.c.l.b16 %v1037
  %v1173 = vunpack.c.l.b16 %v1038
  %v1174 = vunpack.c.l.b16 %v1039
  %v1175 = vunpack.c.l.b16 %v1040
  %v1176 = vunpack.c.l.b16 %v1041
  %v1177 = vunpack.c.l.b16 %v1042
  %v1178 = vpack.c.b16 %v1115, %v1114
  %v1179 = vpack.c.b16 %v1117, %v1116
  %v1180 = vpack.c.b16 %v1119, %v1118
  %v1181 = vpack.c.b16 %v1121, %v1120
  %v1182 = vpack.c.b16 %v1123, %v1122
  %v1183 = vpack.c.b16 %v1125, %v1124
  %v1184 = vpack.c.b16 %v1127, %v1126
  %v1185 = vpack.c.b16 %v1129, %v1128
  %v1186 = vpack.c.b16 %v1131, %v1130
  %v1187 = vpack.c.b16 %v1133, %v1132
  %v1188 = vpack.c.b16 %v1135, %v1134
  %v1189 = vpack.c.b16 %v1137, %v1136
  %v1190 = vpack.c.b16 %v1139, %v1138
  %v1191 = vpack.c.b16 %v1141, %v1140
  %v1192 = vpack.c.b16 %v1143, %v1142
  %v1193 = vpack.c.b16 %v1145, %v1144
  %v1194 = vpack.c.b16 %v1147, %v1146
  %v1195 = vpack.c.b16 %v1149, %v1148
  %v1196 = vpack.c.b16 %v1151, %v1150
  %v1197 = vpack.c.b16 %v1153, %v1152
  %v1198 = vpack.c.b16 %v1155, %v1154
  %v1199 = vpack.c.b16 %v1157, %v1156
  %v1200 = vpack.c.b16 %v1159, %v1158
  %v1201 = vpack.c.b16 %v1161, %v1160
  %v1202 = vpack.c.b16 %v1163, %v1162
  %v1203 = vpack.c.b16 %v1165, %v1164
  %v1204 = vpack.c.b16 %v1167, %v1166
  %v1205 = vpack.c.b16 %v1169, %v1168
  %v1206 = vpack.c.b16 %v1171, %v1170
  %v1207 = vpack.c.b16 %v1173, %v1172
  %v1208 = vpack.c.b16 %v1175, %v1174
  %v1209 = vpack.c.b16 %v1177, %v1176
  %1242 = vmatprep.subr.bf16.mxu0 0
  %1243 = vmatpush1.bf16.msra.mxu0 %v1178
  %1244 = vmatprep.subr.bf16.mxu0 0
  %1245 = vmatpush1.bf16.msra.mxu0 %v1179
  %1246 = vmatprep.subr.bf16.mxu0 0
  %1247 = vmatpush1.bf16.msra.mxu0 %v1180
  %1248 = vmatprep.subr.bf16.mxu0 0
  %1249 = vmatpush1.bf16.msra.mxu0 %v1181
  %1250 = vmatprep.subr.bf16.mxu0 0
  %1251 = vmatpush1.bf16.msra.mxu0 %v1182
  %1252 = vmatprep.subr.bf16.mxu0 0
  %1253 = vmatpush1.bf16.msra.mxu0 %v1183
  %1254 = vmatprep.subr.bf16.mxu0 0
  %1255 = vmatpush1.bf16.msra.mxu0 %v1184
  %1256 = vmatprep.subr.bf16.mxu0 0
  %1257 = vmatpush1.bf16.msra.mxu0 %v1185
  %1258 = vmatprep.subr.bf16.mxu0 0
  %1259 = vmatpush1.bf16.msra.mxu0 %v1186
  %1260 = vmatprep.subr.bf16.mxu0 0
  %1261 = vmatpush1.bf16.msra.mxu0 %v1187
  %1262 = vmatprep.subr.bf16.mxu0 0
  %1263 = vmatpush1.bf16.msra.mxu0 %v1188
  %1264 = vmatprep.subr.bf16.mxu0 0
  %1265 = vmatpush1.bf16.msra.mxu0 %v1189
  %1266 = vmatprep.subr.bf16.mxu0 0
  %1267 = vmatpush1.bf16.msra.mxu0 %v1190
  %1268 = vmatprep.subr.bf16.mxu0 0
  %1269 = vmatpush1.bf16.msra.mxu0 %v1191
  %1270 = vmatprep.subr.bf16.mxu0 0
  %1271 = vmatpush1.bf16.msra.mxu0 %v1192
  %1272 = vmatprep.subr.bf16.mxu0 0
  %1273 = vmatpush1.bf16.msra.mxu0 %v1193
  %1274 = vmatprep.mubr.bf16.mxu0 %v976
  %1275 = vmatmul.mubr.bf16.gmra.mrb[0].mxu0 %v975
  %v1276 = vpop.f32.mrb[0].mxu0
  %v1277 = vadd.f32 %v1048, %v1276
  %v1278 = vpop.f32.mrb[0].mxu0
  %v1279 = vpop.f32.mrb[0].mxu0
  %v1280 = vpop.f32.mrb[0].mxu0
  %1281 = vdwg.mxu0
  %1282 = vmatprep.subr.bf16.mxu0 0
  %1283 = vmatpush1.bf16.msra.mxu0 %v1194
  %1284 = vmatprep.subr.bf16.mxu0 0
  %1285 = vmatpush1.bf16.msra.mxu0 %v1195
  %1286 = vmatprep.subr.bf16.mxu0 0
  %1287 = vmatpush1.bf16.msra.mxu0 %v1196
  %1288 = vmatprep.subr.bf16.mxu0 0
  %1289 = vmatpush1.bf16.msra.mxu0 %v1197
  %1290 = vmatprep.subr.bf16.mxu0 0
  %1291 = vmatpush1.bf16.msra.mxu0 %v1198
  %1292 = vmatprep.subr.bf16.mxu0 0
  %1293 = vmatpush1.bf16.msra.mxu0 %v1199
  %1294 = vmatprep.subr.bf16.mxu0 0
  %1295 = vmatpush1.bf16.msra.mxu0 %v1200
  %1296 = vmatprep.subr.bf16.mxu0 0
  %1297 = vmatpush1.bf16.msra.mxu0 %v1201
  %1298 = vmatprep.subr.bf16.mxu0 0
  %1299 = vmatpush1.bf16.msra.mxu0 %v1202
  %1300 = vmatprep.subr.bf16.mxu0 0
  %1301 = vmatpush1.bf16.msra.mxu0 %v1203
  %1302 = vmatprep.subr.bf16.mxu0 0
  %1303 = vmatpush1.bf16.msra.mxu0 %v1204
  %1304 = vmatprep.subr.bf16.mxu0 0
  %1305 = vmatpush1.bf16.msra.mxu0 %v1205
  %1306 = vmatprep.subr.bf16.mxu0 0
  %1307 = vmatpush1.bf16.msra.mxu0 %v1206
  %1308 = vmatprep.subr.bf16.mxu0 0
  %1309 = vmatpush1.bf16.msra.mxu0 %v1207
  %1310 = vmatprep.subr.bf16.mxu0 0
  %1311 = vmatpush1.bf16.msra.mxu0 %v1208
  %1312 = vmatprep.subr.bf16.mxu0 0
  %1313 = vmatpush1.bf16.msra.mxu0 %v1209
  %1314 = vmatprep.mubr.bf16.mxu0 %v978
  %1315 = vmatmul.mubr.bf16.gmra.mrb[0].mxu0 %v977
  %v1316 = vpop.f32.mrb[0].mxu0
  %v1317 = vadd.f32 %v1277, %v1316
  %v1318 = vpop.f32.mrb[0].mxu0
  %v1319 = vpop.f32.mrb[0].mxu0
  %v1320 = vpop.f32.mrb[0].mxu0
  %1321 = vdwg.mxu0
  %1322 = vst [vmem:[%s22] sm:$0xff] %v1317
  %v1323 = vlaneseq
  %v1324 = vand.u32 %v1323, 127
  %vm1325 = vcmp.lt.s32.totalorder %v1324, 32
  %v1326 = vsel %vm1325, %v1317, 0.0
  %v1327 = vld [vmem:[%s1] sm:$0xff]
  %v1328 = vmul.f32 %v1317, 0.5
  %v1329 = vmul.f32 %v1328, 1.442695
  %v1330 = vpow.pop %v1329
  %v1331 = vmul.f32 %v1327, %v1330
  %v1332 = vadd.f32 %v1326, %v1331
  %v1333 = vpack.c.bf16 %v1332, %v1332
  %v1334 = vld [vmem:[%s7] sm:$0xff]
  %v1335 = vld [vmem:[%s7 + $0x8] sm:$0xff]
  %v1336 = vld [vmem:[%s7 + $0x10] sm:$0xff]
  %v1337 = vld [vmem:[%s7 + $0x18] sm:$0xff]
  %v1338 = vld [vmem:[%s7 + $0x20] sm:$0xff]
  %v1339 = vld [vmem:[%s7 + $0x28] sm:$0xff]
  %v1340 = vld [vmem:[%s7 + $0x30] sm:$0xff]
  %v1341 = vld [vmem:[%s7 + $0x38] sm:$0xff]
  %v1342 = vld [vmem:[%s7 + $0x40] sm:$0xff]
  %v1343 = vld [vmem:[%s7 + $0x48] sm:$0xff]
  %v1344 = vld [vmem:[%s7 + $0x50] sm:$0xff]
  %v1345 = vld [vmem:[%s7 + $0x58] sm:$0xff]
  %v1346 = vld [vmem:[%s7 + $0x60] sm:$0xff]
  %v1347 = vld [vmem:[%s7 + $0x68] sm:$0xff]
  %v1348 = vld [vmem:[%s7 + $0x70] sm:$0xff]
  %v1349 = vld [vmem:[%s7 + $0x78] sm:$0xff]
  %v1350 = vld [vmem:[%s17] sm:$0x3]
  %v1352 = vlaneseq
  %v1353 = vshrl.u32 %v1352, 7
  %v1354 = vsub.s32 0, %v1353
  %v1355 = vrot.slane %v1350, %v1354
  %v1356 = vlaneseq
  %v1357 = vshrl.u32 %v1356, 7
  %v1358 = vsub.s32 1, %v1357
  %v1359 = vrot.slane %v1350, %v1358
  %v1378 = vunpack.c.l.b16 %v1334
  %v1379 = vunpack.c.h.b16 %v1334
  %v1380 = vunpack.c.l.b16 %v1335
  %v1381 = vunpack.c.h.b16 %v1335
  %v1382 = vunpack.c.l.b16 %v1336
  %v1383 = vunpack.c.h.b16 %v1336
  %v1384 = vunpack.c.l.b16 %v1337
  %v1385 = vunpack.c.h.b16 %v1337
  %v1386 = vunpack.c.l.b16 %v1338
  %v1387 = vunpack.c.h.b16 %v1338
  %v1388 = vunpack.c.l.b16 %v1339
  %v1389 = vunpack.c.h.b16 %v1339
  %v1390 = vunpack.c.l.b16 %v1340
  %v1391 = vunpack.c.h.b16 %v1340
  %v1392 = vunpack.c.l.b16 %v1341
  %v1393 = vunpack.c.h.b16 %v1341
  %v1394 = vunpack.c.l.b16 %v1342
  %v1395 = vunpack.c.h.b16 %v1342
  %v1396 = vunpack.c.l.b16 %v1343
  %v1397 = vunpack.c.h.b16 %v1343
  %v1398 = vunpack.c.l.b16 %v1344
  %v1399 = vunpack.c.h.b16 %v1344
  %v1400 = vunpack.c.l.b16 %v1345
  %v1401 = vunpack.c.h.b16 %v1345
  %v1402 = vunpack.c.l.b16 %v1346
  %v1403 = vunpack.c.h.b16 %v1346
  %v1404 = vunpack.c.l.b16 %v1347
  %v1405 = vunpack.c.h.b16 %v1347
  %v1406 = vunpack.c.l.b16 %v1348
  %v1407 = vunpack.c.h.b16 %v1348
  %v1408 = vunpack.c.l.b16 %v1349
  %v1409 = vunpack.c.h.b16 %v1349
  %v1410 = vpack.c.b16 %v1380, %v1378
  %v1411 = vpack.c.b16 %v1381, %v1379
  %v1412 = vpack.c.b16 %v1384, %v1382
  %v1413 = vpack.c.b16 %v1385, %v1383
  %v1414 = vpack.c.b16 %v1388, %v1386
  %v1415 = vpack.c.b16 %v1389, %v1387
  %v1416 = vpack.c.b16 %v1392, %v1390
  %v1417 = vpack.c.b16 %v1393, %v1391
  %v1418 = vpack.c.b16 %v1396, %v1394
  %v1419 = vpack.c.b16 %v1397, %v1395
  %v1420 = vpack.c.b16 %v1400, %v1398
  %v1421 = vpack.c.b16 %v1401, %v1399
  %v1422 = vpack.c.b16 %v1404, %v1402
  %v1423 = vpack.c.b16 %v1405, %v1403
  %v1424 = vpack.c.b16 %v1408, %v1406
  %v1425 = vpack.c.b16 %v1409, %v1407
  %1442 = vmatprep.subr.bf16.mxu0 %v1411
  %1443 = vmatpush1.bf16.msra.mxu0 %v1410
  %1444 = vmatprep.subr.bf16.mxu0 %v1413
  %1445 = vmatpush1.bf16.msra.mxu0 %v1412
  %1446 = vmatprep.subr.bf16.mxu0 %v1415
  %1447 = vmatpush1.bf16.msra.mxu0 %v1414
  %1448 = vmatprep.subr.bf16.mxu0 %v1417
  %1449 = vmatpush1.bf16.msra.mxu0 %v1416
  %1450 = vmatprep.subr.bf16.mxu0 %v1419
  %1451 = vmatpush1.bf16.msra.mxu0 %v1418
  %1452 = vmatprep.subr.bf16.mxu0 %v1421
  %1453 = vmatpush1.bf16.msra.mxu0 %v1420
  %1454 = vmatprep.subr.bf16.mxu0 %v1423
  %1455 = vmatpush1.bf16.msra.mxu0 %v1422
  %1456 = vmatprep.subr.bf16.mxu0 %v1425
  %1457 = vmatpush1.bf16.msra.mxu0 %v1424
  %1458 = vmatprep.subr.bf16.mxu0 0
  %1459 = vmatpush1.bf16.msra.mxu0 0
  %1460 = vmatprep.subr.bf16.mxu0 0
  %1461 = vmatpush1.bf16.msra.mxu0 0
  %1462 = vmatprep.subr.bf16.mxu0 0
  %1463 = vmatpush1.bf16.msra.mxu0 0
  %1464 = vmatprep.subr.bf16.mxu0 0
  %1465 = vmatpush1.bf16.msra.mxu0 0
  %1466 = vmatprep.subr.bf16.mxu0 0
  %1467 = vmatpush1.bf16.msra.mxu0 0
  %1468 = vmatprep.subr.bf16.mxu0 0
  %1469 = vmatpush1.bf16.msra.mxu0 0
  %1470 = vmatprep.subr.bf16.mxu0 0
  %1471 = vmatpush1.bf16.msra.mxu0 0
  %1472 = vmatprep.subr.bf16.mxu0 0
  %1473 = vmatpush1.bf16.msra.mxu0 0
  %1474 = vmatprep.mubr.bf16.mxu0 0
  %1475 = vmatmul.mubr.bf16.gmra.mrb[0].mxu0 %v1333
  %v1476 = vpop.f32.mrb[0].mxu0
  %v1477 = vadd.f32 %v1355, %v1476
  %v1478 = vpop.f32.mrb[0].mxu0
  %v1479 = vadd.f32 %v1359, %v1478
  %v1480 = vpop.f32.mrb[0].mxu0
  %v1481 = vpop.f32.mrb[0].mxu0
  %1482 = vdwg.mxu0
  %v1483 = vmax.f32 %v1477, 0.0
  %v1484 = vmax.f32 %v1479, 0.0
  %v1485 = vpack.c.bf16 %v1483, %v1483
  %v1486 = vpack.c.bf16 %v1484, %v1484
  %v1487 = vld [vmem:[%s8] sm:$0xff]
  %v1488 = vld [vmem:[%s8 + $0x8] sm:$0xff]
  %v1489 = vld [vmem:[%s8 + $0x10] sm:$0xff]
  %v1490 = vld [vmem:[%s8 + $0x18] sm:$0xff]
  %v1491 = vld [vmem:[%s8 + $0x20] sm:$0xff]
  %v1492 = vld [vmem:[%s8 + $0x28] sm:$0xff]
  %v1493 = vld [vmem:[%s8 + $0x30] sm:$0xff]
  %v1494 = vld [vmem:[%s8 + $0x38] sm:$0xff]
  %v1495 = vld [vmem:[%s8 + $0x40] sm:$0xff]
  %v1496 = vld [vmem:[%s8 + $0x48] sm:$0xff]
  %v1497 = vld [vmem:[%s8 + $0x50] sm:$0xff]
  %v1498 = vld [vmem:[%s8 + $0x58] sm:$0xff]
  %v1499 = vld [vmem:[%s8 + $0x60] sm:$0xff]
  %v1500 = vld [vmem:[%s8 + $0x68] sm:$0xff]
  %v1501 = vld [vmem:[%s8 + $0x70] sm:$0xff]
  %v1502 = vld [vmem:[%s8 + $0x78] sm:$0xff]
  %v1503 = vld [vmem:[%s8 + $0x80] sm:$0xff]
  %v1504 = vld [vmem:[%s8 + $0x88] sm:$0xff]
  %v1505 = vld [vmem:[%s8 + $0x90] sm:$0xff]
  %v1506 = vld [vmem:[%s8 + $0x98] sm:$0xff]
  %v1507 = vld [vmem:[%s8 + $0xa0] sm:$0xff]
  %v1508 = vld [vmem:[%s8 + $0xa8] sm:$0xff]
  %v1509 = vld [vmem:[%s8 + $0xb0] sm:$0xff]
  %v1510 = vld [vmem:[%s8 + $0xb8] sm:$0xff]
  %v1511 = vld [vmem:[%s8 + $0xc0] sm:$0xff]
  %v1512 = vld [vmem:[%s8 + $0xc8] sm:$0xff]
  %v1513 = vld [vmem:[%s8 + $0xd0] sm:$0xff]
  %v1514 = vld [vmem:[%s8 + $0xd8] sm:$0xff]
  %v1515 = vld [vmem:[%s8 + $0xe0] sm:$0xff]
  %v1516 = vld [vmem:[%s8 + $0xe8] sm:$0xff]
  %v1517 = vld [vmem:[%s8 + $0xf0] sm:$0xff]
  %v1518 = vld [vmem:[%s8 + $0xf8] sm:$0xff]
  %v1519 = vld [vmem:[%s18] sm:$0x3]
  %v1521 = vlaneseq
  %v1522 = vshrl.u32 %v1521, 7
  %v1523 = vsub.s32 0, %v1522
  %v1524 = vrot.slane %v1519, %v1523
  %v1525 = vlaneseq
  %v1526 = vshrl.u32 %v1525, 7
  %v1527 = vsub.s32 1, %v1526
  %v1528 = vrot.slane %v1519, %v1527
  %v1563 = vunpack.c.l.b16 %v1487
  %v1564 = vunpack.c.h.b16 %v1487
  %v1565 = vunpack.c.l.b16 %v1488
  %v1566 = vunpack.c.h.b16 %v1488
  %v1567 = vunpack.c.l.b16 %v1489
  %v1568 = vunpack.c.h.b16 %v1489
  %v1569 = vunpack.c.l.b16 %v1490
  %v1570 = vunpack.c.h.b16 %v1490
  %v1571 = vunpack.c.l.b16 %v1491
  %v1572 = vunpack.c.h.b16 %v1491
  %v1573 = vunpack.c.l.b16 %v1492
  %v1574 = vunpack.c.h.b16 %v1492
  %v1575 = vunpack.c.l.b16 %v1493
  %v1576 = vunpack.c.h.b16 %v1493
  %v1577 = vunpack.c.l.b16 %v1494
  %v1578 = vunpack.c.h.b16 %v1494
  %v1579 = vunpack.c.l.b16 %v1495
  %v1580 = vunpack.c.h.b16 %v1495
  %v1581 = vunpack.c.l.b16 %v1496
  %v1582 = vunpack.c.h.b16 %v1496
  %v1583 = vunpack.c.l.b16 %v1497
  %v1584 = vunpack.c.h.b16 %v1497
  %v1585 = vunpack.c.l.b16 %v1498
  %v1586 = vunpack.c.h.b16 %v1498
  %v1587 = vunpack.c.l.b16 %v1499
  %v1588 = vunpack.c.h.b16 %v1499
  %v1589 = vunpack.c.l.b16 %v1500
  %v1590 = vunpack.c.h.b16 %v1500
  %v1591 = vunpack.c.l.b16 %v1501
  %v1592 = vunpack.c.h.b16 %v1501
  %v1593 = vunpack.c.l.b16 %v1502
  %v1594 = vunpack.c.h.b16 %v1502
  %v1595 = vunpack.c.l.b16 %v1503
  %v1596 = vunpack.c.h.b16 %v1503
  %v1597 = vunpack.c.l.b16 %v1504
  %v1598 = vunpack.c.h.b16 %v1504
  %v1599 = vunpack.c.l.b16 %v1505
  %v1600 = vunpack.c.h.b16 %v1505
  %v1601 = vunpack.c.l.b16 %v1506
  %v1602 = vunpack.c.h.b16 %v1506
  %v1603 = vunpack.c.l.b16 %v1507
  %v1604 = vunpack.c.h.b16 %v1507
  %v1605 = vunpack.c.l.b16 %v1508
  %v1606 = vunpack.c.h.b16 %v1508
  %v1607 = vunpack.c.l.b16 %v1509
  %v1608 = vunpack.c.h.b16 %v1509
  %v1609 = vunpack.c.l.b16 %v1510
  %v1610 = vunpack.c.h.b16 %v1510
  %v1611 = vunpack.c.l.b16 %v1511
  %v1612 = vunpack.c.h.b16 %v1511
  %v1613 = vunpack.c.l.b16 %v1512
  %v1614 = vunpack.c.h.b16 %v1512
  %v1615 = vunpack.c.l.b16 %v1513
  %v1616 = vunpack.c.h.b16 %v1513
  %v1617 = vunpack.c.l.b16 %v1514
  %v1618 = vunpack.c.h.b16 %v1514
  %v1619 = vunpack.c.l.b16 %v1515
  %v1620 = vunpack.c.h.b16 %v1515
  %v1621 = vunpack.c.l.b16 %v1516
  %v1622 = vunpack.c.h.b16 %v1516
  %v1623 = vunpack.c.l.b16 %v1517
  %v1624 = vunpack.c.h.b16 %v1517
  %v1625 = vunpack.c.l.b16 %v1518
  %v1626 = vunpack.c.h.b16 %v1518
  %v1627 = vpack.c.b16 %v1565, %v1563
  %v1628 = vpack.c.b16 %v1566, %v1564
  %v1629 = vpack.c.b16 %v1569, %v1567
  %v1630 = vpack.c.b16 %v1570, %v1568
  %v1631 = vpack.c.b16 %v1573, %v1571
  %v1632 = vpack.c.b16 %v1574, %v1572
  %v1633 = vpack.c.b16 %v1577, %v1575
  %v1634 = vpack.c.b16 %v1578, %v1576
  %v1635 = vpack.c.b16 %v1581, %v1579
  %v1636 = vpack.c.b16 %v1582, %v1580
  %v1637 = vpack.c.b16 %v1585, %v1583
  %v1638 = vpack.c.b16 %v1586, %v1584
  %v1639 = vpack.c.b16 %v1589, %v1587
  %v1640 = vpack.c.b16 %v1590, %v1588
  %v1641 = vpack.c.b16 %v1593, %v1591
  %v1642 = vpack.c.b16 %v1594, %v1592
  %v1643 = vpack.c.b16 %v1597, %v1595
  %v1644 = vpack.c.b16 %v1598, %v1596
  %v1645 = vpack.c.b16 %v1601, %v1599
  %v1646 = vpack.c.b16 %v1602, %v1600
  %v1647 = vpack.c.b16 %v1605, %v1603
  %v1648 = vpack.c.b16 %v1606, %v1604
  %v1649 = vpack.c.b16 %v1609, %v1607
  %v1650 = vpack.c.b16 %v1610, %v1608
  %v1651 = vpack.c.b16 %v1613, %v1611
  %v1652 = vpack.c.b16 %v1614, %v1612
  %v1653 = vpack.c.b16 %v1617, %v1615
  %v1654 = vpack.c.b16 %v1618, %v1616
  %v1655 = vpack.c.b16 %v1621, %v1619
  %v1656 = vpack.c.b16 %v1622, %v1620
  %v1657 = vpack.c.b16 %v1625, %v1623
  %v1658 = vpack.c.b16 %v1626, %v1624
  %1691 = vmatprep.subr.bf16.mxu0 %v1628
  %1692 = vmatpush1.bf16.msra.mxu0 %v1627
  %1693 = vmatprep.subr.bf16.mxu0 %v1630
  %1694 = vmatpush1.bf16.msra.mxu0 %v1629
  %1695 = vmatprep.subr.bf16.mxu0 %v1632
  %1696 = vmatpush1.bf16.msra.mxu0 %v1631
  %1697 = vmatprep.subr.bf16.mxu0 %v1634
  %1698 = vmatpush1.bf16.msra.mxu0 %v1633
  %1699 = vmatprep.subr.bf16.mxu0 %v1636
  %1700 = vmatpush1.bf16.msra.mxu0 %v1635
  %1701 = vmatprep.subr.bf16.mxu0 %v1638
  %1702 = vmatpush1.bf16.msra.mxu0 %v1637
  %1703 = vmatprep.subr.bf16.mxu0 %v1640
  %1704 = vmatpush1.bf16.msra.mxu0 %v1639
  %1705 = vmatprep.subr.bf16.mxu0 %v1642
  %1706 = vmatpush1.bf16.msra.mxu0 %v1641
  %1707 = vmatprep.subr.bf16.mxu0 %v1644
  %1708 = vmatpush1.bf16.msra.mxu0 %v1643
  %1709 = vmatprep.subr.bf16.mxu0 %v1646
  %1710 = vmatpush1.bf16.msra.mxu0 %v1645
  %1711 = vmatprep.subr.bf16.mxu0 %v1648
  %1712 = vmatpush1.bf16.msra.mxu0 %v1647
  %1713 = vmatprep.subr.bf16.mxu0 %v1650
  %1714 = vmatpush1.bf16.msra.mxu0 %v1649
  %1715 = vmatprep.subr.bf16.mxu0 %v1652
  %1716 = vmatpush1.bf16.msra.mxu0 %v1651
  %1717 = vmatprep.subr.bf16.mxu0 %v1654
  %1718 = vmatpush1.bf16.msra.mxu0 %v1653
  %1719 = vmatprep.subr.bf16.mxu0 %v1656
  %1720 = vmatpush1.bf16.msra.mxu0 %v1655
  %1721 = vmatprep.subr.bf16.mxu0 %v1658
  %1722 = vmatpush1.bf16.msra.mxu0 %v1657
  %1723 = vmatprep.mubr.bf16.mxu0 %v1486
  %1724 = vmatmul.mubr.bf16.gmra.mrb[0].mxu0 %v1485
  %v1725 = vpop.f32.mrb[0].mxu0
  %v1726 = vadd.f32 %v1524, %v1725
  %v1727 = vpop.f32.mrb[0].mxu0
  %v1728 = vadd.f32 %v1528, %v1727
  %v1729 = vpop.f32.mrb[0].mxu0
  %v1730 = vpop.f32.mrb[0].mxu0
  %1731 = vdwg.mxu0
  %v1732 = vmax.f32 %v1726, 0.0
  %v1733 = vmax.f32 %v1728, 0.0
  %v1734 = vpack.c.bf16 %v1732, %v1732
  %v1735 = vpack.c.bf16 %v1733, %v1733
  %v1736 = vld [vmem:[%s9] sm:$0xf]
  %v1737 = vld [vmem:[%s9 + $0x4] sm:$0xf]
  %v1738 = vld [vmem:[%s9 + $0x8] sm:$0xf]
  %v1739 = vld [vmem:[%s9 + $0xc] sm:$0xf]
  %v1740 = vld [vmem:[%s9 + $0x10] sm:$0xf]
  %v1741 = vld [vmem:[%s9 + $0x14] sm:$0xf]
  %v1742 = vld [vmem:[%s9 + $0x18] sm:$0xf]
  %v1743 = vld [vmem:[%s9 + $0x1c] sm:$0xf]
  %v1744 = vld [vmem:[%s9 + $0x20] sm:$0xf]
  %v1745 = vld [vmem:[%s9 + $0x24] sm:$0xf]
  %v1746 = vld [vmem:[%s9 + $0x28] sm:$0xf]
  %v1747 = vld [vmem:[%s9 + $0x2c] sm:$0xf]
  %v1748 = vld [vmem:[%s9 + $0x30] sm:$0xf]
  %v1749 = vld [vmem:[%s9 + $0x34] sm:$0xf]
  %v1750 = vld [vmem:[%s9 + $0x38] sm:$0xf]
  %v1751 = vld [vmem:[%s9 + $0x3c] sm:$0xf]
  %v1752 = vld [vmem:[%s9 + $0x40] sm:$0xf]
  %v1753 = vld [vmem:[%s9 + $0x44] sm:$0xf]
  %v1754 = vld [vmem:[%s9 + $0x48] sm:$0xf]
  %v1755 = vld [vmem:[%s9 + $0x4c] sm:$0xf]
  %v1756 = vld [vmem:[%s9 + $0x50] sm:$0xf]
  %v1757 = vld [vmem:[%s9 + $0x54] sm:$0xf]
  %v1758 = vld [vmem:[%s9 + $0x58] sm:$0xf]
  %v1759 = vld [vmem:[%s9 + $0x5c] sm:$0xf]
  %v1760 = vld [vmem:[%s9 + $0x60] sm:$0xf]
  %v1761 = vld [vmem:[%s9 + $0x64] sm:$0xf]
  %v1762 = vld [vmem:[%s9 + $0x68] sm:$0xf]
  %v1763 = vld [vmem:[%s9 + $0x6c] sm:$0xf]
  %v1764 = vld [vmem:[%s9 + $0x70] sm:$0xf]
  %v1765 = vld [vmem:[%s9 + $0x74] sm:$0xf]
  %v1766 = vld [vmem:[%s9 + $0x78] sm:$0xf]
  %v1767 = vld [vmem:[%s9 + $0x7c] sm:$0xf]
  %v1768 = vld [vmem:[%s19] sm:$0x1]
  %v1770 = vlaneseq
  %v1771 = vshrl.u32 %v1770, 7
  %v1772 = vsub.s32 0, %v1771
  %v1773 = vrot.slane %v1768, %v1772
  %v1807 = vunpack.c.l.b16 %v1736
  %v1808 = vunpack.c.l.b16 %v1737
  %v1809 = vunpack.c.l.b16 %v1738
  %v1810 = vunpack.c.l.b16 %v1739
  %v1811 = vunpack.c.l.b16 %v1740
  %v1812 = vunpack.c.l.b16 %v1741
  %v1813 = vunpack.c.l.b16 %v1742
  %v1814 = vunpack.c.l.b16 %v1743
  %v1815 = vunpack.c.l.b16 %v1744
  %v1816 = vunpack.c.l.b16 %v1745
  %v1817 = vunpack.c.l.b16 %v1746
  %v1818 = vunpack.c.l.b16 %v1747
  %v1819 = vunpack.c.l.b16 %v1748
  %v1820 = vunpack.c.l.b16 %v1749
  %v1821 = vunpack.c.l.b16 %v1750
  %v1822 = vunpack.c.l.b16 %v1751
  %v1823 = vunpack.c.l.b16 %v1752
  %v1824 = vunpack.c.l.b16 %v1753
  %v1825 = vunpack.c.l.b16 %v1754
  %v1826 = vunpack.c.l.b16 %v1755
  %v1827 = vunpack.c.l.b16 %v1756
  %v1828 = vunpack.c.l.b16 %v1757
  %v1829 = vunpack.c.l.b16 %v1758
  %v1830 = vunpack.c.l.b16 %v1759
  %v1831 = vunpack.c.l.b16 %v1760
  %v1832 = vunpack.c.l.b16 %v1761
  %v1833 = vunpack.c.l.b16 %v1762
  %v1834 = vunpack.c.l.b16 %v1763
  %v1835 = vunpack.c.l.b16 %v1764
  %v1836 = vunpack.c.l.b16 %v1765
  %v1837 = vunpack.c.l.b16 %v1766
  %v1838 = vunpack.c.l.b16 %v1767
  %v1839 = vpack.c.b16 %v1808, %v1807
  %v1840 = vpack.c.b16 %v1810, %v1809
  %v1841 = vpack.c.b16 %v1812, %v1811
  %v1842 = vpack.c.b16 %v1814, %v1813
  %v1843 = vpack.c.b16 %v1816, %v1815
  %v1844 = vpack.c.b16 %v1818, %v1817
  %v1845 = vpack.c.b16 %v1820, %v1819
  %v1846 = vpack.c.b16 %v1822, %v1821
  %v1847 = vpack.c.b16 %v1824, %v1823
  %v1848 = vpack.c.b16 %v1826, %v1825
  %v1849 = vpack.c.b16 %v1828, %v1827
  %v1850 = vpack.c.b16 %v1830, %v1829
  %v1851 = vpack.c.b16 %v1832, %v1831
  %v1852 = vpack.c.b16 %v1834, %v1833
  %v1853 = vpack.c.b16 %v1836, %v1835
  %v1854 = vpack.c.b16 %v1838, %v1837
  %1871 = vmatprep.subr.bf16.mxu0 0
  %1872 = vmatpush1.bf16.msra.mxu0 %v1839
  %1873 = vmatprep.subr.bf16.mxu0 0
  %1874 = vmatpush1.bf16.msra.mxu0 %v1840
  %1875 = vmatprep.subr.bf16.mxu0 0
  %1876 = vmatpush1.bf16.msra.mxu0 %v1841
  %1877 = vmatprep.subr.bf16.mxu0 0
  %1878 = vmatpush1.bf16.msra.mxu0 %v1842
  %1879 = vmatprep.subr.bf16.mxu0 0
  %1880 = vmatpush1.bf16.msra.mxu0 %v1843
  %1881 = vmatprep.subr.bf16.mxu0 0
  %1882 = vmatpush1.bf16.msra.mxu0 %v1844
  %1883 = vmatprep.subr.bf16.mxu0 0
  %1884 = vmatpush1.bf16.msra.mxu0 %v1845
  %1885 = vmatprep.subr.bf16.mxu0 0
  %1886 = vmatpush1.bf16.msra.mxu0 %v1846
  %1887 = vmatprep.subr.bf16.mxu0 0
  %1888 = vmatpush1.bf16.msra.mxu0 %v1847
  %1889 = vmatprep.subr.bf16.mxu0 0
  %1890 = vmatpush1.bf16.msra.mxu0 %v1848
  %1891 = vmatprep.subr.bf16.mxu0 0
  %1892 = vmatpush1.bf16.msra.mxu0 %v1849
  %1893 = vmatprep.subr.bf16.mxu0 0
  %1894 = vmatpush1.bf16.msra.mxu0 %v1850
  %1895 = vmatprep.subr.bf16.mxu0 0
  %1896 = vmatpush1.bf16.msra.mxu0 %v1851
  %1897 = vmatprep.subr.bf16.mxu0 0
  %1898 = vmatpush1.bf16.msra.mxu0 %v1852
  %1899 = vmatprep.subr.bf16.mxu0 0
  %1900 = vmatpush1.bf16.msra.mxu0 %v1853
  %1901 = vmatprep.subr.bf16.mxu0 0
  %1902 = vmatpush1.bf16.msra.mxu0 %v1854
  %1903 = vmatprep.mubr.bf16.mxu0 %v1735
  %1904 = vmatmul.mubr.bf16.gmra.mrb[0].mxu0 %v1734
  %v1905 = vpop.f32.mrb[0].mxu0
  %v1906 = vadd.f32 %v1773, %v1905
  %v1907 = vpop.f32.mrb[0].mxu0
  %v1908 = vpop.f32.mrb[0].mxu0
  %v1909 = vpop.f32.mrb[0].mxu0
  %1910 = vdwg.mxu0
  %v1911 = vmax.f32 %v1906, 0.0
  %v1912 = vpack.c.bf16 %v1911, %v1911
  %v1913 = vld [vmem:[%s10] sm:$0xf]
  %v1914 = vld [vmem:[%s10 + $0x4] sm:$0xf]
  %v1915 = vld [vmem:[%s10 + $0x8] sm:$0xf]
  %v1916 = vld [vmem:[%s10 + $0xc] sm:$0xf]
  %v1917 = vld [vmem:[%s10 + $0x10] sm:$0xf]
  %v1918 = vld [vmem:[%s10 + $0x14] sm:$0xf]
  %v1919 = vld [vmem:[%s10 + $0x18] sm:$0xf]
  %v1920 = vld [vmem:[%s10 + $0x1c] sm:$0xf]
  %v1921 = vld [vmem:[%s10 + $0x20] sm:$0xf]
  %v1922 = vld [vmem:[%s10 + $0x24] sm:$0xf]
  %v1923 = vld [vmem:[%s10 + $0x28] sm:$0xf]
  %v1924 = vld [vmem:[%s10 + $0x2c] sm:$0xf]
  %v1925 = vld [vmem:[%s10 + $0x30] sm:$0xf]
  %v1926 = vld [vmem:[%s10 + $0x34] sm:$0xf]
  %v1927 = vld [vmem:[%s10 + $0x38] sm:$0xf]
  %v1928 = vld [vmem:[%s10 + $0x3c] sm:$0xf]
  %v1929 = vld [vmem:[%s20] sm:$0x1]
  %v1931 = vlaneseq
  %v1932 = vshrl.u32 %v1931, 7
  %v1933 = vsub.s32 0, %v1932
  %v1934 = vrot.slane %v1929, %v1933
  %v1952 = vunpack.c.l.b16 %v1913
  %v1953 = vunpack.c.l.b16 %v1914
  %v1954 = vunpack.c.l.b16 %v1915
  %v1955 = vunpack.c.l.b16 %v1916
  %v1956 = vunpack.c.l.b16 %v1917
  %v1957 = vunpack.c.l.b16 %v1918
  %v1958 = vunpack.c.l.b16 %v1919
  %v1959 = vunpack.c.l.b16 %v1920
  %v1960 = vunpack.c.l.b16 %v1921
  %v1961 = vunpack.c.l.b16 %v1922
  %v1962 = vunpack.c.l.b16 %v1923
  %v1963 = vunpack.c.l.b16 %v1924
  %v1964 = vunpack.c.l.b16 %v1925
  %v1965 = vunpack.c.l.b16 %v1926
  %v1966 = vunpack.c.l.b16 %v1927
  %v1967 = vunpack.c.l.b16 %v1928
  %v1968 = vpack.c.b16 %v1953, %v1952
  %v1969 = vpack.c.b16 %v1955, %v1954
  %v1970 = vpack.c.b16 %v1957, %v1956
  %v1971 = vpack.c.b16 %v1959, %v1958
  %v1972 = vpack.c.b16 %v1961, %v1960
  %v1973 = vpack.c.b16 %v1963, %v1962
  %v1974 = vpack.c.b16 %v1965, %v1964
  %v1975 = vpack.c.b16 %v1967, %v1966
  %1984 = vmatprep.subr.bf16.mxu0 0
  %1985 = vmatpush1.bf16.msra.mxu0 %v1968
  %1986 = vmatprep.subr.bf16.mxu0 0
  %1987 = vmatpush1.bf16.msra.mxu0 %v1969
  %1988 = vmatprep.subr.bf16.mxu0 0
  %1989 = vmatpush1.bf16.msra.mxu0 %v1970
  %1990 = vmatprep.subr.bf16.mxu0 0
  %1991 = vmatpush1.bf16.msra.mxu0 %v1971
  %1992 = vmatprep.subr.bf16.mxu0 0
  %1993 = vmatpush1.bf16.msra.mxu0 %v1972
  %1994 = vmatprep.subr.bf16.mxu0 0
  %1995 = vmatpush1.bf16.msra.mxu0 %v1973
  %1996 = vmatprep.subr.bf16.mxu0 0
  %1997 = vmatpush1.bf16.msra.mxu0 %v1974
  %1998 = vmatprep.subr.bf16.mxu0 0
  %1999 = vmatpush1.bf16.msra.mxu0 %v1975
  %2000 = vmatprep.subr.bf16.mxu0 0
  %2001 = vmatpush1.bf16.msra.mxu0 0
  %2002 = vmatprep.subr.bf16.mxu0 0
  %2003 = vmatpush1.bf16.msra.mxu0 0
  %2004 = vmatprep.subr.bf16.mxu0 0
  %2005 = vmatpush1.bf16.msra.mxu0 0
  %2006 = vmatprep.subr.bf16.mxu0 0
  %2007 = vmatpush1.bf16.msra.mxu0 0
  %2008 = vmatprep.subr.bf16.mxu0 0
  %2009 = vmatpush1.bf16.msra.mxu0 0
  %2010 = vmatprep.subr.bf16.mxu0 0
  %2011 = vmatpush1.bf16.msra.mxu0 0
  %2012 = vmatprep.subr.bf16.mxu0 0
  %2013 = vmatpush1.bf16.msra.mxu0 0
  %2014 = vmatprep.subr.bf16.mxu0 0
  %2015 = vmatpush1.bf16.msra.mxu0 0
  %2016 = vmatprep.mubr.bf16.mxu0 0
  %2017 = vmatmul.mubr.bf16.gmra.mrb[0].mxu0 %v1912
  %v2018 = vpop.f32.mrb[0].mxu0
  %v2019 = vadd.f32 %v1934, %v2018
  %v2020 = vpop.f32.mrb[0].mxu0
  %v2021 = vpop.f32.mrb[0].mxu0
  %v2022 = vpop.f32.mrb[0].mxu0
  %2023 = vdwg.mxu0
  %v2024 = vmax.f32 %v2019, 0.0
  %v2025 = vpack.c.bf16 %v2024, %v2024
  %v2026 = vld [vmem:[%s11] sm:$0xff]
  %v2027 = vld [vmem:[%s11 + $0x8] sm:$0xff]
  %v2028 = vld [vmem:[%s11 + $0x10] sm:$0xff]
  %v2029 = vld [vmem:[%s11 + $0x18] sm:$0xff]
  %v2030 = vld [vmem:[%s11 + $0x20] sm:$0xff]
  %v2031 = vld [vmem:[%s11 + $0x28] sm:$0xff]
  %v2032 = vld [vmem:[%s11 + $0x30] sm:$0xff]
  %v2033 = vld [vmem:[%s11 + $0x38] sm:$0xff]
  %v2034 = vld [vmem:[%s11 + $0x40] sm:$0xff]
  %v2035 = vld [vmem:[%s11 + $0x48] sm:$0xff]
  %v2036 = vld [vmem:[%s11 + $0x50] sm:$0xff]
  %v2037 = vld [vmem:[%s11 + $0x58] sm:$0xff]
  %v2038 = vld [vmem:[%s11 + $0x60] sm:$0xff]
  %v2039 = vld [vmem:[%s11 + $0x68] sm:$0xff]
  %v2040 = vld [vmem:[%s11 + $0x70] sm:$0xff]
  %v2041 = vld [vmem:[%s11 + $0x78] sm:$0xff]
  %v2042 = vld [vmem:[%s11 + $0x80] sm:$0xff]
  %v2043 = vld [vmem:[%s11 + $0x88] sm:$0xff]
  %v2044 = vld [vmem:[%s11 + $0x90] sm:$0xff]
  %v2045 = vld [vmem:[%s11 + $0x98] sm:$0xff]
  %v2046 = vld [vmem:[%s11 + $0xa0] sm:$0xff]
  %v2047 = vld [vmem:[%s11 + $0xa8] sm:$0xff]
  %v2048 = vld [vmem:[%s11 + $0xb0] sm:$0xff]
  %v2049 = vld [vmem:[%s11 + $0xb8] sm:$0xff]
  %v2050 = vld [vmem:[%s11 + $0xc0] sm:$0xff]
  %v2051 = vld [vmem:[%s11 + $0xc8] sm:$0xff]
  %v2052 = vld [vmem:[%s11 + $0xd0] sm:$0xff]
  %v2053 = vld [vmem:[%s11 + $0xd8] sm:$0xff]
  %v2054 = vld [vmem:[%s11 + $0xe0] sm:$0xff]
  %v2055 = vld [vmem:[%s11 + $0xe8] sm:$0xff]
  %v2056 = vld [vmem:[%s11 + $0xf0] sm:$0xff]
  %v2057 = vld [vmem:[%s11 + $0xf8] sm:$0xff]
  %v2058 = vld [vmem:[%s21] sm:$0xf]
  %v2060 = vlaneseq
  %v2061 = vshrl.u32 %v2060, 7
  %v2062 = vsub.s32 0, %v2061
  %v2063 = vrot.slane %v2058, %v2062
  %v2064 = vlaneseq
  %v2065 = vshrl.u32 %v2064, 7
  %v2066 = vsub.s32 1, %v2065
  %v2067 = vrot.slane %v2058, %v2066
  %v2068 = vlaneseq
  %v2069 = vshrl.u32 %v2068, 7
  %v2070 = vsub.s32 2, %v2069
  %v2071 = vrot.slane %v2058, %v2070
  %v2072 = vlaneseq
  %v2073 = vshrl.u32 %v2072, 7
  %v2074 = vsub.s32 3, %v2073
  %v2075 = vrot.slane %v2058, %v2074
  %v2112 = vunpack.c.l.b16 %v2026
  %v2113 = vunpack.c.h.b16 %v2026
  %v2114 = vunpack.c.l.b16 %v2027
  %v2115 = vunpack.c.h.b16 %v2027
  %v2116 = vunpack.c.l.b16 %v2028
  %v2117 = vunpack.c.h.b16 %v2028
  %v2118 = vunpack.c.l.b16 %v2029
  %v2119 = vunpack.c.h.b16 %v2029
  %v2120 = vunpack.c.l.b16 %v2030
  %v2121 = vunpack.c.h.b16 %v2030
  %v2122 = vunpack.c.l.b16 %v2031
  %v2123 = vunpack.c.h.b16 %v2031
  %v2124 = vunpack.c.l.b16 %v2032
  %v2125 = vunpack.c.h.b16 %v2032
  %v2126 = vunpack.c.l.b16 %v2033
  %v2127 = vunpack.c.h.b16 %v2033
  %v2128 = vunpack.c.l.b16 %v2034
  %v2129 = vunpack.c.h.b16 %v2034
  %v2130 = vunpack.c.l.b16 %v2035
  %v2131 = vunpack.c.h.b16 %v2035
  %v2132 = vunpack.c.l.b16 %v2036
  %v2133 = vunpack.c.h.b16 %v2036
  %v2134 = vunpack.c.l.b16 %v2037
  %v2135 = vunpack.c.h.b16 %v2037
  %v2136 = vunpack.c.l.b16 %v2038
  %v2137 = vunpack.c.h.b16 %v2038
  %v2138 = vunpack.c.l.b16 %v2039
  %v2139 = vunpack.c.h.b16 %v2039
  %v2140 = vunpack.c.l.b16 %v2040
  %v2141 = vunpack.c.h.b16 %v2040
  %v2142 = vunpack.c.l.b16 %v2041
  %v2143 = vunpack.c.h.b16 %v2041
  %v2144 = vunpack.c.l.b16 %v2042
  %v2145 = vunpack.c.h.b16 %v2042
  %v2146 = vunpack.c.l.b16 %v2043
  %v2147 = vunpack.c.h.b16 %v2043
  %v2148 = vunpack.c.l.b16 %v2044
  %v2149 = vunpack.c.h.b16 %v2044
  %v2150 = vunpack.c.l.b16 %v2045
  %v2151 = vunpack.c.h.b16 %v2045
  %v2152 = vunpack.c.l.b16 %v2046
  %v2153 = vunpack.c.h.b16 %v2046
  %v2154 = vunpack.c.l.b16 %v2047
  %v2155 = vunpack.c.h.b16 %v2047
  %v2156 = vunpack.c.l.b16 %v2048
  %v2157 = vunpack.c.h.b16 %v2048
  %v2158 = vunpack.c.l.b16 %v2049
  %v2159 = vunpack.c.h.b16 %v2049
  %v2160 = vunpack.c.l.b16 %v2050
  %v2161 = vunpack.c.h.b16 %v2050
  %v2162 = vunpack.c.l.b16 %v2051
  %v2163 = vunpack.c.h.b16 %v2051
  %v2164 = vunpack.c.l.b16 %v2052
  %v2165 = vunpack.c.h.b16 %v2052
  %v2166 = vunpack.c.l.b16 %v2053
  %v2167 = vunpack.c.h.b16 %v2053
  %v2168 = vunpack.c.l.b16 %v2054
  %v2169 = vunpack.c.h.b16 %v2054
  %v2170 = vunpack.c.l.b16 %v2055
  %v2171 = vunpack.c.h.b16 %v2055
  %v2172 = vunpack.c.l.b16 %v2056
  %v2173 = vunpack.c.h.b16 %v2056
  %v2174 = vunpack.c.l.b16 %v2057
  %v2175 = vunpack.c.h.b16 %v2057
  %v2176 = vpack.c.b16 %v2116, %v2112
  %v2177 = vpack.c.b16 %v2117, %v2113
  %v2178 = vpack.c.b16 %v2118, %v2114
  %v2179 = vpack.c.b16 %v2119, %v2115
  %v2180 = vpack.c.b16 %v2124, %v2120
  %v2181 = vpack.c.b16 %v2125, %v2121
  %v2182 = vpack.c.b16 %v2126, %v2122
  %v2183 = vpack.c.b16 %v2127, %v2123
  %v2184 = vpack.c.b16 %v2132, %v2128
  %v2185 = vpack.c.b16 %v2133, %v2129
  %v2186 = vpack.c.b16 %v2134, %v2130
  %v2187 = vpack.c.b16 %v2135, %v2131
  %v2188 = vpack.c.b16 %v2140, %v2136
  %v2189 = vpack.c.b16 %v2141, %v2137
  %v2190 = vpack.c.b16 %v2142, %v2138
  %v2191 = vpack.c.b16 %v2143, %v2139
  %v2192 = vpack.c.b16 %v2148, %v2144
  %v2193 = vpack.c.b16 %v2149, %v2145
  %v2194 = vpack.c.b16 %v2150, %v2146
  %v2195 = vpack.c.b16 %v2151, %v2147
  %v2196 = vpack.c.b16 %v2156, %v2152
  %v2197 = vpack.c.b16 %v2157, %v2153
  %v2198 = vpack.c.b16 %v2158, %v2154
  %v2199 = vpack.c.b16 %v2159, %v2155
  %v2200 = vpack.c.b16 %v2164, %v2160
  %v2201 = vpack.c.b16 %v2165, %v2161
  %v2202 = vpack.c.b16 %v2166, %v2162
  %v2203 = vpack.c.b16 %v2167, %v2163
  %v2204 = vpack.c.b16 %v2172, %v2168
  %v2205 = vpack.c.b16 %v2173, %v2169
  %v2206 = vpack.c.b16 %v2174, %v2170
  %v2207 = vpack.c.b16 %v2175, %v2171
  %2240 = vmatprep.subr.bf16.mxu0 %v2177
  %2241 = vmatpush1.bf16.msra.mxu0 %v2176
  %2242 = vmatprep.subr.bf16.mxu0 %v2181
  %2243 = vmatpush1.bf16.msra.mxu0 %v2180
  %2244 = vmatprep.subr.bf16.mxu0 %v2185
  %2245 = vmatpush1.bf16.msra.mxu0 %v2184
  %2246 = vmatprep.subr.bf16.mxu0 %v2189
  %2247 = vmatpush1.bf16.msra.mxu0 %v2188
  %2248 = vmatprep.subr.bf16.mxu0 %v2193
  %2249 = vmatpush1.bf16.msra.mxu0 %v2192
  %2250 = vmatprep.subr.bf16.mxu0 %v2197
  %2251 = vmatpush1.bf16.msra.mxu0 %v2196
  %2252 = vmatprep.subr.bf16.mxu0 %v2201
  %2253 = vmatpush1.bf16.msra.mxu0 %v2200
  %2254 = vmatprep.subr.bf16.mxu0 %v2205
  %2255 = vmatpush1.bf16.msra.mxu0 %v2204
  %2256 = vmatprep.subr.bf16.mxu0 0
  %2257 = vmatpush1.bf16.msra.mxu0 0
  %2258 = vmatprep.subr.bf16.mxu0 0
  %2259 = vmatpush1.bf16.msra.mxu0 0
  %2260 = vmatprep.subr.bf16.mxu0 0
  %2261 = vmatpush1.bf16.msra.mxu0 0
  %2262 = vmatprep.subr.bf16.mxu0 0
  %2263 = vmatpush1.bf16.msra.mxu0 0
  %2264 = vmatprep.subr.bf16.mxu0 0
  %2265 = vmatpush1.bf16.msra.mxu0 0
  %2266 = vmatprep.subr.bf16.mxu0 0
  %2267 = vmatpush1.bf16.msra.mxu0 0
  %2268 = vmatprep.subr.bf16.mxu0 0
  %2269 = vmatpush1.bf16.msra.mxu0 0
  %2270 = vmatprep.subr.bf16.mxu0 0
  %2271 = vmatpush1.bf16.msra.mxu0 0
  %2272 = vmatprep.mubr.bf16.mxu0 0
  %2273 = vmatmul.mubr.bf16.gmra.mrb[0].mxu0 %v2025
  %v2274 = vpop.f32.mrb[0].mxu0
  %v2275 = vadd.f32 %v2063, %v2274
  %v2276 = vpop.f32.mrb[0].mxu0
  %v2277 = vadd.f32 %v2067, %v2276
  %v2278 = vpop.f32.mrb[0].mxu0
  %v2279 = vpop.f32.mrb[0].mxu0
  %2280 = vdwg.mxu0
  %2281 = vmatprep.subr.bf16.mxu0 %v2179
  %2282 = vmatpush1.bf16.msra.mxu0 %v2178
  %2283 = vmatprep.subr.bf16.mxu0 %v2183
  %2284 = vmatpush1.bf16.msra.mxu0 %v2182
  %2285 = vmatprep.subr.bf16.mxu0 %v2187
  %2286 = vmatpush1.bf16.msra.mxu0 %v2186
  %2287 = vmatprep.subr.bf16.mxu0 %v2191
  %2288 = vmatpush1.bf16.msra.mxu0 %v2190
  %2289 = vmatprep.subr.bf16.mxu0 %v2195
  %2290 = vmatpush1.bf16.msra.mxu0 %v2194
  %2291 = vmatprep.subr.bf16.mxu0 %v2199
  %2292 = vmatpush1.bf16.msra.mxu0 %v2198
  %2293 = vmatprep.subr.bf16.mxu0 %v2203
  %2294 = vmatpush1.bf16.msra.mxu0 %v2202
  %2295 = vmatprep.subr.bf16.mxu0 %v2207
  %2296 = vmatpush1.bf16.msra.mxu0 %v2206
  %2297 = vmatprep.subr.bf16.mxu0 0
  %2298 = vmatpush1.bf16.msra.mxu0 0
  %2299 = vmatprep.subr.bf16.mxu0 0
  %2300 = vmatpush1.bf16.msra.mxu0 0
  %2301 = vmatprep.subr.bf16.mxu0 0
  %2302 = vmatpush1.bf16.msra.mxu0 0
  %2303 = vmatprep.subr.bf16.mxu0 0
  %2304 = vmatpush1.bf16.msra.mxu0 0
  %2305 = vmatprep.subr.bf16.mxu0 0
  %2306 = vmatpush1.bf16.msra.mxu0 0
  %2307 = vmatprep.subr.bf16.mxu0 0
  %2308 = vmatpush1.bf16.msra.mxu0 0
  %2309 = vmatprep.subr.bf16.mxu0 0
  %2310 = vmatpush1.bf16.msra.mxu0 0
  %2311 = vmatprep.subr.bf16.mxu0 0
  %2312 = vmatpush1.bf16.msra.mxu0 0
  %2313 = vmatprep.mubr.bf16.mxu0 0
  %2314 = vmatmul.mubr.bf16.gmra.mrb[0].mxu0 %v2025
  %v2315 = vpop.f32.mrb[0].mxu0
  %v2316 = vadd.f32 %v2071, %v2315
  %v2317 = vpop.f32.mrb[0].mxu0
  %v2318 = vadd.f32 %v2075, %v2317
  %v2319 = vpop.f32.mrb[0].mxu0
  %v2320 = vpop.f32.mrb[0].mxu0
  %2321 = vdwg.mxu0
  %v2322 = vmax.f32 %v2275, 0.0
  %v2323 = vmax.f32 %v2277, 0.0
  %v2324 = vmax.f32 %v2316, 0.0
  %v2325 = vmax.f32 %v2318, 0.0
  %v2326 = vpack.c.bf16 %v2322, %v2322
  %v2327 = vpack.c.bf16 %v2323, %v2323
  %v2328 = vpack.c.bf16 %v2324, %v2324
  %v2329 = vpack.c.bf16 %v2325, %v2325
  %v2334 = vunpack.c.l.b16 %v2326
  %v2335 = vunpack.c.l.b16 %v2327
  %v2336 = vunpack.c.l.b16 %v2328
  %v2337 = vunpack.c.l.b16 %v2329
  %v2338 = vpack.c.b16 %v2335, %v2334
  %v2339 = vpack.c.b16 %v2337, %v2336
  %2342 = vst [vmem:[%s23] sm:$0xff] %v2338
  %2343 = vst [vmem:[%s23 + $0x8] sm:$0xff] %v2339
  // Predicated region
  $region90: #{vae_forward.10} parent=0 // pred_check
    _
  $region91: #{vae_forward.10} parent=0 // pred_check_branch
    %2345 = sbr.rel (0) target = $region93
  $region92: #{vae_forward.10} parent=0 // pred_region
    _
  $region93: #{vae_forward.10} parent=0 // pred_fallthru
    _
  // Predicated region
  $region94: #{vae_forward.10} parent=0 // pred_check
    _
  $region95: #{vae_forward.10} parent=0 // pred_check_branch
    %2347 = sbr.rel (0) target = $region97
  $region96: #{vae_forward.10} parent=0 // pred_region
    _
  $region97: #{vae_forward.10} parent=0 // pred_fallthru
    _
  // Predicated region
  $region98: #{vae_forward.10} parent=0 // pred_check
    _
  $region99: #{vae_forward.10} parent=0 // pred_check_branch
    %2349 = sbr.rel (0) target = $region101
  $region100: #{vae_forward.10} parent=0 // pred_region
    _
  $region101: #{vae_forward.10} parent=0 // pred_fallthru
    _
  // Predicated region
  $region102: #{vae_forward.10} parent=0 // pred_check
    _
  $region103: #{vae_forward.10} parent=0 // pred_check_branch
    %2351 = sbr.rel (0) target = $region105
  $region104: #{vae_forward.10} parent=0 // pred_region
    _
  $region105: #{vae_forward.10} parent=0 // pred_fallthru
    _

// kernel: vae_forward.12
$region0: #{vae_forward.12}
  #allocation0 [shape = 'u32[]', space=smem, size = 0x4, offset = 0x4, fixed_abs, tag = 'smem constant byte address 0x4 - core index']
  #allocation1 [shape = 'u32[144,128]{1,0:T(1,128)}', space=vmem, size = 0x12000, scoped, tag = 'internal scratch']
  %s0 = inlined_call_operand.vmem [shape: bf16[128,640], index: 0, kind: input, shape index: {}]
  %s1 = inlined_call_operand.vmem [shape: bf16[640,128], index: 1, kind: input, shape index: {}]
  %s2 = inlined_call_operand.vmem [shape: f32[1,128], index: 2, kind: input, shape index: {}]
  %s3 = inlined_call_operand.vmem [shape: bf16[128,128], index: 3, kind: output, shape index: {}]
  %s4 = sld [smem:[#allocation0]]
  $region22: #{vae_forward.12} parent=0
    _
  %s6 = ssub.s32 1, %s4
  %s7 = scalar_select 0, %s6, %s4
  // Predicated region
  $region2: #{vae_forward.12} parent=0 // pred_check
    _
  $region3: #{vae_forward.12} parent=0 // pred_check_branch
    %9 = sbr.rel (0) target = $region5
  $region4: #{vae_forward.12} parent=0 // pred_region
    _
  $region5: #{vae_forward.12} parent=0 // pred_fallthru
    _
  // Predicated region
  $region6: #{vae_forward.12} parent=0 // pred_check
    _
  $region7: #{vae_forward.12} parent=0 // pred_check_branch
    %11 = sbr.rel (0) target = $region9
  $region8: #{vae_forward.12} parent=0 // pred_region
    _
  $region9: #{vae_forward.12} parent=0 // pred_fallthru
    _
  // Predicated region
  $region10: #{vae_forward.12} parent=0 // pred_check
    _
  $region11: #{vae_forward.12} parent=0 // pred_check_branch
    %13 = sbr.rel (0) target = $region13
  $region12: #{vae_forward.12} parent=0 // pred_region
    _
  $region13: #{vae_forward.12} parent=0 // pred_fallthru
    _
  %v15 = vld [vmem:[%s0] sm:$0xff]
  %v16 = vld [vmem:[%s0 + $0x8] sm:$0xff]
  %v17 = vld [vmem:[%s0 + $0x10] sm:$0xf]
  %v18 = vld [vmem:[%s0 + $0x14] sm:$0xff]
  %v19 = vld [vmem:[%s0 + $0x1c] sm:$0xff]
  %v20 = vld [vmem:[%s0 + $0x24] sm:$0xf]
  %v21 = vld [vmem:[%s0 + $0x28] sm:$0xff]
  %v22 = vld [vmem:[%s0 + $0x30] sm:$0xff]
  %v23 = vld [vmem:[%s0 + $0x38] sm:$0xf]
  %v24 = vld [vmem:[%s0 + $0x3c] sm:$0xff]
  %v25 = vld [vmem:[%s0 + $0x44] sm:$0xff]
  %v26 = vld [vmem:[%s0 + $0x4c] sm:$0xf]
  %v27 = vld [vmem:[%s0 + $0x50] sm:$0xff]
  %v28 = vld [vmem:[%s0 + $0x58] sm:$0xff]
  %v29 = vld [vmem:[%s0 + $0x60] sm:$0xf]
  %v30 = vld [vmem:[%s0 + $0x64] sm:$0xff]
  %v31 = vld [vmem:[%s0 + $0x6c] sm:$0xff]
  %v32 = vld [vmem:[%s0 + $0x74] sm:$0xf]
  %v33 = vld [vmem:[%s0 + $0x78] sm:$0xff]
  %v34 = vld [vmem:[%s0 + $0x80] sm:$0xff]
  %v35 = vld [vmem:[%s0 + $0x88] sm:$0xf]
  %v36 = vld [vmem:[%s0 + $0x8c] sm:$0xff]
  %v37 = vld [vmem:[%s0 + $0x94] sm:$0xff]
  %v38 = vld [vmem:[%s0 + $0x9c] sm:$0xf]
  %v39 = vld [vmem:[%s0 + $0xa0] sm:$0xff]
  %v40 = vld [vmem:[%s0 + $0xa8] sm:$0xff]
  %v41 = vld [vmem:[%s0 + $0xb0] sm:$0xf]
  %v42 = vld [vmem:[%s0 + $0xb4] sm:$0xff]
  %v43 = vld [vmem:[%s0 + $0xbc] sm:$0xff]
  %v44 = vld [vmem:[%s0 + $0xc4] sm:$0xf]
  %v45 = vld [vmem:[%s0 + $0xc8] sm:$0xff]
  %v46 = vld [vmem:[%s0 + $0xd0] sm:$0xff]
  %v47 = vld [vmem:[%s0 + $0xd8] sm:$0xf]
  %v48 = vld [vmem:[%s0 + $0xdc] sm:$0xff]
  %v49 = vld [vmem:[%s0 + $0xe4] sm:$0xff]
  %v50 = vld [vmem:[%s0 + $0xec] sm:$0xf]
  %v51 = vld [vmem:[%s0 + $0xf0] sm:$0xff]
  %v52 = vld [vmem:[%s0 + $0xf8] sm:$0xff]
  %v53 = vld [vmem:[%s0 + $0x100] sm:$0xf]
  %v54 = vld [vmem:[%s0 + $0x104] sm:$0xff]
  %v55 = vld [vmem:[%s0 + $0x10c] sm:$0xff]
  %v56 = vld [vmem:[%s0 + $0x114] sm:$0xf]
  %v57 = vld [vmem:[%s0 + $0x118] sm:$0xff]
  %v58 = vld [vmem:[%s0 + $0x120] sm:$0xff]
  %v59 = vld [vmem:[%s0 + $0x128] sm:$0xf]
  %v60 = vld [vmem:[%s0 + $0x12c] sm:$0xff]
  %v61 = vld [vmem:[%s0 + $0x134] sm:$0xff]
  %v62 = vld [vmem:[%s0 + $0x13c] sm:$0xf]
  %v63 = vld [vmem:[%s1] sm:$0xf]
  %v64 = vld [vmem:[%s1 + $0x4] sm:$0xf]
  %v65 = vld [vmem:[%s1 + $0x8] sm:$0xf]
  %v66 = vld [vmem:[%s1 + $0xc] sm:$0xf]
  %v67 = vld [vmem:[%s1 + $0x10] sm:$0xf]
  %v68 = vld [vmem:[%s1 + $0x14] sm:$0xf]
  %v69 = vld [vmem:[%s1 + $0x18] sm:$0xf]
  %v70 = vld [vmem:[%s1 + $0x1c] sm:$0xf]
  %v71 = vld [vmem:[%s1 + $0x20] sm:$0xf]
  %v72 = vld [vmem:[%s1 + $0x24] sm:$0xf]
  %v73 = vld [vmem:[%s1 + $0x28] sm:$0xf]
  %v74 = vld [vmem:[%s1 + $0x2c] sm:$0xf]
  %v75 = vld [vmem:[%s1 + $0x30] sm:$0xf]
  %v76 = vld [vmem:[%s1 + $0x34] sm:$0xf]
  %v77 = vld [vmem:[%s1 + $0x38] sm:$0xf]
  %v78 = vld [vmem:[%s1 + $0x3c] sm:$0xf]
  %v79 = vld [vmem:[%s1 + $0x40] sm:$0xf]
  %v80 = vld [vmem:[%s1 + $0x44] sm:$0xf]
  %v81 = vld [vmem:[%s1 + $0x48] sm:$0xf]
  %v82 = vld [vmem:[%s1 + $0x4c] sm:$0xf]
  %v83 = vld [vmem:[%s1 + $0x50] sm:$0xf]
  %v84 = vld [vmem:[%s1 + $0x54] sm:$0xf]
  %v85 = vld [vmem:[%s1 + $0x58] sm:$0xf]
  %v86 = vld [vmem:[%s1 + $0x5c] sm:$0xf]
  %v87 = vld [vmem:[%s1 + $0x60] sm:$0xf]
  %v88 = vld [vmem:[%s1 + $0x64] sm:$0xf]
  %v89 = vld [vmem:[%s1 + $0x68] sm:$0xf]
  %v90 = vld [vmem:[%s1 + $0x6c] sm:$0xf]
  %v91 = vld [vmem:[%s1 + $0x70] sm:$0xf]
  %v92 = vld [vmem:[%s1 + $0x74] sm:$0xf]
  %v93 = vld [vmem:[%s1 + $0x78] sm:$0xf]
  %v94 = vld [vmem:[%s1 + $0x7c] sm:$0xf]
  %v95 = vld [vmem:[%s1 + $0x80] sm:$0xf]
  %v96 = vld [vmem:[%s1 + $0x84] sm:$0xf]
  %v97 = vld [vmem:[%s1 + $0x88] sm:$0xf]
  %v98 = vld [vmem:[%s1 + $0x8c] sm:$0xf]
  %v99 = vld [vmem:[%s1 + $0x90] sm:$0xf]
  %v100 = vld [vmem:[%s1 + $0x94] sm:$0xf]
  %v101 = vld [vmem:[%s1 + $0x98] sm:$0xf]
  %v102 = vld [vmem:[%s1 + $0x9c] sm:$0xf]
  %v103 = vld [vmem:[%s1 + $0xa0] sm:$0xf]
  %v104 = vld [vmem:[%s1 + $0xa4] sm:$0xf]
  %v105 = vld [vmem:[%s1 + $0xa8] sm:$0xf]
  %v106 = vld [vmem:[%s1 + $0xac] sm:$0xf]
  %v107 = vld [vmem:[%s1 + $0xb0] sm:$0xf]
  %v108 = vld [vmem:[%s1 + $0xb4] sm:$0xf]
  %v109 = vld [vmem:[%s1 + $0xb8] sm:$0xf]
  %v110 = vld [vmem:[%s1 + $0xbc] sm:$0xf]
  %v111 = vld [vmem:[%s1 + $0xc0] sm:$0xf]
  %v112 = vld [vmem:[%s1 + $0xc4] sm:$0xf]
  %v113 = vld [vmem:[%s1 + $0xc8] sm:$0xf]
  %v114 = vld [vmem:[%s1 + $0xcc] sm:$0xf]
  %v115 = vld [vmem:[%s1 + $0xd0] sm:$0xf]
  %v116 = vld [vmem:[%s1 + $0xd4] sm:$0xf]
  %v117 = vld [vmem:[%s1 + $0xd8] sm:$0xf]
  %v118 = vld [vmem:[%s1 + $0xdc] sm:$0xf]
  %v119 = vld [vmem:[%s1 + $0xe0] sm:$0xf]
  %v120 = vld [vmem:[%s1 + $0xe4] sm:$0xf]
  %v121 = vld [vmem:[%s1 + $0xe8] sm:$0xf]
  %v122 = vld [vmem:[%s1 + $0xec] sm:$0xf]
  %v123 = vld [vmem:[%s1 + $0xf0] sm:$0xf]
  %v124 = vld [vmem:[%s1 + $0xf4] sm:$0xf]
  %v125 = vld [vmem:[%s1 + $0xf8] sm:$0xf]
  %v126 = vld [vmem:[%s1 + $0xfc] sm:$0xf]
  %v127 = vld [vmem:[%s1 + $0x100] sm:$0xf]
  %v128 = vld [vmem:[%s1 + $0x104] sm:$0xf]
  %v129 = vld [vmem:[%s1 + $0x108] sm:$0xf]
  %v130 = vld [vmem:[%s1 + $0x10c] sm:$0xf]
  %v131 = vld [vmem:[%s1 + $0x110] sm:$0xf]
  %v132 = vld [vmem:[%s1 + $0x114] sm:$0xf]
  %v133 = vld [vmem:[%s1 + $0x118] sm:$0xf]
  %v134 = vld [vmem:[%s1 + $0x11c] sm:$0xf]
  %v135 = vld [vmem:[%s1 + $0x120] sm:$0xf]
  %v136 = vld [vmem:[%s1 + $0x124] sm:$0xf]
  %v137 = vld [vmem:[%s1 + $0x128] sm:$0xf]
  %v138 = vld [vmem:[%s1 + $0x12c] sm:$0xf]
  %v139 = vld [vmem:[%s1 + $0x130] sm:$0xf]
  %v140 = vld [vmem:[%s1 + $0x134] sm:$0xf]
  %v141 = vld [vmem:[%s1 + $0x138] sm:$0xf]
  %v142 = vld [vmem:[%s1 + $0x13c] sm:$0xf]
  %v143 = vld [vmem:[%s2] sm:$0x1]
  %v145 = vlaneseq
  %v146 = vshrl.u32 %v145, 7
  %v147 = vsub.s32 0, %v146
  %v148 = vrot.slane %v143, %v147
  %v198 = vunpack.c.l.b16 %v15
  %v199 = vunpack.c.h.b16 %v15
  %v200 = vunpack.c.l.b16 %v16
  %v201 = vunpack.c.h.b16 %v16
  %v202 = vunpack.c.l.b16 %v17
  %v203 = vunpack.c.l.b16 %v18
  %v204 = vunpack.c.h.b16 %v18
  %v205 = vunpack.c.l.b16 %v19
  %v206 = vunpack.c.h.b16 %v19
  %v207 = vunpack.c.l.b16 %v20
  %v208 = vunpack.c.l.b16 %v21
  %v209 = vunpack.c.h.b16 %v21
  %v210 = vunpack.c.l.b16 %v22
  %v211 = vunpack.c.h.b16 %v22
  %v212 = vunpack.c.l.b16 %v23
  %v213 = vunpack.c.l.b16 %v24
  %v214 = vunpack.c.h.b16 %v24
  %v215 = vunpack.c.l.b16 %v25
  %v216 = vunpack.c.h.b16 %v25
  %v217 = vunpack.c.l.b16 %v26
  %v218 = vunpack.c.l.b16 %v27
  %v219 = vunpack.c.h.b16 %v27
  %v220 = vunpack.c.l.b16 %v28
  %v221 = vunpack.c.h.b16 %v28
  %v222 = vunpack.c.l.b16 %v29
  %v223 = vunpack.c.l.b16 %v30
  %v224 = vunpack.c.h.b16 %v30
  %v225 = vunpack.c.l.b16 %v31
  %v226 = vunpack.c.h.b16 %v31
  %v227 = vunpack.c.l.b16 %v32
  %v228 = vunpack.c.l.b16 %v33
  %v229 = vunpack.c.h.b16 %v33
  %v230 = vunpack.c.l.b16 %v34
  %v231 = vunpack.c.h.b16 %v34
  %v232 = vunpack.c.l.b16 %v35
  %v233 = vunpack.c.l.b16 %v36
  %v234 = vunpack.c.h.b16 %v36
  %v235 = vunpack.c.l.b16 %v37
  %v236 = vunpack.c.h.b16 %v37
  %v237 = vunpack.c.l.b16 %v38
  %v238 = vunpack.c.l.b16 %v39
  %v239 = vunpack.c.h.b16 %v39
  %v240 = vunpack.c.l.b16 %v40
  %v241 = vunpack.c.h.b16 %v40
  %v242 = vunpack.c.l.b16 %v41
  %v243 = vunpack.c.l.b16 %v42
  %v244 = vunpack.c.h.b16 %v42
  %v245 = vunpack.c.l.b16 %v43
  %v246 = vunpack.c.h.b16 %v43
  %v247 = vunpack.c.l.b16 %v44
  %v248 = vunpack.c.l.b16 %v45
  %v249 = vunpack.c.h.b16 %v45
  %v250 = vunpack.c.l.b16 %v46
  %v251 = vunpack.c.h.b16 %v46
  %v252 = vunpack.c.l.b16 %v47
  %v253 = vunpack.c.l.b16 %v48
  %v254 = vunpack.c.h.b16 %v48
  %v255 = vunpack.c.l.b16 %v49
  %v256 = vunpack.c.h.b16 %v49
  %v257 = vunpack.c.l.b16 %v50
  %v258 = vunpack.c.l.b16 %v51
  %v259 = vunpack.c.h.b16 %v51
  %v260 = vunpack.c.l.b16 %v52
  %v261 = vunpack.c.h.b16 %v52
  %v262 = vunpack.c.l.b16 %v53
  %v263 = vunpack.c.l.b16 %v54
  %v264 = vunpack.c.h.b16 %v54
  %v265 = vunpack.c.l.b16 %v55
  %v266 = vunpack.c.h.b16 %v55
  %v267 = vunpack.c.l.b16 %v56
  %v268 = vunpack.c.l.b16 %v57
  %v269 = vunpack.c.h.b16 %v57
  %v270 = vunpack.c.l.b16 %v58
  %v271 = vunpack.c.h.b16 %v58
  %v272 = vunpack.c.l.b16 %v59
  %v273 = vunpack.c.l.b16 %v60
  %v274 = vunpack.c.h.b16 %v60
  %v275 = vunpack.c.l.b16 %v61
  %v276 = vunpack.c.h.b16 %v61
  %v277 = vunpack.c.l.b16 %v62
  %v278 = vpack.c.b16 %v203, %v198
  %v279 = vpack.c.b16 %v204, %v199
  %v280 = vpack.c.b16 %v205, %v200
  %v281 = vpack.c.b16 %v206, %v201
  %v282 = vpack.c.b16 %v207, %v202
  %v283 = vpack.c.b16 %v213, %v208
  %v284 = vpack.c.b16 %v214, %v209
  %v285 = vpack.c.b16 %v215, %v210
  %v286 = vpack.c.b16 %v216, %v211
  %v287 = vpack.c.b16 %v217, %v212
  %v288 = vpack.c.b16 %v223, %v218
  %v289 = vpack.c.b16 %v224, %v219
  %v290 = vpack.c.b16 %v225, %v220
  %v291 = vpack.c.b16 %v226, %v221
  %v292 = vpack.c.b16 %v227, %v222
  %v293 = vpack.c.b16 %v233, %v228
  %v294 = vpack.c.b16 %v234, %v229
  %v295 = vpack.c.b16 %v235, %v230
  %v296 = vpack.c.b16 %v236, %v231
  %v297 = vpack.c.b16 %v237, %v232
  %v298 = vpack.c.b16 %v243, %v238
  %v299 = vpack.c.b16 %v244, %v239
  %v300 = vpack.c.b16 %v245, %v240
  %v301 = vpack.c.b16 %v246, %v241
  %v302 = vpack.c.b16 %v247, %v242
  %v303 = vpack.c.b16 %v253, %v248
  %v304 = vpack.c.b16 %v254, %v249
  %v305 = vpack.c.b16 %v255, %v250
  %v306 = vpack.c.b16 %v256, %v251
  %v307 = vpack.c.b16 %v257, %v252
  %v308 = vpack.c.b16 %v263, %v258
  %v309 = vpack.c.b16 %v264, %v259
  %v310 = vpack.c.b16 %v265, %v260
  %v311 = vpack.c.b16 %v266, %v261
  %v312 = vpack.c.b16 %v267, %v262
  %v313 = vpack.c.b16 %v273, %v268
  %v314 = vpack.c.b16 %v274, %v269
  %v315 = vpack.c.b16 %v275, %v270
  %v316 = vpack.c.b16 %v276, %v271
  %v317 = vpack.c.b16 %v277, %v272
  %v438 = vunpack.c.l.b16 %v63
  %v439 = vunpack.c.l.b16 %v64
  %v440 = vunpack.c.l.b16 %v65
  %v441 = vunpack.c.l.b16 %v66
  %v442 = vunpack.c.l.b16 %v67
  %v443 = vunpack.c.l.b16 %v68
  %v444 = vunpack.c.l.b16 %v69
  %v445 = vunpack.c.l.b16 %v70
  %v446 = vunpack.c.l.b16 %v71
  %v447 = vunpack.c.l.b16 %v72
  %v448 = vunpack.c.l.b16 %v73
  %v449 = vunpack.c.l.b16 %v74
  %v450 = vunpack.c.l.b16 %v75
  %v451 = vunpack.c.l.b16 %v76
  %v452 = vunpack.c.l.b16 %v77
  %v453 = vunpack.c.l.b16 %v78
  %v454 = vunpack.c.l.b16 %v79
  %v455 = vunpack.c.l.b16 %v80
  %v456 = vunpack.c.l.b16 %v81
  %v457 = vunpack.c.l.b16 %v82
  %v458 = vunpack.c.l.b16 %v83
  %v459 = vunpack.c.l.b16 %v84
  %v460 = vunpack.c.l.b16 %v85
  %v461 = vunpack.c.l.b16 %v86
  %v462 = vunpack.c.l.b16 %v87
  %v463 = vunpack.c.l.b16 %v88
  %v464 = vunpack.c.l.b16 %v89
  %v465 = vunpack.c.l.b16 %v90
  %v466 = vunpack.c.l.b16 %v91
  %v467 = vunpack.c.l.b16 %v92
  %v468 = vunpack.c.l.b16 %v93
  %v469 = vunpack.c.l.b16 %v94
  %v470 = vunpack.c.l.b16 %v95
  %v471 = vunpack.c.l.b16 %v96
  %v472 = vunpack.c.l.b16 %v97
  %v473 = vunpack.c.l.b16 %v98
  %v474 = vunpack.c.l.b16 %v99
  %v475 = vunpack.c.l.b16 %v100
  %v476 = vunpack.c.l.b16 %v101
  %v477 = vunpack.c.l.b16 %v102
  %v478 = vunpack.c.l.b16 %v103
  %v479 = vunpack.c.l.b16 %v104
  %v480 = vunpack.c.l.b16 %v105
  %v481 = vunpack.c.l.b16 %v106
  %v482 = vunpack.c.l.b16 %v107
  %v483 = vunpack.c.l.b16 %v108
  %v484 = vunpack.c.l.b16 %v109
  %v485 = vunpack.c.l.b16 %v110
  %v486 = vunpack.c.l.b16 %v111
  %v487 = vunpack.c.l.b16 %v112
  %v488 = vunpack.c.l.b16 %v113
  %v489 = vunpack.c.l.b16 %v114
  %v490 = vunpack.c.l.b16 %v115
  %v491 = vunpack.c.l.b16 %v116
  %v492 = vunpack.c.l.b16 %v117
  %v493 = vunpack.c.l.b16 %v118
  %v494 = vunpack.c.l.b16 %v119
  %v495 = vunpack.c.l.b16 %v120
  %v496 = vunpack.c.l.b16 %v121
  %v497 = vunpack.c.l.b16 %v122
  %v498 = vunpack.c.l.b16 %v123
  %v499 = vunpack.c.l.b16 %v124
  %v500 = vunpack.c.l.b16 %v125
  %v501 = vunpack.c.l.b16 %v126
  %v502 = vunpack.c.l.b16 %v127
  %v503 = vunpack.c.l.b16 %v128
  %v504 = vunpack.c.l.b16 %v129
  %v505 = vunpack.c.l.b16 %v130
  %v506 = vunpack.c.l.b16 %v131
  %v507 = vunpack.c.l.b16 %v132
  %v508 = vunpack.c.l.b16 %v133
  %v509 = vunpack.c.l.b16 %v134
  %v510 = vunpack.c.l.b16 %v135
  %v511 = vunpack.c.l.b16 %v136
  %v512 = vunpack.c.l.b16 %v137
  %v513 = vunpack.c.l.b16 %v138
  %v514 = vunpack.c.l.b16 %v139
  %v515 = vunpack.c.l.b16 %v140
  %v516 = vunpack.c.l.b16 %v141
  %v517 = vunpack.c.l.b16 %v142
  %v518 = vpack.c.b16 %v439, %v438
  %v519 = vpack.c.b16 %v441, %v440
  %v520 = vpack.c.b16 %v443, %v442
  %v521 = vpack.c.b16 %v445, %v444
  %v522 = vpack.c.b16 %v447, %v446
  %v523 = vpack.c.b16 %v449, %v448
  %v524 = vpack.c.b16 %v451, %v450
  %v525 = vpack.c.b16 %v453, %v452
  %v526 = vpack.c.b16 %v455, %v454
  %v527 = vpack.c.b16 %v457, %v456
  %v528 = vpack.c.b16 %v459, %v458
  %v529 = vpack.c.b16 %v461, %v460
  %v530 = vpack.c.b16 %v463, %v462
  %v531 = vpack.c.b16 %v465, %v464
  %v532 = vpack.c.b16 %v467, %v466
  %v533 = vpack.c.b16 %v469, %v468
  %v534 = vpack.c.b16 %v471, %v470
  %v535 = vpack.c.b16 %v473, %v472
  %v536 = vpack.c.b16 %v475, %v474
  %v537 = vpack.c.b16 %v477, %v476
  %v538 = vpack.c.b16 %v479, %v478
  %v539 = vpack.c.b16 %v481, %v480
  %v540 = vpack.c.b16 %v483, %v482
  %v541 = vpack.c.b16 %v485, %v484
  %v542 = vpack.c.b16 %v487, %v486
  %v543 = vpack.c.b16 %v489, %v488
  %v544 = vpack.c.b16 %v491, %v490
  %v545 = vpack.c.b16 %v493, %v492
  %v546 = vpack.c.b16 %v495, %v494
  %v547 = vpack.c.b16 %v497, %v496
  %v548 = vpack.c.b16 %v499, %v498
  %v549 = vpack.c.b16 %v501, %v500
  %v550 = vpack.c.b16 %v503, %v502
  %v551 = vpack.c.b16 %v505, %v504
  %v552 = vpack.c.b16 %v507, %v506
  %v553 = vpack.c.b16 %v509, %v508
  %v554 = vpack.c.b16 %v511, %v510
  %v555 = vpack.c.b16 %v513, %v512
  %v556 = vpack.c.b16 %v515, %v514
  %v557 = vpack.c.b16 %v517, %v516
  %598 = vmatprep.subr.bf16.mxu0 0
  %599 = vmatpush1.bf16.msra.mxu0 %v518
  %600 = vmatprep.subr.bf16.mxu0 0
  %601 = vmatpush1.bf16.msra.mxu0 %v519
  %602 = vmatprep.subr.bf16.mxu0 0
  %603 = vmatpush1.bf16.msra.mxu0 %v520
  %604 = vmatprep.subr.bf16.mxu0 0
  %605 = vmatpush1.bf16.msra.mxu0 %v521
  %606 = vmatprep.subr.bf16.mxu0 0
  %607 = vmatpush1.bf16.msra.mxu0 %v522
  %608 = vmatprep.subr.bf16.mxu0 0
  %609 = vmatpush1.bf16.msra.mxu0 %v523
  %610 = vmatprep.subr.bf16.mxu0 0
  %611 = vmatpush1.bf16.msra.mxu0 %v524
  %612 = vmatprep.subr.bf16.mxu0 0
  %613 = vmatpush1.bf16.msra.mxu0 %v525
  %614 = vmatprep.subr.bf16.mxu0 0
  %615 = vmatpush1.bf16.msra.mxu0 %v526
  %616 = vmatprep.subr.bf16.mxu0 0
  %617 = vmatpush1.bf16.msra.mxu0 %v527
  %618 = vmatprep.subr.bf16.mxu0 0
  %619 = vmatpush1.bf16.msra.mxu0 %v528
  %620 = vmatprep.subr.bf16.mxu0 0
  %621 = vmatpush1.bf16.msra.mxu0 %v529
  %622 = vmatprep.subr.bf16.mxu0 0
  %623 = vmatpush1.bf16.msra.mxu0 %v530
  %624 = vmatprep.subr.bf16.mxu0 0
  %625 = vmatpush1.bf16.msra.mxu0 %v531
  %626 = vmatprep.subr.bf16.mxu0 0
  %627 = vmatpush1.bf16.msra.mxu0 %v532
  %628 = vmatprep.subr.bf16.mxu0 0
  %629 = vmatpush1.bf16.msra.mxu0 %v533
  %630 = vmatprep.mubr.bf16.mxu0 %v279
  %631 = vmatmul.mubr.bf16.gmra.mrb[0].mxu0 %v278
  %v632 = vpop.f32.mrb[0].mxu0
  %v633 = vadd.f32 %v148, %v632
  %v634 = vpop.f32.mrb[0].mxu0
  %v635 = vpop.f32.mrb[0].mxu0
  %v636 = vadd.f32 %v148, %v635
  %v637 = vpop.f32.mrb[0].mxu0
  %638 = vmatprep.mubr.bf16.mxu0 %v284
  %639 = vmatmul.mubr.bf16.gmra.mrb[0].mxu0 %v283
  %v640 = vpop.f32.mrb[0].mxu0
  %v641 = vadd.f32 %v148, %v640
  %v642 = vpop.f32.mrb[0].mxu0
  %v643 = vpop.f32.mrb[0].mxu0
  %v644 = vadd.f32 %v148, %v643
  %v645 = vpop.f32.mrb[0].mxu0
  %646 = vmatprep.mubr.bf16.mxu0 %v289
  %647 = vmatmul.mubr.bf16.gmra.mrb[0].mxu0 %v288
  %v648 = vpop.f32.mrb[0].mxu0
  %v649 = vadd.f32 %v148, %v648
  %v650 = vpop.f32.mrb[0].mxu0
  %v651 = vpop.f32.mrb[0].mxu0
  %v652 = vadd.f32 %v148, %v651
  %v653 = vpop.f32.mrb[0].mxu0
  %654 = vmatprep.mubr.bf16.mxu0 %v294
  %655 = vmatmul.mubr.bf16.gmra.mrb[0].mxu0 %v293
  %v656 = vpop.f32.mrb[0].mxu0
  %v657 = vadd.f32 %v148, %v656
  %v658 = vpop.f32.mrb[0].mxu0
  %v659 = vpop.f32.mrb[0].mxu0
  %v660 = vadd.f32 %v148, %v659
  %v661 = vpop.f32.mrb[0].mxu0
  %662 = vmatprep.mubr.bf16.mxu0 %v299
  %663 = vmatmul.mubr.bf16.gmra.mrb[0].mxu0 %v298
  %v664 = vpop.f32.mrb[0].mxu0
  %v665 = vadd.f32 %v148, %v664
  %v666 = vpop.f32.mrb[0].mxu0
  %v667 = vpop.f32.mrb[0].mxu0
  %v668 = vadd.f32 %v148, %v667
  %v669 = vpop.f32.mrb[0].mxu0
  %670 = vmatprep.mubr.bf16.mxu0 %v304
  %671 = vmatmul.mubr.bf16.gmra.mrb[0].mxu0 %v303
  %v672 = vpop.f32.mrb[0].mxu0
  %v673 = vadd.f32 %v148, %v672
  %v674 = vpop.f32.mrb[0].mxu0
  %v675 = vpop.f32.mrb[0].mxu0
  %v676 = vadd.f32 %v148, %v675
  %v677 = vpop.f32.mrb[0].mxu0
  %678 = vmatprep.mubr.bf16.mxu0 %v309
  %679 = vmatmul.mubr.bf16.gmra.mrb[0].mxu0 %v308
  %v680 = vpop.f32.mrb[0].mxu0
  %v681 = vadd.f32 %v148, %v680
  %v682 = vpop.f32.mrb[0].mxu0
  %v683 = vpop.f32.mrb[0].mxu0
  %v684 = vadd.f32 %v148, %v683
  %v685 = vpop.f32.mrb[0].mxu0
  %686 = vmatprep.mubr.bf16.mxu0 %v314
  %687 = vmatmul.mubr.bf16.gmra.mrb[0].mxu0 %v313
  %v688 = vpop.f32.mrb[0].mxu0
  %v689 = vadd.f32 %v148, %v688
  %v690 = vpop.f32.mrb[0].mxu0
  %v691 = vpop.f32.mrb[0].mxu0
  %v692 = vadd.f32 %v148, %v691
  %v693 = vpop.f32.mrb[0].mxu0
  %694 = vdwg.mxu0
  %695 = vmatprep.subr.bf16.mxu0 0
  %696 = vmatpush1.bf16.msra.mxu0 %v534
  %697 = vmatprep.subr.bf16.mxu0 0
  %698 = vmatpush1.bf16.msra.mxu0 %v535
  %699 = vmatprep.subr.bf16.mxu0 0
  %700 = vmatpush1.bf16.msra.mxu0 %v536
  %701 = vmatprep.subr.bf16.mxu0 0
  %702 = vmatpush1.bf16.msra.mxu0 %v537
  %703 = vmatprep.subr.bf16.mxu0 0
  %704 = vmatpush1.bf16.msra.mxu0 %v538
  %705 = vmatprep.subr.bf16.mxu0 0
  %706 = vmatpush1.bf16.msra.mxu0 %v539
  %707 = vmatprep.subr.bf16.mxu0 0
  %708 = vmatpush1.bf16.msra.mxu0 %v540
  %709 = vmatprep.subr.bf16.mxu0 0
  %710 = vmatpush1.bf16.msra.mxu0 %v541
  %711 = vmatprep.subr.bf16.mxu0 0
  %712 = vmatpush1.bf16.msra.mxu0 %v542
  %713 = vmatprep.subr.bf16.mxu0 0
  %714 = vmatpush1.bf16.msra.mxu0 %v543
  %715 = vmatprep.subr.bf16.mxu0 0
  %716 = vmatpush1.bf16.msra.mxu0 %v544
  %717 = vmatprep.subr.bf16.mxu0 0
  %718 = vmatpush1.bf16.msra.mxu0 %v545
  %719 = vmatprep.subr.bf16.mxu0 0
  %720 = vmatpush1.bf16.msra.mxu0 %v546
  %721 = vmatprep.subr.bf16.mxu0 0
  %722 = vmatpush1.bf16.msra.mxu0 %v547
  %723 = vmatprep.subr.bf16.mxu0 0
  %724 = vmatpush1.bf16.msra.mxu0 %v548
  %725 = vmatprep.subr.bf16.mxu0 0
  %726 = vmatpush1.bf16.msra.mxu0 %v549
  %727 = vmatprep.mubr.bf16.mxu0 %v281
  %728 = vmatmul.mubr.bf16.gmra.mrb[0].mxu0 %v280
  %v729 = vpop.f32.mrb[0].mxu0
  %v730 = vadd.f32 %v633, %v729
  %v731 = vpop.f32.mrb[0].mxu0
  %v732 = vpop.f32.mrb[0].mxu0
  %v733 = vadd.f32 %v636, %v732
  %v734 = vpop.f32.mrb[0].mxu0
  %735 = vmatprep.mubr.bf16.mxu0 %v286
  %736 = vmatmul.mubr.bf16.gmra.mrb[0].mxu0 %v285
  %v737 = vpop.f32.mrb[0].mxu0
  %v738 = vadd.f32 %v641, %v737
  %v739 = vpop.f32.mrb[0].mxu0
  %v740 = vpop.f32.mrb[0].mxu0
  %v741 = vadd.f32 %v644, %v740
  %v742 = vpop.f32.mrb[0].mxu0
  %743 = vmatprep.mubr.bf16.mxu0 %v291
  %744 = vmatmul.mubr.bf16.gmra.mrb[0].mxu0 %v290
  %v745 = vpop.f32.mrb[0].mxu0
  %v746 = vadd.f32 %v649, %v745
  %v747 = vpop.f32.mrb[0].mxu0
  %v748 = vpop.f32.mrb[0].mxu0
  %v749 = vadd.f32 %v652, %v748
  %v750 = vpop.f32.mrb[0].mxu0
  %751 = vmatprep.mubr.bf16.mxu0 %v296
  %752 = vmatmul.mubr.bf16.gmra.mrb[0].mxu0 %v295
  %v753 = vpop.f32.mrb[0].mxu0
  %v754 = vadd.f32 %v657, %v753
  %v755 = vpop.f32.mrb[0].mxu0
  %v756 = vpop.f32.mrb[0].mxu0
  %v757 = vadd.f32 %v660, %v756
  %v758 = vpop.f32.mrb[0].mxu0
  %759 = vmatprep.mubr.bf16.mxu0 %v301
  %760 = vmatmul.mubr.bf16.gmra.mrb[0].mxu0 %v300
  %v761 = vpop.f32.mrb[0].mxu0
  %v762 = vadd.f32 %v665, %v761
  %v763 = vpop.f32.mrb[0].mxu0
  %v764 = vpop.f32.mrb[0].mxu0
  %v765 = vadd.f32 %v668, %v764
  %v766 = vpop.f32.mrb[0].mxu0
  %767 = vmatprep.mubr.bf16.mxu0 %v306
  %768 = vmatmul.mubr.bf16.gmra.mrb[0].mxu0 %v305
  %v769 = vpop.f32.mrb[0].mxu0
  %v770 = vadd.f32 %v673, %v769
  %v771 = vpop.f32.mrb[0].mxu0
  %v772 = vpop.f32.mrb[0].mxu0
  %v773 = vadd.f32 %v676, %v772
  %v774 = vpop.f32.mrb[0].mxu0
  %775 = vmatprep.mubr.bf16.mxu0 %v311
  %776 = vmatmul.mubr.bf16.gmra.mrb[0].mxu0 %v310
  %v777 = vpop.f32.mrb[0].mxu0
  %v778 = vadd.f32 %v681, %v777
  %v779 = vpop.f32.mrb[0].mxu0
  %v780 = vpop.f32.mrb[0].mxu0
  %v781 = vadd.f32 %v684, %v780
  %v782 = vpop.f32.mrb[0].mxu0
  %783 = vmatprep.mubr.bf16.mxu0 %v316
  %784 = vmatmul.mubr.bf16.gmra.mrb[0].mxu0 %v315
  %v785 = vpop.f32.mrb[0].mxu0
  %v786 = vadd.f32 %v689, %v785
  %v787 = vpop.f32.mrb[0].mxu0
  %v788 = vpop.f32.mrb[0].mxu0
  %v789 = vadd.f32 %v692, %v788
  %v790 = vpop.f32.mrb[0].mxu0
  %791 = vdwg.mxu0
  %792 = vmatprep.subr.bf16.mxu0 0
  %793 = vmatpush1.bf16.msra.mxu0 %v550
  %794 = vmatprep.subr.bf16.mxu0 0
  %795 = vmatpush1.bf16.msra.mxu0 %v551
  %796 = vmatprep.subr.bf16.mxu0 0
  %797 = vmatpush1.bf16.msra.mxu0 %v552
  %798 = vmatprep.subr.bf16.mxu0 0
  %799 = vmatpush1.bf16.msra.mxu0 %v553
  %800 = vmatprep.subr.bf16.mxu0 0
  %801 = vmatpush1.bf16.msra.mxu0 %v554
  %802 = vmatprep.subr.bf16.mxu0 0
  %803 = vmatpush1.bf16.msra.mxu0 %v555
  %804 = vmatprep.subr.bf16.mxu0 0
  %805 = vmatpush1.bf16.msra.mxu0 %v556
  %806 = vmatprep.subr.bf16.mxu0 0
  %807 = vmatpush1.bf16.msra.mxu0 %v557
  %808 = vmatprep.subr.bf16.mxu0 0
  %809 = vmatpush1.bf16.msra.mxu0 0
  %810 = vmatprep.subr.bf16.mxu0 0
  %811 = vmatpush1.bf16.msra.mxu0 0
  %812 = vmatprep.subr.bf16.mxu0 0
  %813 = vmatpush1.bf16.msra.mxu0 0
  %814 = vmatprep.subr.bf16.mxu0 0
  %815 = vmatpush1.bf16.msra.mxu0 0
  %816 = vmatprep.subr.bf16.mxu0 0
  %817 = vmatpush1.bf16.msra.mxu0 0
  %818 = vmatprep.subr.bf16.mxu0 0
  %819 = vmatpush1.bf16.msra.mxu0 0
  %820 = vmatprep.subr.bf16.mxu0 0
  %821 = vmatpush1.bf16.msra.mxu0 0
  %822 = vmatprep.subr.bf16.mxu0 0
  %823 = vmatpush1.bf16.msra.mxu0 0
  %824 = vmatprep.mubr.bf16.mxu0 0
  %825 = vmatmul.mubr.bf16.gmra.mrb[0].mxu0 %v282
  %v826 = vpop.f32.mrb[0].mxu0
  %v827 = vadd.f32 %v730, %v826
  %v828 = vpop.f32.mrb[0].mxu0
  %v829 = vpop.f32.mrb[0].mxu0
  %v830 = vadd.f32 %v733, %v829
  %v831 = vpop.f32.mrb[0].mxu0
  %832 = vmatprep.mubr.bf16.mxu0 0
  %833 = vmatmul.mubr.bf16.gmra.mrb[0].mxu0 %v287
  %v834 = vpop.f32.mrb[0].mxu0
  %v835 = vadd.f32 %v738, %v834
  %v836 = vpop.f32.mrb[0].mxu0
  %v837 = vpop.f32.mrb[0].mxu0
  %v838 = vadd.f32 %v741, %v837
  %v839 = vpop.f32.mrb[0].mxu0
  %840 = vmatprep.mubr.bf16.mxu0 0
  %841 = vmatmul.mubr.bf16.gmra.mrb[0].mxu0 %v292
  %v842 = vpop.f32.mrb[0].mxu0
  %v843 = vadd.f32 %v746, %v842
  %v844 = vpop.f32.mrb[0].mxu0
  %v845 = vpop.f32.mrb[0].mxu0
  %v846 = vadd.f32 %v749, %v845
  %v847 = vpop.f32.mrb[0].mxu0
  %848 = vmatprep.mubr.bf16.mxu0 0
  %849 = vmatmul.mubr.bf16.gmra.mrb[0].mxu0 %v297
  %v850 = vpop.f32.mrb[0].mxu0
  %v851 = vadd.f32 %v754, %v850
  %v852 = vpop.f32.mrb[0].mxu0
  %v853 = vpop.f32.mrb[0].mxu0
  %v854 = vadd.f32 %v757, %v853
  %v855 = vpop.f32.mrb[0].mxu0
  %856 = vmatprep.mubr.bf16.mxu0 0
  %857 = vmatmul.mubr.bf16.gmra.mrb[0].mxu0 %v302
  %v858 = vpop.f32.mrb[0].mxu0
  %v859 = vadd.f32 %v762, %v858
  %v860 = vpop.f32.mrb[0].mxu0
  %v861 = vpop.f32.mrb[0].mxu0
  %v862 = vadd.f32 %v765, %v861
  %v863 = vpop.f32.mrb[0].mxu0
  %864 = vmatprep.mubr.bf16.mxu0 0
  %865 = vmatmul.mubr.bf16.gmra.mrb[0].mxu0 %v307
  %v866 = vpop.f32.mrb[0].mxu0
  %v867 = vadd.f32 %v770, %v866
  %v868 = vpop.f32.mrb[0].mxu0
  %v869 = vpop.f32.mrb[0].mxu0
  %v870 = vadd.f32 %v773, %v869
  %v871 = vpop.f32.mrb[0].mxu0
  %872 = vmatprep.mubr.bf16.mxu0 0
  %873 = vmatmul.mubr.bf16.gmra.mrb[0].mxu0 %v312
  %v874 = vpop.f32.mrb[0].mxu0
  %v875 = vadd.f32 %v778, %v874
  %v876 = vpop.f32.mrb[0].mxu0
  %v877 = vpop.f32.mrb[0].mxu0
  %v878 = vadd.f32 %v781, %v877
  %v879 = vpop.f32.mrb[0].mxu0
  %880 = vmatprep.mubr.bf16.mxu0 0
  %881 = vmatmul.mubr.bf16.gmra.mrb[0].mxu0 %v317
  %v882 = vpop.f32.mrb[0].mxu0
  %v883 = vadd.f32 %v786, %v882
  %v884 = vpop.f32.mrb[0].mxu0
  %v885 = vpop.f32.mrb[0].mxu0
  %v886 = vadd.f32 %v789, %v885
  %v887 = vpop.f32.mrb[0].mxu0
  %888 = vdwg.mxu0
  %v889 = vmax.f32 %v827, 0.0
  %v890 = vmax.f32 %v830, 0.0
  %v891 = vmax.f32 %v835, 0.0
  %v892 = vmax.f32 %v838, 0.0
  %v893 = vmax.f32 %v843, 0.0
  %v894 = vmax.f32 %v846, 0.0
  %v895 = vmax.f32 %v851, 0.0
  %v896 = vmax.f32 %v854, 0.0
  %v897 = vmax.f32 %v859, 0.0
  %v898 = vmax.f32 %v862, 0.0
  %v899 = vmax.f32 %v867, 0.0
  %v900 = vmax.f32 %v870, 0.0
  %v901 = vmax.f32 %v875, 0.0
  %v902 = vmax.f32 %v878, 0.0
  %v903 = vmax.f32 %v883, 0.0
  %v904 = vmax.f32 %v886, 0.0
  %v905 = vpack.c.bf16 %v890, %v889
  %v906 = vpack.c.bf16 %v892, %v891
  %v907 = vpack.c.bf16 %v894, %v893
  %v908 = vpack.c.bf16 %v896, %v895
  %v909 = vpack.c.bf16 %v898, %v897
  %v910 = vpack.c.bf16 %v900, %v899
  %v911 = vpack.c.bf16 %v902, %v901
  %v912 = vpack.c.bf16 %v904, %v903
  %v921 = vunpack.c.l.b16 %v905
  %v922 = vunpack.c.h.b16 %v905
  %v923 = vunpack.c.l.b16 %v906
  %v924 = vunpack.c.h.b16 %v906
  %v925 = vunpack.c.l.b16 %v907
  %v926 = vunpack.c.h.b16 %v907
  %v927 = vunpack.c.l.b16 %v908
  %v928 = vunpack.c.h.b16 %v908
  %v929 = vunpack.c.l.b16 %v909
  %v930 = vunpack.c.h.b16 %v909
  %v931 = vunpack.c.l.b16 %v910
  %v932 = vunpack.c.h.b16 %v910
  %v933 = vunpack.c.l.b16 %v911
  %v934 = vunpack.c.h.b16 %v911
  %v935 = vunpack.c.l.b16 %v912
  %v936 = vunpack.c.h.b16 %v912
  %v937 = vpack.c.b16 %v921, %v921
  %v938 = vpack.c.b16 %v922, %v922
  %v939 = vpack.c.b16 %v923, %v923
  %v940 = vpack.c.b16 %v924, %v924
  %v941 = vpack.c.b16 %v925, %v925
  %v942 = vpack.c.b16 %v926, %v926
  %v943 = vpack.c.b16 %v927, %v927
  %v944 = vpack.c.b16 %v928, %v928
  %v945 = vpack.c.b16 %v929, %v929
  %v946 = vpack.c.b16 %v930, %v930
  %v947 = vpack.c.b16 %v931, %v931
  %v948 = vpack.c.b16 %v932, %v932
  %v949 = vpack.c.b16 %v933, %v933
  %v950 = vpack.c.b16 %v934, %v934
  %v951 = vpack.c.b16 %v935, %v935
  %v952 = vpack.c.b16 %v936, %v936
  %969 = vst [vmem:[%s3] sm:$0xf] %v937
  %970 = vst [vmem:[%s3 + $0x4] sm:$0xf] %v938
  %971 = vst [vmem:[%s3 + $0x8] sm:$0xf] %v939
  %972 = vst [vmem:[%s3 + $0xc] sm:$0xf] %v940
  %973 = vst [vmem:[%s3 + $0x10] sm:$0xf] %v941
  %974 = vst [vmem:[%s3 + $0x14] sm:$0xf] %v942
  %975 = vst [vmem:[%s3 + $0x18] sm:$0xf] %v943
  %976 = vst [vmem:[%s3 + $0x1c] sm:$0xf] %v944
  %977 = vst [vmem:[%s3 + $0x20] sm:$0xf] %v945
  %978 = vst [vmem:[%s3 + $0x24] sm:$0xf] %v946
  %979 = vst [vmem:[%s3 + $0x28] sm:$0xf] %v947
  %980 = vst [vmem:[%s3 + $0x2c] sm:$0xf] %v948
  %981 = vst [vmem:[%s3 + $0x30] sm:$0xf] %v949
  %982 = vst [vmem:[%s3 + $0x34] sm:$0xf] %v950
  %983 = vst [vmem:[%s3 + $0x38] sm:$0xf] %v951
  %984 = vst [vmem:[%s3 + $0x3c] sm:$0xf] %v952
  // Predicated region
  $region14: #{vae_forward.12} parent=0 // pred_check
    _
  $region15: #{vae_forward.12} parent=0 // pred_check_branch
    %986 = sbr.rel (0) target = $region17
  $region16: #{vae_forward.12} parent=0 // pred_region
    _
  $region17: #{vae_forward.12} parent=0 // pred_fallthru
    _
  // Predicated region
  $region18: #{vae_forward.12} parent=0 // pred_check
    _
  $region19: #{vae_forward.12} parent=0 // pred_check_branch
    %988 = sbr.rel (0) target = $region21
  $region20: #{vae_forward.12} parent=0 // pred_region
    _
  $region21: #{vae_forward.12} parent=0 // pred_fallthru
    _

// kernel: vae_forward.13
$region0: #{vae_forward.13}
  #allocation0 [shape = 'u32[]', space=smem, size = 0x4, offset = 0x4, fixed_abs, tag = 'smem constant byte address 0x4 - core index']
  #allocation1 [shape = 'u32[144,128]{1,0:T(1,128)}', space=vmem, size = 0x12000, scoped, tag = 'internal scratch']
  %s0 = inlined_call_operand.vmem [shape: bf16[512,384], index: 0, kind: input, shape index: {}]
  %s1 = inlined_call_operand.vmem [shape: bf16[384,128], index: 1, kind: input, shape index: {}]
  %s2 = inlined_call_operand.vmem [shape: f32[1,128], index: 2, kind: input, shape index: {}]
  %s3 = inlined_call_operand.vmem [shape: f32[512,128], index: 3, kind: output, shape index: {}]
  %s4 = sld [smem:[#allocation0]]
  $region22: #{vae_forward.13} parent=0
    _
  %s6 = ssub.s32 1, %s4
  %s7 = scalar_select 0, %s6, %s4
  // Predicated region
  $region2: #{vae_forward.13} parent=0 // pred_check
    _
  $region3: #{vae_forward.13} parent=0 // pred_check_branch
    %9 = sbr.rel (0) target = $region5
  $region4: #{vae_forward.13} parent=0 // pred_region
    _
  $region5: #{vae_forward.13} parent=0 // pred_fallthru
    _
  // Predicated region
  $region6: #{vae_forward.13} parent=0 // pred_check
    _
  $region7: #{vae_forward.13} parent=0 // pred_check_branch
    %11 = sbr.rel (0) target = $region9
  $region8: #{vae_forward.13} parent=0 // pred_region
    _
  $region9: #{vae_forward.13} parent=0 // pred_fallthru
    _
  // Predicated region
  $region10: #{vae_forward.13} parent=0 // pred_check
    _
  $region11: #{vae_forward.13} parent=0 // pred_check_branch
    %13 = sbr.rel (0) target = $region13
  $region12: #{vae_forward.13} parent=0 // pred_region
    _
  $region13: #{vae_forward.13} parent=0 // pred_fallthru
    _
  %v15 = vld [vmem:[%s0] sm:$0xff]
  %v16 = vld [vmem:[%s0 + $0x8] sm:$0xf]
  %v17 = vld [vmem:[%s0 + $0xc] sm:$0xff]
  %v18 = vld [vmem:[%s0 + $0x14] sm:$0xf]
  %v19 = vld [vmem:[%s0 + $0x18] sm:$0xff]
  %v20 = vld [vmem:[%s0 + $0x20] sm:$0xf]
  %v21 = vld [vmem:[%s0 + $0x24] sm:$0xff]
  %v22 = vld [vmem:[%s0 + $0x2c] sm:$0xf]
  %v23 = vld [vmem:[%s0 + $0x30] sm:$0xff]
  %v24 = vld [vmem:[%s0 + $0x38] sm:$0xf]
  %v25 = vld [vmem:[%s0 + $0x3c] sm:$0xff]
  %v26 = vld [vmem:[%s0 + $0x44] sm:$0xf]
  %v27 = vld [vmem:[%s0 + $0x48] sm:$0xff]
  %v28 = vld [vmem:[%s0 + $0x50] sm:$0xf]
  %v29 = vld [vmem:[%s0 + $0x54] sm:$0xff]
  %v30 = vld [vmem:[%s0 + $0x5c] sm:$0xf]
  %v31 = vld [vmem:[%s0 + $0x60] sm:$0xff]
  %v32 = vld [vmem:[%s0 + $0x68] sm:$0xf]
  %v33 = vld [vmem:[%s0 + $0x6c] sm:$0xff]
  %v34 = vld [vmem:[%s0 + $0x74] sm:$0xf]
  %v35 = vld [vmem:[%s0 + $0x78] sm:$0xff]
  %v36 = vld [vmem:[%s0 + $0x80] sm:$0xf]
  %v37 = vld [vmem:[%s0 + $0x84] sm:$0xff]
  %v38 = vld [vmem:[%s0 + $0x8c] sm:$0xf]
  %v39 = vld [vmem:[%s0 + $0x90] sm:$0xff]
  %v40 = vld [vmem:[%s0 + $0x98] sm:$0xf]
  %v41 = vld [vmem:[%s0 + $0x9c] sm:$0xff]
  %v42 = vld [vmem:[%s0 + $0xa4] sm:$0xf]
  %v43 = vld [vmem:[%s0 + $0xa8] sm:$0xff]
  %v44 = vld [vmem:[%s0 + $0xb0] sm:$0xf]
  %v45 = vld [vmem:[%s0 + $0xb4] sm:$0xff]
  %v46 = vld [vmem:[%s0 + $0xbc] sm:$0xf]
  %v47 = vld [vmem:[%s0 + $0xc0] sm:$0xff]
  %v48 = vld [vmem:[%s0 + $0xc8] sm:$0xf]
  %v49 = vld [vmem:[%s0 + $0xcc] sm:$0xff]
  %v50 = vld [vmem:[%s0 + $0xd4] sm:$0xf]
  %v51 = vld [vmem:[%s0 + $0xd8] sm:$0xff]
  %v52 = vld [vmem:[%s0 + $0xe0] sm:$0xf]
  %v53 = vld [vmem:[%s0 + $0xe4] sm:$0xff]
  %v54 = vld [vmem:[%s0 + $0xec] sm:$0xf]
  %v55 = vld [vmem:[%s0 + $0xf0] sm:$0xff]
  %v56 = vld [vmem:[%s0 + $0xf8] sm:$0xf]
  %v57 = vld [vmem:[%s0 + $0xfc] sm:$0xff]
  %v58 = vld [vmem:[%s0 + $0x104] sm:$0xf]
  %v59 = vld [vmem:[%s0 + $0x108] sm:$0xff]
  %v60 = vld [vmem:[%s0 + $0x110] sm:$0xf]
  %v61 = vld [vmem:[%s0 + $0x114] sm:$0xff]
  %v62 = vld [vmem:[%s0 + $0x11c] sm:$0xf]
  %v63 = vld [vmem:[%s0 + $0x120] sm:$0xff]
  %v64 = vld [vmem:[%s0 + $0x128] sm:$0xf]
  %v65 = vld [vmem:[%s0 + $0x12c] sm:$0xff]
  %v66 = vld [vmem:[%s0 + $0x134] sm:$0xf]
  %v67 = vld [vmem:[%s0 + $0x138] sm:$0xff]
  %v68 = vld [vmem:[%s0 + $0x140] sm:$0xf]
  %v69 = vld [vmem:[%s0 + $0x144] sm:$0xff]
  %v70 = vld [vmem:[%s0 + $0x14c] sm:$0xf]
  %v71 = vld [vmem:[%s0 + $0x150] sm:$0xff]
  %v72 = vld [vmem:[%s0 + $0x158] sm:$0xf]
  %v73 = vld [vmem:[%s0 + $0x15c] sm:$0xff]
  %v74 = vld [vmem:[%s0 + $0x164] sm:$0xf]
  %v75 = vld [vmem:[%s0 + $0x168] sm:$0xff]
  %v76 = vld [vmem:[%s0 + $0x170] sm:$0xf]
  %v77 = vld [vmem:[%s0 + $0x174] sm:$0xff]
  %v78 = vld [vmem:[%s0 + $0x17c] sm:$0xf]
  %v79 = vld [vmem:[%s0 + $0x180] sm:$0xff]
  %v80 = vld [vmem:[%s0 + $0x188] sm:$0xf]
  %v81 = vld [vmem:[%s0 + $0x18c] sm:$0xff]
  %v82 = vld [vmem:[%s0 + $0x194] sm:$0xf]
  %v83 = vld [vmem:[%s0 + $0x198] sm:$0xff]
  %v84 = vld [vmem:[%s0 + $0x1a0] sm:$0xf]
  %v85 = vld [vmem:[%s0 + $0x1a4] sm:$0xff]
  %v86 = vld [vmem:[%s0 + $0x1ac] sm:$0xf]
  %v87 = vld [vmem:[%s0 + $0x1b0] sm:$0xff]
  %v88 = vld [vmem:[%s0 + $0x1b8] sm:$0xf]
  %v89 = vld [vmem:[%s0 + $0x1bc] sm:$0xff]
  %v90 = vld [vmem:[%s0 + $0x1c4] sm:$0xf]
  %v91 = vld [vmem:[%s0 + $0x1c8] sm:$0xff]
  %v92 = vld [vmem:[%s0 + $0x1d0] sm:$0xf]
  %v93 = vld [vmem:[%s0 + $0x1d4] sm:$0xff]
  %v94 = vld [vmem:[%s0 + $0x1dc] sm:$0xf]
  %v95 = vld [vmem:[%s0 + $0x1e0] sm:$0xff]
  %v96 = vld [vmem:[%s0 + $0x1e8] sm:$0xf]
  %v97 = vld [vmem:[%s0 + $0x1ec] sm:$0xff]
  %v98 = vld [vmem:[%s0 + $0x1f4] sm:$0xf]
  %v99 = vld [vmem:[%s0 + $0x1f8] sm:$0xff]
  %v100 = vld [vmem:[%s0 + $0x200] sm:$0xf]
  %v101 = vld [vmem:[%s0 + $0x204] sm:$0xff]
  %v102 = vld [vmem:[%s0 + $0x20c] sm:$0xf]
  %v103 = vld [vmem:[%s0 + $0x210] sm:$0xff]
  %v104 = vld [vmem:[%s0 + $0x218] sm:$0xf]
  %v105 = vld [vmem:[%s0 + $0x21c] sm:$0xff]
  %v106 = vld [vmem:[%s0 + $0x224] sm:$0xf]
  %v107 = vld [vmem:[%s0 + $0x228] sm:$0xff]
  %v108 = vld [vmem:[%s0 + $0x230] sm:$0xf]
  %v109 = vld [vmem:[%s0 + $0x234] sm:$0xff]
  %v110 = vld [vmem:[%s0 + $0x23c] sm:$0xf]
  %v111 = vld [vmem:[%s0 + $0x240] sm:$0xff]
  %v112 = vld [vmem:[%s0 + $0x248] sm:$0xf]
  %v113 = vld [vmem:[%s0 + $0x24c] sm:$0xff]
  %v114 = vld [vmem:[%s0 + $0x254] sm:$0xf]
  %v115 = vld [vmem:[%s0 + $0x258] sm:$0xff]
  %v116 = vld [vmem:[%s0 + $0x260] sm:$0xf]
  %v117 = vld [vmem:[%s0 + $0x264] sm:$0xff]
  %v118 = vld [vmem:[%s0 + $0x26c] sm:$0xf]
  %v119 = vld [vmem:[%s0 + $0x270] sm:$0xff]
  %v120 = vld [vmem:[%s0 + $0x278] sm:$0xf]
  %v121 = vld [vmem:[%s0 + $0x27c] sm:$0xff]
  %v122 = vld [vmem:[%s0 + $0x284] sm:$0xf]
  %v123 = vld [vmem:[%s0 + $0x288] sm:$0xff]
  %v124 = vld [vmem:[%s0 + $0x290] sm:$0xf]
  %v125 = vld [vmem:[%s0 + $0x294] sm:$0xff]
  %v126 = vld [vmem:[%s0 + $0x29c] sm:$0xf]
  %v127 = vld [vmem:[%s0 + $0x2a0] sm:$0xff]
  %v128 = vld [vmem:[%s0 + $0x2a8] sm:$0xf]
  %v129 = vld [vmem:[%s0 + $0x2ac] sm:$0xff]
  %v130 = vld [vmem:[%s0 + $0x2b4] sm:$0xf]
  %v131 = vld [vmem:[%s0 + $0x2b8] sm:$0xff]
  %v132 = vld [vmem:[%s0 + $0x2c0] sm:$0xf]
  %v133 = vld [vmem:[%s0 + $0x2c4] sm:$0xff]
  %v134 = vld [vmem:[%s0 + $0x2cc] sm:$0xf]
  %v135 = vld [vmem:[%s0 + $0x2d0] sm:$0xff]
  %v136 = vld [vmem:[%s0 + $0x2d8] sm:$0xf]
  %v137 = vld [vmem:[%s0 + $0x2dc] sm:$0xff]
  %v138 = vld [vmem:[%s0 + $0x2e4] sm:$0xf]
  %v139 = vld [vmem:[%s0 + $0x2e8] sm:$0xff]
  %v140 = vld [vmem:[%s0 + $0x2f0] sm:$0xf]
  %v141 = vld [vmem:[%s0 + $0x2f4] sm:$0xff]
  %v142 = vld [vmem:[%s0 + $0x2fc] sm:$0xf]
  %v143 = vld [vmem:[%s1] sm:$0xf]
  %v144 = vld [vmem:[%s1 + $0x4] sm:$0xf]
  %v145 = vld [vmem:[%s1 + $0x8] sm:$0xf]
  %v146 = vld [vmem:[%s1 + $0xc] sm:$0xf]
  %v147 = vld [vmem:[%s1 + $0x10] sm:$0xf]
  %v148 = vld [vmem:[%s1 + $0x14] sm:$0xf]
  %v149 = vld [vmem:[%s1 + $0x18] sm:$0xf]
  %v150 = vld [vmem:[%s1 + $0x1c] sm:$0xf]
  %v151 = vld [vmem:[%s1 + $0x20] sm:$0xf]
  %v152 = vld [vmem:[%s1 + $0x24] sm:$0xf]
  %v153 = vld [vmem:[%s1 + $0x28] sm:$0xf]
  %v154 = vld [vmem:[%s1 + $0x2c] sm:$0xf]
  %v155 = vld [vmem:[%s1 + $0x30] sm:$0xf]
  %v156 = vld [vmem:[%s1 + $0x34] sm:$0xf]
  %v157 = vld [vmem:[%s1 + $0x38] sm:$0xf]
  %v158 = vld [vmem:[%s1 + $0x3c] sm:$0xf]
  %v159 = vld [vmem:[%s1 + $0x40] sm:$0xf]
  %v160 = vld [vmem:[%s1 + $0x44] sm:$0xf]
  %v161 = vld [vmem:[%s1 + $0x48] sm:$0xf]
  %v162 = vld [vmem:[%s1 + $0x4c] sm:$0xf]
  %v163 = vld [vmem:[%s1 + $0x50] sm:$0xf]
  %v164 = vld [vmem:[%s1 + $0x54] sm:$0xf]
  %v165 = vld [vmem:[%s1 + $0x58] sm:$0xf]
  %v166 = vld [vmem:[%s1 + $0x5c] sm:$0xf]
  %v167 = vld [vmem:[%s1 + $0x60] sm:$0xf]
  %v168 = vld [vmem:[%s1 + $0x64] sm:$0xf]
  %v169 = vld [vmem:[%s1 + $0x68] sm:$0xf]
  %v170 = vld [vmem:[%s1 + $0x6c] sm:$0xf]
  %v171 = vld [vmem:[%s1 + $0x70] sm:$0xf]
  %v172 = vld [vmem:[%s1 + $0x74] sm:$0xf]
  %v173 = vld [vmem:[%s1 + $0x78] sm:$0xf]
  %v174 = vld [vmem:[%s1 + $0x7c] sm:$0xf]
  %v175 = vld [vmem:[%s1 + $0x80] sm:$0xf]
  %v176 = vld [vmem:[%s1 + $0x84] sm:$0xf]
  %v177 = vld [vmem:[%s1 + $0x88] sm:$0xf]
  %v178 = vld [vmem:[%s1 + $0x8c] sm:$0xf]
  %v179 = vld [vmem:[%s1 + $0x90] sm:$0xf]
  %v180 = vld [vmem:[%s1 + $0x94] sm:$0xf]
  %v181 = vld [vmem:[%s1 + $0x98] sm:$0xf]
  %v182 = vld [vmem:[%s1 + $0x9c] sm:$0xf]
  %v183 = vld [vmem:[%s1 + $0xa0] sm:$0xf]
  %v184 = vld [vmem:[%s1 + $0xa4] sm:$0xf]
  %v185 = vld [vmem:[%s1 + $0xa8] sm:$0xf]
  %v186 = vld [vmem:[%s1 + $0xac] sm:$0xf]
  %v187 = vld [vmem:[%s1 + $0xb0] sm:$0xf]
  %v188 = vld [vmem:[%s1 + $0xb4] sm:$0xf]
  %v189 = vld [vmem:[%s1 + $0xb8] sm:$0xf]
  %v190 = vld [vmem:[%s1 + $0xbc] sm:$0xf]
  %v191 = vld [vmem:[%s2] sm:$0x1]
  %v193 = vlaneseq
  %v194 = vshrl.u32 %v193, 7
  %v195 = vsub.s32 0, %v194
  %v196 = vrot.slane %v191, %v195
  %v326 = vunpack.c.l.b16 %v15
  %v327 = vunpack.c.h.b16 %v15
  %v328 = vunpack.c.l.b16 %v16
  %v329 = vunpack.c.l.b16 %v17
  %v330 = vunpack.c.h.b16 %v17
  %v331 = vunpack.c.l.b16 %v18
  %v332 = vunpack.c.l.b16 %v19
  %v333 = vunpack.c.h.b16 %v19
  %v334 = vunpack.c.l.b16 %v20
  %v335 = vunpack.c.l.b16 %v21
  %v336 = vunpack.c.h.b16 %v21
  %v337 = vunpack.c.l.b16 %v22
  %v338 = vunpack.c.l.b16 %v23
  %v339 = vunpack.c.h.b16 %v23
  %v340 = vunpack.c.l.b16 %v24
  %v341 = vunpack.c.l.b16 %v25
  %v342 = vunpack.c.h.b16 %v25
  %v343 = vunpack.c.l.b16 %v26
  %v344 = vunpack.c.l.b16 %v27
  %v345 = vunpack.c.h.b16 %v27
  %v346 = vunpack.c.l.b16 %v28
  %v347 = vunpack.c.l.b16 %v29
  %v348 = vunpack.c.h.b16 %v29
  %v349 = vunpack.c.l.b16 %v30
  %v350 = vunpack.c.l.b16 %v31
  %v351 = vunpack.c.h.b16 %v31
  %v352 = vunpack.c.l.b16 %v32
  %v353 = vunpack.c.l.b16 %v33
  %v354 = vunpack.c.h.b16 %v33
  %v355 = vunpack.c.l.b16 %v34
  %v356 = vunpack.c.l.b16 %v35
  %v357 = vunpack.c.h.b16 %v35
  %v358 = vunpack.c.l.b16 %v36
  %v359 = vunpack.c.l.b16 %v37
  %v360 = vunpack.c.h.b16 %v37
  %v361 = vunpack.c.l.b16 %v38
  %v362 = vunpack.c.l.b16 %v39
  %v363 = vunpack.c.h.b16 %v39
  %v364 = vunpack.c.l.b16 %v40
  %v365 = vunpack.c.l.b16 %v41
  %v366 = vunpack.c.h.b16 %v41
  %v367 = vunpack.c.l.b16 %v42
  %v368 = vunpack.c.l.b16 %v43
  %v369 = vunpack.c.h.b16 %v43
  %v370 = vunpack.c.l.b16 %v44
  %v371 = vunpack.c.l.b16 %v45
  %v372 = vunpack.c.h.b16 %v45
  %v373 = vunpack.c.l.b16 %v46
  %v374 = vunpack.c.l.b16 %v47
  %v375 = vunpack.c.h.b16 %v47
  %v376 = vunpack.c.l.b16 %v48
  %v377 = vunpack.c.l.b16 %v49
  %v378 = vunpack.c.h.b16 %v49
  %v379 = vunpack.c.l.b16 %v50
  %v380 = vunpack.c.l.b16 %v51
  %v381 = vunpack.c.h.b16 %v51
  %v382 = vunpack.c.l.b16 %v52
  %v383 = vunpack.c.l.b16 %v53
  %v384 = vunpack.c.h.b16 %v53
  %v385 = vunpack.c.l.b16 %v54
  %v386 = vunpack.c.l.b16 %v55
  %v387 = vunpack.c.h.b16 %v55
  %v388 = vunpack.c.l.b16 %v56
  %v389 = vunpack.c.l.b16 %v57
  %v390 = vunpack.c.h.b16 %v57
  %v391 = vunpack.c.l.b16 %v58
  %v392 = vunpack.c.l.b16 %v59
  %v393 = vunpack.c.h.b16 %v59
  %v394 = vunpack.c.l.b16 %v60
  %v395 = vunpack.c.l.b16 %v61
  %v396 = vunpack.c.h.b16 %v61
  %v397 = vunpack.c.l.b16 %v62
  %v398 = vunpack.c.l.b16 %v63
  %v399 = vunpack.c.h.b16 %v63
  %v400 = vunpack.c.l.b16 %v64
  %v401 = vunpack.c.l.b16 %v65
  %v402 = vunpack.c.h.b16 %v65
  %v403 = vunpack.c.l.b16 %v66
  %v404 = vunpack.c.l.b16 %v67
  %v405 = vunpack.c.h.b16 %v67
  %v406 = vunpack.c.l.b16 %v68
  %v407 = vunpack.c.l.b16 %v69
  %v408 = vunpack.c.h.b16 %v69
  %v409 = vunpack.c.l.b16 %v70
  %v410 = vunpack.c.l.b16 %v71
  %v411 = vunpack.c.h.b16 %v71
  %v412 = vunpack.c.l.b16 %v72
  %v413 = vunpack.c.l.b16 %v73
  %v414 = vunpack.c.h.b16 %v73
  %v415 = vunpack.c.l.b16 %v74
  %v416 = vunpack.c.l.b16 %v75
  %v417 = vunpack.c.h.b16 %v75
  %v418 = vunpack.c.l.b16 %v76
  %v419 = vunpack.c.l.b16 %v77
  %v420 = vunpack.c.h.b16 %v77
  %v421 = vunpack.c.l.b16 %v78
  %v422 = vunpack.c.l.b16 %v79
  %v423 = vunpack.c.h.b16 %v79
  %v424 = vunpack.c.l.b16 %v80
  %v425 = vunpack.c.l.b16 %v81
  %v426 = vunpack.c.h.b16 %v81
  %v427 = vunpack.c.l.b16 %v82
  %v428 = vunpack.c.l.b16 %v83
  %v429 = vunpack.c.h.b16 %v83
  %v430 = vunpack.c.l.b16 %v84
  %v431 = vunpack.c.l.b16 %v85
  %v432 = vunpack.c.h.b16 %v85
  %v433 = vunpack.c.l.b16 %v86
  %v434 = vunpack.c.l.b16 %v87
  %v435 = vunpack.c.h.b16 %v87
  %v436 = vunpack.c.l.b16 %v88
  %v437 = vunpack.c.l.b16 %v89
  %v438 = vunpack.c.h.b16 %v89
  %v439 = vunpack.c.l.b16 %v90
  %v440 = vunpack.c.l.b16 %v91
  %v441 = vunpack.c.h.b16 %v91
  %v442 = vunpack.c.l.b16 %v92
  %v443 = vunpack.c.l.b16 %v93
  %v444 = vunpack.c.h.b16 %v93
  %v445 = vunpack.c.l.b16 %v94
  %v446 = vunpack.c.l.b16 %v95
  %v447 = vunpack.c.h.b16 %v95
  %v448 = vunpack.c.l.b16 %v96
  %v449 = vunpack.c.l.b16 %v97
  %v450 = vunpack.c.h.b16 %v97
  %v451 = vunpack.c.l.b16 %v98
  %v452 = vunpack.c.l.b16 %v99
  %v453 = vunpack.c.h.b16 %v99
  %v454 = vunpack.c.l.b16 %v100
  %v455 = vunpack.c.l.b16 %v101
  %v456 = vunpack.c.h.b16 %v101
  %v457 = vunpack.c.l.b16 %v102
  %v458 = vunpack.c.l.b16 %v103
  %v459 = vunpack.c.h.b16 %v103
  %v460 = vunpack.c.l.b16 %v104
  %v461 = vunpack.c.l.b16 %v105
  %v462 = vunpack.c.h.b16 %v105
  %v463 = vunpack.c.l.b16 %v106
  %v464 = vunpack.c.l.b16 %v107
  %v465 = vunpack.c.h.b16 %v107
  %v466 = vunpack.c.l.b16 %v108
  %v467 = vunpack.c.l.b16 %v109
  %v468 = vunpack.c.h.b16 %v109
  %v469 = vunpack.c.l.b16 %v110
  %v470 = vunpack.c.l.b16 %v111
  %v471 = vunpack.c.h.b16 %v111
  %v472 = vunpack.c.l.b16 %v112
  %v473 = vunpack.c.l.b16 %v113
  %v474 = vunpack.c.h.b16 %v113
  %v475 = vunpack.c.l.b16 %v114
  %v476 = vunpack.c.l.b16 %v115
  %v477 = vunpack.c.h.b16 %v115
  %v478 = vunpack.c.l.b16 %v116
  %v479 = vunpack.c.l.b16 %v117
  %v480 = vunpack.c.h.b16 %v117
  %v481 = vunpack.c.l.b16 %v118
  %v482 = vunpack.c.l.b16 %v119
  %v483 = vunpack.c.h.b16 %v119
  %v484 = vunpack.c.l.b16 %v120
  %v485 = vunpack.c.l.b16 %v121
  %v486 = vunpack.c.h.b16 %v121
  %v487 = vunpack.c.l.b16 %v122
  %v488 = vunpack.c.l.b16 %v123
  %v489 = vunpack.c.h.b16 %v123
  %v490 = vunpack.c.l.b16 %v124
  %v491 = vunpack.c.l.b16 %v125
  %v492 = vunpack.c.h.b16 %v125
  %v493 = vunpack.c.l.b16 %v126
  %v494 = vunpack.c.l.b16 %v127
  %v495 = vunpack.c.h.b16 %v127
  %v496 = vunpack.c.l.b16 %v128
  %v497 = vunpack.c.l.b16 %v129
  %v498 = vunpack.c.h.b16 %v129
  %v499 = vunpack.c.l.b16 %v130
  %v500 = vunpack.c.l.b16 %v131
  %v501 = vunpack.c.h.b16 %v131
  %v502 = vunpack.c.l.b16 %v132
  %v503 = vunpack.c.l.b16 %v133
  %v504 = vunpack.c.h.b16 %v133
  %v505 = vunpack.c.l.b16 %v134
  %v506 = vunpack.c.l.b16 %v135
  %v507 = vunpack.c.h.b16 %v135
  %v508 = vunpack.c.l.b16 %v136
  %v509 = vunpack.c.l.b16 %v137
  %v510 = vunpack.c.h.b16 %v137
  %v511 = vunpack.c.l.b16 %v138
  %v512 = vunpack.c.l.b16 %v139
  %v513 = vunpack.c.h.b16 %v139
  %v514 = vunpack.c.l.b16 %v140
  %v515 = vunpack.c.l.b16 %v141
  %v516 = vunpack.c.h.b16 %v141
  %v517 = vunpack.c.l.b16 %v142
  %v518 = vpack.c.b16 %v329, %v326
  %v519 = vpack.c.b16 %v330, %v327
  %v520 = vpack.c.b16 %v331, %v328
  %v521 = vpack.c.b16 %v335, %v332
  %v522 = vpack.c.b16 %v336, %v333
  %v523 = vpack.c.b16 %v337, %v334
  %v524 = vpack.c.b16 %v341, %v338
  %v525 = vpack.c.b16 %v342, %v339
  %v526 = vpack.c.b16 %v343, %v340
  %v527 = vpack.c.b16 %v347, %v344
  %v528 = vpack.c.b16 %v348, %v345
  %v529 = vpack.c.b16 %v349, %v346
  %v530 = vpack.c.b16 %v353, %v350
  %v531 = vpack.c.b16 %v354, %v351
  %v532 = vpack.c.b16 %v355, %v352
  %v533 = vpack.c.b16 %v359, %v356
  %v534 = vpack.c.b16 %v360, %v357
  %v535 = vpack.c.b16 %v361, %v358
  %v536 = vpack.c.b16 %v365, %v362
  %v537 = vpack.c.b16 %v366, %v363
  %v538 = vpack.c.b16 %v367, %v364
  %v539 = vpack.c.b16 %v371, %v368
  %v540 = vpack.c.b16 %v372, %v369
  %v541 = vpack.c.b16 %v373, %v370
  %v542 = vpack.c.b16 %v377, %v374
  %v543 = vpack.c.b16 %v378, %v375
  %v544 = vpack.c.b16 %v379, %v376
  %v545 = vpack.c.b16 %v383, %v380
  %v546 = vpack.c.b16 %v384, %v381
  %v547 = vpack.c.b16 %v385, %v382
  %v548 = vpack.c.b16 %v389, %v386
  %v549 = vpack.c.b16 %v390, %v387
  %v550 = vpack.c.b16 %v391, %v388
  %v551 = vpack.c.b16 %v395, %v392
  %v552 = vpack.c.b16 %v396, %v393
  %v553 = vpack.c.b16 %v397, %v394
  %v554 = vpack.c.b16 %v401, %v398
  %v555 = vpack.c.b16 %v402, %v399
  %v556 = vpack.c.b16 %v403, %v400
  %v557 = vpack.c.b16 %v407, %v404
  %v558 = vpack.c.b16 %v408, %v405
  %v559 = vpack.c.b16 %v409, %v406
  %v560 = vpack.c.b16 %v413, %v410
  %v561 = vpack.c.b16 %v414, %v411
  %v562 = vpack.c.b16 %v415, %v412
  %v563 = vpack.c.b16 %v419, %v416
  %v564 = vpack.c.b16 %v420, %v417
  %v565 = vpack.c.b16 %v421, %v418
  %v566 = vpack.c.b16 %v425, %v422
  %v567 = vpack.c.b16 %v426, %v423
  %v568 = vpack.c.b16 %v427, %v424
  %v569 = vpack.c.b16 %v431, %v428
  %v570 = vpack.c.b16 %v432, %v429
  %v571 = vpack.c.b16 %v433, %v430
  %v572 = vpack.c.b16 %v437, %v434
  %v573 = vpack.c.b16 %v438, %v435
  %v574 = vpack.c.b16 %v439, %v436
  %v575 = vpack.c.b16 %v443, %v440
  %v576 = vpack.c.b16 %v444, %v441
  %v577 = vpack.c.b16 %v445, %v442
  %v578 = vpack.c.b16 %v449, %v446
  %v579 = vpack.c.b16 %v450, %v447
  %v580 = vpack.c.b16 %v451, %v448
  %v581 = vpack.c.b16 %v455, %v452
  %v582 = vpack.c.b16 %v456, %v453
  %v583 = vpack.c.b16 %v457, %v454
  %v584 = vpack.c.b16 %v461, %v458
  %v585 = vpack.c.b16 %v462, %v459
  %v586 = vpack.c.b16 %v463, %v460
  %v587 = vpack.c.b16 %v467, %v464
  %v588 = vpack.c.b16 %v468, %v465
  %v589 = vpack.c.b16 %v469, %v466
  %v590 = vpack.c.b16 %v473, %v470
  %v591 = vpack.c.b16 %v474, %v471
  %v592 = vpack.c.b16 %v475, %v472
  %v593 = vpack.c.b16 %v479, %v476
  %v594 = vpack.c.b16 %v480, %v477
  %v595 = vpack.c.b16 %v481, %v478
  %v596 = vpack.c.b16 %v485, %v482
  %v597 = vpack.c.b16 %v486, %v483
  %v598 = vpack.c.b16 %v487, %v484
  %v599 = vpack.c.b16 %v491, %v488
  %v600 = vpack.c.b16 %v492, %v489
  %v601 = vpack.c.b16 %v493, %v490
  %v602 = vpack.c.b16 %v497, %v494
  %v603 = vpack.c.b16 %v498, %v495
  %v604 = vpack.c.b16 %v499, %v496
  %v605 = vpack.c.b16 %v503, %v500
  %v606 = vpack.c.b16 %v504, %v501
  %v607 = vpack.c.b16 %v505, %v502
  %v608 = vpack.c.b16 %v509, %v506
  %v609 = vpack.c.b16 %v510, %v507
  %v610 = vpack.c.b16 %v511, %v508
  %v611 = vpack.c.b16 %v515, %v512
  %v612 = vpack.c.b16 %v516, %v513
  %v613 = vpack.c.b16 %v517, %v514
  %v758 = vunpack.c.l.b16 %v143
  %v759 = vunpack.c.l.b16 %v144
  %v760 = vunpack.c.l.b16 %v145
  %v761 = vunpack.c.l.b16 %v146
  %v762 = vunpack.c.l.b16 %v147
  %v763 = vunpack.c.l.b16 %v148
  %v764 = vunpack.c.l.b16 %v149
  %v765 = vunpack.c.l.b16 %v150
  %v766 = vunpack.c.l.b16 %v151
  %v767 = vunpack.c.l.b16 %v152
  %v768 = vunpack.c.l.b16 %v153
  %v769 = vunpack.c.l.b16 %v154
  %v770 = vunpack.c.l.b16 %v155
  %v771 = vunpack.c.l.b16 %v156
  %v772 = vunpack.c.l.b16 %v157
  %v773 = vunpack.c.l.b16 %v158
  %v774 = vunpack.c.l.b16 %v159
  %v775 = vunpack.c.l.b16 %v160
  %v776 = vunpack.c.l.b16 %v161
  %v777 = vunpack.c.l.b16 %v162
  %v778 = vunpack.c.l.b16 %v163
  %v779 = vunpack.c.l.b16 %v164
  %v780 = vunpack.c.l.b16 %v165
  %v781 = vunpack.c.l.b16 %v166
  %v782 = vunpack.c.l.b16 %v167
  %v783 = vunpack.c.l.b16 %v168
  %v784 = vunpack.c.l.b16 %v169
  %v785 = vunpack.c.l.b16 %v170
  %v786 = vunpack.c.l.b16 %v171
  %v787 = vunpack.c.l.b16 %v172
  %v788 = vunpack.c.l.b16 %v173
  %v789 = vunpack.c.l.b16 %v174
  %v790 = vunpack.c.l.b16 %v175
  %v791 = vunpack.c.l.b16 %v176
  %v792 = vunpack.c.l.b16 %v177
  %v793 = vunpack.c.l.b16 %v178
  %v794 = vunpack.c.l.b16 %v179
  %v795 = vunpack.c.l.b16 %v180
  %v796 = vunpack.c.l.b16 %v181
  %v797 = vunpack.c.l.b16 %v182
  %v798 = vunpack.c.l.b16 %v183
  %v799 = vunpack.c.l.b16 %v184
  %v800 = vunpack.c.l.b16 %v185
  %v801 = vunpack.c.l.b16 %v186
  %v802 = vunpack.c.l.b16 %v187
  %v803 = vunpack.c.l.b16 %v188
  %v804 = vunpack.c.l.b16 %v189
  %v805 = vunpack.c.l.b16 %v190
  %v806 = vpack.c.b16 %v759, %v758
  %v807 = vpack.c.b16 %v761, %v760
  %v808 = vpack.c.b16 %v763, %v762
  %v809 = vpack.c.b16 %v765, %v764
  %v810 = vpack.c.b16 %v767, %v766
  %v811 = vpack.c.b16 %v769, %v768
  %v812 = vpack.c.b16 %v771, %v770
  %v813 = vpack.c.b16 %v773, %v772
  %v814 = vpack.c.b16 %v775, %v774
  %v815 = vpack.c.b16 %v777, %v776
  %v816 = vpack.c.b16 %v779, %v778
  %v817 = vpack.c.b16 %v781, %v780
  %v818 = vpack.c.b16 %v783, %v782
  %v819 = vpack.c.b16 %v785, %v784
  %v820 = vpack.c.b16 %v787, %v786
  %v821 = vpack.c.b16 %v789, %v788
  %v822 = vpack.c.b16 %v791, %v790
  %v823 = vpack.c.b16 %v793, %v792
  %v824 = vpack.c.b16 %v795, %v794
  %v825 = vpack.c.b16 %v797, %v796
  %v826 = vpack.c.b16 %v799, %v798
  %v827 = vpack.c.b16 %v801, %v800
  %v828 = vpack.c.b16 %v803, %v802
  %v829 = vpack.c.b16 %v805, %v804
  %854 = vmatprep.subr.bf16.mxu0 0
  %855 = vmatpush1.bf16.msra.mxu0 %v806
  %856 = vmatprep.subr.bf16.mxu0 0
  %857 = vmatpush1.bf16.msra.mxu0 %v807
  %858 = vmatprep.subr.bf16.mxu0 0
  %859 = vmatpush1.bf16.msra.mxu0 %v808
  %860 = vmatprep.subr.bf16.mxu0 0
  %861 = vmatpush1.bf16.msra.mxu0 %v809
  %862 = vmatprep.subr.bf16.mxu0 0
  %863 = vmatpush1.bf16.msra.mxu0 %v810
  %864 = vmatprep.subr.bf16.mxu0 0
  %865 = vmatpush1.bf16.msra.mxu0 %v811
  %866 = vmatprep.subr.bf16.mxu0 0
  %867 = vmatpush1.bf16.msra.mxu0 %v812
  %868 = vmatprep.subr.bf16.mxu0 0
  %869 = vmatpush1.bf16.msra.mxu0 %v813
  %870 = vmatprep.subr.bf16.mxu0 0
  %871 = vmatpush1.bf16.msra.mxu0 %v814
  %872 = vmatprep.subr.bf16.mxu0 0
  %873 = vmatpush1.bf16.msra.mxu0 %v815
  %874 = vmatprep.subr.bf16.mxu0 0
  %875 = vmatpush1.bf16.msra.mxu0 %v816
  %876 = vmatprep.subr.bf16.mxu0 0
  %877 = vmatpush1.bf16.msra.mxu0 %v817
  %878 = vmatprep.subr.bf16.mxu0 0
  %879 = vmatpush1.bf16.msra.mxu0 %v818
  %880 = vmatprep.subr.bf16.mxu0 0
  %881 = vmatpush1.bf16.msra.mxu0 %v819
  %882 = vmatprep.subr.bf16.mxu0 0
  %883 = vmatpush1.bf16.msra.mxu0 %v820
  %884 = vmatprep.subr.bf16.mxu0 0
  %885 = vmatpush1.bf16.msra.mxu0 %v821
  %886 = vmatprep.mubr.bf16.mxu0 %v519
  %887 = vmatmul.mubr.bf16.gmra.mrb[0].mxu0 %v518
  %v888 = vpop.f32.mrb[0].mxu0
  %v889 = vadd.f32 %v196, %v888
  %v890 = vpop.f32.mrb[0].mxu0
  %v891 = vpop.f32.mrb[0].mxu0
  %v892 = vadd.f32 %v196, %v891
  %v893 = vpop.f32.mrb[0].mxu0
  %894 = vmatprep.mubr.bf16.mxu0 %v522
  %895 = vmatmul.mubr.bf16.gmra.mrb[0].mxu0 %v521
  %v896 = vpop.f32.mrb[0].mxu0
  %v897 = vadd.f32 %v196, %v896
  %v898 = vpop.f32.mrb[0].mxu0
  %v899 = vpop.f32.mrb[0].mxu0
  %v900 = vadd.f32 %v196, %v899
  %v901 = vpop.f32.mrb[0].mxu0
  %902 = vmatprep.mubr.bf16.mxu0 %v525
  %903 = vmatmul.mubr.bf16.gmra.mrb[0].mxu0 %v524
  %v904 = vpop.f32.mrb[0].mxu0
  %v905 = vadd.f32 %v196, %v904
  %v906 = vpop.f32.mrb[0].mxu0
  %v907 = vpop.f32.mrb[0].mxu0
  %v908 = vadd.f32 %v196, %v907
  %v909 = vpop.f32.mrb[0].mxu0
  %910 = vmatprep.mubr.bf16.mxu0 %v528
  %911 = vmatmul.mubr.bf16.gmra.mrb[0].mxu0 %v527
  %v912 = vpop.f32.mrb[0].mxu0
  %v913 = vadd.f32 %v196, %v912
  %v914 = vpop.f32.mrb[0].mxu0
  %v915 = vpop.f32.mrb[0].mxu0
  %v916 = vadd.f32 %v196, %v915
  %v917 = vpop.f32.mrb[0].mxu0
  %918 = vmatprep.mubr.bf16.mxu0 %v531
  %919 = vmatmul.mubr.bf16.gmra.mrb[0].mxu0 %v530
  %v920 = vpop.f32.mrb[0].mxu0
  %v921 = vadd.f32 %v196, %v920
  %v922 = vpop.f32.mrb[0].mxu0
  %v923 = vpop.f32.mrb[0].mxu0
  %v924 = vadd.f32 %v196, %v923
  %v925 = vpop.f32.mrb[0].mxu0
  %926 = vmatprep.mubr.bf16.mxu0 %v534
  %927 = vmatmul.mubr.bf16.gmra.mrb[0].mxu0 %v533
  %v928 = vpop.f32.mrb[0].mxu0
  %v929 = vadd.f32 %v196, %v928
  %v930 = vpop.f32.mrb[0].mxu0
  %v931 = vpop.f32.mrb[0].mxu0
  %v932 = vadd.f32 %v196, %v931
  %v933 = vpop.f32.mrb[0].mxu0
  %934 = vmatprep.mubr.bf16.mxu0 %v537
  %935 = vmatmul.mubr.bf16.gmra.mrb[0].mxu0 %v536
  %v936 = vpop.f32.mrb[0].mxu0
  %v937 = vadd.f32 %v196, %v936
  %v938 = vpop.f32.mrb[0].mxu0
  %v939 = vpop.f32.mrb[0].mxu0
  %v940 = vadd.f32 %v196, %v939
  %v941 = vpop.f32.mrb[0].mxu0
  %942 = vmatprep.mubr.bf16.mxu0 %v540
  %943 = vmatmul.mubr.bf16.gmra.mrb[0].mxu0 %v539
  %v944 = vpop.f32.mrb[0].mxu0
  %v945 = vadd.f32 %v196, %v944
  %v946 = vpop.f32.mrb[0].mxu0
  %v947 = vpop.f32.mrb[0].mxu0
  %v948 = vadd.f32 %v196, %v947
  %v949 = vpop.f32.mrb[0].mxu0
  %950 = vmatprep.mubr.bf16.mxu0 %v543
  %951 = vmatmul.mubr.bf16.gmra.mrb[0].mxu0 %v542
  %v952 = vpop.f32.mrb[0].mxu0
  %v953 = vadd.f32 %v196, %v952
  %v954 = vpop.f32.mrb[0].mxu0
  %v955 = vpop.f32.mrb[0].mxu0
  %v956 = vadd.f32 %v196, %v955
  %v957 = vpop.f32.mrb[0].mxu0
  %958 = vmatprep.mubr.bf16.mxu0 %v546
  %959 = vmatmul.mubr.bf16.gmra.mrb[0].mxu0 %v545
  %v960 = vpop.f32.mrb[0].mxu0
  %v961 = vadd.f32 %v196, %v960
  %v962 = vpop.f32.mrb[0].mxu0
  %v963 = vpop.f32.mrb[0].mxu0
  %v964 = vadd.f32 %v196, %v963
  %v965 = vpop.f32.mrb[0].mxu0
  %966 = vmatprep.mubr.bf16.mxu0 %v549
  %967 = vmatmul.mubr.bf16.gmra.mrb[0].mxu0 %v548
  %v968 = vpop.f32.mrb[0].mxu0
  %v969 = vadd.f32 %v196, %v968
  %v970 = vpop.f32.mrb[0].mxu0
  %v971 = vpop.f32.mrb[0].mxu0
  %v972 = vadd.f32 %v196, %v971
  %v973 = vpop.f32.mrb[0].mxu0
  %974 = vmatprep.mubr.bf16.mxu0 %v552
  %975 = vmatmul.mubr.bf16.gmra.mrb[0].mxu0 %v551
  %v976 = vpop.f32.mrb[0].mxu0
  %v977 = vadd.f32 %v196, %v976
  %v978 = vpop.f32.mrb[0].mxu0
  %v979 = vpop.f32.mrb[0].mxu0
  %v980 = vadd.f32 %v196, %v979
  %v981 = vpop.f32.mrb[0].mxu0
  %982 = vmatprep.mubr.bf16.mxu0 %v555
  %983 = vmatmul.mubr.bf16.gmra.mrb[0].mxu0 %v554
  %v984 = vpop.f32.mrb[0].mxu0
  %v985 = vadd.f32 %v196, %v984
  %v986 = vpop.f32.mrb[0].mxu0
  %v987 = vpop.f32.mrb[0].mxu0
  %v988 = vadd.f32 %v196, %v987
  %v989 = vpop.f32.mrb[0].mxu0
  %990 = vmatprep.mubr.bf16.mxu0 %v558
  %991 = vmatmul.mubr.bf16.gmra.mrb[0].mxu0 %v557
  %v992 = vpop.f32.mrb[0].mxu0
  %v993 = vadd.f32 %v196, %v992
  %v994 = vpop.f32.mrb[0].mxu0
  %v995 = vpop.f32.mrb[0].mxu0
  %v996 = vadd.f32 %v196, %v995
  %v997 = vpop.f32.mrb[0].mxu0
  %998 = vmatprep.mubr.bf16.mxu0 %v561
  %999 = vmatmul.mubr.bf16.gmra.mrb[0].mxu0 %v560
  %v1000 = vpop.f32.mrb[0].mxu0
  %v1001 = vadd.f32 %v196, %v1000
  %v1002 = vpop.f32.mrb[0].mxu0
  %v1003 = vpop.f32.mrb[0].mxu0
  %v1004 = vadd.f32 %v196, %v1003
  %v1005 = vpop.f32.mrb[0].mxu0
  %1006 = vmatprep.mubr.bf16.mxu0 %v564
  %1007 = vmatmul.mubr.bf16.gmra.mrb[0].mxu0 %v563
  %v1008 = vpop.f32.mrb[0].mxu0
  %v1009 = vadd.f32 %v196, %v1008
  %v1010 = vpop.f32.mrb[0].mxu0
  %v1011 = vpop.f32.mrb[0].mxu0
  %v1012 = vadd.f32 %v196, %v1011
  %v1013 = vpop.f32.mrb[0].mxu0
  %1014 = vmatprep.mubr.bf16.mxu0 %v567
  %1015 = vmatmul.mubr.bf16.gmra.mrb[0].mxu0 %v566
  %v1016 = vpop.f32.mrb[0].mxu0
  %v1017 = vadd.f32 %v196, %v1016
  %v1018 = vpop.f32.mrb[0].mxu0
  %v1019 = vpop.f32.mrb[0].mxu0
  %v1020 = vadd.f32 %v196, %v1019
  %v1021 = vpop.f32.mrb[0].mxu0
  %1022 = vmatprep.mubr.bf16.mxu0 %v570
  %1023 = vmatmul.mubr.bf16.gmra.mrb[0].mxu0 %v569
  %v1024 = vpop.f32.mrb[0].mxu0
  %v1025 = vadd.f32 %v196, %v1024
  %v1026 = vpop.f32.mrb[0].mxu0
  %v1027 = vpop.f32.mrb[0].mxu0
  %v1028 = vadd.f32 %v196, %v1027
  %v1029 = vpop.f32.mrb[0].mxu0
  %1030 = vmatprep.mubr.bf16.mxu0 %v573
  %1031 = vmatmul.mubr.bf16.gmra.mrb[0].mxu0 %v572
  %v1032 = vpop.f32.mrb[0].mxu0
  %v1033 = vadd.f32 %v196, %v1032
  %v1034 = vpop.f32.mrb[0].mxu0
  %v1035 = vpop.f32.mrb[0].mxu0
  %v1036 = vadd.f32 %v196, %v1035
  %v1037 = vpop.f32.mrb[0].mxu0
  %1038 = vmatprep.mubr.bf16.mxu0 %v576
  %1039 = vmatmul.mubr.bf16.gmra.mrb[0].mxu0 %v575
  %v1040 = vpop.f32.mrb[0].mxu0
  %v1041 = vadd.f32 %v196, %v1040
  %v1042 = vpop.f32.mrb[0].mxu0
  %v1043 = vpop.f32.mrb[0].mxu0
  %v1044 = vadd.f32 %v196, %v1043
  %v1045 = vpop.f32.mrb[0].mxu0
  %1046 = vmatprep.mubr.bf16.mxu0 %v579
  %1047 = vmatmul.mubr.bf16.gmra.mrb[0].mxu0 %v578
  %v1048 = vpop.f32.mrb[0].mxu0
  %v1049 = vadd.f32 %v196, %v1048
  %v1050 = vpop.f32.mrb[0].mxu0
  %v1051 = vpop.f32.mrb[0].mxu0
  %v1052 = vadd.f32 %v196, %v1051
  %v1053 = vpop.f32.mrb[0].mxu0
  %1054 = vmatprep.mubr.bf16.mxu0 %v582
  %1055 = vmatmul.mubr.bf16.gmra.mrb[0].mxu0 %v581
  %v1056 = vpop.f32.mrb[0].mxu0
  %v1057 = vadd.f32 %v196, %v1056
  %v1058 = vpop.f32.mrb[0].mxu0
  %v1059 = vpop.f32.mrb[0].mxu0
  %v1060 = vadd.f32 %v196, %v1059
  %v1061 = vpop.f32.mrb[0].mxu0
  %1062 = vmatprep.mubr.bf16.mxu0 %v585
  %1063 = vmatmul.mubr.bf16.gmra.mrb[0].mxu0 %v584
  %v1064 = vpop.f32.mrb[0].mxu0
  %v1065 = vadd.f32 %v196, %v1064
  %v1066 = vpop.f32.mrb[0].mxu0
  %v1067 = vpop.f32.mrb[0].mxu0
  %v1068 = vadd.f32 %v196, %v1067
  %v1069 = vpop.f32.mrb[0].mxu0
  %1070 = vmatprep.mubr.bf16.mxu0 %v588
  %1071 = vmatmul.mubr.bf16.gmra.mrb[0].mxu0 %v587
  %v1072 = vpop.f32.mrb[0].mxu0
  %v1073 = vadd.f32 %v196, %v1072
  %v1074 = vpop.f32.mrb[0].mxu0
  %v1075 = vpop.f32.mrb[0].mxu0
  %v1076 = vadd.f32 %v196, %v1075
  %v1077 = vpop.f32.mrb[0].mxu0
  %1078 = vmatprep.mubr.bf16.mxu0 %v591
  %1079 = vmatmul.mubr.bf16.gmra.mrb[0].mxu0 %v590
  %v1080 = vpop.f32.mrb[0].mxu0
  %v1081 = vadd.f32 %v196, %v1080
  %v1082 = vpop.f32.mrb[0].mxu0
  %v1083 = vpop.f32.mrb[0].mxu0
  %v1084 = vadd.f32 %v196, %v1083
  %v1085 = vpop.f32.mrb[0].mxu0
  %1086 = vmatprep.mubr.bf16.mxu0 %v594
  %1087 = vmatmul.mubr.bf16.gmra.mrb[0].mxu0 %v593
  %v1088 = vpop.f32.mrb[0].mxu0
  %v1089 = vadd.f32 %v196, %v1088
  %v1090 = vpop.f32.mrb[0].mxu0
  %v1091 = vpop.f32.mrb[0].mxu0
  %v1092 = vadd.f32 %v196, %v1091
  %v1093 = vpop.f32.mrb[0].mxu0
  %1094 = vmatprep.mubr.bf16.mxu0 %v597
  %1095 = vmatmul.mubr.bf16.gmra.mrb[0].mxu0 %v596
  %v1096 = vpop.f32.mrb[0].mxu0
  %v1097 = vadd.f32 %v196, %v1096
  %v1098 = vpop.f32.mrb[0].mxu0
  %v1099 = vpop.f32.mrb[0].mxu0
  %v1100 = vadd.f32 %v196, %v1099
  %v1101 = vpop.f32.mrb[0].mxu0
  %1102 = vmatprep.mubr.bf16.mxu0 %v600
  %1103 = vmatmul.mubr.bf16.gmra.mrb[0].mxu0 %v599
  %v1104 = vpop.f32.mrb[0].mxu0
  %v1105 = vadd.f32 %v196, %v1104
  %v1106 = vpop.f32.mrb[0].mxu0
  %v1107 = vpop.f32.mrb[0].mxu0
  %v1108 = vadd.f32 %v196, %v1107
  %v1109 = vpop.f32.mrb[0].mxu0
  %1110 = vmatprep.mubr.bf16.mxu0 %v603
  %1111 = vmatmul.mubr.bf16.gmra.mrb[0].mxu0 %v602
  %v1112 = vpop.f32.mrb[0].mxu0
  %v1113 = vadd.f32 %v196, %v1112
  %v1114 = vpop.f32.mrb[0].mxu0
  %v1115 = vpop.f32.mrb[0].mxu0
  %v1116 = vadd.f32 %v196, %v1115
  %v1117 = vpop.f32.mrb[0].mxu0
  %1118 = vmatprep.mubr.bf16.mxu0 %v606
  %1119 = vmatmul.mubr.bf16.gmra.mrb[0].mxu0 %v605
  %v1120 = vpop.f32.mrb[0].mxu0
  %v1121 = vadd.f32 %v196, %v1120
  %v1122 = vpop.f32.mrb[0].mxu0
  %v1123 = vpop.f32.mrb[0].mxu0
  %v1124 = vadd.f32 %v196, %v1123
  %v1125 = vpop.f32.mrb[0].mxu0
  %1126 = vmatprep.mubr.bf16.mxu0 %v609
  %1127 = vmatmul.mubr.bf16.gmra.mrb[0].mxu0 %v608
  %v1128 = vpop.f32.mrb[0].mxu0
  %v1129 = vadd.f32 %v196, %v1128
  %v1130 = vpop.f32.mrb[0].mxu0
  %v1131 = vpop.f32.mrb[0].mxu0
  %v1132 = vadd.f32 %v196, %v1131
  %v1133 = vpop.f32.mrb[0].mxu0
  %1134 = vmatprep.mubr.bf16.mxu0 %v612
  %1135 = vmatmul.mubr.bf16.gmra.mrb[0].mxu0 %v611
  %v1136 = vpop.f32.mrb[0].mxu0
  %v1137 = vadd.f32 %v196, %v1136
  %v1138 = vpop.f32.mrb[0].mxu0
  %v1139 = vpop.f32.mrb[0].mxu0
  %v1140 = vadd.f32 %v196, %v1139
  %v1141 = vpop.f32.mrb[0].mxu0
  %1142 = vdwg.mxu0
  %1143 = vmatprep.subr.bf16.mxu0 0
  %1144 = vmatpush1.bf16.msra.mxu0 %v822
  %1145 = vmatprep.subr.bf16.mxu0 0
  %1146 = vmatpush1.bf16.msra.mxu0 %v823
  %1147 = vmatprep.subr.bf16.mxu0 0
  %1148 = vmatpush1.bf16.msra.mxu0 %v824
  %1149 = vmatprep.subr.bf16.mxu0 0
  %1150 = vmatpush1.bf16.msra.mxu0 %v825
  %1151 = vmatprep.subr.bf16.mxu0 0
  %1152 = vmatpush1.bf16.msra.mxu0 %v826
  %1153 = vmatprep.subr.bf16.mxu0 0
  %1154 = vmatpush1.bf16.msra.mxu0 %v827
  %1155 = vmatprep.subr.bf16.mxu0 0
  %1156 = vmatpush1.bf16.msra.mxu0 %v828
  %1157 = vmatprep.subr.bf16.mxu0 0
  %1158 = vmatpush1.bf16.msra.mxu0 %v829
  %1159 = vmatprep.subr.bf16.mxu0 0
  %1160 = vmatpush1.bf16.msra.mxu0 0
  %1161 = vmatprep.subr.bf16.mxu0 0
  %1162 = vmatpush1.bf16.msra.mxu0 0
  %1163 = vmatprep.subr.bf16.mxu0 0
  %1164 = vmatpush1.bf16.msra.mxu0 0
  %1165 = vmatprep.subr.bf16.mxu0 0
  %1166 = vmatpush1.bf16.msra.mxu0 0
  %1167 = vmatprep.subr.bf16.mxu0 0
  %1168 = vmatpush1.bf16.msra.mxu0 0
  %1169 = vmatprep.subr.bf16.mxu0 0
  %1170 = vmatpush1.bf16.msra.mxu0 0
  %1171 = vmatprep.subr.bf16.mxu0 0
  %1172 = vmatpush1.bf16.msra.mxu0 0
  %1173 = vmatprep.subr.bf16.mxu0 0
  %1174 = vmatpush1.bf16.msra.mxu0 0
  %1175 = vmatprep.mubr.bf16.mxu0 0
  %1176 = vmatmul.mubr.bf16.gmra.mrb[0].mxu0 %v520
  %v1177 = vpop.f32.mrb[0].mxu0
  %v1178 = vadd.f32 %v889, %v1177
  %v1179 = vpop.f32.mrb[0].mxu0
  %v1180 = vpop.f32.mrb[0].mxu0
  %v1181 = vadd.f32 %v892, %v1180
  %v1182 = vpop.f32.mrb[0].mxu0
  %1183 = vmatprep.mubr.bf16.mxu0 0
  %1184 = vmatmul.mubr.bf16.gmra.mrb[0].mxu0 %v523
  %v1185 = vpop.f32.mrb[0].mxu0
  %v1186 = vadd.f32 %v897, %v1185
  %v1187 = vpop.f32.mrb[0].mxu0
  %v1188 = vpop.f32.mrb[0].mxu0
  %v1189 = vadd.f32 %v900, %v1188
  %v1190 = vpop.f32.mrb[0].mxu0
  %1191 = vmatprep.mubr.bf16.mxu0 0
  %1192 = vmatmul.mubr.bf16.gmra.mrb[0].mxu0 %v526
  %v1193 = vpop.f32.mrb[0].mxu0
  %v1194 = vadd.f32 %v905, %v1193
  %v1195 = vpop.f32.mrb[0].mxu0
  %v1196 = vpop.f32.mrb[0].mxu0
  %v1197 = vadd.f32 %v908, %v1196
  %v1198 = vpop.f32.mrb[0].mxu0
  %1199 = vmatprep.mubr.bf16.mxu0 0
  %1200 = vmatmul.mubr.bf16.gmra.mrb[0].mxu0 %v529
  %v1201 = vpop.f32.mrb[0].mxu0
  %v1202 = vadd.f32 %v913, %v1201
  %v1203 = vpop.f32.mrb[0].mxu0
  %v1204 = vpop.f32.mrb[0].mxu0
  %v1205 = vadd.f32 %v916, %v1204
  %v1206 = vpop.f32.mrb[0].mxu0
  %1207 = vmatprep.mubr.bf16.mxu0 0
  %1208 = vmatmul.mubr.bf16.gmra.mrb[0].mxu0 %v532
  %v1209 = vpop.f32.mrb[0].mxu0
  %v1210 = vadd.f32 %v921, %v1209
  %v1211 = vpop.f32.mrb[0].mxu0
  %v1212 = vpop.f32.mrb[0].mxu0
  %v1213 = vadd.f32 %v924, %v1212
  %v1214 = vpop.f32.mrb[0].mxu0
  %1215 = vmatprep.mubr.bf16.mxu0 0
  %1216 = vmatmul.mubr.bf16.gmra.mrb[0].mxu0 %v535
  %v1217 = vpop.f32.mrb[0].mxu0
  %v1218 = vadd.f32 %v929, %v1217
  %v1219 = vpop.f32.mrb[0].mxu0
  %v1220 = vpop.f32.mrb[0].mxu0
  %v1221 = vadd.f32 %v932, %v1220
  %v1222 = vpop.f32.mrb[0].mxu0
  %1223 = vmatprep.mubr.bf16.mxu0 0
  %1224 = vmatmul.mubr.bf16.gmra.mrb[0].mxu0 %v538
  %v1225 = vpop.f32.mrb[0].mxu0
  %v1226 = vadd.f32 %v937, %v1225
  %v1227 = vpop.f32.mrb[0].mxu0
  %v1228 = vpop.f32.mrb[0].mxu0
  %v1229 = vadd.f32 %v940, %v1228
  %v1230 = vpop.f32.mrb[0].mxu0
  %1231 = vmatprep.mubr.bf16.mxu0 0
  %1232 = vmatmul.mubr.bf16.gmra.mrb[0].mxu0 %v541
  %v1233 = vpop.f32.mrb[0].mxu0
  %v1234 = vadd.f32 %v945, %v1233
  %v1235 = vpop.f32.mrb[0].mxu0
  %v1236 = vpop.f32.mrb[0].mxu0
  %v1237 = vadd.f32 %v948, %v1236
  %v1238 = vpop.f32.mrb[0].mxu0
  %1239 = vmatprep.mubr.bf16.mxu0 0
  %1240 = vmatmul.mubr.bf16.gmra.mrb[0].mxu0 %v544
  %v1241 = vpop.f32.mrb[0].mxu0
  %v1242 = vadd.f32 %v953, %v1241
  %v1243 = vpop.f32.mrb[0].mxu0
  %v1244 = vpop.f32.mrb[0].mxu0
  %v1245 = vadd.f32 %v956, %v1244
  %v1246 = vpop.f32.mrb[0].mxu0
  %1247 = vmatprep.mubr.bf16.mxu0 0
  %1248 = vmatmul.mubr.bf16.gmra.mrb[0].mxu0 %v547
  %v1249 = vpop.f32.mrb[0].mxu0
  %v1250 = vadd.f32 %v961, %v1249
  %v1251 = vpop.f32.mrb[0].mxu0
  %v1252 = vpop.f32.mrb[0].mxu0
  %v1253 = vadd.f32 %v964, %v1252
  %v1254 = vpop.f32.mrb[0].mxu0
  %1255 = vmatprep.mubr.bf16.mxu0 0
  %1256 = vmatmul.mubr.bf16.gmra.mrb[0].mxu0 %v550
  %v1257 = vpop.f32.mrb[0].mxu0
  %v1258 = vadd.f32 %v969, %v1257
  %v1259 = vpop.f32.mrb[0].mxu0
  %v1260 = vpop.f32.mrb[0].mxu0
  %v1261 = vadd.f32 %v972, %v1260
  %v1262 = vpop.f32.mrb[0].mxu0
  %1263 = vmatprep.mubr.bf16.mxu0 0
  %1264 = vmatmul.mubr.bf16.gmra.mrb[0].mxu0 %v553
  %v1265 = vpop.f32.mrb[0].mxu0
  %v1266 = vadd.f32 %v977, %v1265
  %v1267 = vpop.f32.mrb[0].mxu0
  %v1268 = vpop.f32.mrb[0].mxu0
  %v1269 = vadd.f32 %v980, %v1268
  %v1270 = vpop.f32.mrb[0].mxu0
  %1271 = vmatprep.mubr.bf16.mxu0 0
  %1272 = vmatmul.mubr.bf16.gmra.mrb[0].mxu0 %v556
  %v1273 = vpop.f32.mrb[0].mxu0
  %v1274 = vadd.f32 %v985, %v1273
  %v1275 = vpop.f32.mrb[0].mxu0
  %v1276 = vpop.f32.mrb[0].mxu0
  %v1277 = vadd.f32 %v988, %v1276
  %v1278 = vpop.f32.mrb[0].mxu0
  %1279 = vmatprep.mubr.bf16.mxu0 0
  %1280 = vmatmul.mubr.bf16.gmra.mrb[0].mxu0 %v559
  %v1281 = vpop.f32.mrb[0].mxu0
  %v1282 = vadd.f32 %v993, %v1281
  %v1283 = vpop.f32.mrb[0].mxu0
  %v1284 = vpop.f32.mrb[0].mxu0
  %v1285 = vadd.f32 %v996, %v1284
  %v1286 = vpop.f32.mrb[0].mxu0
  %1287 = vmatprep.mubr.bf16.mxu0 0
  %1288 = vmatmul.mubr.bf16.gmra.mrb[0].mxu0 %v562
  %v1289 = vpop.f32.mrb[0].mxu0
  %v1290 = vadd.f32 %v1001, %v1289
  %v1291 = vpop.f32.mrb[0].mxu0
  %v1292 = vpop.f32.mrb[0].mxu0
  %v1293 = vadd.f32 %v1004, %v1292
  %v1294 = vpop.f32.mrb[0].mxu0
  %1295 = vmatprep.mubr.bf16.mxu0 0
  %1296 = vmatmul.mubr.bf16.gmra.mrb[0].mxu0 %v565
  %v1297 = vpop.f32.mrb[0].mxu0
  %v1298 = vadd.f32 %v1009, %v1297
  %v1299 = vpop.f32.mrb[0].mxu0
  %v1300 = vpop.f32.mrb[0].mxu0
  %v1301 = vadd.f32 %v1012, %v1300
  %v1302 = vpop.f32.mrb[0].mxu0
  %1303 = vmatprep.mubr.bf16.mxu0 0
  %1304 = vmatmul.mubr.bf16.gmra.mrb[0].mxu0 %v568
  %v1305 = vpop.f32.mrb[0].mxu0
  %v1306 = vadd.f32 %v1017, %v1305
  %v1307 = vpop.f32.mrb[0].mxu0
  %v1308 = vpop.f32.mrb[0].mxu0
  %v1309 = vadd.f32 %v1020, %v1308
  %v1310 = vpop.f32.mrb[0].mxu0
  %1311 = vmatprep.mubr.bf16.mxu0 0
  %1312 = vmatmul.mubr.bf16.gmra.mrb[0].mxu0 %v571
  %v1313 = vpop.f32.mrb[0].mxu0
  %v1314 = vadd.f32 %v1025, %v1313
  %v1315 = vpop.f32.mrb[0].mxu0
  %v1316 = vpop.f32.mrb[0].mxu0
  %v1317 = vadd.f32 %v1028, %v1316
  %v1318 = vpop.f32.mrb[0].mxu0
  %1319 = vmatprep.mubr.bf16.mxu0 0
  %1320 = vmatmul.mubr.bf16.gmra.mrb[0].mxu0 %v574
  %v1321 = vpop.f32.mrb[0].mxu0
  %v1322 = vadd.f32 %v1033, %v1321
  %v1323 = vpop.f32.mrb[0].mxu0
  %v1324 = vpop.f32.mrb[0].mxu0
  %v1325 = vadd.f32 %v1036, %v1324
  %v1326 = vpop.f32.mrb[0].mxu0
  %1327 = vmatprep.mubr.bf16.mxu0 0
  %1328 = vmatmul.mubr.bf16.gmra.mrb[0].mxu0 %v577
  %v1329 = vpop.f32.mrb[0].mxu0
  %v1330 = vadd.f32 %v1041, %v1329
  %v1331 = vpop.f32.mrb[0].mxu0
  %v1332 = vpop.f32.mrb[0].mxu0
  %v1333 = vadd.f32 %v1044, %v1332
  %v1334 = vpop.f32.mrb[0].mxu0
  %1335 = vmatprep.mubr.bf16.mxu0 0
  %1336 = vmatmul.mubr.bf16.gmra.mrb[0].mxu0 %v580
  %v1337 = vpop.f32.mrb[0].mxu0
  %v1338 = vadd.f32 %v1049, %v1337
  %v1339 = vpop.f32.mrb[0].mxu0
  %v1340 = vpop.f32.mrb[0].mxu0
  %v1341 = vadd.f32 %v1052, %v1340
  %v1342 = vpop.f32.mrb[0].mxu0
  %1343 = vmatprep.mubr.bf16.mxu0 0
  %1344 = vmatmul.mubr.bf16.gmra.mrb[0].mxu0 %v583
  %v1345 = vpop.f32.mrb[0].mxu0
  %v1346 = vadd.f32 %v1057, %v1345
  %v1347 = vpop.f32.mrb[0].mxu0
  %v1348 = vpop.f32.mrb[0].mxu0
  %v1349 = vadd.f32 %v1060, %v1348
  %v1350 = vpop.f32.mrb[0].mxu0
  %1351 = vmatprep.mubr.bf16.mxu0 0
  %1352 = vmatmul.mubr.bf16.gmra.mrb[0].mxu0 %v586
  %v1353 = vpop.f32.mrb[0].mxu0
  %v1354 = vadd.f32 %v1065, %v1353
  %v1355 = vpop.f32.mrb[0].mxu0
  %v1356 = vpop.f32.mrb[0].mxu0
  %v1357 = vadd.f32 %v1068, %v1356
  %v1358 = vpop.f32.mrb[0].mxu0
  %1359 = vmatprep.mubr.bf16.mxu0 0
  %1360 = vmatmul.mubr.bf16.gmra.mrb[0].mxu0 %v589
  %v1361 = vpop.f32.mrb[0].mxu0
  %v1362 = vadd.f32 %v1073, %v1361
  %v1363 = vpop.f32.mrb[0].mxu0
  %v1364 = vpop.f32.mrb[0].mxu0
  %v1365 = vadd.f32 %v1076, %v1364
  %v1366 = vpop.f32.mrb[0].mxu0
  %1367 = vmatprep.mubr.bf16.mxu0 0
  %1368 = vmatmul.mubr.bf16.gmra.mrb[0].mxu0 %v592
  %v1369 = vpop.f32.mrb[0].mxu0
  %v1370 = vadd.f32 %v1081, %v1369
  %v1371 = vpop.f32.mrb[0].mxu0
  %v1372 = vpop.f32.mrb[0].mxu0
  %v1373 = vadd.f32 %v1084, %v1372
  %v1374 = vpop.f32.mrb[0].mxu0
  %1375 = vmatprep.mubr.bf16.mxu0 0
  %1376 = vmatmul.mubr.bf16.gmra.mrb[0].mxu0 %v595
  %v1377 = vpop.f32.mrb[0].mxu0
  %v1378 = vadd.f32 %v1089, %v1377
  %v1379 = vpop.f32.mrb[0].mxu0
  %v1380 = vpop.f32.mrb[0].mxu0
  %v1381 = vadd.f32 %v1092, %v1380
  %v1382 = vpop.f32.mrb[0].mxu0
  %1383 = vmatprep.mubr.bf16.mxu0 0
  %1384 = vmatmul.mubr.bf16.gmra.mrb[0].mxu0 %v598
  %v1385 = vpop.f32.mrb[0].mxu0
  %v1386 = vadd.f32 %v1097, %v1385
  %v1387 = vpop.f32.mrb[0].mxu0
  %v1388 = vpop.f32.mrb[0].mxu0
  %v1389 = vadd.f32 %v1100, %v1388
  %v1390 = vpop.f32.mrb[0].mxu0
  %1391 = vmatprep.mubr.bf16.mxu0 0
  %1392 = vmatmul.mubr.bf16.gmra.mrb[0].mxu0 %v601
  %v1393 = vpop.f32.mrb[0].mxu0
  %v1394 = vadd.f32 %v1105, %v1393
  %v1395 = vpop.f32.mrb[0].mxu0
  %v1396 = vpop.f32.mrb[0].mxu0
  %v1397 = vadd.f32 %v1108, %v1396
  %v1398 = vpop.f32.mrb[0].mxu0
  %1399 = vmatprep.mubr.bf16.mxu0 0
  %1400 = vmatmul.mubr.bf16.gmra.mrb[0].mxu0 %v604
  %v1401 = vpop.f32.mrb[0].mxu0
  %v1402 = vadd.f32 %v1113, %v1401
  %v1403 = vpop.f32.mrb[0].mxu0
  %v1404 = vpop.f32.mrb[0].mxu0
  %v1405 = vadd.f32 %v1116, %v1404
  %v1406 = vpop.f32.mrb[0].mxu0
  %1407 = vmatprep.mubr.bf16.mxu0 0
  %1408 = vmatmul.mubr.bf16.gmra.mrb[0].mxu0 %v607
  %v1409 = vpop.f32.mrb[0].mxu0
  %v1410 = vadd.f32 %v1121, %v1409
  %v1411 = vpop.f32.mrb[0].mxu0
  %v1412 = vpop.f32.mrb[0].mxu0
  %v1413 = vadd.f32 %v1124, %v1412
  %v1414 = vpop.f32.mrb[0].mxu0
  %1415 = vmatprep.mubr.bf16.mxu0 0
  %1416 = vmatmul.mubr.bf16.gmra.mrb[0].mxu0 %v610
  %v1417 = vpop.f32.mrb[0].mxu0
  %v1418 = vadd.f32 %v1129, %v1417
  %v1419 = vpop.f32.mrb[0].mxu0
  %v1420 = vpop.f32.mrb[0].mxu0
  %v1421 = vadd.f32 %v1132, %v1420
  %v1422 = vpop.f32.mrb[0].mxu0
  %1423 = vmatprep.mubr.bf16.mxu0 0
  %1424 = vmatmul.mubr.bf16.gmra.mrb[0].mxu0 %v613
  %v1425 = vpop.f32.mrb[0].mxu0
  %v1426 = vadd.f32 %v1137, %v1425
  %v1427 = vpop.f32.mrb[0].mxu0
  %v1428 = vpop.f32.mrb[0].mxu0
  %v1429 = vadd.f32 %v1140, %v1428
  %v1430 = vpop.f32.mrb[0].mxu0
  %1431 = vdwg.mxu0
  %v1432 = vtanh.pop %v1178
  %v1433 = vtanh.pop %v1181
  %v1434 = vtanh.pop %v1186
  %v1435 = vtanh.pop %v1189
  %v1436 = vtanh.pop %v1194
  %v1437 = vtanh.pop %v1197
  %v1438 = vtanh.pop %v1202
  %v1439 = vtanh.pop %v1205
  %v1440 = vtanh.pop %v1210
  %v1441 = vtanh.pop %v1213
  %v1442 = vtanh.pop %v1218
  %v1443 = vtanh.pop %v1221
  %v1444 = vtanh.pop %v1226
  %v1445 = vtanh.pop %v1229
  %v1446 = vtanh.pop %v1234
  %v1447 = vtanh.pop %v1237
  %v1448 = vtanh.pop %v1242
  %v1449 = vtanh.pop %v1245
  %v1450 = vtanh.pop %v1250
  %v1451 = vtanh.pop %v1253
  %v1452 = vtanh.pop %v1258
  %v1453 = vtanh.pop %v1261
  %v1454 = vtanh.pop %v1266
  %v1455 = vtanh.pop %v1269
  %v1456 = vtanh.pop %v1274
  %v1457 = vtanh.pop %v1277
  %v1458 = vtanh.pop %v1282
  %v1459 = vtanh.pop %v1285
  %v1460 = vtanh.pop %v1290
  %v1461 = vtanh.pop %v1293
  %v1462 = vtanh.pop %v1298
  %v1463 = vtanh.pop %v1301
  %v1464 = vtanh.pop %v1306
  %v1465 = vtanh.pop %v1309
  %v1466 = vtanh.pop %v1314
  %v1467 = vtanh.pop %v1317
  %v1468 = vtanh.pop %v1322
  %v1469 = vtanh.pop %v1325
  %v1470 = vtanh.pop %v1330
  %v1471 = vtanh.pop %v1333
  %v1472 = vtanh.pop %v1338
  %v1473 = vtanh.pop %v1341
  %v1474 = vtanh.pop %v1346
  %v1475 = vtanh.pop %v1349
  %v1476 = vtanh.pop %v1354
  %v1477 = vtanh.pop %v1357
  %v1478 = vtanh.pop %v1362
  %v1479 = vtanh.pop %v1365
  %v1480 = vtanh.pop %v1370
  %v1481 = vtanh.pop %v1373
  %v1482 = vtanh.pop %v1378
  %v1483 = vtanh.pop %v1381
  %v1484 = vtanh.pop %v1386
  %v1485 = vtanh.pop %v1389
  %v1486 = vtanh.pop %v1394
  %v1487 = vtanh.pop %v1397
  %v1488 = vtanh.pop %v1402
  %v1489 = vtanh.pop %v1405
  %v1490 = vtanh.pop %v1410
  %v1491 = vtanh.pop %v1413
  %v1492 = vtanh.pop %v1418
  %v1493 = vtanh.pop %v1421
  %v1494 = vtanh.pop %v1426
  %v1495 = vtanh.pop %v1429
  %1496 = vst [vmem:[%s3] sm:$0xff] %v1432
  %1497 = vst [vmem:[%s3 + $0x8] sm:$0xff] %v1433
  %1498 = vst [vmem:[%s3 + $0x10] sm:$0xff] %v1434
  %1499 = vst [vmem:[%s3 + $0x18] sm:$0xff] %v1435
  %1500 = vst [vmem:[%s3 + $0x20] sm:$0xff] %v1436
  %1501 = vst [vmem:[%s3 + $0x28] sm:$0xff] %v1437
  %1502 = vst [vmem:[%s3 + $0x30] sm:$0xff] %v1438
  %1503 = vst [vmem:[%s3 + $0x38] sm:$0xff] %v1439
  %1504 = vst [vmem:[%s3 + $0x40] sm:$0xff] %v1440
  %1505 = vst [vmem:[%s3 + $0x48] sm:$0xff] %v1441
  %1506 = vst [vmem:[%s3 + $0x50] sm:$0xff] %v1442
  %1507 = vst [vmem:[%s3 + $0x58] sm:$0xff] %v1443
  %1508 = vst [vmem:[%s3 + $0x60] sm:$0xff] %v1444
  %1509 = vst [vmem:[%s3 + $0x68] sm:$0xff] %v1445
  %1510 = vst [vmem:[%s3 + $0x70] sm:$0xff] %v1446
  %1511 = vst [vmem:[%s3 + $0x78] sm:$0xff] %v1447
  %1512 = vst [vmem:[%s3 + $0x80] sm:$0xff] %v1448
  %1513 = vst [vmem:[%s3 + $0x88] sm:$0xff] %v1449
  %1514 = vst [vmem:[%s3 + $0x90] sm:$0xff] %v1450
  %1515 = vst [vmem:[%s3 + $0x98] sm:$0xff] %v1451
  %1516 = vst [vmem:[%s3 + $0xa0] sm:$0xff] %v1452
  %1517 = vst [vmem:[%s3 + $0xa8] sm:$0xff] %v1453
  %1518 = vst [vmem:[%s3 + $0xb0] sm:$0xff] %v1454
  %1519 = vst [vmem:[%s3 + $0xb8] sm:$0xff] %v1455
  %1520 = vst [vmem:[%s3 + $0xc0] sm:$0xff] %v1456
  %1521 = vst [vmem:[%s3 + $0xc8] sm:$0xff] %v1457
  %1522 = vst [vmem:[%s3 + $0xd0] sm:$0xff] %v1458
  %1523 = vst [vmem:[%s3 + $0xd8] sm:$0xff] %v1459
  %1524 = vst [vmem:[%s3 + $0xe0] sm:$0xff] %v1460
  %1525 = vst [vmem:[%s3 + $0xe8] sm:$0xff] %v1461
  %1526 = vst [vmem:[%s3 + $0xf0] sm:$0xff] %v1462
  %1527 = vst [vmem:[%s3 + $0xf8] sm:$0xff] %v1463
  %1528 = vst [vmem:[%s3 + $0x100] sm:$0xff] %v1464
  %1529 = vst [vmem:[%s3 + $0x108] sm:$0xff] %v1465
  %1530 = vst [vmem:[%s3 + $0x110] sm:$0xff] %v1466
  %1531 = vst [vmem:[%s3 + $0x118] sm:$0xff] %v1467
  %1532 = vst [vmem:[%s3 + $0x120] sm:$0xff] %v1468
  %1533 = vst [vmem:[%s3 + $0x128] sm:$0xff] %v1469
  %1534 = vst [vmem:[%s3 + $0x130] sm:$0xff] %v1470
  %1535 = vst [vmem:[%s3 + $0x138] sm:$0xff] %v1471
  %1536 = vst [vmem:[%s3 + $0x140] sm:$0xff] %v1472
  %1537 = vst [vmem:[%s3 + $0x148] sm:$0xff] %v1473
  %1538 = vst [vmem:[%s3 + $0x150] sm:$0xff] %v1474
  %1539 = vst [vmem:[%s3 + $0x158] sm:$0xff] %v1475
  %1540 = vst [vmem:[%s3 + $0x160] sm:$0xff] %v1476
  %1541 = vst [vmem:[%s3 + $0x168] sm:$0xff] %v1477
  %1542 = vst [vmem:[%s3 + $0x170] sm:$0xff] %v1478
  %1543 = vst [vmem:[%s3 + $0x178] sm:$0xff] %v1479
  %1544 = vst [vmem:[%s3 + $0x180] sm:$0xff] %v1480
  %1545 = vst [vmem:[%s3 + $0x188] sm:$0xff] %v1481
  %1546 = vst [vmem:[%s3 + $0x190] sm:$0xff] %v1482
  %1547 = vst [vmem:[%s3 + $0x198] sm:$0xff] %v1483
  %1548 = vst [vmem:[%s3 + $0x1a0] sm:$0xff] %v1484
  %1549 = vst [vmem:[%s3 + $0x1a8] sm:$0xff] %v1485
  %1550 = vst [vmem:[%s3 + $0x1b0] sm:$0xff] %v1486
  %1551 = vst [vmem:[%s3 + $0x1b8] sm:$0xff] %v1487
  %1552 = vst [vmem:[%s3 + $0x1c0] sm:$0xff] %v1488
  %1553 = vst [vmem:[%s3 + $0x1c8] sm:$0xff] %v1489
  %1554 = vst [vmem:[%s3 + $0x1d0] sm:$0xff] %v1490
  %1555 = vst [vmem:[%s3 + $0x1d8] sm:$0xff] %v1491
  %1556 = vst [vmem:[%s3 + $0x1e0] sm:$0xff] %v1492
  %1557 = vst [vmem:[%s3 + $0x1e8] sm:$0xff] %v1493
  %1558 = vst [vmem:[%s3 + $0x1f0] sm:$0xff] %v1494
  %1559 = vst [vmem:[%s3 + $0x1f8] sm:$0xff] %v1495
  // Predicated region
  $region14: #{vae_forward.13} parent=0 // pred_check
    _
  $region15: #{vae_forward.13} parent=0 // pred_check_branch
    %1561 = sbr.rel (0) target = $region17
  $region16: #{vae_forward.13} parent=0 // pred_region
    _
  $region17: #{vae_forward.13} parent=0 // pred_fallthru
    _
  // Predicated region
  $region18: #{vae_forward.13} parent=0 // pred_check
    _
  $region19: #{vae_forward.13} parent=0 // pred_check_branch
    %1563 = sbr.rel (0) target = $region21
  $region20: #{vae_forward.13} parent=0 // pred_region
    _
  $region21: #{vae_forward.13} parent=0 // pred_fallthru
    _

</llo_original>
